<compile_context>
chip_gen: v7x
topology: tpu7x:2x2x1
jax: 0.10.0
libtpu: 0.0.40
codegen_flags: <defaults>
</compile_context>

<pallas_src>
import functools
import numpy as np
import jax
import jax.numpy as jnp
from jax.experimental import pallas as pl
from jax.experimental.pallas import tpu as pltpu

# ----------------------- model configuration (small shapes) -----------------------
BATCH, C_IN, T_IN, H_IN, W_IN = 2, 3, 4, 32, 64
C1, C2, C3 = 8, 16, 24
HIDDEN = 32
VOCAB = 28           # 27 letters + CTC blank
VPAD = 128           # FC output padded to a full lane width; sliced back to VOCAB
VMEM_LIMIT = 32 * 1024 * 1024   # within scoped-VMEM defaults on v5e/v6e/v7x


def _full_spec(shape):
    nd = len(shape)
    return pl.BlockSpec(shape, lambda i, _nd=nd: (0,) * _nd)


def _round_up(x, m):
    return ((x + m - 1) // m) * m


# ====================== fused conv + bias + ReLU + maxpool kernel ======================

def _conv_pool_kernel(cols_ref, w_ref, b_ref, o_ref):
    """cols_ref: (4, Kp, TM) bf16 (4 = 2x2 pool quadrants), w_ref: (Cout, Kp) bf16,
    b_ref: (Cout, 1) f32, o_ref: (Cout, TM) bf16 (lane-dense pooled output).
    relu(max_q(conv_q) + b) == maxpool(relu(conv + b)) since bias-add and ReLU are
    monotone per-channel."""
    w = w_ref[...]
    y = jnp.dot(w, cols_ref[0], preferred_element_type=jnp.float32)
    for q in range(1, 4):
        y = jnp.maximum(y, jnp.dot(w, cols_ref[q],
                                   preferred_element_type=jnp.float32))
    o_ref[...] = jnp.maximum(y + b_ref[...], 0.0).astype(o_ref.dtype)


def _im2col_pool_quadrants(x, ksize, stride, pad):
    """x: (C, B, T, H, W) bf16.  Returns cols of shape (4, K, Mq):
       axis 0 = 2x2 max-pool quadrant (qh, qw),
       axis 1 = K = C*kt*kh*kw, ordered (C slowest, then kt, kh, kw) to match
                torch weight.reshape(Cout, -1),
       axis 2 = Mq = B*To*(Ho//2)*(Wo//2) pooled output positions (lane axis)."""
    kt, kh, kw = ksize
    st, sh, sw = stride
    pt, ph, pw = pad
    xp = jnp.pad(x, ((0, 0), (0, 0), (pt, pt), (ph, ph), (pw, pw)))
    C, B, Tp, Hp, Wp = xp.shape
    To = (Tp - kt) // st + 1
    Ho = (Hp - kh) // sh + 1
    Wo = (Wp - kw) // sw + 1
    assert Ho % 2 == 0 and Wo % 2 == 0, "fused pool expects even spatial dims"
    Ho2, Wo2 = Ho // 2, Wo // 2
    Mq = B * To * Ho2 * Wo2
    quads = []
    for qh in range(2):
        for qw in range(2):
            taps = []
            for dt in range(kt):
                for dh in range(kh):
                    for dw in range(kw):
                        h0 = qh * sh + dh
                        w0 = qw * sw + dw
                        slab = xp[:, :,
                                  dt:dt + (To - 1) * st + 1:st,
                                  h0:h0 + (Ho2 - 1) * 2 * sh + 1:2 * sh,
                                  w0:w0 + (Wo2 - 1) * 2 * sw + 1:2 * sw]
                        taps.append(slab.reshape(C, 1, Mq))
            quads.append(jnp.concatenate(taps, axis=1).reshape(C * kt * kh * kw, Mq))
    return jnp.stack(quads, axis=0), (B, To, Ho2, Wo2)


def _pick_m_tile(mp):
    """Largest lane-dense tile <= 512.  512 keeps a mem-bound stage near the HBM
    roofline on single-core v5e/v6e, and gives conv1 exactly 2 grid steps (one
    per TensorCore) on v7x; no artificial grid>=2 forcing."""
    if mp <= 512:
        return mp
    for cand in (512, 256, 128):
        if mp % cand == 0:
            return cand
    return mp


def conv_pool_stage(x, p, stride, pad):
    """Fused Conv3d + bias + ReLU + MaxPool3d(1,2,2).
    x: (C, B, T, H, W) bf16 -> (Cout, B, To, Ho//2, Wo//2) bf16."""
    w, b = p["w"], p["b"]                       # w: (Cout, Cin, kt, kh, kw) f32
    cout = w.shape[0]
    ksize = w.shape[2:]
    cols, (B, To, Ho2, Wo2) = _im2col_pool_quadrants(
        x.astype(jnp.bfloat16), ksize, stride, pad)
    K, Mq = cols.shape[1], cols.shape[2]
    Kp = _round_up(K, 128)                      # pad contraction depth to 128-multiple
    Mp = _round_up(Mq, 128)                     # lane-dense output (no masked stores)
    cols = jnp.pad(cols, ((0, 0), (0, Kp - K), (0, Mp - Mq)))
    wm = jnp.pad(w.reshape(cout, -1), ((0, 0), (0, Kp - K))).astype(jnp.bfloat16)

    tile = _pick_m_tile(Mp)
    assert Mp % tile == 0
    grid = (Mp // tile,)

    out = pl.pallas_call(
        _conv_pool_kernel,
        grid=grid,
        in_specs=[pl.BlockSpec((4, Kp, tile), lambda i: (0, 0, i)),
                  pl.BlockSpec((cout, Kp), lambda i: (0, 0)),
                  pl.BlockSpec((cout, 1), lambda i: (0, 0))],
        out_specs=pl.BlockSpec((cout, tile), lambda i: (0, i)),
        out_shape=jax.ShapeDtypeStruct((cout, Mp), jnp.bfloat16),
        compiler_params=pltpu.CompilerParams(
            dimension_semantics=("parallel",),
            vmem_limit_bytes=VMEM_LIMIT),
    )(cols, wm, b.reshape(cout, 1))
    return out[:, :Mq].reshape(cout, B, To, Ho2, Wo2)


# ====================== fused biGRU x2 + FC kernel ======================

def _gru_stack_kernel(x_ref,
                      wih1_ref, bih1_ref, whh1_ref, bhh1_ref,
                      wih2_ref, bih2_ref, whh2_ref, bhh2_ref,
                      wfc_ref, bfc_ref, o_ref,
                      f1_ref, b1_ref, f2_ref, b2_ref, *, T, B, hidden):
    H = hidden

    def dir_gates(gi, gh, h):
        # PyTorch nn.GRU gate order: [reset, update, new]; r and z share one sigmoid.
        rz = jax.nn.sigmoid(gi[:, :2 * H] + gh[:, :2 * H])
        r, z = rz[:, :H], rz[:, H:]
        n = jnp.tanh(gi[:, 2 * H:] + r * gh[:, 2 * H:])
        return (1.0 - z) * n + z * h

    def bigru_layer(xseq, wih_ref, bih_ref, whh_ref, bhh_ref, of_ref, ob_ref):
        din = xseq.shape[-1]
        # fwd+bwd input projections as a single bf16 GEMM (lane width 6H = 192)
        gi = jnp.dot(xseq.reshape(T * B, din).astype(jnp.bfloat16), wih_ref[...],
                     preferred_element_type=jnp.float32) + bih_ref[...]
        gi = gi.reshape(T, B, 6 * H)
        whh = whh_ref[...]                      # (2H, 6H) block-diag [fwd | bwd]
        bhh = bhh_ref[...]                      # (1, 6H)
        h_cat = jnp.zeros((B, 2 * H), jnp.float32)
        for s in range(T):                      # statically unrolled time loop
            tb = T - 1 - s
            # one fused hidden matmul for both directions per step
            gh = jnp.dot(h_cat, whh, preferred_element_type=jnp.float32) + bhh
            h_f = dir_gates(gi[s, :, :3 * H], gh[:, :3 * H], h_cat[:, :H])
            h_b = dir_gates(gi[tb, :, 3 * H:], gh[:, 3 * H:], h_cat[:, H:])
            h_cat = jnp.concatenate([h_f, h_b], axis=-1)
            of_ref[s] = h_f                     # VMEM scratch stores (no stack/concat
            ob_ref[tb] = h_b                    #  of T tiny arrays)
        return jnp.concatenate([of_ref[...], ob_ref[...]], axis=-1)   # (T, B, 2H)

    h1 = bigru_layer(x_ref[...], wih1_ref, bih1_ref, whh1_ref, bhh1_ref,
                     f1_ref, b1_ref)
    h2 = bigru_layer(h1, wih2_ref, bih2_ref, whh2_ref, bhh2_ref, f2_ref, b2_ref)
    logits = jnp.dot(h2.reshape(T * B, 2 * H).astype(jnp.bfloat16), wfc_ref[...],
                     preferred_element_type=jnp.float32) + bfc_ref[...]
    o_ref[...] = logits


def gru_stack(x, g1, g2, fc, hidden):
    """x: (T, B, F) bf16.  Returns FC logits (T*B, VPAD) f32 (lane-padded)."""
    T, B, _ = x.shape
    args = (x,
            g1["w_ih"], g1["b_ih"], g1["w_hh"], g1["b_hh"],
            g2["w_ih"], g2["b_ih"], g2["w_hh"], g2["b_hh"],
            fc["w_pad"], fc["b_pad"])
    return pl.pallas_call(
        functools.partial(_gru_stack_kernel, T=T, B=B, hidden=hidden),
        grid=(1,),
        in_specs=[_full_spec(a.shape) for a in args],
        out_specs=_full_spec((T * B, VPAD)),
        out_shape=jax.ShapeDtypeStruct((T * B, VPAD), jnp.float32),
        scratch_shapes=[pltpu.VMEM((T, B, hidden), jnp.float32)] * 4,
        compiler_params=pltpu.CompilerParams(
            dimension_semantics=("arbitrary",),
            vmem_limit_bytes=VMEM_LIMIT),
    )(*args)


# ================================ forward pass ================================

def _combine_bigru(p, hidden):
    """Concatenate fwd/bwd input projections into one (Din, 6H) bf16 GEMM weight and
    build the block-diagonal (2H, 6H) hidden weight used by the fused recurrence."""
    H = hidden
    z = jnp.zeros((H, 3 * H), jnp.float32)
    w_hh = jnp.concatenate(
        [jnp.concatenate([p["fwd"]["w_hh_t"], z], axis=1),
         jnp.concatenate([z, p["bwd"]["w_hh_t"]], axis=1)], axis=0)     # (2H, 6H)
    return dict(
        w_ih=jnp.concatenate([p["fwd"]["w_ih_t"], p["bwd"]["w_ih_t"]],
                             axis=1).astype(jnp.bfloat16),
        b_ih=jnp.concatenate([p["fwd"]["b_ih"], p["bwd"]["b_ih"]]).reshape(1, -1),
        w_hh=w_hh,
        b_hh=jnp.concatenate([p["fwd"]["b_hh"], p["bwd"]["b_hh"]]).reshape(1, -1),
    )


def lipnet_forward(video, params):
    # layout: video (B, C, T, H, W) NCDHW -> channel-major (C, B, T, H, W), bf16
    x = video.transpose(1, 0, 2, 3, 4).astype(jnp.bfloat16)
    x = conv_pool_stage(x, params["conv1"], stride=(1, 2, 2), pad=(1, 2, 2))
    x = conv_pool_stage(x, params["conv2"], stride=(1, 1, 1), pad=(1, 2, 2))
    x = conv_pool_stage(x, params["conv3"], stride=(1, 1, 1), pad=(1, 1, 1))
    # (C, B, T, H, W) -> (T, B, C*H*W)   (feature order c, h, w matches torch)
    C, B, T, H, W = x.shape
    feats = x.transpose(2, 1, 0, 3, 4).reshape(T, B, C * H * W)

    g1 = _combine_bigru(params["gru1"], HIDDEN)
    g2 = _combine_bigru(params["gru2"], HIDDEN)
    fc = dict(
        w_pad=jnp.pad(params["fc"]["w_t"],
                      ((0, 0), (0, VPAD - VOCAB))).astype(jnp.bfloat16),
        b_pad=jnp.pad(params["fc"]["b"], (0, VPAD - VOCAB)).reshape(1, VPAD))

    logits = gru_stack(feats, g1, g2, fc, HIDDEN)          # (T*B, VPAD)
    logits = logits.reshape(T, B, VPAD)[:, :, :VOCAB]
    return logits.transpose(1, 0, 2)                       # (B, T, VOCAB)


# ================================ parameter init ================================

def _uniform(key, shape, fan_in):
    bound = 1.0 / float(np.sqrt(fan_in))
    return jax.random.uniform(key, shape, jnp.float32, -bound, bound)


def _init_gru_dir(key, din, hidden):
    ks = jax.random.split(key, 4)
    return dict(
        w_ih_t=_uniform(ks[0], (din, 3 * hidden), hidden),
        b_ih=_uniform(ks[1], (3 * hidden,), hidden),
        w_hh_t=_uniform(ks[2], (hidden, 3 * hidden), hidden),
        b_hh=_uniform(ks[3], (3 * hidden,), hidden),
    )


def init_params(key):
    ks = jax.random.split(key, 9)

    def conv(k, cout, cin, ksz):
        kw, kb = jax.random.split(k)
        fan = cin * ksz[0] * ksz[1] * ksz[2]
        return dict(w=_uniform(kw, (cout, cin) + ksz, fan),
                    b=_uniform(kb, (cout,), fan))

    feat = C3 * (H_IN // 16) * (W_IN // 16)   # channels * final H * final W
    return dict(
        conv1=conv(ks[0], C1, C_IN, (3, 5, 5)),
        conv2=conv(ks[1], C2, C1, (3, 5, 5)),
        conv3=conv(ks[2], C3, C2, (3, 3, 3)),
        gru1=dict(fwd=_init_gru_dir(ks[3], feat, HIDDEN),
                  bwd=_init_gru_dir(ks[4], feat, HIDDEN)),
        gru2=dict(fwd=_init_gru_dir(ks[5], 2 * HIDDEN, HIDDEN),
                  bwd=_init_gru_dir(ks[6], 2 * HIDDEN, HIDDEN)),
        fc=dict(w_t=_uniform(ks[7], (2 * HIDDEN, VOCAB), 2 * HIDDEN),
                b=_uniform(ks[8], (VOCAB,), 2 * HIDDEN)),
    )


# ==================================== main ====================================

if __name__ == "__main__":
    key = jax.random.PRNGKey(0)
    k_vid, k_par = jax.random.split(key)
    # Stand-in for the preprocessed / normalized video tensor that reaches the model.
    video = jax.random.uniform(k_vid, (BATCH, C_IN, T_IN, H_IN, W_IN), jnp.float32)
    params = init_params(k_par)

    logits = jax.jit(lipnet_forward)(video, params)
    logits = jax.block_until_ready(logits)
    assert logits.shape == (BATCH, T_IN, VOCAB), logits.shape
    assert bool(jnp.all(jnp.isfinite(logits)))
    print("KERNEL_OK")
</pallas_src>

<mosaic_0001>
module attributes {stable_mosaic.version = 11 : i64} {
  func.func @_conv_pool_kernel(%arg0: i32, %arg1: memref<4x256x512xbf16, #tpu.memory_space<vmem>>, %arg2: memref<8x256xbf16, #tpu.memory_space<vmem>>, %arg3: memref<8x1xf32, #tpu.memory_space<vmem>>, %arg4: memref<8x512xbf16, #tpu.memory_space<vmem>>) attributes {dimension_semantics = [#tpu.dimension_semantics<parallel>], iteration_bounds = array<i64: 2>, scalar_prefetch = 0 : i64, scratch_operands = 0 : i64, tpu.core_type = #tpu.core_type<tc>, window_params = [{transform_indices = @transform_0, window_bounds = array<i64: 4, 256, 512>}, {pipeline_mode = #tpu.pipeline_mode<synchronous>, transform_indices = @transform_1, window_bounds = array<i64: 8, 256>}, {pipeline_mode = #tpu.pipeline_mode<synchronous>, transform_indices = @transform_2, window_bounds = array<i64: 8, 1>}, {transform_indices = @transform_3, window_bounds = array<i64: 8, 512>}]} {
    %c0 = arith.constant 0 : index
    %c0_0 = arith.constant 0 : index
    %0 = vector.load %arg2[%c0, %c0_0] : memref<8x256xbf16, #tpu.memory_space<vmem>>, vector<8x256xbf16>
    %c0_1 = arith.constant 0 : index
    %c0_2 = arith.constant 0 : index
    %c0_3 = arith.constant 0 : index
    %1 = vector.load %arg1[%c0_1, %c0_2, %c0_3] : memref<4x256x512xbf16, #tpu.memory_space<vmem>>, vector<1x256x512xbf16>
    %2 = vector.shape_cast %1 : vector<1x256x512xbf16> to vector<256x512xbf16>
    %cst = arith.constant dense<0.000000e+00> : vector<8x512xf32>
    %3 = tpu.matmul %0, %2, %cst {dimension_numbers = #tpu.dot_dimension_numbers<[1], [0], [0], [1], [0, 0, 1, 1], [], []>} : vector<8x256xbf16>, vector<256x512xbf16>, vector<8x512xf32> -> vector<8x512xf32>
    %c1 = arith.constant 1 : index
    %c0_4 = arith.constant 0 : index
    %c0_5 = arith.constant 0 : index
    %4 = vector.load %arg1[%c1, %c0_4, %c0_5] : memref<4x256x512xbf16, #tpu.memory_space<vmem>>, vector<1x256x512xbf16>
    %5 = vector.shape_cast %4 : vector<1x256x512xbf16> to vector<256x512xbf16>
    %cst_6 = arith.constant dense<0.000000e+00> : vector<8x512xf32>
    %6 = tpu.matmul %0, %5, %cst_6 {dimension_numbers = #tpu.dot_dimension_numbers<[1], [0], [0], [1], [0, 0, 1, 1], [], []>} : vector<8x256xbf16>, vector<256x512xbf16>, vector<8x512xf32> -> vector<8x512xf32>
    %7 = arith.maximumf %3, %6 : vector<8x512xf32>
    %c2 = arith.constant 2 : index
    %c0_7 = arith.constant 0 : index
    %c0_8 = arith.constant 0 : index
    %8 = vector.load %arg1[%c2, %c0_7, %c0_8] : memref<4x256x512xbf16, #tpu.memory_space<vmem>>, vector<1x256x512xbf16>
    %9 = vector.shape_cast %8 : vector<1x256x512xbf16> to vector<256x512xbf16>
    %cst_9 = arith.constant dense<0.000000e+00> : vector<8x512xf32>
    %10 = tpu.matmul %0, %9, %cst_9 {dimension_numbers = #tpu.dot_dimension_numbers<[1], [0], [0], [1], [0, 0, 1, 1], [], []>} : vector<8x256xbf16>, vector<256x512xbf16>, vector<8x512xf32> -> vector<8x512xf32>
    %11 = arith.maximumf %7, %10 : vector<8x512xf32>
    %c3 = arith.constant 3 : index
    %c0_10 = arith.constant 0 : index
    %c0_11 = arith.constant 0 : index
    %12 = vector.load %arg1[%c3, %c0_10, %c0_11] : memref<4x256x512xbf16, #tpu.memory_space<vmem>>, vector<1x256x512xbf16>
    %13 = vector.shape_cast %12 : vector<1x256x512xbf16> to vector<256x512xbf16>
    %cst_12 = arith.constant dense<0.000000e+00> : vector<8x512xf32>
    %14 = tpu.matmul %0, %13, %cst_12 {dimension_numbers = #tpu.dot_dimension_numbers<[1], [0], [0], [1], [0, 0, 1, 1], [], []>} : vector<8x256xbf16>, vector<256x512xbf16>, vector<8x512xf32> -> vector<8x512xf32>
    %15 = arith.maximumf %11, %14 : vector<8x512xf32>
    %c0_13 = arith.constant 0 : index
    %c0_14 = arith.constant 0 : index
    %16 = vector.load %arg3[%c0_13, %c0_14] : memref<8x1xf32, #tpu.memory_space<vmem>>, vector<8x1xf32>
    %17 = vector.broadcast %16 : vector<8x1xf32> to vector<8x512xf32>
    %18 = arith.addf %15, %17 : vector<8x512xf32>
    %cst_15 = arith.constant 0.000000e+00 : f32
    %19 = vector.broadcast %cst_15 : f32 to vector<8x512xf32>
    %20 = arith.maximumf %18, %19 : vector<8x512xf32>
    %21 = arith.truncf %20 : vector<8x512xf32> to vector<8x512xbf16>
    %c0_16 = arith.constant 0 : index
    %c0_17 = arith.constant 0 : index
    %22 = vector.load %arg4[%c0_16, %c0_17] : memref<8x512xbf16, #tpu.memory_space<vmem>>, vector<8x512xbf16>
    tpu.vector_store %arg4[%c0_16, %c0_17], %21 {strides = array<i32>} : memref<8x512xbf16, #tpu.memory_space<vmem>>, vector<8x512xbf16>,
    return
  }
  func.func @transform_0(%arg0: i32) -> (i32, i32, i32) {
    %c0_i32 = arith.constant 0 : i32
    %c0_i32_0 = arith.constant 0 : i32
    %c0_i32_1 = arith.constant 0 : i32
    return %c0_i32, %c0_i32_0, %arg0 : i32, i32, i32
  }
  func.func @transform_1(%arg0: i32) -> (i32, i32) {
    %c0_i32 = arith.constant 0 : i32
    %c0_i32_0 = arith.constant 0 : i32
    %c0_i32_1 = arith.constant 0 : i32
    return %c0_i32, %c0_i32_0 : i32, i32
  }
  func.func @transform_2(%arg0: i32) -> (i32, i32) {
    %c0_i32 = arith.constant 0 : i32
    %c0_i32_0 = arith.constant 0 : i32
    %c0_i32_1 = arith.constant 0 : i32
    return %c0_i32, %c0_i32_0 : i32, i32
  }
  func.func @transform_3(%arg0: i32) -> (i32, i32) {
    %c0_i32 = arith.constant 0 : i32
    %c0_i32_0 = arith.constant 0 : i32
    return %c0_i32, %arg0 : i32, i32
  }
}

module attributes {stable_mosaic.version = 11 : i64} {
  func.func @_conv_pool_kernel(%arg0: i32, %arg1: memref<4x640x256xbf16, #tpu.memory_space<vmem>>, %arg2: memref<16x640xbf16, #tpu.memory_space<vmem>>, %arg3: memref<16x1xf32, #tpu.memory_space<vmem>>, %arg4: memref<16x256xbf16, #tpu.memory_space<vmem>>) attributes {dimension_semantics = [#tpu.dimension_semantics<parallel>], iteration_bounds = array<i64: 1>, scalar_prefetch = 0 : i64, scratch_operands = 0 : i64, tpu.core_type = #tpu.core_type<tc>, window_params = [{transform_indices = @transform_0, window_bounds = array<i64: 4, 640, 256>}, {pipeline_mode = #tpu.pipeline_mode<synchronous>, transform_indices = @transform_1, window_bounds = array<i64: 16, 640>}, {pipeline_mode = #tpu.pipeline_mode<synchronous>, transform_indices = @transform_2, window_bounds = array<i64: 16, 1>}, {transform_indices = @transform_3, window_bounds = array<i64: 16, 256>}]} {
    %c0 = arith.constant 0 : index
    %c0_0 = arith.constant 0 : index
    %0 = vector.load %arg2[%c0, %c0_0] : memref<16x640xbf16, #tpu.memory_space<vmem>>, vector<16x640xbf16>
    %c0_1 = arith.constant 0 : index
    %c0_2 = arith.constant 0 : index
    %c0_3 = arith.constant 0 : index
    %1 = vector.load %arg1[%c0_1, %c0_2, %c0_3] : memref<4x640x256xbf16, #tpu.memory_space<vmem>>, vector<1x640x256xbf16>
    %2 = vector.shape_cast %1 : vector<1x640x256xbf16> to vector<640x256xbf16>
    %cst = arith.constant dense<0.000000e+00> : vector<16x256xf32>
    %3 = tpu.matmul %0, %2, %cst {dimension_numbers = #tpu.dot_dimension_numbers<[1], [0], [0], [1], [0, 0, 1, 1], [], []>} : vector<16x640xbf16>, vector<640x256xbf16>, vector<16x256xf32> -> vector<16x256xf32>
    %c1 = arith.constant 1 : index
    %c0_4 = arith.constant 0 : index
    %c0_5 = arith.constant 0 : index
    %4 = vector.load %arg1[%c1, %c0_4, %c0_5] : memref<4x640x256xbf16, #tpu.memory_space<vmem>>, vector<1x640x256xbf16>
    %5 = vector.shape_cast %4 : vector<1x640x256xbf16> to vector<640x256xbf16>
    %cst_6 = arith.constant dense<0.000000e+00> : vector<16x256xf32>
    %6 = tpu.matmul %0, %5, %cst_6 {dimension_numbers = #tpu.dot_dimension_numbers<[1], [0], [0], [1], [0, 0, 1, 1], [], []>} : vector<16x640xbf16>, vector<640x256xbf16>, vector<16x256xf32> -> vector<16x256xf32>
    %7 = arith.maximumf %3, %6 : vector<16x256xf32>
    %c2 = arith.constant 2 : index
    %c0_7 = arith.constant 0 : index
    %c0_8 = arith.constant 0 : index
    %8 = vector.load %arg1[%c2, %c0_7, %c0_8] : memref<4x640x256xbf16, #tpu.memory_space<vmem>>, vector<1x640x256xbf16>
    %9 = vector.shape_cast %8 : vector<1x640x256xbf16> to vector<640x256xbf16>
    %cst_9 = arith.constant dense<0.000000e+00> : vector<16x256xf32>
    %10 = tpu.matmul %0, %9, %cst_9 {dimension_numbers = #tpu.dot_dimension_numbers<[1], [0], [0], [1], [0, 0, 1, 1], [], []>} : vector<16x640xbf16>, vector<640x256xbf16>, vector<16x256xf32> -> vector<16x256xf32>
    %11 = arith.maximumf %7, %10 : vector<16x256xf32>
    %c3 = arith.constant 3 : index
    %c0_10 = arith.constant 0 : index
    %c0_11 = arith.constant 0 : index
    %12 = vector.load %arg1[%c3, %c0_10, %c0_11] : memref<4x640x256xbf16, #tpu.memory_space<vmem>>, vector<1x640x256xbf16>
    %13 = vector.shape_cast %12 : vector<1x640x256xbf16> to vector<640x256xbf16>
    %cst_12 = arith.constant dense<0.000000e+00> : vector<16x256xf32>
    %14 = tpu.matmul %0, %13, %cst_12 {dimension_numbers = #tpu.dot_dimension_numbers<[1], [0], [0], [1], [0, 0, 1, 1], [], []>} : vector<16x640xbf16>, vector<640x256xbf16>, vector<16x256xf32> -> vector<16x256xf32>
    %15 = arith.maximumf %11, %14 : vector<16x256xf32>
    %c0_13 = arith.constant 0 : index
    %c0_14 = arith.constant 0 : index
    %16 = vector.load %arg3[%c0_13, %c0_14] : memref<16x1xf32, #tpu.memory_space<vmem>>, vector<16x1xf32>
    %17 = vector.broadcast %16 : vector<16x1xf32> to vector<16x256xf32>
    %18 = arith.addf %15, %17 : vector<16x256xf32>
    %cst_15 = arith.constant 0.000000e+00 : f32
    %19 = vector.broadcast %cst_15 : f32 to vector<16x256xf32>
    %20 = arith.maximumf %18, %19 : vector<16x256xf32>
    %21 = arith.truncf %20 : vector<16x256xf32> to vector<16x256xbf16>
    %c0_16 = arith.constant 0 : index
    %c0_17 = arith.constant 0 : index
    %22 = vector.load %arg4[%c0_16, %c0_17] : memref<16x256xbf16, #tpu.memory_space<vmem>>, vector<16x256xbf16>
    tpu.vector_store %arg4[%c0_16, %c0_17], %21 {strides = array<i32>} : memref<16x256xbf16, #tpu.memory_space<vmem>>, vector<16x256xbf16>,
    return
  }
  func.func @transform_0(%arg0: i32) -> (i32, i32, i32) {
    %c0_i32 = arith.constant 0 : i32
    %c0_i32_0 = arith.constant 0 : i32
    %c0_i32_1 = arith.constant 0 : i32
    return %c0_i32, %c0_i32_0, %arg0 : i32, i32, i32
  }
  func.func @transform_1(%arg0: i32) -> (i32, i32) {
    %c0_i32 = arith.constant 0 : i32
    %c0_i32_0 = arith.constant 0 : i32
    %c0_i32_1 = arith.constant 0 : i32
    return %c0_i32, %c0_i32_0 : i32, i32
  }
  func.func @transform_2(%arg0: i32) -> (i32, i32) {
    %c0_i32 = arith.constant 0 : i32
    %c0_i32_0 = arith.constant 0 : i32
    %c0_i32_1 = arith.constant 0 : i32
    return %c0_i32, %c0_i32_0 : i32, i32
  }
  func.func @transform_3(%arg0: i32) -> (i32, i32) {
    %c0_i32 = arith.constant 0 : i32
    %c0_i32_0 = arith.constant 0 : i32
    return %c0_i32, %arg0 : i32, i32
  }
}

module attributes {stable_mosaic.version = 11 : i64} {
  func.func @_conv_pool_kernel(%arg0: i32, %arg1: memref<4x512x128xbf16, #tpu.memory_space<vmem>>, %arg2: memref<24x512xbf16, #tpu.memory_space<vmem>>, %arg3: memref<24x1xf32, #tpu.memory_space<vmem>>, %arg4: memref<24x128xbf16, #tpu.memory_space<vmem>>) attributes {dimension_semantics = [#tpu.dimension_semantics<parallel>], iteration_bounds = array<i64: 1>, scalar_prefetch = 0 : i64, scratch_operands = 0 : i64, tpu.core_type = #tpu.core_type<tc>, window_params = [{transform_indices = @transform_0, window_bounds = array<i64: 4, 512, 128>}, {pipeline_mode = #tpu.pipeline_mode<synchronous>, transform_indices = @transform_1, window_bounds = array<i64: 24, 512>}, {pipeline_mode = #tpu.pipeline_mode<synchronous>, transform_indices = @transform_2, window_bounds = array<i64: 24, 1>}, {transform_indices = @transform_3, window_bounds = array<i64: 24, 128>}]} {
    %c0 = arith.constant 0 : index
    %c0_0 = arith.constant 0 : index
    %0 = vector.load %arg2[%c0, %c0_0] : memref<24x512xbf16, #tpu.memory_space<vmem>>, vector<24x512xbf16>
    %c0_1 = arith.constant 0 : index
    %c0_2 = arith.constant 0 : index
    %c0_3 = arith.constant 0 : index
    %1 = vector.load %arg1[%c0_1, %c0_2, %c0_3] : memref<4x512x128xbf16, #tpu.memory_space<vmem>>, vector<1x512x128xbf16>
    %2 = vector.shape_cast %1 : vector<1x512x128xbf16> to vector<512x128xbf16>
    %cst = arith.constant dense<0.000000e+00> : vector<24x128xf32>
    %3 = tpu.matmul %0, %2, %cst {dimension_numbers = #tpu.dot_dimension_numbers<[1], [0], [0], [1], [0, 0, 1, 1], [], []>} : vector<24x512xbf16>, vector<512x128xbf16>, vector<24x128xf32> -> vector<24x128xf32>
    %c1 = arith.constant 1 : index
    %c0_4 = arith.constant 0 : index
    %c0_5 = arith.constant 0 : index
    %4 = vector.load %arg1[%c1, %c0_4, %c0_5] : memref<4x512x128xbf16, #tpu.memory_space<vmem>>, vector<1x512x128xbf16>
    %5 = vector.shape_cast %4 : vector<1x512x128xbf16> to vector<512x128xbf16>
    %cst_6 = arith.constant dense<0.000000e+00> : vector<24x128xf32>
    %6 = tpu.matmul %0, %5, %cst_6 {dimension_numbers = #tpu.dot_dimension_numbers<[1], [0], [0], [1], [0, 0, 1, 1], [], []>} : vector<24x512xbf16>, vector<512x128xbf16>, vector<24x128xf32> -> vector<24x128xf32>
    %7 = arith.maximumf %3, %6 : vector<24x128xf32>
    %c2 = arith.constant 2 : index
    %c0_7 = arith.constant 0 : index
    %c0_8 = arith.constant 0 : index
    %8 = vector.load %arg1[%c2, %c0_7, %c0_8] : memref<4x512x128xbf16, #tpu.memory_space<vmem>>, vector<1x512x128xbf16>
    %9 = vector.shape_cast %8 : vector<1x512x128xbf16> to vector<512x128xbf16>
    %cst_9 = arith.constant dense<0.000000e+00> : vector<24x128xf32>
    %10 = tpu.matmul %0, %9, %cst_9 {dimension_numbers = #tpu.dot_dimension_numbers<[1], [0], [0], [1], [0, 0, 1, 1], [], []>} : vector<24x512xbf16>, vector<512x128xbf16>, vector<24x128xf32> -> vector<24x128xf32>
    %11 = arith.maximumf %7, %10 : vector<24x128xf32>
    %c3 = arith.constant 3 : index
    %c0_10 = arith.constant 0 : index
    %c0_11 = arith.constant 0 : index
    %12 = vector.load %arg1[%c3, %c0_10, %c0_11] : memref<4x512x128xbf16, #tpu.memory_space<vmem>>, vector<1x512x128xbf16>
    %13 = vector.shape_cast %12 : vector<1x512x128xbf16> to vector<512x128xbf16>
    %cst_12 = arith.constant dense<0.000000e+00> : vector<24x128xf32>
    %14 = tpu.matmul %0, %13, %cst_12 {dimension_numbers = #tpu.dot_dimension_numbers<[1], [0], [0], [1], [0, 0, 1, 1], [], []>} : vector<24x512xbf16>, vector<512x128xbf16>, vector<24x128xf32> -> vector<24x128xf32>
    %15 = arith.maximumf %11, %14 : vector<24x128xf32>
    %c0_13 = arith.constant 0 : index
    %c0_14 = arith.constant 0 : index
    %16 = vector.load %arg3[%c0_13, %c0_14] : memref<24x1xf32, #tpu.memory_space<vmem>>, vector<24x1xf32>
    %17 = vector.broadcast %16 : vector<24x1xf32> to vector<24x128xf32>
    %18 = arith.addf %15, %17 : vector<24x128xf32>
    %cst_15 = arith.constant 0.000000e+00 : f32
    %19 = vector.broadcast %cst_15 : f32 to vector<24x128xf32>
    %20 = arith.maximumf %18, %19 : vector<24x128xf32>
    %21 = arith.truncf %20 : vector<24x128xf32> to vector<24x128xbf16>
    %c0_16 = arith.constant 0 : index
    %c0_17 = arith.constant 0 : index
    %22 = vector.load %arg4[%c0_16, %c0_17] : memref<24x128xbf16, #tpu.memory_space<vmem>>, vector<24x128xbf16>
    tpu.vector_store %arg4[%c0_16, %c0_17], %21 {strides = array<i32>} : memref<24x128xbf16, #tpu.memory_space<vmem>>, vector<24x128xbf16>,
    return
  }
  func.func @transform_0(%arg0: i32) -> (i32, i32, i32) {
    %c0_i32 = arith.constant 0 : i32
    %c0_i32_0 = arith.constant 0 : i32
    %c0_i32_1 = arith.constant 0 : i32
    return %c0_i32, %c0_i32_0, %arg0 : i32, i32, i32
  }
  func.func @transform_1(%arg0: i32) -> (i32, i32) {
    %c0_i32 = arith.constant 0 : i32
    %c0_i32_0 = arith.constant 0 : i32
    %c0_i32_1 = arith.constant 0 : i32
    return %c0_i32, %c0_i32_0 : i32, i32
  }
  func.func @transform_2(%arg0: i32) -> (i32, i32) {
    %c0_i32 = arith.constant 0 : i32
    %c0_i32_0 = arith.constant 0 : i32
    %c0_i32_1 = arith.constant 0 : i32
    return %c0_i32, %c0_i32_0 : i32, i32
  }
  func.func @transform_3(%arg0: i32) -> (i32, i32) {
    %c0_i32 = arith.constant 0 : i32
    %c0_i32_0 = arith.constant 0 : i32
    return %c0_i32, %arg0 : i32, i32
  }
}

module attributes {stable_mosaic.version = 11 : i64} {
  func.func @_gru_stack_kernel(%arg0: i32, %arg1: memref<4x2x192xbf16, #tpu.memory_space<vmem>>, %arg2: memref<192x192xbf16, #tpu.memory_space<vmem>>, %arg3: memref<1x192xf32, #tpu.memory_space<vmem>>, %arg4: memref<64x192xf32, #tpu.memory_space<vmem>>, %arg5: memref<1x192xf32, #tpu.memory_space<vmem>>, %arg6: memref<64x192xbf16, #tpu.memory_space<vmem>>, %arg7: memref<1x192xf32, #tpu.memory_space<vmem>>, %arg8: memref<64x192xf32, #tpu.memory_space<vmem>>, %arg9: memref<1x192xf32, #tpu.memory_space<vmem>>, %arg10: memref<64x128xbf16, #tpu.memory_space<vmem>>, %arg11: memref<1x128xf32, #tpu.memory_space<vmem>>, %arg12: memref<8x128xf32, #tpu.memory_space<vmem>>, %arg13: memref<4x2x32xf32, #tpu.memory_space<vmem>>, %arg14: memref<4x2x32xf32, #tpu.memory_space<vmem>>, %arg15: memref<4x2x32xf32, #tpu.memory_space<vmem>>, %arg16: memref<4x2x32xf32, #tpu.memory_space<vmem>>) attributes {dimension_semantics = [#tpu.dimension_semantics<arbitrary>], iteration_bounds = array<i64: 1>, scalar_prefetch = 0 : i64, scratch_operands = 4 : i64, tpu.core_type = #tpu.core_type<tc>, window_params = [{pipeline_mode = #tpu.pipeline_mode<synchronous>, transform_indices = @transform_0, window_bounds = array<i64: 4, 2, 192>}, {pipeline_mode = #tpu.pipeline_mode<synchronous>, transform_indices = @transform_1, window_bounds = array<i64: 192, 192>}, {pipeline_mode = #tpu.pipeline_mode<synchronous>, transform_indices = @transform_2, window_bounds = array<i64: 1, 192>}, {pipeline_mode = #tpu.pipeline_mode<synchronous>, transform_indices = @transform_3, window_bounds = array<i64: 64, 192>}, {pipeline_mode = #tpu.pipeline_mode<synchronous>, transform_indices = @transform_4, window_bounds = array<i64: 1, 192>}, {pipeline_mode = #tpu.pipeline_mode<synchronous>, transform_indices = @transform_5, window_bounds = array<i64: 64, 192>}, {pipeline_mode = #tpu.pipeline_mode<synchronous>, transform_indices = @transform_6, window_bounds = array<i64: 1, 192>}, {pipeline_mode = #tpu.pipeline_mode<synchronous>, transform_indices = @transform_7, window_bounds = array<i64: 64, 192>}, {pipeline_mode = #tpu.pipeline_mode<synchronous>, transform_indices = @transform_8, window_bounds = array<i64: 1, 192>}, {pipeline_mode = #tpu.pipeline_mode<synchronous>, transform_indices = @transform_9, window_bounds = array<i64: 64, 128>}, {pipeline_mode = #tpu.pipeline_mode<synchronous>, transform_indices = @transform_10, window_bounds = array<i64: 1, 128>}, {pipeline_mode = #tpu.pipeline_mode<synchronous>, transform_indices = @transform_11, window_bounds = array<i64: 8, 128>}]} {
    %c0 = arith.constant 0 : index
    %c0_0 = arith.constant 0 : index
    %c0_1 = arith.constant 0 : index
    %0 = vector.load %arg1[%c0, %c0_0, %c0_1] : memref<4x2x192xbf16, #tpu.memory_space<vmem>>, vector<4x2x192xbf16>
    %1 = vector.shape_cast %0 : vector<4x2x192xbf16> to vector<8x192xbf16>
    %c0_2 = arith.constant 0 : index
    %c0_3 = arith.constant 0 : index
    %2 = vector.load %arg2[%c0_2, %c0_3] : memref<192x192xbf16, #tpu.memory_space<vmem>>, vector<192x192xbf16>
    %cst = arith.constant dense<0.000000e+00> : vector<8x192xf32>
    %3 = tpu.matmul %1, %2, %cst {dimension_numbers = #tpu.dot_dimension_numbers<[1], [0], [0], [1], [0, 0, 1, 1], [], []>} : vector<8x192xbf16>, vector<192x192xbf16>, vector<8x192xf32> -> vector<8x192xf32>
    %c0_4 = arith.constant 0 : index
    %c0_5 = arith.constant 0 : index
    %4 = vector.load %arg3[%c0_4, %c0_5] : memref<1x192xf32, #tpu.memory_space<vmem>>, vector<1x192xf32>
    %5 = vector.broadcast %4 : vector<1x192xf32> to vector<8x192xf32>
    %6 = arith.addf %3, %5 : vector<8x192xf32>
    %7 = vector.shape_cast %6 : vector<8x192xf32> to vector<4x2x192xf32>
    %c0_6 = arith.constant 0 : index
    %c0_7 = arith.constant 0 : index
    %8 = vector.load %arg4[%c0_6, %c0_7] : memref<64x192xf32, #tpu.memory_space<vmem>>, vector<64x192xf32>
    %c0_8 = arith.constant 0 : index
    %c0_9 = arith.constant 0 : index
    %9 = vector.load %arg5[%c0_8, %c0_9] : memref<1x192xf32, #tpu.memory_space<vmem>>, vector<1x192xf32>
    %cst_10 = arith.constant 0.000000e+00 : f32
    %10 = vector.broadcast %cst_10 : f32 to vector<2x64xf32>
    %cst_11 = arith.constant dense<0.000000e+00> : vector<2x192xf32>
    %11 = tpu.matmul %10, %8, %cst_11 {dimension_numbers = #tpu.dot_dimension_numbers<[1], [0], [0], [1], [0, 0, 1, 1], [], []>} : vector<2x64xf32>, vector<64x192xf32>, vector<2x192xf32> -> vector<2x192xf32>
    %12 = vector.broadcast %9 : vector<1x192xf32> to vector<2x192xf32>
    %13 = arith.addf %11, %12 : vector<2x192xf32>
    %14 = vector.extract_strided_slice %7 {offsets = [0, 0, 0], sizes = [1, 2, 96], strides = [1, 1, 1]} : vector<4x2x192xf32> to vector<1x2x96xf32>
    %15 = vector.shape_cast %14 : vector<1x2x96xf32> to vector<2x96xf32>
    %16 = vector.extract_strided_slice %13 {offsets = [0, 0], sizes = [2, 96], strides = [1, 1]} : vector<2x192xf32> to vector<2x96xf32>
    %17 = vector.extract_strided_slice %10 {offsets = [0, 0], sizes = [2, 32], strides = [1, 1]} : vector<2x64xf32> to vector<2x32xf32>
    %18 = vector.extract_strided_slice %15 {offsets = [0, 0], sizes = [2, 64], strides = [1, 1]} : vector<2x96xf32> to vector<2x64xf32>
    %19 = vector.extract_strided_slice %16 {offsets = [0, 0], sizes = [2, 64], strides = [1, 1]} : vector<2x96xf32> to vector<2x64xf32>
    %20 = arith.addf %18, %19 : vector<2x64xf32>
    %21 = arith.negf %20 : vector<2x64xf32>
    %22 = math.exp %21 : vector<2x64xf32>
    %cst_12 = arith.constant 1.000000e+00 : f32
    %23 = vector.broadcast %cst_12 : f32 to vector<2x64xf32>
    %24 = arith.addf %23, %22 : vector<2x64xf32>
    %25 = arith.divf %23, %24 : vector<2x64xf32>
    %26 = vector.extract_strided_slice %25 {offsets = [0, 0], sizes = [2, 32], strides = [1, 1]} : vector<2x64xf32> to vector<2x32xf32>
    %27 = vector.extract_strided_slice %25 {offsets = [0, 32], sizes = [2, 32], strides = [1, 1]} : vector<2x64xf32> to vector<2x32xf32>
    %28 = vector.extract_strided_slice %15 {offsets = [0, 64], sizes = [2, 32], strides = [1, 1]} : vector<2x96xf32> to vector<2x32xf32>
    %29 = vector.extract_strided_slice %16 {offsets = [0, 64], sizes = [2, 32], strides = [1, 1]} : vector<2x96xf32> to vector<2x32xf32>
    %30 = arith.mulf %26, %29 : vector<2x32xf32>
    %31 = arith.addf %28, %30 : vector<2x32xf32>
    %32 = math.tanh %31 : vector<2x32xf32>
    %cst_13 = arith.constant 1.000000e+00 : f32
    %33 = vector.broadcast %cst_13 : f32 to vector<2x32xf32>
    %34 = arith.subf %33, %27 : vector<2x32xf32>
    %35 = arith.mulf %34, %32 : vector<2x32xf32>
    %36 = arith.mulf %27, %17 : vector<2x32xf32>
    %37 = arith.addf %35, %36 : vector<2x32xf32>
    %38 = vector.extract_strided_slice %7 {offsets = [3, 0, 96], sizes = [1, 2, 96], strides = [1, 1, 1]} : vector<4x2x192xf32> to vector<1x2x96xf32>
    %39 = vector.shape_cast %38 : vector<1x2x96xf32> to vector<2x96xf32>
    %40 = vector.extract_strided_slice %13 {offsets = [0, 96], sizes = [2, 96], strides = [1, 1]} : vector<2x192xf32> to vector<2x96xf32>
    %41 = vector.extract_strided_slice %10 {offsets = [0, 32], sizes = [2, 32], strides = [1, 1]} : vector<2x64xf32> to vector<2x32xf32>
    %42 = vector.extract_strided_slice %39 {offsets = [0, 0], sizes = [2, 64], strides = [1, 1]} : vector<2x96xf32> to vector<2x64xf32>
    %43 = vector.extract_strided_slice %40 {offsets = [0, 0], sizes = [2, 64], strides = [1, 1]} : vector<2x96xf32> to vector<2x64xf32>
    %44 = arith.addf %42, %43 : vector<2x64xf32>
    %45 = arith.negf %44 : vector<2x64xf32>
    %46 = math.exp %45 : vector<2x64xf32>
    %cst_14 = arith.constant 1.000000e+00 : f32
    %47 = vector.broadcast %cst_14 : f32 to vector<2x64xf32>
    %48 = arith.addf %47, %46 : vector<2x64xf32>
    %49 = arith.divf %47, %48 : vector<2x64xf32>
    %50 = vector.extract_strided_slice %49 {offsets = [0, 0], sizes = [2, 32], strides = [1, 1]} : vector<2x64xf32> to vector<2x32xf32>
    %51 = vector.extract_strided_slice %49 {offsets = [0, 32], sizes = [2, 32], strides = [1, 1]} : vector<2x64xf32> to vector<2x32xf32>
    %52 = vector.extract_strided_slice %39 {offsets = [0, 64], sizes = [2, 32], strides = [1, 1]} : vector<2x96xf32> to vector<2x32xf32>
    %53 = vector.extract_strided_slice %40 {offsets = [0, 64], sizes = [2, 32], strides = [1, 1]} : vector<2x96xf32> to vector<2x32xf32>
    %54 = arith.mulf %50, %53 : vector<2x32xf32>
    %55 = arith.addf %52, %54 : vector<2x32xf32>
    %56 = math.tanh %55 : vector<2x32xf32>
    %cst_15 = arith.constant 1.000000e+00 : f32
    %57 = vector.broadcast %cst_15 : f32 to vector<2x32xf32>
    %58 = arith.subf %57, %51 : vector<2x32xf32>
    %59 = arith.mulf %58, %56 : vector<2x32xf32>
    %60 = arith.mulf %51, %41 : vector<2x32xf32>
    %61 = arith.addf %59, %60 : vector<2x32xf32>
    %62 = tpu.concatenate %37, %61 in 1 : vector<2x32xf32>, vector<2x32xf32> -> vector<2x64xf32>
    %c0_16 = arith.constant 0 : index
    %c0_17 = arith.constant 0 : index
    %c0_18 = arith.constant 0 : index
    %63 = vector.load %arg13[%c0_16, %c0_17, %c0_18] : memref<4x2x32xf32, #tpu.memory_space<vmem>>, vector<1x2x32xf32>
    %64 = vector.shape_cast %63 : vector<1x2x32xf32> to vector<2x32xf32>
    %65 = vector.shape_cast %37 : vector<2x32xf32> to vector<1x2x32xf32>
    tpu.vector_store %arg13[%c0_16, %c0_17, %c0_18], %65 {strides = array<i32>} : memref<4x2x32xf32, #tpu.memory_space<vmem>>, vector<1x2x32xf32>,
    %c3 = arith.constant 3 : index
    %c0_19 = arith.constant 0 : index
    %c0_20 = arith.constant 0 : index
    %66 = vector.load %arg14[%c3, %c0_19, %c0_20] : memref<4x2x32xf32, #tpu.memory_space<vmem>>, vector<1x2x32xf32>
    %67 = vector.shape_cast %66 : vector<1x2x32xf32> to vector<2x32xf32>
    %68 = vector.shape_cast %61 : vector<2x32xf32> to vector<1x2x32xf32>
    tpu.vector_store %arg14[%c3, %c0_19, %c0_20], %68 {strides = array<i32>} : memref<4x2x32xf32, #tpu.memory_space<vmem>>, vector<1x2x32xf32>,
    %cst_21 = arith.constant dense<0.000000e+00> : vector<2x192xf32>
    %69 = tpu.matmul %62, %8, %cst_21 {dimension_numbers = #tpu.dot_dimension_numbers<[1], [0], [0], [1], [0, 0, 1, 1], [], []>} : vector<2x64xf32>, vector<64x192xf32>, vector<2x192xf32> -> vector<2x192xf32>
    %70 = vector.broadcast %9 : vector<1x192xf32> to vector<2x192xf32>
    %71 = arith.addf %69, %70 : vector<2x192xf32>
    %72 = vector.extract_strided_slice %7 {offsets = [1, 0, 0], sizes = [1, 2, 96], strides = [1, 1, 1]} : vector<4x2x192xf32> to vector<1x2x96xf32>
    %73 = vector.shape_cast %72 : vector<1x2x96xf32> to vector<2x96xf32>
    %74 = vector.extract_strided_slice %71 {offsets = [0, 0], sizes = [2, 96], strides = [1, 1]} : vector<2x192xf32> to vector<2x96xf32>
    %75 = vector.extract_strided_slice %62 {offsets = [0, 0], sizes = [2, 32], strides = [1, 1]} : vector<2x64xf32> to vector<2x32xf32>
    %76 = vector.extract_strided_slice %73 {offsets = [0, 0], sizes = [2, 64], strides = [1, 1]} : vector<2x96xf32> to vector<2x64xf32>
    %77 = vector.extract_strided_slice %74 {offsets = [0, 0], sizes = [2, 64], strides = [1, 1]} : vector<2x96xf32> to vector<2x64xf32>
    %78 = arith.addf %76, %77 : vector<2x64xf32>
    %79 = arith.negf %78 : vector<2x64xf32>
    %80 = math.exp %79 : vector<2x64xf32>
    %cst_22 = arith.constant 1.000000e+00 : f32
    %81 = vector.broadcast %cst_22 : f32 to vector<2x64xf32>
    %82 = arith.addf %81, %80 : vector<2x64xf32>
    %83 = arith.divf %81, %82 : vector<2x64xf32>
    %84 = vector.extract_strided_slice %83 {offsets = [0, 0], sizes = [2, 32], strides = [1, 1]} : vector<2x64xf32> to vector<2x32xf32>
    %85 = vector.extract_strided_slice %83 {offsets = [0, 32], sizes = [2, 32], strides = [1, 1]} : vector<2x64xf32> to vector<2x32xf32>
    %86 = vector.extract_strided_slice %73 {offsets = [0, 64], sizes = [2, 32], strides = [1, 1]} : vector<2x96xf32> to vector<2x32xf32>
    %87 = vector.extract_strided_slice %74 {offsets = [0, 64], sizes = [2, 32], strides = [1, 1]} : vector<2x96xf32> to vector<2x32xf32>
    %88 = arith.mulf %84, %87 : vector<2x32xf32>
    %89 = arith.addf %86, %88 : vector<2x32xf32>
    %90 = math.tanh %89 : vector<2x32xf32>
    %cst_23 = arith.constant 1.000000e+00 : f32
    %91 = vector.broadcast %cst_23 : f32 to vector<2x32xf32>
    %92 = arith.subf %91, %85 : vector<2x32xf32>
    %93 = arith.mulf %92, %90 : vector<2x32xf32>
    %94 = arith.mulf %85, %75 : vector<2x32xf32>
    %95 = arith.addf %93, %94 : vector<2x32xf32>
    %96 = vector.extract_strided_slice %7 {offsets = [2, 0, 96], sizes = [1, 2, 96], strides = [1, 1, 1]} : vector<4x2x192xf32> to vector<1x2x96xf32>
    %97 = vector.shape_cast %96 : vector<1x2x96xf32> to vector<2x96xf32>
    %98 = vector.extract_strided_slice %71 {offsets = [0, 96], sizes = [2, 96], strides = [1, 1]} : vector<2x192xf32> to vector<2x96xf32>
    %99 = vector.extract_strided_slice %62 {offsets = [0, 32], sizes = [2, 32], strides = [1, 1]} : vector<2x64xf32> to vector<2x32xf32>
    %100 = vector.extract_strided_slice %97 {offsets = [0, 0], sizes = [2, 64], strides = [1, 1]} : vector<2x96xf32> to vector<2x64xf32>
    %101 = vector.extract_strided_slice %98 {offsets = [0, 0], sizes = [2, 64], strides = [1, 1]} : vector<2x96xf32> to vector<2x64xf32>
    %102 = arith.addf %100, %101 : vector<2x64xf32>
    %103 = arith.negf %102 : vector<2x64xf32>
    %104 = math.exp %103 : vector<2x64xf32>
    %cst_24 = arith.constant 1.000000e+00 : f32
    %105 = vector.broadcast %cst_24 : f32 to vector<2x64xf32>
    %106 = arith.addf %105, %104 : vector<2x64xf32>
    %107 = arith.divf %105, %106 : vector<2x64xf32>
    %108 = vector.extract_strided_slice %107 {offsets = [0, 0], sizes = [2, 32], strides = [1, 1]} : vector<2x64xf32> to vector<2x32xf32>
    %109 = vector.extract_strided_slice %107 {offsets = [0, 32], sizes = [2, 32], strides = [1, 1]} : vector<2x64xf32> to vector<2x32xf32>
    %110 = vector.extract_strided_slice %97 {offsets = [0, 64], sizes = [2, 32], strides = [1, 1]} : vector<2x96xf32> to vector<2x32xf32>
    %111 = vector.extract_strided_slice %98 {offsets = [0, 64], sizes = [2, 32], strides = [1, 1]} : vector<2x96xf32> to vector<2x32xf32>
    %112 = arith.mulf %108, %111 : vector<2x32xf32>
    %113 = arith.addf %110, %112 : vector<2x32xf32>
    %114 = math.tanh %113 : vector<2x32xf32>
    %cst_25 = arith.constant 1.000000e+00 : f32
    %115 = vector.broadcast %cst_25 : f32 to vector<2x32xf32>
    %116 = arith.subf %115, %109 : vector<2x32xf32>
    %117 = arith.mulf %116, %114 : vector<2x32xf32>
    %118 = arith.mulf %109, %99 : vector<2x32xf32>
    %119 = arith.addf %117, %118 : vector<2x32xf32>
    %120 = tpu.concatenate %95, %119 in 1 : vector<2x32xf32>, vector<2x32xf32> -> vector<2x64xf32>
    %c1 = arith.constant 1 : index
    %c0_26 = arith.constant 0 : index
    %c0_27 = arith.constant 0 : index
    %121 = vector.load %arg13[%c1, %c0_26, %c0_27] : memref<4x2x32xf32, #tpu.memory_space<vmem>>, vector<1x2x32xf32>
    %122 = vector.shape_cast %121 : vector<1x2x32xf32> to vector<2x32xf32>
    %123 = vector.shape_cast %95 : vector<2x32xf32> to vector<1x2x32xf32>
    tpu.vector_store %arg13[%c1, %c0_26, %c0_27], %123 {strides = array<i32>} : memref<4x2x32xf32, #tpu.memory_space<vmem>>, vector<1x2x32xf32>,
    %c2 = arith.constant 2 : index
    %c0_28 = arith.constant 0 : index
    %c0_29 = arith.constant 0 : index
    %124 = vector.load %arg14[%c2, %c0_28, %c0_29] : memref<4x2x32xf32, #tpu.memory_space<vmem>>, vector<1x2x32xf32>
    %125 = vector.shape_cast %124 : vector<1x2x32xf32> to vector<2x32xf32>
    %126 = vector.shape_cast %119 : vector<2x32xf32> to vector<1x2x32xf32>
    tpu.vector_store %arg14[%c2, %c0_28, %c0_29], %126 {strides = array<i32>} : memref<4x2x32xf32, #tpu.memory_space<vmem>>, vector<1x2x32xf32>,
    %cst_30 = arith.constant dense<0.000000e+00> : vector<2x192xf32>
    %127 = tpu.matmul %120, %8, %cst_30 {dimension_numbers = #tpu.dot_dimension_numbers<[1], [0], [0], [1], [0, 0, 1, 1], [], []>} : vector<2x64xf32>, vector<64x192xf32>, vector<2x192xf32> -> vector<2x192xf32>
    %128 = vector.broadcast %9 : vector<1x192xf32> to vector<2x192xf32>
    %129 = arith.addf %127, %128 : vector<2x192xf32>
    %130 = vector.extract_strided_slice %7 {offsets = [2, 0, 0], sizes = [1, 2, 96], strides = [1, 1, 1]} : vector<4x2x192xf32> to vector<1x2x96xf32>
    %131 = vector.shape_cast %130 : vector<1x2x96xf32> to vector<2x96xf32>
    %132 = vector.extract_strided_slice %129 {offsets = [0, 0], sizes = [2, 96], strides = [1, 1]} : vector<2x192xf32> to vector<2x96xf32>
    %133 = vector.extract_strided_slice %120 {offsets = [0, 0], sizes = [2, 32], strides = [1, 1]} : vector<2x64xf32> to vector<2x32xf32>
    %134 = vector.extract_strided_slice %131 {offsets = [0, 0], sizes = [2, 64], strides = [1, 1]} : vector<2x96xf32> to vector<2x64xf32>
    %135 = vector.extract_strided_slice %132 {offsets = [0, 0], sizes = [2, 64], strides = [1, 1]} : vector<2x96xf32> to vector<2x64xf32>
    %136 = arith.addf %134, %135 : vector<2x64xf32>
    %137 = arith.negf %136 : vector<2x64xf32>
    %138 = math.exp %137 : vector<2x64xf32>
    %cst_31 = arith.constant 1.000000e+00 : f32
    %139 = vector.broadcast %cst_31 : f32 to vector<2x64xf32>
    %140 = arith.addf %139, %138 : vector<2x64xf32>
    %141 = arith.divf %139, %140 : vector<2x64xf32>
    %142 = vector.extract_strided_slice %141 {offsets = [0, 0], sizes = [2, 32], strides = [1, 1]} : vector<2x64xf32> to vector<2x32xf32>
    %143 = vector.extract_strided_slice %141 {offsets = [0, 32], sizes = [2, 32], strides = [1, 1]} : vector<2x64xf32> to vector<2x32xf32>
    %144 = vector.extract_strided_slice %131 {offsets = [0, 64], sizes = [2, 32], strides = [1, 1]} : vector<2x96xf32> to vector<2x32xf32>
    %145 = vector.extract_strided_slice %132 {offsets = [0, 64], sizes = [2, 32], strides = [1, 1]} : vector<2x96xf32> to vector<2x32xf32>
    %146 = arith.mulf %142, %145 : vector<2x32xf32>
    %147 = arith.addf %144, %146 : vector<2x32xf32>
    %148 = math.tanh %147 : vector<2x32xf32>
    %cst_32 = arith.constant 1.000000e+00 : f32
    %149 = vector.broadcast %cst_32 : f32 to vector<2x32xf32>
    %150 = arith.subf %149, %143 : vector<2x32xf32>
    %151 = arith.mulf %150, %148 : vector<2x32xf32>
    %152 = arith.mulf %143, %133 : vector<2x32xf32>
    %153 = arith.addf %151, %152 : vector<2x32xf32>
    %154 = vector.extract_strided_slice %7 {offsets = [1, 0, 96], sizes = [1, 2, 96], strides = [1, 1, 1]} : vector<4x2x192xf32> to vector<1x2x96xf32>
    %155 = vector.shape_cast %154 : vector<1x2x96xf32> to vector<2x96xf32>
    %156 = vector.extract_strided_slice %129 {offsets = [0, 96], sizes = [2, 96], strides = [1, 1]} : vector<2x192xf32> to vector<2x96xf32>
    %157 = vector.extract_strided_slice %120 {offsets = [0, 32], sizes = [2, 32], strides = [1, 1]} : vector<2x64xf32> to vector<2x32xf32>
    %158 = vector.extract_strided_slice %155 {offsets = [0, 0], sizes = [2, 64], strides = [1, 1]} : vector<2x96xf32> to vector<2x64xf32>
    %159 = vector.extract_strided_slice %156 {offsets = [0, 0], sizes = [2, 64], strides = [1, 1]} : vector<2x96xf32> to vector<2x64xf32>
    %160 = arith.addf %158, %159 : vector<2x64xf32>
    %161 = arith.negf %160 : vector<2x64xf32>
    %162 = math.exp %161 : vector<2x64xf32>
    %cst_33 = arith.constant 1.000000e+00 : f32
    %163 = vector.broadcast %cst_33 : f32 to vector<2x64xf32>
    %164 = arith.addf %163, %162 : vector<2x64xf32>
    %165 = arith.divf %163, %164 : vector<2x64xf32>
    %166 = vector.extract_strided_slice %165 {offsets = [0, 0], sizes = [2, 32], strides = [1, 1]} : vector<2x64xf32> to vector<2x32xf32>
    %167 = vector.extract_strided_slice %165 {offsets = [0, 32], sizes = [2, 32], strides = [1, 1]} : vector<2x64xf32> to vector<2x32xf32>
    %168 = vector.extract_strided_slice %155 {offsets = [0, 64], sizes = [2, 32], strides = [1, 1]} : vector<2x96xf32> to vector<2x32xf32>
    %169 = vector.extract_strided_slice %156 {offsets = [0, 64], sizes = [2, 32], strides = [1, 1]} : vector<2x96xf32> to vector<2x32xf32>
    %170 = arith.mulf %166, %169 : vector<2x32xf32>
    %171 = arith.addf %168, %170 : vector<2x32xf32>
    %172 = math.tanh %171 : vector<2x32xf32>
    %cst_34 = arith.constant 1.000000e+00 : f32
    %173 = vector.broadcast %cst_34 : f32 to vector<2x32xf32>
    %174 = arith.subf %173, %167 : vector<2x32xf32>
    %175 = arith.mulf %174, %172 : vector<2x32xf32>
    %176 = arith.mulf %167, %157 : vector<2x32xf32>
    %177 = arith.addf %175, %176 : vector<2x32xf32>
    %178 = tpu.concatenate %153, %177 in 1 : vector<2x32xf32>, vector<2x32xf32> -> vector<2x64xf32>
    %c2_35 = arith.constant 2 : index
    %c0_36 = arith.constant 0 : index
    %c0_37 = arith.constant 0 : index
    %179 = vector.load %arg13[%c2_35, %c0_36, %c0_37] : memref<4x2x32xf32, #tpu.memory_space<vmem>>, vector<1x2x32xf32>
    %180 = vector.shape_cast %179 : vector<1x2x32xf32> to vector<2x32xf32>
    %181 = vector.shape_cast %153 : vector<2x32xf32> to vector<1x2x32xf32>
    tpu.vector_store %arg13[%c2_35, %c0_36, %c0_37], %181 {strides = array<i32>} : memref<4x2x32xf32, #tpu.memory_space<vmem>>, vector<1x2x32xf32>,
    %c1_38 = arith.constant 1 : index
    %c0_39 = arith.constant 0 : index
    %c0_40 = arith.constant 0 : index
    %182 = vector.load %arg14[%c1_38, %c0_39, %c0_40] : memref<4x2x32xf32, #tpu.memory_space<vmem>>, vector<1x2x32xf32>
    %183 = vector.shape_cast %182 : vector<1x2x32xf32> to vector<2x32xf32>
    %184 = vector.shape_cast %177 : vector<2x32xf32> to vector<1x2x32xf32>
    tpu.vector_store %arg14[%c1_38, %c0_39, %c0_40], %184 {strides = array<i32>} : memref<4x2x32xf32, #tpu.memory_space<vmem>>, vector<1x2x32xf32>,
    %cst_41 = arith.constant dense<0.000000e+00> : vector<2x192xf32>
    %185 = tpu.matmul %178, %8, %cst_41 {dimension_numbers = #tpu.dot_dimension_numbers<[1], [0], [0], [1], [0, 0, 1, 1], [], []>} : vector<2x64xf32>, vector<64x192xf32>, vector<2x192xf32> -> vector<2x192xf32>
    %186 = vector.broadcast %9 : vector<1x192xf32> to vector<2x192xf32>
    %187 = arith.addf %185, %186 : vector<2x192xf32>
    %188 = vector.extract_strided_slice %7 {offsets = [3, 0, 0], sizes = [1, 2, 96], strides = [1, 1, 1]} : vector<4x2x192xf32> to vector<1x2x96xf32>
    %189 = vector.shape_cast %188 : vector<1x2x96xf32> to vector<2x96xf32>
    %190 = vector.extract_strided_slice %187 {offsets = [0, 0], sizes = [2, 96], strides = [1, 1]} : vector<2x192xf32> to vector<2x96xf32>
    %191 = vector.extract_strided_slice %178 {offsets = [0, 0], sizes = [2, 32], strides = [1, 1]} : vector<2x64xf32> to vector<2x32xf32>
    %192 = vector.extract_strided_slice %189 {offsets = [0, 0], sizes = [2, 64], strides = [1, 1]} : vector<2x96xf32> to vector<2x64xf32>
    %193 = vector.extract_strided_slice %190 {offsets = [0, 0], sizes = [2, 64], strides = [1, 1]} : vector<2x96xf32> to vector<2x64xf32>
    %194 = arith.addf %192, %193 : vector<2x64xf32>
    %195 = arith.negf %194 : vector<2x64xf32>
    %196 = math.exp %195 : vector<2x64xf32>
    %cst_42 = arith.constant 1.000000e+00 : f32
    %197 = vector.broadcast %cst_42 : f32 to vector<2x64xf32>
    %198 = arith.addf %197, %196 : vector<2x64xf32>
    %199 = arith.divf %197, %198 : vector<2x64xf32>
    %200 = vector.extract_strided_slice %199 {offsets = [0, 0], sizes = [2, 32], strides = [1, 1]} : vector<2x64xf32> to vector<2x32xf32>
    %201 = vector.extract_strided_slice %199 {offsets = [0, 32], sizes = [2, 32], strides = [1, 1]} : vector<2x64xf32> to vector<2x32xf32>
    %202 = vector.extract_strided_slice %189 {offsets = [0, 64], sizes = [2, 32], strides = [1, 1]} : vector<2x96xf32> to vector<2x32xf32>
    %203 = vector.extract_strided_slice %190 {offsets = [0, 64], sizes = [2, 32], strides = [1, 1]} : vector<2x96xf32> to vector<2x32xf32>
    %204 = arith.mulf %200, %203 : vector<2x32xf32>
    %205 = arith.addf %202, %204 : vector<2x32xf32>
    %206 = math.tanh %205 : vector<2x32xf32>
    %cst_43 = arith.constant 1.000000e+00 : f32
    %207 = vector.broadcast %cst_43 : f32 to vector<2x32xf32>
    %208 = arith.subf %207, %201 : vector<2x32xf32>
    %209 = arith.mulf %208, %206 : vector<2x32xf32>
    %210 = arith.mulf %201, %191 : vector<2x32xf32>
    %211 = arith.addf %209, %210 : vector<2x32xf32>
    %212 = vector.extract_strided_slice %7 {offsets = [0, 0, 96], sizes = [1, 2, 96], strides = [1, 1, 1]} : vector<4x2x192xf32> to vector<1x2x96xf32>
    %213 = vector.shape_cast %212 : vector<1x2x96xf32> to vector<2x96xf32>
    %214 = vector.extract_strided_slice %187 {offsets = [0, 96], sizes = [2, 96], strides = [1, 1]} : vector<2x192xf32> to vector<2x96xf32>
    %215 = vector.extract_strided_slice %178 {offsets = [0, 32], sizes = [2, 32], strides = [1, 1]} : vector<2x64xf32> to vector<2x32xf32>
    %216 = vector.extract_strided_slice %213 {offsets = [0, 0], sizes = [2, 64], strides = [1, 1]} : vector<2x96xf32> to vector<2x64xf32>
    %217 = vector.extract_strided_slice %214 {offsets = [0, 0], sizes = [2, 64], strides = [1, 1]} : vector<2x96xf32> to vector<2x64xf32>
    %218 = arith.addf %216, %217 : vector<2x64xf32>
    %219 = arith.negf %218 : vector<2x64xf32>
    %220 = math.exp %219 : vector<2x64xf32>
    %cst_44 = arith.constant 1.000000e+00 : f32
    %221 = vector.broadcast %cst_44 : f32 to vector<2x64xf32>
    %222 = arith.addf %221, %220 : vector<2x64xf32>
    %223 = arith.divf %221, %222 : vector<2x64xf32>
    %224 = vector.extract_strided_slice %223 {offsets = [0, 0], sizes = [2, 32], strides = [1, 1]} : vector<2x64xf32> to vector<2x32xf32>
    %225 = vector.extract_strided_slice %223 {offsets = [0, 32], sizes = [2, 32], strides = [1, 1]} : vector<2x64xf32> to vector<2x32xf32>
    %226 = vector.extract_strided_slice %213 {offsets = [0, 64], sizes = [2, 32], strides = [1, 1]} : vector<2x96xf32> to vector<2x32xf32>
    %227 = vector.extract_strided_slice %214 {offsets = [0, 64], sizes = [2, 32], strides = [1, 1]} : vector<2x96xf32> to vector<2x32xf32>
    %228 = arith.mulf %224, %227 : vector<2x32xf32>
    %229 = arith.addf %226, %228 : vector<2x32xf32>
    %230 = math.tanh %229 : vector<2x32xf32>
    %cst_45 = arith.constant 1.000000e+00 : f32
    %231 = vector.broadcast %cst_45 : f32 to vector<2x32xf32>
    %232 = arith.subf %231, %225 : vector<2x32xf32>
    %233 = arith.mulf %232, %230 : vector<2x32xf32>
    %234 = arith.mulf %225, %215 : vector<2x32xf32>
    %235 = arith.addf %233, %234 : vector<2x32xf32>
    %c3_46 = arith.constant 3 : index
    %c0_47 = arith.constant 0 : index
    %c0_48 = arith.constant 0 : index
    %236 = vector.load %arg13[%c3_46, %c0_47, %c0_48] : memref<4x2x32xf32, #tpu.memory_space<vmem>>, vector<1x2x32xf32>
    %237 = vector.shape_cast %236 : vector<1x2x32xf32> to vector<2x32xf32>
    %238 = vector.shape_cast %211 : vector<2x32xf32> to vector<1x2x32xf32>
    tpu.vector_store %arg13[%c3_46, %c0_47, %c0_48], %238 {strides = array<i32>} : memref<4x2x32xf32, #tpu.memory_space<vmem>>, vector<1x2x32xf32>,
    %c0_49 = arith.constant 0 : index
    %c0_50 = arith.constant 0 : index
    %c0_51 = arith.constant 0 : index
    %239 = vector.load %arg14[%c0_49, %c0_50, %c0_51] : memref<4x2x32xf32, #tpu.memory_space<vmem>>, vector<1x2x32xf32>
    %240 = vector.shape_cast %239 : vector<1x2x32xf32> to vector<2x32xf32>
    %241 = vector.shape_cast %235 : vector<2x32xf32> to vector<1x2x32xf32>
    tpu.vector_store %arg14[%c0_49, %c0_50, %c0_51], %241 {strides = array<i32>} : memref<4x2x32xf32, #tpu.memory_space<vmem>>, vector<1x2x32xf32>,
    %c0_52 = arith.constant 0 : index
    %c0_53 = arith.constant 0 : index
    %c0_54 = arith.constant 0 : index
    %242 = vector.load %arg13[%c0_52, %c0_53, %c0_54] : memref<4x2x32xf32, #tpu.memory_space<vmem>>, vector<4x2x32xf32>
    %c0_55 = arith.constant 0 : index
    %c0_56 = arith.constant 0 : index
    %c0_57 = arith.constant 0 : index
    %243 = vector.load %arg14[%c0_55, %c0_56, %c0_57] : memref<4x2x32xf32, #tpu.memory_space<vmem>>, vector<4x2x32xf32>
    %244 = tpu.concatenate %242, %243 in 2 : vector<4x2x32xf32>, vector<4x2x32xf32> -> vector<4x2x64xf32>
    %245 = vector.shape_cast %244 : vector<4x2x64xf32> to vector<8x64xf32>
    %246 = arith.truncf %245 : vector<8x64xf32> to vector<8x64xbf16>
    %c0_58 = arith.constant 0 : index
    %c0_59 = arith.constant 0 : index
    %247 = vector.load %arg6[%c0_58, %c0_59] : memref<64x192xbf16, #tpu.memory_space<vmem>>, vector<64x192xbf16>
    %cst_60 = arith.constant dense<0.000000e+00> : vector<8x192xf32>
    %248 = tpu.matmul %246, %247, %cst_60 {dimension_numbers = #tpu.dot_dimension_numbers<[1], [0], [0], [1], [0, 0, 1, 1], [], []>} : vector<8x64xbf16>, vector<64x192xbf16>, vector<8x192xf32> -> vector<8x192xf32>
    %c0_61 = arith.constant 0 : index
    %c0_62 = arith.constant 0 : index
    %249 = vector.load %arg7[%c0_61, %c0_62] : memref<1x192xf32, #tpu.memory_space<vmem>>, vector<1x192xf32>
    %250 = vector.broadcast %249 : vector<1x192xf32> to vector<8x192xf32>
    %251 = arith.addf %248, %250 : vector<8x192xf32>
    %252 = vector.shape_cast %251 : vector<8x192xf32> to vector<4x2x192xf32>
    %c0_63 = arith.constant 0 : index
    %c0_64 = arith.constant 0 : index
    %253 = vector.load %arg8[%c0_63, %c0_64] : memref<64x192xf32, #tpu.memory_space<vmem>>, vector<64x192xf32>
    %c0_65 = arith.constant 0 : index
    %c0_66 = arith.constant 0 : index
    %254 = vector.load %arg9[%c0_65, %c0_66] : memref<1x192xf32, #tpu.memory_space<vmem>>, vector<1x192xf32>
    %cst_67 = arith.constant 0.000000e+00 : f32
    %255 = vector.broadcast %cst_67 : f32 to vector<2x64xf32>
    %cst_68 = arith.constant dense<0.000000e+00> : vector<2x192xf32>
    %256 = tpu.matmul %255, %253, %cst_68 {dimension_numbers = #tpu.dot_dimension_numbers<[1], [0], [0], [1], [0, 0, 1, 1], [], []>} : vector<2x64xf32>, vector<64x192xf32>, vector<2x192xf32> -> vector<2x192xf32>
    %257 = vector.broadcast %254 : vector<1x192xf32> to vector<2x192xf32>
    %258 = arith.addf %256, %257 : vector<2x192xf32>
    %259 = vector.extract_strided_slice %252 {offsets = [0, 0, 0], sizes = [1, 2, 96], strides = [1, 1, 1]} : vector<4x2x192xf32> to vector<1x2x96xf32>
    %260 = vector.shape_cast %259 : vector<1x2x96xf32> to vector<2x96xf32>
    %261 = vector.extract_strided_slice %258 {offsets = [0, 0], sizes = [2, 96], strides = [1, 1]} : vector<2x192xf32> to vector<2x96xf32>
    %262 = vector.extract_strided_slice %255 {offsets = [0, 0], sizes = [2, 32], strides = [1, 1]} : vector<2x64xf32> to vector<2x32xf32>
    %263 = vector.extract_strided_slice %260 {offsets = [0, 0], sizes = [2, 64], strides = [1, 1]} : vector<2x96xf32> to vector<2x64xf32>
    %264 = vector.extract_strided_slice %261 {offsets = [0, 0], sizes = [2, 64], strides = [1, 1]} : vector<2x96xf32> to vector<2x64xf32>
    %265 = arith.addf %263, %264 : vector<2x64xf32>
    %266 = arith.negf %265 : vector<2x64xf32>
    %267 = math.exp %266 : vector<2x64xf32>
    %cst_69 = arith.constant 1.000000e+00 : f32
    %268 = vector.broadcast %cst_69 : f32 to vector<2x64xf32>
    %269 = arith.addf %268, %267 : vector<2x64xf32>
    %270 = arith.divf %268, %269 : vector<2x64xf32>
    %271 = vector.extract_strided_slice %270 {offsets = [0, 0], sizes = [2, 32], strides = [1, 1]} : vector<2x64xf32> to vector<2x32xf32>
    %272 = vector.extract_strided_slice %270 {offsets = [0, 32], sizes = [2, 32], strides = [1, 1]} : vector<2x64xf32> to vector<2x32xf32>
    %273 = vector.extract_strided_slice %260 {offsets = [0, 64], sizes = [2, 32], strides = [1, 1]} : vector<2x96xf32> to vector<2x32xf32>
    %274 = vector.extract_strided_slice %261 {offsets = [0, 64], sizes = [2, 32], strides = [1, 1]} : vector<2x96xf32> to vector<2x32xf32>
    %275 = arith.mulf %271, %274 : vector<2x32xf32>
    %276 = arith.addf %273, %275 : vector<2x32xf32>
    %277 = math.tanh %276 : vector<2x32xf32>
    %cst_70 = arith.constant 1.000000e+00 : f32
    %278 = vector.broadcast %cst_70 : f32 to vector<2x32xf32>
    %279 = arith.subf %278, %272 : vector<2x32xf32>
    %280 = arith.mulf %279, %277 : vector<2x32xf32>
    %281 = arith.mulf %272, %262 : vector<2x32xf32>
    %282 = arith.addf %280, %281 : vector<2x32xf32>
    %283 = vector.extract_strided_slice %252 {offsets = [3, 0, 96], sizes = [1, 2, 96], strides = [1, 1, 1]} : vector<4x2x192xf32> to vector<1x2x96xf32>
    %284 = vector.shape_cast %283 : vector<1x2x96xf32> to vector<2x96xf32>
    %285 = vector.extract_strided_slice %258 {offsets = [0, 96], sizes = [2, 96], strides = [1, 1]} : vector<2x192xf32> to vector<2x96xf32>
    %286 = vector.extract_strided_slice %255 {offsets = [0, 32], sizes = [2, 32], strides = [1, 1]} : vector<2x64xf32> to vector<2x32xf32>
    %287 = vector.extract_strided_slice %284 {offsets = [0, 0], sizes = [2, 64], strides = [1, 1]} : vector<2x96xf32> to vector<2x64xf32>
    %288 = vector.extract_strided_slice %285 {offsets = [0, 0], sizes = [2, 64], strides = [1, 1]} : vector<2x96xf32> to vector<2x64xf32>
    %289 = arith.addf %287, %288 : vector<2x64xf32>
    %290 = arith.negf %289 : vector<2x64xf32>
    %291 = math.exp %290 : vector<2x64xf32>
    %cst_71 = arith.constant 1.000000e+00 : f32
    %292 = vector.broadcast %cst_71 : f32 to vector<2x64xf32>
    %293 = arith.addf %292, %291 : vector<2x64xf32>
    %294 = arith.divf %292, %293 : vector<2x64xf32>
    %295 = vector.extract_strided_slice %294 {offsets = [0, 0], sizes = [2, 32], strides = [1, 1]} : vector<2x64xf32> to vector<2x32xf32>
    %296 = vector.extract_strided_slice %294 {offsets = [0, 32], sizes = [2, 32], strides = [1, 1]} : vector<2x64xf32> to vector<2x32xf32>
    %297 = vector.extract_strided_slice %284 {offsets = [0, 64], sizes = [2, 32], strides = [1, 1]} : vector<2x96xf32> to vector<2x32xf32>
    %298 = vector.extract_strided_slice %285 {offsets = [0, 64], sizes = [2, 32], strides = [1, 1]} : vector<2x96xf32> to vector<2x32xf32>
    %299 = arith.mulf %295, %298 : vector<2x32xf32>
    %300 = arith.addf %297, %299 : vector<2x32xf32>
    %301 = math.tanh %300 : vector<2x32xf32>
    %cst_72 = arith.constant 1.000000e+00 : f32
    %302 = vector.broadcast %cst_72 : f32 to vector<2x32xf32>
    %303 = arith.subf %302, %296 : vector<2x32xf32>
    %304 = arith.mulf %303, %301 : vector<2x32xf32>
    %305 = arith.mulf %296, %286 : vector<2x32xf32>
    %306 = arith.addf %304, %305 : vector<2x32xf32>
    %307 = tpu.concatenate %282, %306 in 1 : vector<2x32xf32>, vector<2x32xf32> -> vector<2x64xf32>
    %c0_73 = arith.constant 0 : index
    %c0_74 = arith.constant 0 : index
    %c0_75 = arith.constant 0 : index
    %308 = vector.load %arg15[%c0_73, %c0_74, %c0_75] : memref<4x2x32xf32, #tpu.memory_space<vmem>>, vector<1x2x32xf32>
    %309 = vector.shape_cast %308 : vector<1x2x32xf32> to vector<2x32xf32>
    %310 = vector.shape_cast %282 : vector<2x32xf32> to vector<1x2x32xf32>
    tpu.vector_store %arg15[%c0_73, %c0_74, %c0_75], %310 {strides = array<i32>} : memref<4x2x32xf32, #tpu.memory_space<vmem>>, vector<1x2x32xf32>,
    %c3_76 = arith.constant 3 : index
    %c0_77 = arith.constant 0 : index
    %c0_78 = arith.constant 0 : index
    %311 = vector.load %arg16[%c3_76, %c0_77, %c0_78] : memref<4x2x32xf32, #tpu.memory_space<vmem>>, vector<1x2x32xf32>
    %312 = vector.shape_cast %311 : vector<1x2x32xf32> to vector<2x32xf32>
    %313 = vector.shape_cast %306 : vector<2x32xf32> to vector<1x2x32xf32>
    tpu.vector_store %arg16[%c3_76, %c0_77, %c0_78], %313 {strides = array<i32>} : memref<4x2x32xf32, #tpu.memory_space<vmem>>, vector<1x2x32xf32>,
    %cst_79 = arith.constant dense<0.000000e+00> : vector<2x192xf32>
    %314 = tpu.matmul %307, %253, %cst_79 {dimension_numbers = #tpu.dot_dimension_numbers<[1], [0], [0], [1], [0, 0, 1, 1], [], []>} : vector<2x64xf32>, vector<64x192xf32>, vector<2x192xf32> -> vector<2x192xf32>
    %315 = vector.broadcast %254 : vector<1x192xf32> to vector<2x192xf32>
    %316 = arith.addf %314, %315 : vector<2x192xf32>
    %317 = vector.extract_strided_slice %252 {offsets = [1, 0, 0], sizes = [1, 2, 96], strides = [1, 1, 1]} : vector<4x2x192xf32> to vector<1x2x96xf32>
    %318 = vector.shape_cast %317 : vector<1x2x96xf32> to vector<2x96xf32>
    %319 = vector.extract_strided_slice %316 {offsets = [0, 0], sizes = [2, 96], strides = [1, 1]} : vector<2x192xf32> to vector<2x96xf32>
    %320 = vector.extract_strided_slice %307 {offsets = [0, 0], sizes = [2, 32], strides = [1, 1]} : vector<2x64xf32> to vector<2x32xf32>
    %321 = vector.extract_strided_slice %318 {offsets = [0, 0], sizes = [2, 64], strides = [1, 1]} : vector<2x96xf32> to vector<2x64xf32>
    %322 = vector.extract_strided_slice %319 {offsets = [0, 0], sizes = [2, 64], strides = [1, 1]} : vector<2x96xf32> to vector<2x64xf32>
    %323 = arith.addf %321, %322 : vector<2x64xf32>
    %324 = arith.negf %323 : vector<2x64xf32>
    %325 = math.exp %324 : vector<2x64xf32>
    %cst_80 = arith.constant 1.000000e+00 : f32
    %326 = vector.broadcast %cst_80 : f32 to vector<2x64xf32>
    %327 = arith.addf %326, %325 : vector<2x64xf32>
    %328 = arith.divf %326, %327 : vector<2x64xf32>
    %329 = vector.extract_strided_slice %328 {offsets = [0, 0], sizes = [2, 32], strides = [1, 1]} : vector<2x64xf32> to vector<2x32xf32>
    %330 = vector.extract_strided_slice %328 {offsets = [0, 32], sizes = [2, 32], strides = [1, 1]} : vector<2x64xf32> to vector<2x32xf32>
    %331 = vector.extract_strided_slice %318 {offsets = [0, 64], sizes = [2, 32], strides = [1, 1]} : vector<2x96xf32> to vector<2x32xf32>
    %332 = vector.extract_strided_slice %319 {offsets = [0, 64], sizes = [2, 32], strides = [1, 1]} : vector<2x96xf32> to vector<2x32xf32>
    %333 = arith.mulf %329, %332 : vector<2x32xf32>
    %334 = arith.addf %331, %333 : vector<2x32xf32>
    %335 = math.tanh %334 : vector<2x32xf32>
    %cst_81 = arith.constant 1.000000e+00 : f32
    %336 = vector.broadcast %cst_81 : f32 to vector<2x32xf32>
    %337 = arith.subf %336, %330 : vector<2x32xf32>
    %338 = arith.mulf %337, %335 : vector<2x32xf32>
    %339 = arith.mulf %330, %320 : vector<2x32xf32>
    %340 = arith.addf %338, %339 : vector<2x32xf32>
    %341 = vector.extract_strided_slice %252 {offsets = [2, 0, 96], sizes = [1, 2, 96], strides = [1, 1, 1]} : vector<4x2x192xf32> to vector<1x2x96xf32>
    %342 = vector.shape_cast %341 : vector<1x2x96xf32> to vector<2x96xf32>
    %343 = vector.extract_strided_slice %316 {offsets = [0, 96], sizes = [2, 96], strides = [1, 1]} : vector<2x192xf32> to vector<2x96xf32>
    %344 = vector.extract_strided_slice %307 {offsets = [0, 32], sizes = [2, 32], strides = [1, 1]} : vector<2x64xf32> to vector<2x32xf32>
    %345 = vector.extract_strided_slice %342 {offsets = [0, 0], sizes = [2, 64], strides = [1, 1]} : vector<2x96xf32> to vector<2x64xf32>
    %346 = vector.extract_strided_slice %343 {offsets = [0, 0], sizes = [2, 64], strides = [1, 1]} : vector<2x96xf32> to vector<2x64xf32>
    %347 = arith.addf %345, %346 : vector<2x64xf32>
    %348 = arith.negf %347 : vector<2x64xf32>
    %349 = math.exp %348 : vector<2x64xf32>
    %cst_82 = arith.constant 1.000000e+00 : f32
    %350 = vector.broadcast %cst_82 : f32 to vector<2x64xf32>
    %351 = arith.addf %350, %349 : vector<2x64xf32>
    %352 = arith.divf %350, %351 : vector<2x64xf32>
    %353 = vector.extract_strided_slice %352 {offsets = [0, 0], sizes = [2, 32], strides = [1, 1]} : vector<2x64xf32> to vector<2x32xf32>
    %354 = vector.extract_strided_slice %352 {offsets = [0, 32], sizes = [2, 32], strides = [1, 1]} : vector<2x64xf32> to vector<2x32xf32>
    %355 = vector.extract_strided_slice %342 {offsets = [0, 64], sizes = [2, 32], strides = [1, 1]} : vector<2x96xf32> to vector<2x32xf32>
    %356 = vector.extract_strided_slice %343 {offsets = [0, 64], sizes = [2, 32], strides = [1, 1]} : vector<2x96xf32> to vector<2x32xf32>
    %357 = arith.mulf %353, %356 : vector<2x32xf32>
    %358 = arith.addf %355, %357 : vector<2x32xf32>
    %359 = math.tanh %358 : vector<2x32xf32>
    %cst_83 = arith.constant 1.000000e+00 : f32
    %360 = vector.broadcast %cst_83 : f32 to vector<2x32xf32>
    %361 = arith.subf %360, %354 : vector<2x32xf32>
    %362 = arith.mulf %361, %359 : vector<2x32xf32>
    %363 = arith.mulf %354, %344 : vector<2x32xf32>
    %364 = arith.addf %362, %363 : vector<2x32xf32>
    %365 = tpu.concatenate %340, %364 in 1 : vector<2x32xf32>, vector<2x32xf32> -> vector<2x64xf32>
    %c1_84 = arith.constant 1 : index
    %c0_85 = arith.constant 0 : index
    %c0_86 = arith.constant 0 : index
    %366 = vector.load %arg15[%c1_84, %c0_85, %c0_86] : memref<4x2x32xf32, #tpu.memory_space<vmem>>, vector<1x2x32xf32>
    %367 = vector.shape_cast %366 : vector<1x2x32xf32> to vector<2x32xf32>
    %368 = vector.shape_cast %340 : vector<2x32xf32> to vector<1x2x32xf32>
    tpu.vector_store %arg15[%c1_84, %c0_85, %c0_86], %368 {strides = array<i32>} : memref<4x2x32xf32, #tpu.memory_space<vmem>>, vector<1x2x32xf32>,
    %c2_87 = arith.constant 2 : index
    %c0_88 = arith.constant 0 : index
    %c0_89 = arith.constant 0 : index
    %369 = vector.load %arg16[%c2_87, %c0_88, %c0_89] : memref<4x2x32xf32, #tpu.memory_space<vmem>>, vector<1x2x32xf32>
    %370 = vector.shape_cast %369 : vector<1x2x32xf32> to vector<2x32xf32>
    %371 = vector.shape_cast %364 : vector<2x32xf32> to vector<1x2x32xf32>
    tpu.vector_store %arg16[%c2_87, %c0_88, %c0_89], %371 {strides = array<i32>} : memref<4x2x32xf32, #tpu.memory_space<vmem>>, vector<1x2x32xf32>,
    %cst_90 = arith.constant dense<0.000000e+00> : vector<2x192xf32>
    %372 = tpu.matmul %365, %253, %cst_90 {dimension_numbers = #tpu.dot_dimension_numbers<[1], [0], [0], [1], [0, 0, 1, 1], [], []>} : vector<2x64xf32>, vector<64x192xf32>, vector<2x192xf32> -> vector<2x192xf32>
    %373 = vector.broadcast %254 : vector<1x192xf32> to vector<2x192xf32>
    %374 = arith.addf %372, %373 : vector<2x192xf32>
    %375 = vector.extract_strided_slice %252 {offsets = [2, 0, 0], sizes = [1, 2, 96], strides = [1, 1, 1]} : vector<4x2x192xf32> to vector<1x2x96xf32>
    %376 = vector.shape_cast %375 : vector<1x2x96xf32> to vector<2x96xf32>
    %377 = vector.extract_strided_slice %374 {offsets = [0, 0], sizes = [2, 96], strides = [1, 1]} : vector<2x192xf32> to vector<2x96xf32>
    %378 = vector.extract_strided_slice %365 {offsets = [0, 0], sizes = [2, 32], strides = [1, 1]} : vector<2x64xf32> to vector<2x32xf32>
    %379 = vector.extract_strided_slice %376 {offsets = [0, 0], sizes = [2, 64], strides = [1, 1]} : vector<2x96xf32> to vector<2x64xf32>
    %380 = vector.extract_strided_slice %377 {offsets = [0, 0], sizes = [2, 64], strides = [1, 1]} : vector<2x96xf32> to vector<2x64xf32>
    %381 = arith.addf %379, %380 : vector<2x64xf32>
    %382 = arith.negf %381 : vector<2x64xf32>
    %383 = math.exp %382 : vector<2x64xf32>
    %cst_91 = arith.constant 1.000000e+00 : f32
    %384 = vector.broadcast %cst_91 : f32 to vector<2x64xf32>
    %385 = arith.addf %384, %383 : vector<2x64xf32>
    %386 = arith.divf %384, %385 : vector<2x64xf32>
    %387 = vector.extract_strided_slice %386 {offsets = [0, 0], sizes = [2, 32], strides = [1, 1]} : vector<2x64xf32> to vector<2x32xf32>
    %388 = vector.extract_strided_slice %386 {offsets = [0, 32], sizes = [2, 32], strides = [1, 1]} : vector<2x64xf32> to vector<2x32xf32>
    %389 = vector.extract_strided_slice %376 {offsets = [0, 64], sizes = [2, 32], strides = [1, 1]} : vector<2x96xf32> to vector<2x32xf32>
    %390 = vector.extract_strided_slice %377 {offsets = [0, 64], sizes = [2, 32], strides = [1, 1]} : vector<2x96xf32> to vector<2x32xf32>
    %391 = arith.mulf %387, %390 : vector<2x32xf32>
    %392 = arith.addf %389, %391 : vector<2x32xf32>
    %393 = math.tanh %392 : vector<2x32xf32>
    %cst_92 = arith.constant 1.000000e+00 : f32
    %394 = vector.broadcast %cst_92 : f32 to vector<2x32xf32>
    %395 = arith.subf %394, %388 : vector<2x32xf32>
    %396 = arith.mulf %395, %393 : vector<2x32xf32>
    %397 = arith.mulf %388, %378 : vector<2x32xf32>
    %398 = arith.addf %396, %397 : vector<2x32xf32>
    %399 = vector.extract_strided_slice %252 {offsets = [1, 0, 96], sizes = [1, 2, 96], strides = [1, 1, 1]} : vector<4x2x192xf32> to vector<1x2x96xf32>
    %400 = vector.shape_cast %399 : vector<1x2x96xf32> to vector<2x96xf32>
    %401 = vector.extract_strided_slice %374 {offsets = [0, 96], sizes = [2, 96], strides = [1, 1]} : vector<2x192xf32> to vector<2x96xf32>
    %402 = vector.extract_strided_slice %365 {offsets = [0, 32], sizes = [2, 32], strides = [1, 1]} : vector<2x64xf32> to vector<2x32xf32>
    %403 = vector.extract_strided_slice %400 {offsets = [0, 0], sizes = [2, 64], strides = [1, 1]} : vector<2x96xf32> to vector<2x64xf32>
    %404 = vector.extract_strided_slice %401 {offsets = [0, 0], sizes = [2, 64], strides = [1, 1]} : vector<2x96xf32> to vector<2x64xf32>
    %405 = arith.addf %403, %404 : vector<2x64xf32>
    %406 = arith.negf %405 : vector<2x64xf32>
    %407 = math.exp %406 : vector<2x64xf32>
    %cst_93 = arith.constant 1.000000e+00 : f32
    %408 = vector.broadcast %cst_93 : f32 to vector<2x64xf32>
    %409 = arith.addf %408, %407 : vector<2x64xf32>
    %410 = arith.divf %408, %409 : vector<2x64xf32>
    %411 = vector.extract_strided_slice %410 {offsets = [0, 0], sizes = [2, 32], strides = [1, 1]} : vector<2x64xf32> to vector<2x32xf32>
    %412 = vector.extract_strided_slice %410 {offsets = [0, 32], sizes = [2, 32], strides = [1, 1]} : vector<2x64xf32> to vector<2x32xf32>
    %413 = vector.extract_strided_slice %400 {offsets = [0, 64], sizes = [2, 32], strides = [1, 1]} : vector<2x96xf32> to vector<2x32xf32>
    %414 = vector.extract_strided_slice %401 {offsets = [0, 64], sizes = [2, 32], strides = [1, 1]} : vector<2x96xf32> to vector<2x32xf32>
    %415 = arith.mulf %411, %414 : vector<2x32xf32>
    %416 = arith.addf %413, %415 : vector<2x32xf32>
    %417 = math.tanh %416 : vector<2x32xf32>
    %cst_94 = arith.constant 1.000000e+00 : f32
    %418 = vector.broadcast %cst_94 : f32 to vector<2x32xf32>
    %419 = arith.subf %418, %412 : vector<2x32xf32>
    %420 = arith.mulf %419, %417 : vector<2x32xf32>
    %421 = arith.mulf %412, %402 : vector<2x32xf32>
    %422 = arith.addf %420, %421 : vector<2x32xf32>
    %423 = tpu.concatenate %398, %422 in 1 : vector<2x32xf32>, vector<2x32xf32> -> vector<2x64xf32>
    %c2_95 = arith.constant 2 : index
    %c0_96 = arith.constant 0 : index
    %c0_97 = arith.constant 0 : index
    %424 = vector.load %arg15[%c2_95, %c0_96, %c0_97] : memref<4x2x32xf32, #tpu.memory_space<vmem>>, vector<1x2x32xf32>
    %425 = vector.shape_cast %424 : vector<1x2x32xf32> to vector<2x32xf32>
    %426 = vector.shape_cast %398 : vector<2x32xf32> to vector<1x2x32xf32>
    tpu.vector_store %arg15[%c2_95, %c0_96, %c0_97], %426 {strides = array<i32>} : memref<4x2x32xf32, #tpu.memory_space<vmem>>, vector<1x2x32xf32>,
    %c1_98 = arith.constant 1 : index
    %c0_99 = arith.constant 0 : index
    %c0_100 = arith.constant 0 : index
    %427 = vector.load %arg16[%c1_98, %c0_99, %c0_100] : memref<4x2x32xf32, #tpu.memory_space<vmem>>, vector<1x2x32xf32>
    %428 = vector.shape_cast %427 : vector<1x2x32xf32> to vector<2x32xf32>
    %429 = vector.shape_cast %422 : vector<2x32xf32> to vector<1x2x32xf32>
    tpu.vector_store %arg16[%c1_98, %c0_99, %c0_100], %429 {strides = array<i32>} : memref<4x2x32xf32, #tpu.memory_space<vmem>>, vector<1x2x32xf32>,
    %cst_101 = arith.constant dense<0.000000e+00> : vector<2x192xf32>
    %430 = tpu.matmul %423, %253, %cst_101 {dimension_numbers = #tpu.dot_dimension_numbers<[1], [0], [0], [1], [0, 0, 1, 1], [], []>} : vector<2x64xf32>, vector<64x192xf32>, vector<2x192xf32> -> vector<2x192xf32>
    %431 = vector.broadcast %254 : vector<1x192xf32> to vector<2x192xf32>
    %432 = arith.addf %430, %431 : vector<2x192xf32>
    %433 = vector.extract_strided_slice %252 {offsets = [3, 0, 0], sizes = [1, 2, 96], strides = [1, 1, 1]} : vector<4x2x192xf32> to vector<1x2x96xf32>
    %434 = vector.shape_cast %433 : vector<1x2x96xf32> to vector<2x96xf32>
    %435 = vector.extract_strided_slice %432 {offsets = [0, 0], sizes = [2, 96], strides = [1, 1]} : vector<2x192xf32> to vector<2x96xf32>
    %436 = vector.extract_strided_slice %423 {offsets = [0, 0], sizes = [2, 32], strides = [1, 1]} : vector<2x64xf32> to vector<2x32xf32>
    %437 = vector.extract_strided_slice %434 {offsets = [0, 0], sizes = [2, 64], strides = [1, 1]} : vector<2x96xf32> to vector<2x64xf32>
    %438 = vector.extract_strided_slice %435 {offsets = [0, 0], sizes = [2, 64], strides = [1, 1]} : vector<2x96xf32> to vector<2x64xf32>
    %439 = arith.addf %437, %438 : vector<2x64xf32>
    %440 = arith.negf %439 : vector<2x64xf32>
    %441 = math.exp %440 : vector<2x64xf32>
    %cst_102 = arith.constant 1.000000e+00 : f32
    %442 = vector.broadcast %cst_102 : f32 to vector<2x64xf32>
    %443 = arith.addf %442, %441 : vector<2x64xf32>
    %444 = arith.divf %442, %443 : vector<2x64xf32>
    %445 = vector.extract_strided_slice %444 {offsets = [0, 0], sizes = [2, 32], strides = [1, 1]} : vector<2x64xf32> to vector<2x32xf32>
    %446 = vector.extract_strided_slice %444 {offsets = [0, 32], sizes = [2, 32], strides = [1, 1]} : vector<2x64xf32> to vector<2x32xf32>
    %447 = vector.extract_strided_slice %434 {offsets = [0, 64], sizes = [2, 32], strides = [1, 1]} : vector<2x96xf32> to vector<2x32xf32>
    %448 = vector.extract_strided_slice %435 {offsets = [0, 64], sizes = [2, 32], strides = [1, 1]} : vector<2x96xf32> to vector<2x32xf32>
    %449 = arith.mulf %445, %448 : vector<2x32xf32>
    %450 = arith.addf %447, %449 : vector<2x32xf32>
    %451 = math.tanh %450 : vector<2x32xf32>
    %cst_103 = arith.constant 1.000000e+00 : f32
    %452 = vector.broadcast %cst_103 : f32 to vector<2x32xf32>
    %453 = arith.subf %452, %446 : vector<2x32xf32>
    %454 = arith.mulf %453, %451 : vector<2x32xf32>
    %455 = arith.mulf %446, %436 : vector<2x32xf32>
    %456 = arith.addf %454, %455 : vector<2x32xf32>
    %457 = vector.extract_strided_slice %252 {offsets = [0, 0, 96], sizes = [1, 2, 96], strides = [1, 1, 1]} : vector<4x2x192xf32> to vector<1x2x96xf32>
    %458 = vector.shape_cast %457 : vector<1x2x96xf32> to vector<2x96xf32>
    %459 = vector.extract_strided_slice %432 {offsets = [0, 96], sizes = [2, 96], strides = [1, 1]} : vector<2x192xf32> to vector<2x96xf32>
    %460 = vector.extract_strided_slice %423 {offsets = [0, 32], sizes = [2, 32], strides = [1, 1]} : vector<2x64xf32> to vector<2x32xf32>
    %461 = vector.extract_strided_slice %458 {offsets = [0, 0], sizes = [2, 64], strides = [1, 1]} : vector<2x96xf32> to vector<2x64xf32>
    %462 = vector.extract_strided_slice %459 {offsets = [0, 0], sizes = [2, 64], strides = [1, 1]} : vector<2x96xf32> to vector<2x64xf32>
    %463 = arith.addf %461, %462 : vector<2x64xf32>
    %464 = arith.negf %463 : vector<2x64xf32>
    %465 = math.exp %464 : vector<2x64xf32>
    %cst_104 = arith.constant 1.000000e+00 : f32
    %466 = vector.broadcast %cst_104 : f32 to vector<2x64xf32>
    %467 = arith.addf %466, %465 : vector<2x64xf32>
    %468 = arith.divf %466, %467 : vector<2x64xf32>
    %469 = vector.extract_strided_slice %468 {offsets = [0, 0], sizes = [2, 32], strides = [1, 1]} : vector<2x64xf32> to vector<2x32xf32>
    %470 = vector.extract_strided_slice %468 {offsets = [0, 32], sizes = [2, 32], strides = [1, 1]} : vector<2x64xf32> to vector<2x32xf32>
    %471 = vector.extract_strided_slice %458 {offsets = [0, 64], sizes = [2, 32], strides = [1, 1]} : vector<2x96xf32> to vector<2x32xf32>
    %472 = vector.extract_strided_slice %459 {offsets = [0, 64], sizes = [2, 32], strides = [1, 1]} : vector<2x96xf32> to vector<2x32xf32>
    %473 = arith.mulf %469, %472 : vector<2x32xf32>
    %474 = arith.addf %471, %473 : vector<2x32xf32>
    %475 = math.tanh %474 : vector<2x32xf32>
    %cst_105 = arith.constant 1.000000e+00 : f32
    %476 = vector.broadcast %cst_105 : f32 to vector<2x32xf32>
    %477 = arith.subf %476, %470 : vector<2x32xf32>
    %478 = arith.mulf %477, %475 : vector<2x32xf32>
    %479 = arith.mulf %470, %460 : vector<2x32xf32>
    %480 = arith.addf %478, %479 : vector<2x32xf32>
    %c3_106 = arith.constant 3 : index
    %c0_107 = arith.constant 0 : index
    %c0_108 = arith.constant 0 : index
    %481 = vector.load %arg15[%c3_106, %c0_107, %c0_108] : memref<4x2x32xf32, #tpu.memory_space<vmem>>, vector<1x2x32xf32>
    %482 = vector.shape_cast %481 : vector<1x2x32xf32> to vector<2x32xf32>
    %483 = vector.shape_cast %456 : vector<2x32xf32> to vector<1x2x32xf32>
    tpu.vector_store %arg15[%c3_106, %c0_107, %c0_108], %483 {strides = array<i32>} : memref<4x2x32xf32, #tpu.memory_space<vmem>>, vector<1x2x32xf32>,
    %c0_109 = arith.constant 0 : index
    %c0_110 = arith.constant 0 : index
    %c0_111 = arith.constant 0 : index
    %484 = vector.load %arg16[%c0_109, %c0_110, %c0_111] : memref<4x2x32xf32, #tpu.memory_space<vmem>>, vector<1x2x32xf32>
    %485 = vector.shape_cast %484 : vector<1x2x32xf32> to vector<2x32xf32>
    %486 = vector.shape_cast %480 : vector<2x32xf32> to vector<1x2x32xf32>
    tpu.vector_store %arg16[%c0_109, %c0_110, %c0_111], %486 {strides = array<i32>} : memref<4x2x32xf32, #tpu.memory_space<vmem>>, vector<1x2x32xf32>,
    %c0_112 = arith.constant 0 : index
    %c0_113 = arith.constant 0 : index
    %c0_114 = arith.constant 0 : index
    %487 = vector.load %arg15[%c0_112, %c0_113, %c0_114] : memref<4x2x32xf32, #tpu.memory_space<vmem>>, vector<4x2x32xf32>
    %c0_115 = arith.constant 0 : index
    %c0_116 = arith.constant 0 : index
    %c0_117 = arith.constant 0 : index
    %488 = vector.load %arg16[%c0_115, %c0_116, %c0_117] : memref<4x2x32xf32, #tpu.memory_space<vmem>>, vector<4x2x32xf32>
    %489 = tpu.concatenate %487, %488 in 2 : vector<4x2x32xf32>, vector<4x2x32xf32> -> vector<4x2x64xf32>
    %490 = vector.shape_cast %489 : vector<4x2x64xf32> to vector<8x64xf32>
    %491 = arith.truncf %490 : vector<8x64xf32> to vector<8x64xbf16>
    %c0_118 = arith.constant 0 : index
    %c0_119 = arith.constant 0 : index
    %492 = vector.load %arg10[%c0_118, %c0_119] : memref<64x128xbf16, #tpu.memory_space<vmem>>, vector<64x128xbf16>
    %cst_120 = arith.constant dense<0.000000e+00> : vector<8x128xf32>
    %493 = tpu.matmul %491, %492, %cst_120 {dimension_numbers = #tpu.dot_dimension_numbers<[1], [0], [0], [1], [0, 0, 1, 1], [], []>} : vector<8x64xbf16>, vector<64x128xbf16>, vector<8x128xf32> -> vector<8x128xf32>
    %c0_121 = arith.constant 0 : index
    %c0_122 = arith.constant 0 : index
    %494 = vector.load %arg11[%c0_121, %c0_122] : memref<1x128xf32, #tpu.memory_space<vmem>>, vector<1x128xf32>
    %495 = vector.broadcast %494 : vector<1x128xf32> to vector<8x128xf32>
    %496 = arith.addf %493, %495 : vector<8x128xf32>
    %c0_123 = arith.constant 0 : index
    %c0_124 = arith.constant 0 : index
    %497 = vector.load %arg12[%c0_123, %c0_124] : memref<8x128xf32, #tpu.memory_space<vmem>>, vector<8x128xf32>
    tpu.vector_store %arg12[%c0_123, %c0_124], %496 {strides = array<i32>} : memref<8x128xf32, #tpu.memory_space<vmem>>, vector<8x128xf32>,
    return
  }
  func.func @transform_0(%arg0: i32) -> (i32, i32, i32) {
    %c0_i32 = arith.constant 0 : i32
    %c0_i32_0 = arith.constant 0 : i32
    %c0_i32_1 = arith.constant 0 : i32
    %c0_i32_2 = arith.constant 0 : i32
    return %c0_i32, %c0_i32_0, %c0_i32_1 : i32, i32, i32
  }
  func.func @transform_1(%arg0: i32) -> (i32, i32) {
    %c0_i32 = arith.constant 0 : i32
    %c0_i32_0 = arith.constant 0 : i32
    %c0_i32_1 = arith.constant 0 : i32
    return %c0_i32, %c0_i32_0 : i32, i32
  }
  func.func @transform_2(%arg0: i32) -> (i32, i32) {
    %c0_i32 = arith.constant 0 : i32
    %c0_i32_0 = arith.constant 0 : i32
    %c0_i32_1 = arith.constant 0 : i32
    return %c0_i32, %c0_i32_0 : i32, i32
  }
  func.func @transform_3(%arg0: i32) -> (i32, i32) {
    %c0_i32 = arith.constant 0 : i32
    %c0_i32_0 = arith.constant 0 : i32
    %c0_i32_1 = arith.constant 0 : i32
    return %c0_i32, %c0_i32_0 : i32, i32
  }
  func.func @transform_4(%arg0: i32) -> (i32, i32) {
    %c0_i32 = arith.constant 0 : i32
    %c0_i32_0 = arith.constant 0 : i32
    %c0_i32_1 = arith.constant 0 : i32
    return %c0_i32, %c0_i32_0 : i32, i32
  }
  func.func @transform_5(%arg0: i32) -> (i32, i32) {
    %c0_i32 = arith.constant 0 : i32
    %c0_i32_0 = arith.constant 0 : i32
    %c0_i32_1 = arith.constant 0 : i32
    return %c0_i32, %c0_i32_0 : i32, i32
  }
  func.func @transform_6(%arg0: i32) -> (i32, i32) {
    %c0_i32 = arith.constant 0 : i32
    %c0_i32_0 = arith.constant 0 : i32
    %c0_i32_1 = arith.constant 0 : i32
    return %c0_i32, %c0_i32_0 : i32, i32
  }
  func.func @transform_7(%arg0: i32) -> (i32, i32) {
    %c0_i32 = arith.constant 0 : i32
    %c0_i32_0 = arith.constant 0 : i32
    %c0_i32_1 = arith.constant 0 : i32
    return %c0_i32, %c0_i32_0 : i32, i32
  }
  func.func @transform_8(%arg0: i32) -> (i32, i32) {
    %c0_i32 = arith.constant 0 : i32
    %c0_i32_0 = arith.constant 0 : i32
    %c0_i32_1 = arith.constant 0 : i32
    return %c0_i32, %c0_i32_0 : i32, i32
  }
  func.func @transform_9(%arg0: i32) -> (i32, i32) {
    %c0_i32 = arith.constant 0 : i32
    %c0_i32_0 = arith.constant 0 : i32
    %c0_i32_1 = arith.constant 0 : i32
    return %c0_i32, %c0_i32_0 : i32, i32
  }
  func.func @transform_10(%arg0: i32) -> (i32, i32) {
    %c0_i32 = arith.constant 0 : i32
    %c0_i32_0 = arith.constant 0 : i32
    %c0_i32_1 = arith.constant 0 : i32
    return %c0_i32, %c0_i32_0 : i32, i32
  }
  func.func @transform_11(%arg0: i32) -> (i32, i32) {
    %c0_i32 = arith.constant 0 : i32
    %c0_i32_0 = arith.constant 0 : i32
    %c0_i32_1 = arith.constant 0 : i32
    return %c0_i32, %c0_i32_0 : i32, i32
  }
}

</mosaic_0001>

<llo_original>
// kernel: lipnet_forward.4
$region0: #{lipnet_forward.4}
  #allocation0 [shape = 'u32[]', space=smem, size = 0x4, offset = 0x4, fixed_abs, tag = 'smem constant byte address 0x4 - core index']
  #allocation1 [shape = 'u32[144,128]{1,0:T(1,128)}', space=vmem, size = 0x12000, scoped, tag = 'internal scratch']
  %s0 = inlined_call_operand.vmem [shape: bf16[4,256,1024], index: 0, kind: input, shape index: {}]
  %s1 = inlined_call_operand.vmem [shape: bf16[8,256], index: 1, kind: input, shape index: {}]
  %s2 = inlined_call_operand.vmem [shape: f32[8,1], index: 2, kind: input, shape index: {}]
  %s3 = inlined_call_operand.vmem [shape: bf16[8,1024], index: 3, kind: output, shape index: {}]
  %s4 = sld [smem:[#allocation0]]
  $region68: #{lipnet_forward.4} parent=0
    _
  %s6 = ssub.s32 1, %s4
  %s7 = scalar_select 0, %s6, %s4
  $region1: #{lipnet_forward.4} parent=0
    #allocation2 [shape = 'u8[2097152]{0}', space=vmem, size = 0x200000, scoped, tag = 'input window, operand 0']
    loop: start=0, step=1, limit=4
    $region2: #{lipnet_forward.4} parent=1 // loop_pre_header
      _
    $region3: #{lipnet_forward.4} parent=1 // loop_header
      %s9 = sphi 0, %s13
      %p10 = scmp.ge.s32.totalorder %s9, 4
      %s19 = sphi 0, %s21
      %s22 = sphi 0, %s19
      %s23 = sphi 0, %s22
      %s39 = sphi 0, %s23
      %s43 = sphi 0, %s43
      %s45 = sphi 0, %s43
      %s46 = sphi 0, %s45
      %s60 = sphi 0, %s46
      %s64 = sphi 0, %s64
      %s66 = sphi 0, %s64
      %s67 = sphi 0, %s66
      %s81 = sphi 0, %s67
      %s87 = sphi 0, %s89
      %s90 = sphi 0, %s87
      %s91 = sphi 0, %s90
      %s107 = sphi 0, %s91
    $region4: #{lipnet_forward.4} parent=1 // loop_header_branch
      %12 = sbr.rel (%p10) target = $region8
    $region5: #{lipnet_forward.4} parent=1 // loop_body
      %s14 = ssub.s32 %s9, 1
      %s15 = ssub.s32 %s9, 2
      %s16 = sadd.s32 %s9, 1
      %s17 = ssub.s32 %s9, %s16
      %p18 = scmp.eq.s32.totalorder %s17, 0
      %s20 = sadd.s32 %s19, 1
      %s21 = scalar_select %p18, %s19, %s20
      %p24 = pneg %p18
      %p25 = scmp.eq.s32.totalorder %s9, 1
      %p26 = por %p24, %p25
      %p27 = scmp.ne.s32.totalorder %s19, %s22
      %p28 = scmp.eq.s32.totalorder %s9, 0
      %p29 = por %p27, %p28
      %p30 = scmp.ne.s32.totalorder %s19, %s22
      %p31 = scmp.eq.s32.totalorder %s14, 1
      %p32 = por %p30, %p31
      %p33 = scmp.ne.s32.totalorder %s22, %s23
      %p34 = scmp.eq.s32.totalorder %s14, 0
      %p35 = por %p33, %p34
      %p36 = scmp.ne.s32.totalorder %s22, %s23
      %p37 = scmp.eq.s32.totalorder %s15, 1
      %p38 = por %p36, %p37
      %p40 = scmp.ne.s32.totalorder %s23, %s39
      %p41 = scmp.eq.s32.totalorder %s15, 0
      %p42 = por %p40, %p41
      %s44 = sadd.s32 %s43, 1
      %p47 = scmp.eq.s32.totalorder %s9, 1
      %p48 = scmp.ne.s32.totalorder %s43, %s45
      %p49 = scmp.eq.s32.totalorder %s9, 0
      %p50 = por %p48, %p49
      %p51 = scmp.ne.s32.totalorder %s43, %s45
      %p52 = scmp.eq.s32.totalorder %s14, 1
      %p53 = por %p51, %p52
      %p54 = scmp.ne.s32.totalorder %s45, %s46
      %p55 = scmp.eq.s32.totalorder %s14, 0
      %p56 = por %p54, %p55
      %p57 = scmp.ne.s32.totalorder %s45, %s46
      %p58 = scmp.eq.s32.totalorder %s15, 1
      %p59 = por %p57, %p58
      %p61 = scmp.ne.s32.totalorder %s46, %s60
      %p62 = scmp.eq.s32.totalorder %s15, 0
      %p63 = por %p61, %p62
      %s65 = sadd.s32 %s64, 1
      %p68 = scmp.eq.s32.totalorder %s9, 1
      %p69 = scmp.ne.s32.totalorder %s64, %s66
      %p70 = scmp.eq.s32.totalorder %s9, 0
      %p71 = por %p69, %p70
      %p72 = scmp.ne.s32.totalorder %s64, %s66
      %p73 = scmp.eq.s32.totalorder %s14, 1
      %p74 = por %p72, %p73
      %p75 = scmp.ne.s32.totalorder %s66, %s67
      %p76 = scmp.eq.s32.totalorder %s14, 0
      %p77 = por %p75, %p76
      %p78 = scmp.ne.s32.totalorder %s66, %s67
      %p79 = scmp.eq.s32.totalorder %s15, 1
      %p80 = por %p78, %p79
      %p82 = scmp.ne.s32.totalorder %s67, %s81
      %p83 = scmp.eq.s32.totalorder %s15, 0
      %p84 = por %p82, %p83
      %s85 = ssub.s32 %s9, %s16
      %p86 = scmp.eq.s32.totalorder %s85, 0
      %s88 = sadd.s32 %s87, 1
      %s89 = scalar_select %p86, %s87, %s88
      %p92 = pneg %p86
      %p93 = scmp.eq.s32.totalorder %s9, 1
      %p94 = por %p92, %p93
      %p95 = scmp.ne.s32.totalorder %s87, %s90
      %p96 = scmp.eq.s32.totalorder %s9, 0
      %p97 = por %p95, %p96
      %p98 = scmp.ne.s32.totalorder %s87, %s90
      %p99 = scmp.eq.s32.totalorder %s14, 1
      %p100 = por %p98, %p99
      %p101 = scmp.ne.s32.totalorder %s90, %s91
      %p102 = scmp.eq.s32.totalorder %s14, 0
      %p103 = por %p101, %p102
      %p104 = scmp.ne.s32.totalorder %s90, %s91
      %p105 = scmp.eq.s32.totalorder %s15, 1
      %p106 = por %p104, %p105
      %p108 = scmp.ne.s32.totalorder %s91, %s107
      %p109 = scmp.eq.s32.totalorder %s15, 0
      %p110 = por %p108, %p109
      %p111 = scmp.le.s32.totalorder 1, %s9
      %p112 = scmp.lt.s32.totalorder %s9, 3
      %p113 = pnand %p111, %p112
      %p114 = pneg %p113
      // Predicated region
      $region9: #{lipnet_forward.4} parent=5 // pred_check
        _
      $region10: #{lipnet_forward.4} parent=5 // pred_check_branch
        %116 = sbr.rel (%p113) target = $region12
      $region11: #{lipnet_forward.4} parent=5 // pred_region
        %s117 = ssub.s32 %s9, 1
        // Predicated region
        $region13: #{lipnet_forward.4} parent=11 // pred_check
          %p118 = pneg %p56
        $region14: #{lipnet_forward.4} parent=11 // pred_check_branch
          %120 = sbr.rel (%p118) target = $region16
        $region15: #{lipnet_forward.4} parent=11 // pred_region
          _
        $region16: #{lipnet_forward.4} parent=11 // pred_fallthru
          _
        // Predicated region
        $region17: #{lipnet_forward.4} parent=11 // pred_check
          %p121 = pneg %p77
        $region18: #{lipnet_forward.4} parent=11 // pred_check_branch
          %123 = sbr.rel (%p121) target = $region20
        $region19: #{lipnet_forward.4} parent=11 // pred_region
          _
        $region20: #{lipnet_forward.4} parent=11 // pred_fallthru
          _
      $region12: #{lipnet_forward.4} parent=5 // pred_fallthru
        _
      %p124 = scmp.lt.s32.totalorder %s9, 2
      // Predicated region
      $region21: #{lipnet_forward.4} parent=5 // pred_check
        %p125 = pneg %p124
      $region22: #{lipnet_forward.4} parent=5 // pred_check_branch
        %127 = sbr.rel (%p125) target = $region24
      $region23: #{lipnet_forward.4} parent=5 // pred_region
        // Predicated region
        $region25: #{lipnet_forward.4} parent=23 // pred_check
          %p128 = pneg %p29
        $region26: #{lipnet_forward.4} parent=23 // pred_check_branch
          %130 = sbr.rel (%p128) target = $region28
        $region27: #{lipnet_forward.4} parent=23 // pred_region
          %s131 = sand.u32 %s19, 1
          %s132 = sand.u32 %s19, 1
          %s133 = smul.addr %s132, 2048
          %s134 = scalar_lea.vmem [#allocation2], %s133
          %s135 = smul.u32 4, %s9
          %s136 = smul.addr %s135, 4
          %s137 = scalar_lea.vmem %s0, %s136
          // Predicated region
          $region29: #{lipnet_forward.4} parent=27 // pred_check
            _
          $region30: #{lipnet_forward.4} parent=27 // pred_check_branch
            %139 = sbr.rel (0) target = $region32
          $region31: #{lipnet_forward.4} parent=27 // pred_region
            // Predicated region
            $region33: #{lipnet_forward.4} parent=31 // pred_check
              _
            $region34: #{lipnet_forward.4} parent=31 // pred_check_branch
              %141 = sbr.rel (0) target = $region36
            $region35: #{lipnet_forward.4} parent=31 // pred_region
              loop: start=0, step=1, limit=1
              $region37: #{lipnet_forward.4} parent=35 // loop_pre_header
                _
              $region38: #{lipnet_forward.4} parent=35 // loop_header
                %s143 = sphi 0, %s147
                %p144 = scmp.ge.s32.totalorder %s143, 1
                %s148 = sphi %s137, %s137
                %s149 = sphi %s134, %s134
              $region39: #{lipnet_forward.4} parent=35 // loop_header_branch
                %146 = sbr.rel (%p144) target = $region43
              $region40: #{lipnet_forward.4} parent=35 // loop_body
                %v150 = vld [vmem:[%s148] sm:$0xff]
                %151 = vst [vmem:[%s149] sm:$0xff] %v150
                %v152 = vld [vmem:[%s148 + $0x8] sm:$0xff]
                %153 = vst [vmem:[%s149 + $0x8] sm:$0xff] %v152
                %v154 = vld [vmem:[%s148 + $0x20] sm:$0xff]
                %155 = vst [vmem:[%s149 + $0x10] sm:$0xff] %v154
                %v156 = vld [vmem:[%s148 + $0x28] sm:$0xff]
                %157 = vst [vmem:[%s149 + $0x18] sm:$0xff] %v156
                %v158 = vld [vmem:[%s148 + $0x40] sm:$0xff]
                %159 = vst [vmem:[%s149 + $0x20] sm:$0xff] %v158
                %v160 = vld [vmem:[%s148 + $0x48] sm:$0xff]
                %161 = vst [vmem:[%s149 + $0x28] sm:$0xff] %v160
                %v162 = vld [vmem:[%s148 + $0x60] sm:$0xff]
                %163 = vst [vmem:[%s149 + $0x30] sm:$0xff] %v162
                %v164 = vld [vmem:[%s148 + $0x68] sm:$0xff]
                %165 = vst [vmem:[%s149 + $0x38] sm:$0xff] %v164
                %v166 = vld [vmem:[%s148 + $0x80] sm:$0xff]
                %167 = vst [vmem:[%s149 + $0x40] sm:$0xff] %v166
                %v168 = vld [vmem:[%s148 + $0x88] sm:$0xff]
                %169 = vst [vmem:[%s149 + $0x48] sm:$0xff] %v168
                %v170 = vld [vmem:[%s148 + $0xa0] sm:$0xff]
                %171 = vst [vmem:[%s149 + $0x50] sm:$0xff] %v170
                %v172 = vld [vmem:[%s148 + $0xa8] sm:$0xff]
                %173 = vst [vmem:[%s149 + $0x58] sm:$0xff] %v172
                %v174 = vld [vmem:[%s148 + $0xc0] sm:$0xff]
                %175 = vst [vmem:[%s149 + $0x60] sm:$0xff] %v174
                %v176 = vld [vmem:[%s148 + $0xc8] sm:$0xff]
                %177 = vst [vmem:[%s149 + $0x68] sm:$0xff] %v176
                %v178 = vld [vmem:[%s148 + $0xe0] sm:$0xff]
                %179 = vst [vmem:[%s149 + $0x70] sm:$0xff] %v178
                %v180 = vld [vmem:[%s148 + $0xe8] sm:$0xff]
                %181 = vst [vmem:[%s149 + $0x78] sm:$0xff] %v180
                %v182 = vld [vmem:[%s148 + $0x100] sm:$0xff]
                %183 = vst [vmem:[%s149 + $0x80] sm:$0xff] %v182
                %v184 = vld [vmem:[%s148 + $0x108] sm:$0xff]
                %185 = vst [vmem:[%s149 + $0x88] sm:$0xff] %v184
                %v186 = vld [vmem:[%s148 + $0x120] sm:$0xff]
                %187 = vst [vmem:[%s149 + $0x90] sm:$0xff] %v186
                %v188 = vld [vmem:[%s148 + $0x128] sm:$0xff]
                %189 = vst [vmem:[%s149 + $0x98] sm:$0xff] %v188
                %v190 = vld [vmem:[%s148 + $0x140] sm:$0xff]
                %191 = vst [vmem:[%s149 + $0xa0] sm:$0xff] %v190
                %v192 = vld [vmem:[%s148 + $0x148] sm:$0xff]
                %193 = vst [vmem:[%s149 + $0xa8] sm:$0xff] %v192
                %v194 = vld [vmem:[%s148 + $0x160] sm:$0xff]
                %195 = vst [vmem:[%s149 + $0xb0] sm:$0xff] %v194
                %v196 = vld [vmem:[%s148 + $0x168] sm:$0xff]
                %197 = vst [vmem:[%s149 + $0xb8] sm:$0xff] %v196
                %v198 = vld [vmem:[%s148 + $0x180] sm:$0xff]
                %199 = vst [vmem:[%s149 + $0xc0] sm:$0xff] %v198
                %v200 = vld [vmem:[%s148 + $0x188] sm:$0xff]
                %201 = vst [vmem:[%s149 + $0xc8] sm:$0xff] %v200
                %v202 = vld [vmem:[%s148 + $0x1a0] sm:$0xff]
                %203 = vst [vmem:[%s149 + $0xd0] sm:$0xff] %v202
                %v204 = vld [vmem:[%s148 + $0x1a8] sm:$0xff]
                %205 = vst [vmem:[%s149 + $0xd8] sm:$0xff] %v204
                %v206 = vld [vmem:[%s148 + $0x1c0] sm:$0xff]
                %207 = vst [vmem:[%s149 + $0xe0] sm:$0xff] %v206
                %v208 = vld [vmem:[%s148 + $0x1c8] sm:$0xff]
                %209 = vst [vmem:[%s149 + $0xe8] sm:$0xff] %v208
                %v210 = vld [vmem:[%s148 + $0x1e0] sm:$0xff]
                %211 = vst [vmem:[%s149 + $0xf0] sm:$0xff] %v210
                %v212 = vld [vmem:[%s148 + $0x1e8] sm:$0xff]
                %213 = vst [vmem:[%s149 + $0xf8] sm:$0xff] %v212
                %v214 = vld [vmem:[%s148 + $0x200] sm:$0xff]
                %215 = vst [vmem:[%s149 + $0x100] sm:$0xff] %v214
                %v216 = vld [vmem:[%s148 + $0x208] sm:$0xff]
                %217 = vst [vmem:[%s149 + $0x108] sm:$0xff] %v216
                %v218 = vld [vmem:[%s148 + $0x220] sm:$0xff]
                %219 = vst [vmem:[%s149 + $0x110] sm:$0xff] %v218
                %v220 = vld [vmem:[%s148 + $0x228] sm:$0xff]
                %221 = vst [vmem:[%s149 + $0x118] sm:$0xff] %v220
                %v222 = vld [vmem:[%s148 + $0x240] sm:$0xff]
                %223 = vst [vmem:[%s149 + $0x120] sm:$0xff] %v222
                %v224 = vld [vmem:[%s148 + $0x248] sm:$0xff]
                %225 = vst [vmem:[%s149 + $0x128] sm:$0xff] %v224
                %v226 = vld [vmem:[%s148 + $0x260] sm:$0xff]
                %227 = vst [vmem:[%s149 + $0x130] sm:$0xff] %v226
                %v228 = vld [vmem:[%s148 + $0x268] sm:$0xff]
                %229 = vst [vmem:[%s149 + $0x138] sm:$0xff] %v228
                %v230 = vld [vmem:[%s148 + $0x280] sm:$0xff]
                %231 = vst [vmem:[%s149 + $0x140] sm:$0xff] %v230
                %v232 = vld [vmem:[%s148 + $0x288] sm:$0xff]
                %233 = vst [vmem:[%s149 + $0x148] sm:$0xff] %v232
                %v234 = vld [vmem:[%s148 + $0x2a0] sm:$0xff]
                %235 = vst [vmem:[%s149 + $0x150] sm:$0xff] %v234
                %v236 = vld [vmem:[%s148 + $0x2a8] sm:$0xff]
                %237 = vst [vmem:[%s149 + $0x158] sm:$0xff] %v236
                %v238 = vld [vmem:[%s148 + $0x2c0] sm:$0xff]
                %239 = vst [vmem:[%s149 + $0x160] sm:$0xff] %v238
                %v240 = vld [vmem:[%s148 + $0x2c8] sm:$0xff]
                %241 = vst [vmem:[%s149 + $0x168] sm:$0xff] %v240
                %v242 = vld [vmem:[%s148 + $0x2e0] sm:$0xff]
                %243 = vst [vmem:[%s149 + $0x170] sm:$0xff] %v242
                %v244 = vld [vmem:[%s148 + $0x2e8] sm:$0xff]
                %245 = vst [vmem:[%s149 + $0x178] sm:$0xff] %v244
                %v246 = vld [vmem:[%s148 + $0x300] sm:$0xff]
                %247 = vst [vmem:[%s149 + $0x180] sm:$0xff] %v246
                %v248 = vld [vmem:[%s148 + $0x308] sm:$0xff]
                %249 = vst [vmem:[%s149 + $0x188] sm:$0xff] %v248
                %v250 = vld [vmem:[%s148 + $0x320] sm:$0xff]
                %251 = vst [vmem:[%s149 + $0x190] sm:$0xff] %v250
                %v252 = vld [vmem:[%s148 + $0x328] sm:$0xff]
                %253 = vst [vmem:[%s149 + $0x198] sm:$0xff] %v252
                %v254 = vld [vmem:[%s148 + $0x340] sm:$0xff]
                %255 = vst [vmem:[%s149 + $0x1a0] sm:$0xff] %v254
                %v256 = vld [vmem:[%s148 + $0x348] sm:$0xff]
                %257 = vst [vmem:[%s149 + $0x1a8] sm:$0xff] %v256
                %v258 = vld [vmem:[%s148 + $0x360] sm:$0xff]
                %259 = vst [vmem:[%s149 + $0x1b0] sm:$0xff] %v258
                %v260 = vld [vmem:[%s148 + $0x368] sm:$0xff]
                %261 = vst [vmem:[%s149 + $0x1b8] sm:$0xff] %v260
                %v262 = vld [vmem:[%s148 + $0x380] sm:$0xff]
                %263 = vst [vmem:[%s149 + $0x1c0] sm:$0xff] %v262
                %v264 = vld [vmem:[%s148 + $0x388] sm:$0xff]
                %265 = vst [vmem:[%s149 + $0x1c8] sm:$0xff] %v264
                %v266 = vld [vmem:[%s148 + $0x3a0] sm:$0xff]
                %267 = vst [vmem:[%s149 + $0x1d0] sm:$0xff] %v266
                %v268 = vld [vmem:[%s148 + $0x3a8] sm:$0xff]
                %269 = vst [vmem:[%s149 + $0x1d8] sm:$0xff] %v268
                %v270 = vld [vmem:[%s148 + $0x3c0] sm:$0xff]
                %271 = vst [vmem:[%s149 + $0x1e0] sm:$0xff] %v270
                %v272 = vld [vmem:[%s148 + $0x3c8] sm:$0xff]
                %273 = vst [vmem:[%s149 + $0x1e8] sm:$0xff] %v272
                %v274 = vld [vmem:[%s148 + $0x3e0] sm:$0xff]
                %275 = vst [vmem:[%s149 + $0x1f0] sm:$0xff] %v274
                %v276 = vld [vmem:[%s148 + $0x3e8] sm:$0xff]
                %277 = vst [vmem:[%s149 + $0x1f8] sm:$0xff] %v276
                %v278 = vld [vmem:[%s148 + $0x400] sm:$0xff]
                %279 = vst [vmem:[%s149 + $0x200] sm:$0xff] %v278
                %v280 = vld [vmem:[%s148 + $0x408] sm:$0xff]
                %281 = vst [vmem:[%s149 + $0x208] sm:$0xff] %v280
                %v282 = vld [vmem:[%s148 + $0x420] sm:$0xff]
                %283 = vst [vmem:[%s149 + $0x210] sm:$0xff] %v282
                %v284 = vld [vmem:[%s148 + $0x428] sm:$0xff]
                %285 = vst [vmem:[%s149 + $0x218] sm:$0xff] %v284
                %v286 = vld [vmem:[%s148 + $0x440] sm:$0xff]
                %287 = vst [vmem:[%s149 + $0x220] sm:$0xff] %v286
                %v288 = vld [vmem:[%s148 + $0x448] sm:$0xff]
                %289 = vst [vmem:[%s149 + $0x228] sm:$0xff] %v288
                %v290 = vld [vmem:[%s148 + $0x460] sm:$0xff]
                %291 = vst [vmem:[%s149 + $0x230] sm:$0xff] %v290
                %v292 = vld [vmem:[%s148 + $0x468] sm:$0xff]
                %293 = vst [vmem:[%s149 + $0x238] sm:$0xff] %v292
                %v294 = vld [vmem:[%s148 + $0x480] sm:$0xff]
                %295 = vst [vmem:[%s149 + $0x240] sm:$0xff] %v294
                %v296 = vld [vmem:[%s148 + $0x488] sm:$0xff]
                %297 = vst [vmem:[%s149 + $0x248] sm:$0xff] %v296
                %v298 = vld [vmem:[%s148 + $0x4a0] sm:$0xff]
                %299 = vst [vmem:[%s149 + $0x250] sm:$0xff] %v298
                %v300 = vld [vmem:[%s148 + $0x4a8] sm:$0xff]
                %301 = vst [vmem:[%s149 + $0x258] sm:$0xff] %v300
                %v302 = vld [vmem:[%s148 + $0x4c0] sm:$0xff]
                %303 = vst [vmem:[%s149 + $0x260] sm:$0xff] %v302
                %v304 = vld [vmem:[%s148 + $0x4c8] sm:$0xff]
                %305 = vst [vmem:[%s149 + $0x268] sm:$0xff] %v304
                %v306 = vld [vmem:[%s148 + $0x4e0] sm:$0xff]
                %307 = vst [vmem:[%s149 + $0x270] sm:$0xff] %v306
                %v308 = vld [vmem:[%s148 + $0x4e8] sm:$0xff]
                %309 = vst [vmem:[%s149 + $0x278] sm:$0xff] %v308
                %v310 = vld [vmem:[%s148 + $0x500] sm:$0xff]
                %311 = vst [vmem:[%s149 + $0x280] sm:$0xff] %v310
                %v312 = vld [vmem:[%s148 + $0x508] sm:$0xff]
                %313 = vst [vmem:[%s149 + $0x288] sm:$0xff] %v312
                %v314 = vld [vmem:[%s148 + $0x520] sm:$0xff]
                %315 = vst [vmem:[%s149 + $0x290] sm:$0xff] %v314
                %v316 = vld [vmem:[%s148 + $0x528] sm:$0xff]
                %317 = vst [vmem:[%s149 + $0x298] sm:$0xff] %v316
                %v318 = vld [vmem:[%s148 + $0x540] sm:$0xff]
                %319 = vst [vmem:[%s149 + $0x2a0] sm:$0xff] %v318
                %v320 = vld [vmem:[%s148 + $0x548] sm:$0xff]
                %321 = vst [vmem:[%s149 + $0x2a8] sm:$0xff] %v320
                %v322 = vld [vmem:[%s148 + $0x560] sm:$0xff]
                %323 = vst [vmem:[%s149 + $0x2b0] sm:$0xff] %v322
                %v324 = vld [vmem:[%s148 + $0x568] sm:$0xff]
                %325 = vst [vmem:[%s149 + $0x2b8] sm:$0xff] %v324
                %v326 = vld [vmem:[%s148 + $0x580] sm:$0xff]
                %327 = vst [vmem:[%s149 + $0x2c0] sm:$0xff] %v326
                %v328 = vld [vmem:[%s148 + $0x588] sm:$0xff]
                %329 = vst [vmem:[%s149 + $0x2c8] sm:$0xff] %v328
                %v330 = vld [vmem:[%s148 + $0x5a0] sm:$0xff]
                %331 = vst [vmem:[%s149 + $0x2d0] sm:$0xff] %v330
                %v332 = vld [vmem:[%s148 + $0x5a8] sm:$0xff]
                %333 = vst [vmem:[%s149 + $0x2d8] sm:$0xff] %v332
                %v334 = vld [vmem:[%s148 + $0x5c0] sm:$0xff]
                %335 = vst [vmem:[%s149 + $0x2e0] sm:$0xff] %v334
                %v336 = vld [vmem:[%s148 + $0x5c8] sm:$0xff]
                %337 = vst [vmem:[%s149 + $0x2e8] sm:$0xff] %v336
                %v338 = vld [vmem:[%s148 + $0x5e0] sm:$0xff]
                %339 = vst [vmem:[%s149 + $0x2f0] sm:$0xff] %v338
                %v340 = vld [vmem:[%s148 + $0x5e8] sm:$0xff]
                %341 = vst [vmem:[%s149 + $0x2f8] sm:$0xff] %v340
                %v342 = vld [vmem:[%s148 + $0x600] sm:$0xff]
                %343 = vst [vmem:[%s149 + $0x300] sm:$0xff] %v342
                %v344 = vld [vmem:[%s148 + $0x608] sm:$0xff]
                %345 = vst [vmem:[%s149 + $0x308] sm:$0xff] %v344
                %v346 = vld [vmem:[%s148 + $0x620] sm:$0xff]
                %347 = vst [vmem:[%s149 + $0x310] sm:$0xff] %v346
                %v348 = vld [vmem:[%s148 + $0x628] sm:$0xff]
                %349 = vst [vmem:[%s149 + $0x318] sm:$0xff] %v348
                %v350 = vld [vmem:[%s148 + $0x640] sm:$0xff]
                %351 = vst [vmem:[%s149 + $0x320] sm:$0xff] %v350
                %v352 = vld [vmem:[%s148 + $0x648] sm:$0xff]
                %353 = vst [vmem:[%s149 + $0x328] sm:$0xff] %v352
                %v354 = vld [vmem:[%s148 + $0x660] sm:$0xff]
                %355 = vst [vmem:[%s149 + $0x330] sm:$0xff] %v354
                %v356 = vld [vmem:[%s148 + $0x668] sm:$0xff]
                %357 = vst [vmem:[%s149 + $0x338] sm:$0xff] %v356
                %v358 = vld [vmem:[%s148 + $0x680] sm:$0xff]
                %359 = vst [vmem:[%s149 + $0x340] sm:$0xff] %v358
                %v360 = vld [vmem:[%s148 + $0x688] sm:$0xff]
                %361 = vst [vmem:[%s149 + $0x348] sm:$0xff] %v360
                %v362 = vld [vmem:[%s148 + $0x6a0] sm:$0xff]
                %363 = vst [vmem:[%s149 + $0x350] sm:$0xff] %v362
                %v364 = vld [vmem:[%s148 + $0x6a8] sm:$0xff]
                %365 = vst [vmem:[%s149 + $0x358] sm:$0xff] %v364
                %v366 = vld [vmem:[%s148 + $0x6c0] sm:$0xff]
                %367 = vst [vmem:[%s149 + $0x360] sm:$0xff] %v366
                %v368 = vld [vmem:[%s148 + $0x6c8] sm:$0xff]
                %369 = vst [vmem:[%s149 + $0x368] sm:$0xff] %v368
                %v370 = vld [vmem:[%s148 + $0x6e0] sm:$0xff]
                %371 = vst [vmem:[%s149 + $0x370] sm:$0xff] %v370
                %v372 = vld [vmem:[%s148 + $0x6e8] sm:$0xff]
                %373 = vst [vmem:[%s149 + $0x378] sm:$0xff] %v372
                %v374 = vld [vmem:[%s148 + $0x700] sm:$0xff]
                %375 = vst [vmem:[%s149 + $0x380] sm:$0xff] %v374
                %v376 = vld [vmem:[%s148 + $0x708] sm:$0xff]
                %377 = vst [vmem:[%s149 + $0x388] sm:$0xff] %v376
                %v378 = vld [vmem:[%s148 + $0x720] sm:$0xff]
                %379 = vst [vmem:[%s149 + $0x390] sm:$0xff] %v378
                %v380 = vld [vmem:[%s148 + $0x728] sm:$0xff]
                %381 = vst [vmem:[%s149 + $0x398] sm:$0xff] %v380
                %v382 = vld [vmem:[%s148 + $0x740] sm:$0xff]
                %383 = vst [vmem:[%s149 + $0x3a0] sm:$0xff] %v382
                %v384 = vld [vmem:[%s148 + $0x748] sm:$0xff]
                %385 = vst [vmem:[%s149 + $0x3a8] sm:$0xff] %v384
                %v386 = vld [vmem:[%s148 + $0x760] sm:$0xff]
                %387 = vst [vmem:[%s149 + $0x3b0] sm:$0xff] %v386
                %v388 = vld [vmem:[%s148 + $0x768] sm:$0xff]
                %389 = vst [vmem:[%s149 + $0x3b8] sm:$0xff] %v388
                %v390 = vld [vmem:[%s148 + $0x780] sm:$0xff]
                %391 = vst [vmem:[%s149 + $0x3c0] sm:$0xff] %v390
                %v392 = vld [vmem:[%s148 + $0x788] sm:$0xff]
                %393 = vst [vmem:[%s149 + $0x3c8] sm:$0xff] %v392
                %v394 = vld [vmem:[%s148 + $0x7a0] sm:$0xff]
                %395 = vst [vmem:[%s149 + $0x3d0] sm:$0xff] %v394
                %v396 = vld [vmem:[%s148 + $0x7a8] sm:$0xff]
                %397 = vst [vmem:[%s149 + $0x3d8] sm:$0xff] %v396
                %v398 = vld [vmem:[%s148 + $0x7c0] sm:$0xff]
                %399 = vst [vmem:[%s149 + $0x3e0] sm:$0xff] %v398
                %v400 = vld [vmem:[%s148 + $0x7c8] sm:$0xff]
                %401 = vst [vmem:[%s149 + $0x3e8] sm:$0xff] %v400
                %v402 = vld [vmem:[%s148 + $0x7e0] sm:$0xff]
                %403 = vst [vmem:[%s149 + $0x3f0] sm:$0xff] %v402
                %v404 = vld [vmem:[%s148 + $0x7e8] sm:$0xff]
                %405 = vst [vmem:[%s149 + $0x3f8] sm:$0xff] %v404
                %v406 = vld [vmem:[%s148 + $0x800] sm:$0xff]
                %407 = vst [vmem:[%s149 + $0x400] sm:$0xff] %v406
                %v408 = vld [vmem:[%s148 + $0x808] sm:$0xff]
                %409 = vst [vmem:[%s149 + $0x408] sm:$0xff] %v408
                %v410 = vld [vmem:[%s148 + $0x820] sm:$0xff]
                %411 = vst [vmem:[%s149 + $0x410] sm:$0xff] %v410
                %v412 = vld [vmem:[%s148 + $0x828] sm:$0xff]
                %413 = vst [vmem:[%s149 + $0x418] sm:$0xff] %v412
                %v414 = vld [vmem:[%s148 + $0x840] sm:$0xff]
                %415 = vst [vmem:[%s149 + $0x420] sm:$0xff] %v414
                %v416 = vld [vmem:[%s148 + $0x848] sm:$0xff]
                %417 = vst [vmem:[%s149 + $0x428] sm:$0xff] %v416
                %v418 = vld [vmem:[%s148 + $0x860] sm:$0xff]
                %419 = vst [vmem:[%s149 + $0x430] sm:$0xff] %v418
                %v420 = vld [vmem:[%s148 + $0x868] sm:$0xff]
                %421 = vst [vmem:[%s149 + $0x438] sm:$0xff] %v420
                %v422 = vld [vmem:[%s148 + $0x880] sm:$0xff]
                %423 = vst [vmem:[%s149 + $0x440] sm:$0xff] %v422
                %v424 = vld [vmem:[%s148 + $0x888] sm:$0xff]
                %425 = vst [vmem:[%s149 + $0x448] sm:$0xff] %v424
                %v426 = vld [vmem:[%s148 + $0x8a0] sm:$0xff]
                %427 = vst [vmem:[%s149 + $0x450] sm:$0xff] %v426
                %v428 = vld [vmem:[%s148 + $0x8a8] sm:$0xff]
                %429 = vst [vmem:[%s149 + $0x458] sm:$0xff] %v428
                %v430 = vld [vmem:[%s148 + $0x8c0] sm:$0xff]
                %431 = vst [vmem:[%s149 + $0x460] sm:$0xff] %v430
                %v432 = vld [vmem:[%s148 + $0x8c8] sm:$0xff]
                %433 = vst [vmem:[%s149 + $0x468] sm:$0xff] %v432
                %v434 = vld [vmem:[%s148 + $0x8e0] sm:$0xff]
                %435 = vst [vmem:[%s149 + $0x470] sm:$0xff] %v434
                %v436 = vld [vmem:[%s148 + $0x8e8] sm:$0xff]
                %437 = vst [vmem:[%s149 + $0x478] sm:$0xff] %v436
                %v438 = vld [vmem:[%s148 + $0x900] sm:$0xff]
                %439 = vst [vmem:[%s149 + $0x480] sm:$0xff] %v438
                %v440 = vld [vmem:[%s148 + $0x908] sm:$0xff]
                %441 = vst [vmem:[%s149 + $0x488] sm:$0xff] %v440
                %v442 = vld [vmem:[%s148 + $0x920] sm:$0xff]
                %443 = vst [vmem:[%s149 + $0x490] sm:$0xff] %v442
                %v444 = vld [vmem:[%s148 + $0x928] sm:$0xff]
                %445 = vst [vmem:[%s149 + $0x498] sm:$0xff] %v444
                %v446 = vld [vmem:[%s148 + $0x940] sm:$0xff]
                %447 = vst [vmem:[%s149 + $0x4a0] sm:$0xff] %v446
                %v448 = vld [vmem:[%s148 + $0x948] sm:$0xff]
                %449 = vst [vmem:[%s149 + $0x4a8] sm:$0xff] %v448
                %v450 = vld [vmem:[%s148 + $0x960] sm:$0xff]
                %451 = vst [vmem:[%s149 + $0x4b0] sm:$0xff] %v450
                %v452 = vld [vmem:[%s148 + $0x968] sm:$0xff]
                %453 = vst [vmem:[%s149 + $0x4b8] sm:$0xff] %v452
                %v454 = vld [vmem:[%s148 + $0x980] sm:$0xff]
                %455 = vst [vmem:[%s149 + $0x4c0] sm:$0xff] %v454
                %v456 = vld [vmem:[%s148 + $0x988] sm:$0xff]
                %457 = vst [vmem:[%s149 + $0x4c8] sm:$0xff] %v456
                %v458 = vld [vmem:[%s148 + $0x9a0] sm:$0xff]
                %459 = vst [vmem:[%s149 + $0x4d0] sm:$0xff] %v458
                %v460 = vld [vmem:[%s148 + $0x9a8] sm:$0xff]
                %461 = vst [vmem:[%s149 + $0x4d8] sm:$0xff] %v460
                %v462 = vld [vmem:[%s148 + $0x9c0] sm:$0xff]
                %463 = vst [vmem:[%s149 + $0x4e0] sm:$0xff] %v462
                %v464 = vld [vmem:[%s148 + $0x9c8] sm:$0xff]
                %465 = vst [vmem:[%s149 + $0x4e8] sm:$0xff] %v464
                %v466 = vld [vmem:[%s148 + $0x9e0] sm:$0xff]
                %467 = vst [vmem:[%s149 + $0x4f0] sm:$0xff] %v466
                %v468 = vld [vmem:[%s148 + $0x9e8] sm:$0xff]
                %469 = vst [vmem:[%s149 + $0x4f8] sm:$0xff] %v468
                %v470 = vld [vmem:[%s148 + $0xa00] sm:$0xff]
                %471 = vst [vmem:[%s149 + $0x500] sm:$0xff] %v470
                %v472 = vld [vmem:[%s148 + $0xa08] sm:$0xff]
                %473 = vst [vmem:[%s149 + $0x508] sm:$0xff] %v472
                %v474 = vld [vmem:[%s148 + $0xa20] sm:$0xff]
                %475 = vst [vmem:[%s149 + $0x510] sm:$0xff] %v474
                %v476 = vld [vmem:[%s148 + $0xa28] sm:$0xff]
                %477 = vst [vmem:[%s149 + $0x518] sm:$0xff] %v476
                %v478 = vld [vmem:[%s148 + $0xa40] sm:$0xff]
                %479 = vst [vmem:[%s149 + $0x520] sm:$0xff] %v478
                %v480 = vld [vmem:[%s148 + $0xa48] sm:$0xff]
                %481 = vst [vmem:[%s149 + $0x528] sm:$0xff] %v480
                %v482 = vld [vmem:[%s148 + $0xa60] sm:$0xff]
                %483 = vst [vmem:[%s149 + $0x530] sm:$0xff] %v482
                %v484 = vld [vmem:[%s148 + $0xa68] sm:$0xff]
                %485 = vst [vmem:[%s149 + $0x538] sm:$0xff] %v484
                %v486 = vld [vmem:[%s148 + $0xa80] sm:$0xff]
                %487 = vst [vmem:[%s149 + $0x540] sm:$0xff] %v486
                %v488 = vld [vmem:[%s148 + $0xa88] sm:$0xff]
                %489 = vst [vmem:[%s149 + $0x548] sm:$0xff] %v488
                %v490 = vld [vmem:[%s148 + $0xaa0] sm:$0xff]
                %491 = vst [vmem:[%s149 + $0x550] sm:$0xff] %v490
                %v492 = vld [vmem:[%s148 + $0xaa8] sm:$0xff]
                %493 = vst [vmem:[%s149 + $0x558] sm:$0xff] %v492
                %v494 = vld [vmem:[%s148 + $0xac0] sm:$0xff]
                %495 = vst [vmem:[%s149 + $0x560] sm:$0xff] %v494
                %v496 = vld [vmem:[%s148 + $0xac8] sm:$0xff]
                %497 = vst [vmem:[%s149 + $0x568] sm:$0xff] %v496
                %v498 = vld [vmem:[%s148 + $0xae0] sm:$0xff]
                %499 = vst [vmem:[%s149 + $0x570] sm:$0xff] %v498
                %v500 = vld [vmem:[%s148 + $0xae8] sm:$0xff]
                %501 = vst [vmem:[%s149 + $0x578] sm:$0xff] %v500
                %v502 = vld [vmem:[%s148 + $0xb00] sm:$0xff]
                %503 = vst [vmem:[%s149 + $0x580] sm:$0xff] %v502
                %v504 = vld [vmem:[%s148 + $0xb08] sm:$0xff]
                %505 = vst [vmem:[%s149 + $0x588] sm:$0xff] %v504
                %v506 = vld [vmem:[%s148 + $0xb20] sm:$0xff]
                %507 = vst [vmem:[%s149 + $0x590] sm:$0xff] %v506
                %v508 = vld [vmem:[%s148 + $0xb28] sm:$0xff]
                %509 = vst [vmem:[%s149 + $0x598] sm:$0xff] %v508
                %v510 = vld [vmem:[%s148 + $0xb40] sm:$0xff]
                %511 = vst [vmem:[%s149 + $0x5a0] sm:$0xff] %v510
                %v512 = vld [vmem:[%s148 + $0xb48] sm:$0xff]
                %513 = vst [vmem:[%s149 + $0x5a8] sm:$0xff] %v512
                %v514 = vld [vmem:[%s148 + $0xb60] sm:$0xff]
                %515 = vst [vmem:[%s149 + $0x5b0] sm:$0xff] %v514
                %v516 = vld [vmem:[%s148 + $0xb68] sm:$0xff]
                %517 = vst [vmem:[%s149 + $0x5b8] sm:$0xff] %v516
                %v518 = vld [vmem:[%s148 + $0xb80] sm:$0xff]
                %519 = vst [vmem:[%s149 + $0x5c0] sm:$0xff] %v518
                %v520 = vld [vmem:[%s148 + $0xb88] sm:$0xff]
                %521 = vst [vmem:[%s149 + $0x5c8] sm:$0xff] %v520
                %v522 = vld [vmem:[%s148 + $0xba0] sm:$0xff]
                %523 = vst [vmem:[%s149 + $0x5d0] sm:$0xff] %v522
                %v524 = vld [vmem:[%s148 + $0xba8] sm:$0xff]
                %525 = vst [vmem:[%s149 + $0x5d8] sm:$0xff] %v524
                %v526 = vld [vmem:[%s148 + $0xbc0] sm:$0xff]
                %527 = vst [vmem:[%s149 + $0x5e0] sm:$0xff] %v526
                %v528 = vld [vmem:[%s148 + $0xbc8] sm:$0xff]
                %529 = vst [vmem:[%s149 + $0x5e8] sm:$0xff] %v528
                %v530 = vld [vmem:[%s148 + $0xbe0] sm:$0xff]
                %531 = vst [vmem:[%s149 + $0x5f0] sm:$0xff] %v530
                %v532 = vld [vmem:[%s148 + $0xbe8] sm:$0xff]
                %533 = vst [vmem:[%s149 + $0x5f8] sm:$0xff] %v532
                %v534 = vld [vmem:[%s148 + $0xc00] sm:$0xff]
                %535 = vst [vmem:[%s149 + $0x600] sm:$0xff] %v534
                %v536 = vld [vmem:[%s148 + $0xc08] sm:$0xff]
                %537 = vst [vmem:[%s149 + $0x608] sm:$0xff] %v536
                %v538 = vld [vmem:[%s148 + $0xc20] sm:$0xff]
                %539 = vst [vmem:[%s149 + $0x610] sm:$0xff] %v538
                %v540 = vld [vmem:[%s148 + $0xc28] sm:$0xff]
                %541 = vst [vmem:[%s149 + $0x618] sm:$0xff] %v540
                %v542 = vld [vmem:[%s148 + $0xc40] sm:$0xff]
                %543 = vst [vmem:[%s149 + $0x620] sm:$0xff] %v542
                %v544 = vld [vmem:[%s148 + $0xc48] sm:$0xff]
                %545 = vst [vmem:[%s149 + $0x628] sm:$0xff] %v544
                %v546 = vld [vmem:[%s148 + $0xc60] sm:$0xff]
                %547 = vst [vmem:[%s149 + $0x630] sm:$0xff] %v546
                %v548 = vld [vmem:[%s148 + $0xc68] sm:$0xff]
                %549 = vst [vmem:[%s149 + $0x638] sm:$0xff] %v548
                %v550 = vld [vmem:[%s148 + $0xc80] sm:$0xff]
                %551 = vst [vmem:[%s149 + $0x640] sm:$0xff] %v550
                %v552 = vld [vmem:[%s148 + $0xc88] sm:$0xff]
                %553 = vst [vmem:[%s149 + $0x648] sm:$0xff] %v552
                %v554 = vld [vmem:[%s148 + $0xca0] sm:$0xff]
                %555 = vst [vmem:[%s149 + $0x650] sm:$0xff] %v554
                %v556 = vld [vmem:[%s148 + $0xca8] sm:$0xff]
                %557 = vst [vmem:[%s149 + $0x658] sm:$0xff] %v556
                %v558 = vld [vmem:[%s148 + $0xcc0] sm:$0xff]
                %559 = vst [vmem:[%s149 + $0x660] sm:$0xff] %v558
                %v560 = vld [vmem:[%s148 + $0xcc8] sm:$0xff]
                %561 = vst [vmem:[%s149 + $0x668] sm:$0xff] %v560
                %v562 = vld [vmem:[%s148 + $0xce0] sm:$0xff]
                %563 = vst [vmem:[%s149 + $0x670] sm:$0xff] %v562
                %v564 = vld [vmem:[%s148 + $0xce8] sm:$0xff]
                %565 = vst [vmem:[%s149 + $0x678] sm:$0xff] %v564
                %v566 = vld [vmem:[%s148 + $0xd00] sm:$0xff]
                %567 = vst [vmem:[%s149 + $0x680] sm:$0xff] %v566
                %v568 = vld [vmem:[%s148 + $0xd08] sm:$0xff]
                %569 = vst [vmem:[%s149 + $0x688] sm:$0xff] %v568
                %v570 = vld [vmem:[%s148 + $0xd20] sm:$0xff]
                %571 = vst [vmem:[%s149 + $0x690] sm:$0xff] %v570
                %v572 = vld [vmem:[%s148 + $0xd28] sm:$0xff]
                %573 = vst [vmem:[%s149 + $0x698] sm:$0xff] %v572
                %v574 = vld [vmem:[%s148 + $0xd40] sm:$0xff]
                %575 = vst [vmem:[%s149 + $0x6a0] sm:$0xff] %v574
                %v576 = vld [vmem:[%s148 + $0xd48] sm:$0xff]
                %577 = vst [vmem:[%s149 + $0x6a8] sm:$0xff] %v576
                %v578 = vld [vmem:[%s148 + $0xd60] sm:$0xff]
                %579 = vst [vmem:[%s149 + $0x6b0] sm:$0xff] %v578
                %v580 = vld [vmem:[%s148 + $0xd68] sm:$0xff]
                %581 = vst [vmem:[%s149 + $0x6b8] sm:$0xff] %v580
                %v582 = vld [vmem:[%s148 + $0xd80] sm:$0xff]
                %583 = vst [vmem:[%s149 + $0x6c0] sm:$0xff] %v582
                %v584 = vld [vmem:[%s148 + $0xd88] sm:$0xff]
                %585 = vst [vmem:[%s149 + $0x6c8] sm:$0xff] %v584
                %v586 = vld [vmem:[%s148 + $0xda0] sm:$0xff]
                %587 = vst [vmem:[%s149 + $0x6d0] sm:$0xff] %v586
                %v588 = vld [vmem:[%s148 + $0xda8] sm:$0xff]
                %589 = vst [vmem:[%s149 + $0x6d8] sm:$0xff] %v588
                %v590 = vld [vmem:[%s148 + $0xdc0] sm:$0xff]
                %591 = vst [vmem:[%s149 + $0x6e0] sm:$0xff] %v590
                %v592 = vld [vmem:[%s148 + $0xdc8] sm:$0xff]
                %593 = vst [vmem:[%s149 + $0x6e8] sm:$0xff] %v592
                %v594 = vld [vmem:[%s148 + $0xde0] sm:$0xff]
                %595 = vst [vmem:[%s149 + $0x6f0] sm:$0xff] %v594
                %v596 = vld [vmem:[%s148 + $0xde8] sm:$0xff]
                %597 = vst [vmem:[%s149 + $0x6f8] sm:$0xff] %v596
                %v598 = vld [vmem:[%s148 + $0xe00] sm:$0xff]
                %599 = vst [vmem:[%s149 + $0x700] sm:$0xff] %v598
                %v600 = vld [vmem:[%s148 + $0xe08] sm:$0xff]
                %601 = vst [vmem:[%s149 + $0x708] sm:$0xff] %v600
                %v602 = vld [vmem:[%s148 + $0xe20] sm:$0xff]
                %603 = vst [vmem:[%s149 + $0x710] sm:$0xff] %v602
                %v604 = vld [vmem:[%s148 + $0xe28] sm:$0xff]
                %605 = vst [vmem:[%s149 + $0x718] sm:$0xff] %v604
                %v606 = vld [vmem:[%s148 + $0xe40] sm:$0xff]
                %607 = vst [vmem:[%s149 + $0x720] sm:$0xff] %v606
                %v608 = vld [vmem:[%s148 + $0xe48] sm:$0xff]
                %609 = vst [vmem:[%s149 + $0x728] sm:$0xff] %v608
                %v610 = vld [vmem:[%s148 + $0xe60] sm:$0xff]
                %611 = vst [vmem:[%s149 + $0x730] sm:$0xff] %v610
                %v612 = vld [vmem:[%s148 + $0xe68] sm:$0xff]
                %613 = vst [vmem:[%s149 + $0x738] sm:$0xff] %v612
                %v614 = vld [vmem:[%s148 + $0xe80] sm:$0xff]
                %615 = vst [vmem:[%s149 + $0x740] sm:$0xff] %v614
                %v616 = vld [vmem:[%s148 + $0xe88] sm:$0xff]
                %617 = vst [vmem:[%s149 + $0x748] sm:$0xff] %v616
                %v618 = vld [vmem:[%s148 + $0xea0] sm:$0xff]
                %619 = vst [vmem:[%s149 + $0x750] sm:$0xff] %v618
                %v620 = vld [vmem:[%s148 + $0xea8] sm:$0xff]
                %621 = vst [vmem:[%s149 + $0x758] sm:$0xff] %v620
                %v622 = vld [vmem:[%s148 + $0xec0] sm:$0xff]
                %623 = vst [vmem:[%s149 + $0x760] sm:$0xff] %v622
                %v624 = vld [vmem:[%s148 + $0xec8] sm:$0xff]
                %625 = vst [vmem:[%s149 + $0x768] sm:$0xff] %v624
                %v626 = vld [vmem:[%s148 + $0xee0] sm:$0xff]
                %627 = vst [vmem:[%s149 + $0x770] sm:$0xff] %v626
                %v628 = vld [vmem:[%s148 + $0xee8] sm:$0xff]
                %629 = vst [vmem:[%s149 + $0x778] sm:$0xff] %v628
                %v630 = vld [vmem:[%s148 + $0xf00] sm:$0xff]
                %631 = vst [vmem:[%s149 + $0x780] sm:$0xff] %v630
                %v632 = vld [vmem:[%s148 + $0xf08] sm:$0xff]
                %633 = vst [vmem:[%s149 + $0x788] sm:$0xff] %v632
                %v634 = vld [vmem:[%s148 + $0xf20] sm:$0xff]
                %635 = vst [vmem:[%s149 + $0x790] sm:$0xff] %v634
                %v636 = vld [vmem:[%s148 + $0xf28] sm:$0xff]
                %637 = vst [vmem:[%s149 + $0x798] sm:$0xff] %v636
                %v638 = vld [vmem:[%s148 + $0xf40] sm:$0xff]
                %639 = vst [vmem:[%s149 + $0x7a0] sm:$0xff] %v638
                %v640 = vld [vmem:[%s148 + $0xf48] sm:$0xff]
                %641 = vst [vmem:[%s149 + $0x7a8] sm:$0xff] %v640
                %v642 = vld [vmem:[%s148 + $0xf60] sm:$0xff]
                %643 = vst [vmem:[%s149 + $0x7b0] sm:$0xff] %v642
                %v644 = vld [vmem:[%s148 + $0xf68] sm:$0xff]
                %645 = vst [vmem:[%s149 + $0x7b8] sm:$0xff] %v644
                %v646 = vld [vmem:[%s148 + $0xf80] sm:$0xff]
                %647 = vst [vmem:[%s149 + $0x7c0] sm:$0xff] %v646
                %v648 = vld [vmem:[%s148 + $0xf88] sm:$0xff]
                %649 = vst [vmem:[%s149 + $0x7c8] sm:$0xff] %v648
                %v650 = vld [vmem:[%s148 + $0xfa0] sm:$0xff]
                %651 = vst [vmem:[%s149 + $0x7d0] sm:$0xff] %v650
                %v652 = vld [vmem:[%s148 + $0xfa8] sm:$0xff]
                %653 = vst [vmem:[%s149 + $0x7d8] sm:$0xff] %v652
                %v654 = vld [vmem:[%s148 + $0xfc0] sm:$0xff]
                %655 = vst [vmem:[%s149 + $0x7e0] sm:$0xff] %v654
                %v656 = vld [vmem:[%s148 + $0xfc8] sm:$0xff]
                %657 = vst [vmem:[%s149 + $0x7e8] sm:$0xff] %v656
                %v658 = vld [vmem:[%s148 + $0xfe0] sm:$0xff]
                %659 = vst [vmem:[%s149 + $0x7f0] sm:$0xff] %v658
                %v660 = vld [vmem:[%s148 + $0xfe8] sm:$0xff]
                %661 = vst [vmem:[%s149 + $0x7f8] sm:$0xff] %v660
              $region41: #{lipnet_forward.4} parent=35 // loop_footer
                %s147 = sadd.s32 1, %s143
              $region42: #{lipnet_forward.4} parent=35 // loop_footer_branch
                %142 = sbr.rel target = $region38
              $region43: #{lipnet_forward.4} parent=35 // loop_exit
                _
            $region36: #{lipnet_forward.4} parent=31 // pred_fallthru
              _
            // Predicated region
            $region44: #{lipnet_forward.4} parent=31 // pred_check
              _
            $region45: #{lipnet_forward.4} parent=31 // pred_check_branch
              %663 = sbr.rel target = $region47
            $region46: #{lipnet_forward.4} parent=31 // pred_region
              _
            $region47: #{lipnet_forward.4} parent=31 // pred_fallthru
              _
          $region32: #{lipnet_forward.4} parent=27 // pred_fallthru
            _
          %664 = vnop
        $region28: #{lipnet_forward.4} parent=23 // pred_fallthru
          _
      $region24: #{lipnet_forward.4} parent=5 // pred_fallthru
        _
      %p665 = scmp.le.s32.totalorder 1, %s9
      %p666 = scmp.lt.s32.totalorder %s9, 3
      %p667 = pnand %p665, %p666
      %p668 = pneg %p667
      // Predicated region
      $region48: #{lipnet_forward.4} parent=5 // pred_check
        _
      $region49: #{lipnet_forward.4} parent=5 // pred_check_branch
        %670 = sbr.rel (%p667) target = $region51
      $region50: #{lipnet_forward.4} parent=5 // pred_region
        %s671 = ssub.s32 %s9, 1
        %s672 = sand.u32 %s22, 1
        %s673 = sand.u32 %s22, 1
        %s674 = smul.addr %s673, 2048
        %s675 = scalar_lea.vmem [#allocation2], %s674
        // Predicated region
        $region52: #{lipnet_forward.4} parent=50 // pred_check
          %p676 = pneg %p35
        $region53: #{lipnet_forward.4} parent=50 // pred_check_branch
          %678 = sbr.rel (%p676) target = $region55
        $region54: #{lipnet_forward.4} parent=50 // pred_region
          _
        $region55: #{lipnet_forward.4} parent=50 // pred_fallthru
          _
        %s679 = sand.u32 %s22, 1
        %s680 = sand.u32 %s22, 1
        %s681 = smul.addr %s680, 2048
        %s682 = scalar_lea.vmem [#allocation2], %s681
        %p683 = pneg %p35
        %p684 = pneg %p32
        %p685 = pneg %p56
        %p686 = pneg %p53
        %p687 = pneg %p77
        %p688 = pneg %p74
        %p689 = pneg %p103
        %p690 = pneg %p100
        %s691 = smul.u32 4, %s14
        %p692 = scmp.lt.s32.totalorder %s691, 7
        %s693 = scalar_select %p692, %s691, 7
        %s694 = smul.addr %s693, 4
        %s695 = scalar_lea.vmem %s3, %s694
        %s696 = smul.u32 4, %s14
        %s697 = smul.u32 4, %s14
        %p698 = scmp.lt.s32.totalorder %s697, 7
        %s699 = scalar_select %p698, %s697, 7
        %s700 = smul.addr %s699, 4
        %s701 = scalar_lea.vmem %s3, %s700
        %s702 = smul.u32 4, %s14
        %v703 = vld [vmem:[%s1] sm:$0xff]
        %v704 = vld [vmem:[%s675] sm:$0xff]
        %v705 = vld [vmem:[%s675 + $0x8] sm:$0xff]
        %v706 = vld [vmem:[%s675 + $0x10] sm:$0xff]
        %v707 = vld [vmem:[%s675 + $0x18] sm:$0xff]
        %v708 = vld [vmem:[%s675 + $0x20] sm:$0xff]
        %v709 = vld [vmem:[%s675 + $0x28] sm:$0xff]
        %v710 = vld [vmem:[%s675 + $0x30] sm:$0xff]
        %v711 = vld [vmem:[%s675 + $0x38] sm:$0xff]
        %v712 = vld [vmem:[%s675 + $0x40] sm:$0xff]
        %v713 = vld [vmem:[%s675 + $0x48] sm:$0xff]
        %v714 = vld [vmem:[%s675 + $0x50] sm:$0xff]
        %v715 = vld [vmem:[%s675 + $0x58] sm:$0xff]
        %v716 = vld [vmem:[%s675 + $0x60] sm:$0xff]
        %v717 = vld [vmem:[%s675 + $0x68] sm:$0xff]
        %v718 = vld [vmem:[%s675 + $0x70] sm:$0xff]
        %v719 = vld [vmem:[%s675 + $0x78] sm:$0xff]
        %v720 = vld [vmem:[%s675 + $0x80] sm:$0xff]
        %v721 = vld [vmem:[%s675 + $0x88] sm:$0xff]
        %v722 = vld [vmem:[%s675 + $0x90] sm:$0xff]
        %v723 = vld [vmem:[%s675 + $0x98] sm:$0xff]
        %v724 = vld [vmem:[%s675 + $0xa0] sm:$0xff]
        %v725 = vld [vmem:[%s675 + $0xa8] sm:$0xff]
        %v726 = vld [vmem:[%s675 + $0xb0] sm:$0xff]
        %v727 = vld [vmem:[%s675 + $0xb8] sm:$0xff]
        %v728 = vld [vmem:[%s675 + $0xc0] sm:$0xff]
        %v729 = vld [vmem:[%s675 + $0xc8] sm:$0xff]
        %v730 = vld [vmem:[%s675 + $0xd0] sm:$0xff]
        %v731 = vld [vmem:[%s675 + $0xd8] sm:$0xff]
        %v732 = vld [vmem:[%s675 + $0xe0] sm:$0xff]
        %v733 = vld [vmem:[%s675 + $0xe8] sm:$0xff]
        %v734 = vld [vmem:[%s675 + $0xf0] sm:$0xff]
        %v735 = vld [vmem:[%s675 + $0xf8] sm:$0xff]
        %v736 = vld [vmem:[%s675 + $0x100] sm:$0xff]
        %v737 = vld [vmem:[%s675 + $0x108] sm:$0xff]
        %v738 = vld [vmem:[%s675 + $0x110] sm:$0xff]
        %v739 = vld [vmem:[%s675 + $0x118] sm:$0xff]
        %v740 = vld [vmem:[%s675 + $0x120] sm:$0xff]
        %v741 = vld [vmem:[%s675 + $0x128] sm:$0xff]
        %v742 = vld [vmem:[%s675 + $0x130] sm:$0xff]
        %v743 = vld [vmem:[%s675 + $0x138] sm:$0xff]
        %v744 = vld [vmem:[%s675 + $0x140] sm:$0xff]
        %v745 = vld [vmem:[%s675 + $0x148] sm:$0xff]
        %v746 = vld [vmem:[%s675 + $0x150] sm:$0xff]
        %v747 = vld [vmem:[%s675 + $0x158] sm:$0xff]
        %v748 = vld [vmem:[%s675 + $0x160] sm:$0xff]
        %v749 = vld [vmem:[%s675 + $0x168] sm:$0xff]
        %v750 = vld [vmem:[%s675 + $0x170] sm:$0xff]
        %v751 = vld [vmem:[%s675 + $0x178] sm:$0xff]
        %v752 = vld [vmem:[%s675 + $0x180] sm:$0xff]
        %v753 = vld [vmem:[%s675 + $0x188] sm:$0xff]
        %v754 = vld [vmem:[%s675 + $0x190] sm:$0xff]
        %v755 = vld [vmem:[%s675 + $0x198] sm:$0xff]
        %v756 = vld [vmem:[%s675 + $0x1a0] sm:$0xff]
        %v757 = vld [vmem:[%s675 + $0x1a8] sm:$0xff]
        %v758 = vld [vmem:[%s675 + $0x1b0] sm:$0xff]
        %v759 = vld [vmem:[%s675 + $0x1b8] sm:$0xff]
        %v760 = vld [vmem:[%s675 + $0x1c0] sm:$0xff]
        %v761 = vld [vmem:[%s675 + $0x1c8] sm:$0xff]
        %v762 = vld [vmem:[%s675 + $0x1d0] sm:$0xff]
        %v763 = vld [vmem:[%s675 + $0x1d8] sm:$0xff]
        %v764 = vld [vmem:[%s675 + $0x1e0] sm:$0xff]
        %v765 = vld [vmem:[%s675 + $0x1e8] sm:$0xff]
        %v766 = vld [vmem:[%s675 + $0x1f0] sm:$0xff]
        %v767 = vld [vmem:[%s675 + $0x1f8] sm:$0xff]
        %v769 = vunpack.c.l.b16 %v703
        %v770 = vunpack.c.h.b16 %v703
        %v771 = vpack.c.b16 %v769, %v769
        %v772 = vpack.c.b16 %v770, %v770
        %v839 = vunpack.c.l.b16 %v704
        %v840 = vunpack.c.h.b16 %v704
        %v841 = vunpack.c.l.b16 %v705
        %v842 = vunpack.c.h.b16 %v705
        %v843 = vunpack.c.l.b16 %v706
        %v844 = vunpack.c.h.b16 %v706
        %v845 = vunpack.c.l.b16 %v707
        %v846 = vunpack.c.h.b16 %v707
        %v847 = vunpack.c.l.b16 %v708
        %v848 = vunpack.c.h.b16 %v708
        %v849 = vunpack.c.l.b16 %v709
        %v850 = vunpack.c.h.b16 %v709
        %v851 = vunpack.c.l.b16 %v710
        %v852 = vunpack.c.h.b16 %v710
        %v853 = vunpack.c.l.b16 %v711
        %v854 = vunpack.c.h.b16 %v711
        %v855 = vunpack.c.l.b16 %v712
        %v856 = vunpack.c.h.b16 %v712
        %v857 = vunpack.c.l.b16 %v713
        %v858 = vunpack.c.h.b16 %v713
        %v859 = vunpack.c.l.b16 %v714
        %v860 = vunpack.c.h.b16 %v714
        %v861 = vunpack.c.l.b16 %v715
        %v862 = vunpack.c.h.b16 %v715
        %v863 = vunpack.c.l.b16 %v716
        %v864 = vunpack.c.h.b16 %v716
        %v865 = vunpack.c.l.b16 %v717
        %v866 = vunpack.c.h.b16 %v717
        %v867 = vunpack.c.l.b16 %v718
        %v868 = vunpack.c.h.b16 %v718
        %v869 = vunpack.c.l.b16 %v719
        %v870 = vunpack.c.h.b16 %v719
        %v871 = vunpack.c.l.b16 %v720
        %v872 = vunpack.c.h.b16 %v720
        %v873 = vunpack.c.l.b16 %v721
        %v874 = vunpack.c.h.b16 %v721
        %v875 = vunpack.c.l.b16 %v722
        %v876 = vunpack.c.h.b16 %v722
        %v877 = vunpack.c.l.b16 %v723
        %v878 = vunpack.c.h.b16 %v723
        %v879 = vunpack.c.l.b16 %v724
        %v880 = vunpack.c.h.b16 %v724
        %v881 = vunpack.c.l.b16 %v725
        %v882 = vunpack.c.h.b16 %v725
        %v883 = vunpack.c.l.b16 %v726
        %v884 = vunpack.c.h.b16 %v726
        %v885 = vunpack.c.l.b16 %v727
        %v886 = vunpack.c.h.b16 %v727
        %v887 = vunpack.c.l.b16 %v728
        %v888 = vunpack.c.h.b16 %v728
        %v889 = vunpack.c.l.b16 %v729
        %v890 = vunpack.c.h.b16 %v729
        %v891 = vunpack.c.l.b16 %v730
        %v892 = vunpack.c.h.b16 %v730
        %v893 = vunpack.c.l.b16 %v731
        %v894 = vunpack.c.h.b16 %v731
        %v895 = vunpack.c.l.b16 %v732
        %v896 = vunpack.c.h.b16 %v732
        %v897 = vunpack.c.l.b16 %v733
        %v898 = vunpack.c.h.b16 %v733
        %v899 = vunpack.c.l.b16 %v734
        %v900 = vunpack.c.h.b16 %v734
        %v901 = vunpack.c.l.b16 %v735
        %v902 = vunpack.c.h.b16 %v735
        %v903 = vunpack.c.l.b16 %v736
        %v904 = vunpack.c.h.b16 %v736
        %v905 = vunpack.c.l.b16 %v737
        %v906 = vunpack.c.h.b16 %v737
        %v907 = vunpack.c.l.b16 %v738
        %v908 = vunpack.c.h.b16 %v738
        %v909 = vunpack.c.l.b16 %v739
        %v910 = vunpack.c.h.b16 %v739
        %v911 = vunpack.c.l.b16 %v740
        %v912 = vunpack.c.h.b16 %v740
        %v913 = vunpack.c.l.b16 %v741
        %v914 = vunpack.c.h.b16 %v741
        %v915 = vunpack.c.l.b16 %v742
        %v916 = vunpack.c.h.b16 %v742
        %v917 = vunpack.c.l.b16 %v743
        %v918 = vunpack.c.h.b16 %v743
        %v919 = vunpack.c.l.b16 %v744
        %v920 = vunpack.c.h.b16 %v744
        %v921 = vunpack.c.l.b16 %v745
        %v922 = vunpack.c.h.b16 %v745
        %v923 = vunpack.c.l.b16 %v746
        %v924 = vunpack.c.h.b16 %v746
        %v925 = vunpack.c.l.b16 %v747
        %v926 = vunpack.c.h.b16 %v747
        %v927 = vunpack.c.l.b16 %v748
        %v928 = vunpack.c.h.b16 %v748
        %v929 = vunpack.c.l.b16 %v749
        %v930 = vunpack.c.h.b16 %v749
        %v931 = vunpack.c.l.b16 %v750
        %v932 = vunpack.c.h.b16 %v750
        %v933 = vunpack.c.l.b16 %v751
        %v934 = vunpack.c.h.b16 %v751
        %v935 = vunpack.c.l.b16 %v752
        %v936 = vunpack.c.h.b16 %v752
        %v937 = vunpack.c.l.b16 %v753
        %v938 = vunpack.c.h.b16 %v753
        %v939 = vunpack.c.l.b16 %v754
        %v940 = vunpack.c.h.b16 %v754
        %v941 = vunpack.c.l.b16 %v755
        %v942 = vunpack.c.h.b16 %v755
        %v943 = vunpack.c.l.b16 %v756
        %v944 = vunpack.c.h.b16 %v756
        %v945 = vunpack.c.l.b16 %v757
        %v946 = vunpack.c.h.b16 %v757
        %v947 = vunpack.c.l.b16 %v758
        %v948 = vunpack.c.h.b16 %v758
        %v949 = vunpack.c.l.b16 %v759
        %v950 = vunpack.c.h.b16 %v759
        %v951 = vunpack.c.l.b16 %v760
        %v952 = vunpack.c.h.b16 %v760
        %v953 = vunpack.c.l.b16 %v761
        %v954 = vunpack.c.h.b16 %v761
        %v955 = vunpack.c.l.b16 %v762
        %v956 = vunpack.c.h.b16 %v762
        %v957 = vunpack.c.l.b16 %v763
        %v958 = vunpack.c.h.b16 %v763
        %v959 = vunpack.c.l.b16 %v764
        %v960 = vunpack.c.h.b16 %v764
        %v961 = vunpack.c.l.b16 %v765
        %v962 = vunpack.c.h.b16 %v765
        %v963 = vunpack.c.l.b16 %v766
        %v964 = vunpack.c.h.b16 %v766
        %v965 = vunpack.c.l.b16 %v767
        %v966 = vunpack.c.h.b16 %v767
        %v967 = vpack.c.b16 %v843, %v839
        %v968 = vpack.c.b16 %v844, %v840
        %v969 = vpack.c.b16 %v845, %v841
        %v970 = vpack.c.b16 %v846, %v842
        %v971 = vpack.c.b16 %v851, %v847
        %v972 = vpack.c.b16 %v852, %v848
        %v973 = vpack.c.b16 %v853, %v849
        %v974 = vpack.c.b16 %v854, %v850
        %v975 = vpack.c.b16 %v859, %v855
        %v976 = vpack.c.b16 %v860, %v856
        %v977 = vpack.c.b16 %v861, %v857
        %v978 = vpack.c.b16 %v862, %v858
        %v979 = vpack.c.b16 %v867, %v863
        %v980 = vpack.c.b16 %v868, %v864
        %v981 = vpack.c.b16 %v869, %v865
        %v982 = vpack.c.b16 %v870, %v866
        %v983 = vpack.c.b16 %v875, %v871
        %v984 = vpack.c.b16 %v876, %v872
        %v985 = vpack.c.b16 %v877, %v873
        %v986 = vpack.c.b16 %v878, %v874
        %v987 = vpack.c.b16 %v883, %v879
        %v988 = vpack.c.b16 %v884, %v880
        %v989 = vpack.c.b16 %v885, %v881
        %v990 = vpack.c.b16 %v886, %v882
        %v991 = vpack.c.b16 %v891, %v887
        %v992 = vpack.c.b16 %v892, %v888
        %v993 = vpack.c.b16 %v893, %v889
        %v994 = vpack.c.b16 %v894, %v890
        %v995 = vpack.c.b16 %v899, %v895
        %v996 = vpack.c.b16 %v900, %v896
        %v997 = vpack.c.b16 %v901, %v897
        %v998 = vpack.c.b16 %v902, %v898
        %v999 = vpack.c.b16 %v907, %v903
        %v1000 = vpack.c.b16 %v908, %v904
        %v1001 = vpack.c.b16 %v909, %v905
        %v1002 = vpack.c.b16 %v910, %v906
        %v1003 = vpack.c.b16 %v915, %v911
        %v1004 = vpack.c.b16 %v916, %v912
        %v1005 = vpack.c.b16 %v917, %v913
        %v1006 = vpack.c.b16 %v918, %v914
        %v1007 = vpack.c.b16 %v923, %v919
        %v1008 = vpack.c.b16 %v924, %v920
        %v1009 = vpack.c.b16 %v925, %v921
        %v1010 = vpack.c.b16 %v926, %v922
        %v1011 = vpack.c.b16 %v931, %v927
        %v1012 = vpack.c.b16 %v932, %v928
        %v1013 = vpack.c.b16 %v933, %v929
        %v1014 = vpack.c.b16 %v934, %v930
        %v1015 = vpack.c.b16 %v939, %v935
        %v1016 = vpack.c.b16 %v940, %v936
        %v1017 = vpack.c.b16 %v941, %v937
        %v1018 = vpack.c.b16 %v942, %v938
        %v1019 = vpack.c.b16 %v947, %v943
        %v1020 = vpack.c.b16 %v948, %v944
        %v1021 = vpack.c.b16 %v949, %v945
        %v1022 = vpack.c.b16 %v950, %v946
        %v1023 = vpack.c.b16 %v955, %v951
        %v1024 = vpack.c.b16 %v956, %v952
        %v1025 = vpack.c.b16 %v957, %v953
        %v1026 = vpack.c.b16 %v958, %v954
        %v1027 = vpack.c.b16 %v963, %v959
        %v1028 = vpack.c.b16 %v964, %v960
        %v1029 = vpack.c.b16 %v965, %v961
        %v1030 = vpack.c.b16 %v966, %v962
        %1095 = vmatprep.subr.bf16.mxu0 %v968
        %1096 = vmatpush1.bf16.msra.mxu0 %v967
        %1097 = vmatprep.subr.bf16.mxu0 %v972
        %1098 = vmatpush1.bf16.msra.mxu0 %v971
        %1099 = vmatprep.subr.bf16.mxu0 %v976
        %1100 = vmatpush1.bf16.msra.mxu0 %v975
        %1101 = vmatprep.subr.bf16.mxu0 %v980
        %1102 = vmatpush1.bf16.msra.mxu0 %v979
        %1103 = vmatprep.subr.bf16.mxu0 %v984
        %1104 = vmatpush1.bf16.msra.mxu0 %v983
        %1105 = vmatprep.subr.bf16.mxu0 %v988
        %1106 = vmatpush1.bf16.msra.mxu0 %v987
        %1107 = vmatprep.subr.bf16.mxu0 %v992
        %1108 = vmatpush1.bf16.msra.mxu0 %v991
        %1109 = vmatprep.subr.bf16.mxu0 %v996
        %1110 = vmatpush1.bf16.msra.mxu0 %v995
        %1111 = vmatprep.subr.bf16.mxu0 %v1000
        %1112 = vmatpush1.bf16.msra.mxu0 %v999
        %1113 = vmatprep.subr.bf16.mxu0 %v1004
        %1114 = vmatpush1.bf16.msra.mxu0 %v1003
        %1115 = vmatprep.subr.bf16.mxu0 %v1008
        %1116 = vmatpush1.bf16.msra.mxu0 %v1007
        %1117 = vmatprep.subr.bf16.mxu0 %v1012
        %1118 = vmatpush1.bf16.msra.mxu0 %v1011
        %1119 = vmatprep.subr.bf16.mxu0 %v1016
        %1120 = vmatpush1.bf16.msra.mxu0 %v1015
        %1121 = vmatprep.subr.bf16.mxu0 %v1020
        %1122 = vmatpush1.bf16.msra.mxu0 %v1019
        %1123 = vmatprep.subr.bf16.mxu0 %v1024
        %1124 = vmatpush1.bf16.msra.mxu0 %v1023
        %1125 = vmatprep.subr.bf16.mxu0 %v1028
        %1126 = vmatpush1.bf16.msra.mxu0 %v1027
        %1127 = vmatprep.mubr.bf16.mxu0 %v772
        %1128 = vmatmul.mubr.bf16.gmra.mrb[0].mxu0 %v771
        %v1129 = vpop.f32.mrb[0].mxu0
        %v1130 = vadd.f32 0.0, %v1129
        %v1131 = vpop.f32.mrb[0].mxu0
        %v1132 = vadd.f32 0.0, %v1131
        %v1133 = vpop.f32.mrb[0].mxu0
        %v1134 = vpop.f32.mrb[0].mxu0
        %1135 = vdwg.mxu0
        %1136 = vmatprep.subr.bf16.mxu0 %v970
        %1137 = vmatpush1.bf16.msra.mxu0 %v969
        %1138 = vmatprep.subr.bf16.mxu0 %v974
        %1139 = vmatpush1.bf16.msra.mxu0 %v973
        %1140 = vmatprep.subr.bf16.mxu0 %v978
        %1141 = vmatpush1.bf16.msra.mxu0 %v977
        %1142 = vmatprep.subr.bf16.mxu0 %v982
        %1143 = vmatpush1.bf16.msra.mxu0 %v981
        %1144 = vmatprep.subr.bf16.mxu0 %v986
        %1145 = vmatpush1.bf16.msra.mxu0 %v985
        %1146 = vmatprep.subr.bf16.mxu0 %v990
        %1147 = vmatpush1.bf16.msra.mxu0 %v989
        %1148 = vmatprep.subr.bf16.mxu0 %v994
        %1149 = vmatpush1.bf16.msra.mxu0 %v993
        %1150 = vmatprep.subr.bf16.mxu0 %v998
        %1151 = vmatpush1.bf16.msra.mxu0 %v997
        %1152 = vmatprep.subr.bf16.mxu0 %v1002
        %1153 = vmatpush1.bf16.msra.mxu0 %v1001
        %1154 = vmatprep.subr.bf16.mxu0 %v1006
        %1155 = vmatpush1.bf16.msra.mxu0 %v1005
        %1156 = vmatprep.subr.bf16.mxu0 %v1010
        %1157 = vmatpush1.bf16.msra.mxu0 %v1009
        %1158 = vmatprep.subr.bf16.mxu0 %v1014
        %1159 = vmatpush1.bf16.msra.mxu0 %v1013
        %1160 = vmatprep.subr.bf16.mxu0 %v1018
        %1161 = vmatpush1.bf16.msra.mxu0 %v1017
        %1162 = vmatprep.subr.bf16.mxu0 %v1022
        %1163 = vmatpush1.bf16.msra.mxu0 %v1021
        %1164 = vmatprep.subr.bf16.mxu0 %v1026
        %1165 = vmatpush1.bf16.msra.mxu0 %v1025
        %1166 = vmatprep.subr.bf16.mxu0 %v1030
        %1167 = vmatpush1.bf16.msra.mxu0 %v1029
        %1168 = vmatprep.mubr.bf16.mxu0 %v772
        %1169 = vmatmul.mubr.bf16.gmra.mrb[0].mxu0 %v771
        %v1170 = vpop.f32.mrb[0].mxu0
        %v1171 = vadd.f32 0.0, %v1170
        %v1172 = vpop.f32.mrb[0].mxu0
        %v1173 = vadd.f32 0.0, %v1172
        %v1174 = vpop.f32.mrb[0].mxu0
        %v1175 = vpop.f32.mrb[0].mxu0
        %1176 = vdwg.mxu0
        %s1177 = scalar_lea.vmem %s675, 512 [#allocation2]
        %v1178 = vld [vmem:[%s1177] sm:$0xff]
        %v1179 = vld [vmem:[%s1177 + $0x8] sm:$0xff]
        %v1180 = vld [vmem:[%s1177 + $0x10] sm:$0xff]
        %v1181 = vld [vmem:[%s1177 + $0x18] sm:$0xff]
        %v1182 = vld [vmem:[%s1177 + $0x20] sm:$0xff]
        %v1183 = vld [vmem:[%s1177 + $0x28] sm:$0xff]
        %v1184 = vld [vmem:[%s1177 + $0x30] sm:$0xff]
        %v1185 = vld [vmem:[%s1177 + $0x38] sm:$0xff]
        %v1186 = vld [vmem:[%s1177 + $0x40] sm:$0xff]
        %v1187 = vld [vmem:[%s1177 + $0x48] sm:$0xff]
        %v1188 = vld [vmem:[%s1177 + $0x50] sm:$0xff]
        %v1189 = vld [vmem:[%s1177 + $0x58] sm:$0xff]
        %v1190 = vld [vmem:[%s1177 + $0x60] sm:$0xff]
        %v1191 = vld [vmem:[%s1177 + $0x68] sm:$0xff]
        %v1192 = vld [vmem:[%s1177 + $0x70] sm:$0xff]
        %v1193 = vld [vmem:[%s1177 + $0x78] sm:$0xff]
        %v1194 = vld [vmem:[%s1177 + $0x80] sm:$0xff]
        %v1195 = vld [vmem:[%s1177 + $0x88] sm:$0xff]
        %v1196 = vld [vmem:[%s1177 + $0x90] sm:$0xff]
        %v1197 = vld [vmem:[%s1177 + $0x98] sm:$0xff]
        %v1198 = vld [vmem:[%s1177 + $0xa0] sm:$0xff]
        %v1199 = vld [vmem:[%s1177 + $0xa8] sm:$0xff]
        %v1200 = vld [vmem:[%s1177 + $0xb0] sm:$0xff]
        %v1201 = vld [vmem:[%s1177 + $0xb8] sm:$0xff]
        %v1202 = vld [vmem:[%s1177 + $0xc0] sm:$0xff]
        %v1203 = vld [vmem:[%s1177 + $0xc8] sm:$0xff]
        %v1204 = vld [vmem:[%s1177 + $0xd0] sm:$0xff]
        %v1205 = vld [vmem:[%s1177 + $0xd8] sm:$0xff]
        %v1206 = vld [vmem:[%s1177 + $0xe0] sm:$0xff]
        %v1207 = vld [vmem:[%s1177 + $0xe8] sm:$0xff]
        %v1208 = vld [vmem:[%s1177 + $0xf0] sm:$0xff]
        %v1209 = vld [vmem:[%s1177 + $0xf8] sm:$0xff]
        %v1210 = vld [vmem:[%s1177 + $0x100] sm:$0xff]
        %v1211 = vld [vmem:[%s1177 + $0x108] sm:$0xff]
        %v1212 = vld [vmem:[%s1177 + $0x110] sm:$0xff]
        %v1213 = vld [vmem:[%s1177 + $0x118] sm:$0xff]
        %v1214 = vld [vmem:[%s1177 + $0x120] sm:$0xff]
        %v1215 = vld [vmem:[%s1177 + $0x128] sm:$0xff]
        %v1216 = vld [vmem:[%s1177 + $0x130] sm:$0xff]
        %v1217 = vld [vmem:[%s1177 + $0x138] sm:$0xff]
        %v1218 = vld [vmem:[%s1177 + $0x140] sm:$0xff]
        %v1219 = vld [vmem:[%s1177 + $0x148] sm:$0xff]
        %v1220 = vld [vmem:[%s1177 + $0x150] sm:$0xff]
        %v1221 = vld [vmem:[%s1177 + $0x158] sm:$0xff]
        %v1222 = vld [vmem:[%s1177 + $0x160] sm:$0xff]
        %v1223 = vld [vmem:[%s1177 + $0x168] sm:$0xff]
        %v1224 = vld [vmem:[%s1177 + $0x170] sm:$0xff]
        %v1225 = vld [vmem:[%s1177 + $0x178] sm:$0xff]
        %v1226 = vld [vmem:[%s1177 + $0x180] sm:$0xff]
        %v1227 = vld [vmem:[%s1177 + $0x188] sm:$0xff]
        %v1228 = vld [vmem:[%s1177 + $0x190] sm:$0xff]
        %v1229 = vld [vmem:[%s1177 + $0x198] sm:$0xff]
        %v1230 = vld [vmem:[%s1177 + $0x1a0] sm:$0xff]
        %v1231 = vld [vmem:[%s1177 + $0x1a8] sm:$0xff]
        %v1232 = vld [vmem:[%s1177 + $0x1b0] sm:$0xff]
        %v1233 = vld [vmem:[%s1177 + $0x1b8] sm:$0xff]
        %v1234 = vld [vmem:[%s1177 + $0x1c0] sm:$0xff]
        %v1235 = vld [vmem:[%s1177 + $0x1c8] sm:$0xff]
        %v1236 = vld [vmem:[%s1177 + $0x1d0] sm:$0xff]
        %v1237 = vld [vmem:[%s1177 + $0x1d8] sm:$0xff]
        %v1238 = vld [vmem:[%s1177 + $0x1e0] sm:$0xff]
        %v1239 = vld [vmem:[%s1177 + $0x1e8] sm:$0xff]
        %v1240 = vld [vmem:[%s1177 + $0x1f0] sm:$0xff]
        %v1241 = vld [vmem:[%s1177 + $0x1f8] sm:$0xff]
        %v1306 = vunpack.c.l.b16 %v1178
        %v1307 = vunpack.c.h.b16 %v1178
        %v1308 = vunpack.c.l.b16 %v1179
        %v1309 = vunpack.c.h.b16 %v1179
        %v1310 = vunpack.c.l.b16 %v1180
        %v1311 = vunpack.c.h.b16 %v1180
        %v1312 = vunpack.c.l.b16 %v1181
        %v1313 = vunpack.c.h.b16 %v1181
        %v1314 = vunpack.c.l.b16 %v1182
        %v1315 = vunpack.c.h.b16 %v1182
        %v1316 = vunpack.c.l.b16 %v1183
        %v1317 = vunpack.c.h.b16 %v1183
        %v1318 = vunpack.c.l.b16 %v1184
        %v1319 = vunpack.c.h.b16 %v1184
        %v1320 = vunpack.c.l.b16 %v1185
        %v1321 = vunpack.c.h.b16 %v1185
        %v1322 = vunpack.c.l.b16 %v1186
        %v1323 = vunpack.c.h.b16 %v1186
        %v1324 = vunpack.c.l.b16 %v1187
        %v1325 = vunpack.c.h.b16 %v1187
        %v1326 = vunpack.c.l.b16 %v1188
        %v1327 = vunpack.c.h.b16 %v1188
        %v1328 = vunpack.c.l.b16 %v1189
        %v1329 = vunpack.c.h.b16 %v1189
        %v1330 = vunpack.c.l.b16 %v1190
        %v1331 = vunpack.c.h.b16 %v1190
        %v1332 = vunpack.c.l.b16 %v1191
        %v1333 = vunpack.c.h.b16 %v1191
        %v1334 = vunpack.c.l.b16 %v1192
        %v1335 = vunpack.c.h.b16 %v1192
        %v1336 = vunpack.c.l.b16 %v1193
        %v1337 = vunpack.c.h.b16 %v1193
        %v1338 = vunpack.c.l.b16 %v1194
        %v1339 = vunpack.c.h.b16 %v1194
        %v1340 = vunpack.c.l.b16 %v1195
        %v1341 = vunpack.c.h.b16 %v1195
        %v1342 = vunpack.c.l.b16 %v1196
        %v1343 = vunpack.c.h.b16 %v1196
        %v1344 = vunpack.c.l.b16 %v1197
        %v1345 = vunpack.c.h.b16 %v1197
        %v1346 = vunpack.c.l.b16 %v1198
        %v1347 = vunpack.c.h.b16 %v1198
        %v1348 = vunpack.c.l.b16 %v1199
        %v1349 = vunpack.c.h.b16 %v1199
        %v1350 = vunpack.c.l.b16 %v1200
        %v1351 = vunpack.c.h.b16 %v1200
        %v1352 = vunpack.c.l.b16 %v1201
        %v1353 = vunpack.c.h.b16 %v1201
        %v1354 = vunpack.c.l.b16 %v1202
        %v1355 = vunpack.c.h.b16 %v1202
        %v1356 = vunpack.c.l.b16 %v1203
        %v1357 = vunpack.c.h.b16 %v1203
        %v1358 = vunpack.c.l.b16 %v1204
        %v1359 = vunpack.c.h.b16 %v1204
        %v1360 = vunpack.c.l.b16 %v1205
        %v1361 = vunpack.c.h.b16 %v1205
        %v1362 = vunpack.c.l.b16 %v1206
        %v1363 = vunpack.c.h.b16 %v1206
        %v1364 = vunpack.c.l.b16 %v1207
        %v1365 = vunpack.c.h.b16 %v1207
        %v1366 = vunpack.c.l.b16 %v1208
        %v1367 = vunpack.c.h.b16 %v1208
        %v1368 = vunpack.c.l.b16 %v1209
        %v1369 = vunpack.c.h.b16 %v1209
        %v1370 = vunpack.c.l.b16 %v1210
        %v1371 = vunpack.c.h.b16 %v1210
        %v1372 = vunpack.c.l.b16 %v1211
        %v1373 = vunpack.c.h.b16 %v1211
        %v1374 = vunpack.c.l.b16 %v1212
        %v1375 = vunpack.c.h.b16 %v1212
        %v1376 = vunpack.c.l.b16 %v1213
        %v1377 = vunpack.c.h.b16 %v1213
        %v1378 = vunpack.c.l.b16 %v1214
        %v1379 = vunpack.c.h.b16 %v1214
        %v1380 = vunpack.c.l.b16 %v1215
        %v1381 = vunpack.c.h.b16 %v1215
        %v1382 = vunpack.c.l.b16 %v1216
        %v1383 = vunpack.c.h.b16 %v1216
        %v1384 = vunpack.c.l.b16 %v1217
        %v1385 = vunpack.c.h.b16 %v1217
        %v1386 = vunpack.c.l.b16 %v1218
        %v1387 = vunpack.c.h.b16 %v1218
        %v1388 = vunpack.c.l.b16 %v1219
        %v1389 = vunpack.c.h.b16 %v1219
        %v1390 = vunpack.c.l.b16 %v1220
        %v1391 = vunpack.c.h.b16 %v1220
        %v1392 = vunpack.c.l.b16 %v1221
        %v1393 = vunpack.c.h.b16 %v1221
        %v1394 = vunpack.c.l.b16 %v1222
        %v1395 = vunpack.c.h.b16 %v1222
        %v1396 = vunpack.c.l.b16 %v1223
        %v1397 = vunpack.c.h.b16 %v1223
        %v1398 = vunpack.c.l.b16 %v1224
        %v1399 = vunpack.c.h.b16 %v1224
        %v1400 = vunpack.c.l.b16 %v1225
        %v1401 = vunpack.c.h.b16 %v1225
        %v1402 = vunpack.c.l.b16 %v1226
        %v1403 = vunpack.c.h.b16 %v1226
        %v1404 = vunpack.c.l.b16 %v1227
        %v1405 = vunpack.c.h.b16 %v1227
        %v1406 = vunpack.c.l.b16 %v1228
        %v1407 = vunpack.c.h.b16 %v1228
        %v1408 = vunpack.c.l.b16 %v1229
        %v1409 = vunpack.c.h.b16 %v1229
        %v1410 = vunpack.c.l.b16 %v1230
        %v1411 = vunpack.c.h.b16 %v1230
        %v1412 = vunpack.c.l.b16 %v1231
        %v1413 = vunpack.c.h.b16 %v1231
        %v1414 = vunpack.c.l.b16 %v1232
        %v1415 = vunpack.c.h.b16 %v1232
        %v1416 = vunpack.c.l.b16 %v1233
        %v1417 = vunpack.c.h.b16 %v1233
        %v1418 = vunpack.c.l.b16 %v1234
        %v1419 = vunpack.c.h.b16 %v1234
        %v1420 = vunpack.c.l.b16 %v1235
        %v1421 = vunpack.c.h.b16 %v1235
        %v1422 = vunpack.c.l.b16 %v1236
        %v1423 = vunpack.c.h.b16 %v1236
        %v1424 = vunpack.c.l.b16 %v1237
        %v1425 = vunpack.c.h.b16 %v1237
        %v1426 = vunpack.c.l.b16 %v1238
        %v1427 = vunpack.c.h.b16 %v1238
        %v1428 = vunpack.c.l.b16 %v1239
        %v1429 = vunpack.c.h.b16 %v1239
        %v1430 = vunpack.c.l.b16 %v1240
        %v1431 = vunpack.c.h.b16 %v1240
        %v1432 = vunpack.c.l.b16 %v1241
        %v1433 = vunpack.c.h.b16 %v1241
        %v1434 = vpack.c.b16 %v1310, %v1306
        %v1435 = vpack.c.b16 %v1311, %v1307
        %v1436 = vpack.c.b16 %v1312, %v1308
        %v1437 = vpack.c.b16 %v1313, %v1309
        %v1438 = vpack.c.b16 %v1318, %v1314
        %v1439 = vpack.c.b16 %v1319, %v1315
        %v1440 = vpack.c.b16 %v1320, %v1316
        %v1441 = vpack.c.b16 %v1321, %v1317
        %v1442 = vpack.c.b16 %v1326, %v1322
        %v1443 = vpack.c.b16 %v1327, %v1323
        %v1444 = vpack.c.b16 %v1328, %v1324
        %v1445 = vpack.c.b16 %v1329, %v1325
        %v1446 = vpack.c.b16 %v1334, %v1330
        %v1447 = vpack.c.b16 %v1335, %v1331
        %v1448 = vpack.c.b16 %v1336, %v1332
        %v1449 = vpack.c.b16 %v1337, %v1333
        %v1450 = vpack.c.b16 %v1342, %v1338
        %v1451 = vpack.c.b16 %v1343, %v1339
        %v1452 = vpack.c.b16 %v1344, %v1340
        %v1453 = vpack.c.b16 %v1345, %v1341
        %v1454 = vpack.c.b16 %v1350, %v1346
        %v1455 = vpack.c.b16 %v1351, %v1347
        %v1456 = vpack.c.b16 %v1352, %v1348
        %v1457 = vpack.c.b16 %v1353, %v1349
        %v1458 = vpack.c.b16 %v1358, %v1354
        %v1459 = vpack.c.b16 %v1359, %v1355
        %v1460 = vpack.c.b16 %v1360, %v1356
        %v1461 = vpack.c.b16 %v1361, %v1357
        %v1462 = vpack.c.b16 %v1366, %v1362
        %v1463 = vpack.c.b16 %v1367, %v1363
        %v1464 = vpack.c.b16 %v1368, %v1364
        %v1465 = vpack.c.b16 %v1369, %v1365
        %v1466 = vpack.c.b16 %v1374, %v1370
        %v1467 = vpack.c.b16 %v1375, %v1371
        %v1468 = vpack.c.b16 %v1376, %v1372
        %v1469 = vpack.c.b16 %v1377, %v1373
        %v1470 = vpack.c.b16 %v1382, %v1378
        %v1471 = vpack.c.b16 %v1383, %v1379
        %v1472 = vpack.c.b16 %v1384, %v1380
        %v1473 = vpack.c.b16 %v1385, %v1381
        %v1474 = vpack.c.b16 %v1390, %v1386
        %v1475 = vpack.c.b16 %v1391, %v1387
        %v1476 = vpack.c.b16 %v1392, %v1388
        %v1477 = vpack.c.b16 %v1393, %v1389
        %v1478 = vpack.c.b16 %v1398, %v1394
        %v1479 = vpack.c.b16 %v1399, %v1395
        %v1480 = vpack.c.b16 %v1400, %v1396
        %v1481 = vpack.c.b16 %v1401, %v1397
        %v1482 = vpack.c.b16 %v1406, %v1402
        %v1483 = vpack.c.b16 %v1407, %v1403
        %v1484 = vpack.c.b16 %v1408, %v1404
        %v1485 = vpack.c.b16 %v1409, %v1405
        %v1486 = vpack.c.b16 %v1414, %v1410
        %v1487 = vpack.c.b16 %v1415, %v1411
        %v1488 = vpack.c.b16 %v1416, %v1412
        %v1489 = vpack.c.b16 %v1417, %v1413
        %v1490 = vpack.c.b16 %v1422, %v1418
        %v1491 = vpack.c.b16 %v1423, %v1419
        %v1492 = vpack.c.b16 %v1424, %v1420
        %v1493 = vpack.c.b16 %v1425, %v1421
        %v1494 = vpack.c.b16 %v1430, %v1426
        %v1495 = vpack.c.b16 %v1431, %v1427
        %v1496 = vpack.c.b16 %v1432, %v1428
        %v1497 = vpack.c.b16 %v1433, %v1429
        %1562 = vmatprep.subr.bf16.mxu0 %v1435
        %1563 = vmatpush1.bf16.msra.mxu0 %v1434
        %1564 = vmatprep.subr.bf16.mxu0 %v1439
        %1565 = vmatpush1.bf16.msra.mxu0 %v1438
        %1566 = vmatprep.subr.bf16.mxu0 %v1443
        %1567 = vmatpush1.bf16.msra.mxu0 %v1442
        %1568 = vmatprep.subr.bf16.mxu0 %v1447
        %1569 = vmatpush1.bf16.msra.mxu0 %v1446
        %1570 = vmatprep.subr.bf16.mxu0 %v1451
        %1571 = vmatpush1.bf16.msra.mxu0 %v1450
        %1572 = vmatprep.subr.bf16.mxu0 %v1455
        %1573 = vmatpush1.bf16.msra.mxu0 %v1454
        %1574 = vmatprep.subr.bf16.mxu0 %v1459
        %1575 = vmatpush1.bf16.msra.mxu0 %v1458
        %1576 = vmatprep.subr.bf16.mxu0 %v1463
        %1577 = vmatpush1.bf16.msra.mxu0 %v1462
        %1578 = vmatprep.subr.bf16.mxu0 %v1467
        %1579 = vmatpush1.bf16.msra.mxu0 %v1466
        %1580 = vmatprep.subr.bf16.mxu0 %v1471
        %1581 = vmatpush1.bf16.msra.mxu0 %v1470
        %1582 = vmatprep.subr.bf16.mxu0 %v1475
        %1583 = vmatpush1.bf16.msra.mxu0 %v1474
        %1584 = vmatprep.subr.bf16.mxu0 %v1479
        %1585 = vmatpush1.bf16.msra.mxu0 %v1478
        %1586 = vmatprep.subr.bf16.mxu0 %v1483
        %1587 = vmatpush1.bf16.msra.mxu0 %v1482
        %1588 = vmatprep.subr.bf16.mxu0 %v1487
        %1589 = vmatpush1.bf16.msra.mxu0 %v1486
        %1590 = vmatprep.subr.bf16.mxu0 %v1491
        %1591 = vmatpush1.bf16.msra.mxu0 %v1490
        %1592 = vmatprep.subr.bf16.mxu0 %v1495
        %1593 = vmatpush1.bf16.msra.mxu0 %v1494
        %1594 = vmatprep.mubr.bf16.mxu0 %v772
        %1595 = vmatmul.mubr.bf16.gmra.mrb[0].mxu0 %v771
        %v1596 = vpop.f32.mrb[0].mxu0
        %v1597 = vadd.f32 0.0, %v1596
        %v1598 = vpop.f32.mrb[0].mxu0
        %v1599 = vadd.f32 0.0, %v1598
        %v1600 = vpop.f32.mrb[0].mxu0
        %v1601 = vpop.f32.mrb[0].mxu0
        %1602 = vdwg.mxu0
        %1603 = vmatprep.subr.bf16.mxu0 %v1437
        %1604 = vmatpush1.bf16.msra.mxu0 %v1436
        %1605 = vmatprep.subr.bf16.mxu0 %v1441
        %1606 = vmatpush1.bf16.msra.mxu0 %v1440
        %1607 = vmatprep.subr.bf16.mxu0 %v1445
        %1608 = vmatpush1.bf16.msra.mxu0 %v1444
        %1609 = vmatprep.subr.bf16.mxu0 %v1449
        %1610 = vmatpush1.bf16.msra.mxu0 %v1448
        %1611 = vmatprep.subr.bf16.mxu0 %v1453
        %1612 = vmatpush1.bf16.msra.mxu0 %v1452
        %1613 = vmatprep.subr.bf16.mxu0 %v1457
        %1614 = vmatpush1.bf16.msra.mxu0 %v1456
        %1615 = vmatprep.subr.bf16.mxu0 %v1461
        %1616 = vmatpush1.bf16.msra.mxu0 %v1460
        %1617 = vmatprep.subr.bf16.mxu0 %v1465
        %1618 = vmatpush1.bf16.msra.mxu0 %v1464
        %1619 = vmatprep.subr.bf16.mxu0 %v1469
        %1620 = vmatpush1.bf16.msra.mxu0 %v1468
        %1621 = vmatprep.subr.bf16.mxu0 %v1473
        %1622 = vmatpush1.bf16.msra.mxu0 %v1472
        %1623 = vmatprep.subr.bf16.mxu0 %v1477
        %1624 = vmatpush1.bf16.msra.mxu0 %v1476
        %1625 = vmatprep.subr.bf16.mxu0 %v1481
        %1626 = vmatpush1.bf16.msra.mxu0 %v1480
        %1627 = vmatprep.subr.bf16.mxu0 %v1485
        %1628 = vmatpush1.bf16.msra.mxu0 %v1484
        %1629 = vmatprep.subr.bf16.mxu0 %v1489
        %1630 = vmatpush1.bf16.msra.mxu0 %v1488
        %1631 = vmatprep.subr.bf16.mxu0 %v1493
        %1632 = vmatpush1.bf16.msra.mxu0 %v1492
        %1633 = vmatprep.subr.bf16.mxu0 %v1497
        %1634 = vmatpush1.bf16.msra.mxu0 %v1496
        %1635 = vmatprep.mubr.bf16.mxu0 %v772
        %1636 = vmatmul.mubr.bf16.gmra.mrb[0].mxu0 %v771
        %v1637 = vpop.f32.mrb[0].mxu0
        %v1638 = vadd.f32 0.0, %v1637
        %v1639 = vpop.f32.mrb[0].mxu0
        %v1640 = vadd.f32 0.0, %v1639
        %v1641 = vpop.f32.mrb[0].mxu0
        %v1642 = vpop.f32.mrb[0].mxu0
        %1643 = vdwg.mxu0
        %v1644 = vmax.f32 %v1130, %v1597
        %v1645 = vmax.f32 %v1132, %v1599
        %v1646 = vmax.f32 %v1171, %v1638
        %v1647 = vmax.f32 %v1173, %v1640
        %s1648 = scalar_lea.vmem %s675, 1024 [#allocation2]
        %v1649 = vld [vmem:[%s1648] sm:$0xff]
        %v1650 = vld [vmem:[%s1648 + $0x8] sm:$0xff]
        %v1651 = vld [vmem:[%s1648 + $0x10] sm:$0xff]
        %v1652 = vld [vmem:[%s1648 + $0x18] sm:$0xff]
        %v1653 = vld [vmem:[%s1648 + $0x20] sm:$0xff]
        %v1654 = vld [vmem:[%s1648 + $0x28] sm:$0xff]
        %v1655 = vld [vmem:[%s1648 + $0x30] sm:$0xff]
        %v1656 = vld [vmem:[%s1648 + $0x38] sm:$0xff]
        %v1657 = vld [vmem:[%s1648 + $0x40] sm:$0xff]
        %v1658 = vld [vmem:[%s1648 + $0x48] sm:$0xff]
        %v1659 = vld [vmem:[%s1648 + $0x50] sm:$0xff]
        %v1660 = vld [vmem:[%s1648 + $0x58] sm:$0xff]
        %v1661 = vld [vmem:[%s1648 + $0x60] sm:$0xff]
        %v1662 = vld [vmem:[%s1648 + $0x68] sm:$0xff]
        %v1663 = vld [vmem:[%s1648 + $0x70] sm:$0xff]
        %v1664 = vld [vmem:[%s1648 + $0x78] sm:$0xff]
        %v1665 = vld [vmem:[%s1648 + $0x80] sm:$0xff]
        %v1666 = vld [vmem:[%s1648 + $0x88] sm:$0xff]
        %v1667 = vld [vmem:[%s1648 + $0x90] sm:$0xff]
        %v1668 = vld [vmem:[%s1648 + $0x98] sm:$0xff]
        %v1669 = vld [vmem:[%s1648 + $0xa0] sm:$0xff]
        %v1670 = vld [vmem:[%s1648 + $0xa8] sm:$0xff]
        %v1671 = vld [vmem:[%s1648 + $0xb0] sm:$0xff]
        %v1672 = vld [vmem:[%s1648 + $0xb8] sm:$0xff]
        %v1673 = vld [vmem:[%s1648 + $0xc0] sm:$0xff]
        %v1674 = vld [vmem:[%s1648 + $0xc8] sm:$0xff]
        %v1675 = vld [vmem:[%s1648 + $0xd0] sm:$0xff]
        %v1676 = vld [vmem:[%s1648 + $0xd8] sm:$0xff]
        %v1677 = vld [vmem:[%s1648 + $0xe0] sm:$0xff]
        %v1678 = vld [vmem:[%s1648 + $0xe8] sm:$0xff]
        %v1679 = vld [vmem:[%s1648 + $0xf0] sm:$0xff]
        %v1680 = vld [vmem:[%s1648 + $0xf8] sm:$0xff]
        %v1681 = vld [vmem:[%s1648 + $0x100] sm:$0xff]
        %v1682 = vld [vmem:[%s1648 + $0x108] sm:$0xff]
        %v1683 = vld [vmem:[%s1648 + $0x110] sm:$0xff]
        %v1684 = vld [vmem:[%s1648 + $0x118] sm:$0xff]
        %v1685 = vld [vmem:[%s1648 + $0x120] sm:$0xff]
        %v1686 = vld [vmem:[%s1648 + $0x128] sm:$0xff]
        %v1687 = vld [vmem:[%s1648 + $0x130] sm:$0xff]
        %v1688 = vld [vmem:[%s1648 + $0x138] sm:$0xff]
        %v1689 = vld [vmem:[%s1648 + $0x140] sm:$0xff]
        %v1690 = vld [vmem:[%s1648 + $0x148] sm:$0xff]
        %v1691 = vld [vmem:[%s1648 + $0x150] sm:$0xff]
        %v1692 = vld [vmem:[%s1648 + $0x158] sm:$0xff]
        %v1693 = vld [vmem:[%s1648 + $0x160] sm:$0xff]
        %v1694 = vld [vmem:[%s1648 + $0x168] sm:$0xff]
        %v1695 = vld [vmem:[%s1648 + $0x170] sm:$0xff]
        %v1696 = vld [vmem:[%s1648 + $0x178] sm:$0xff]
        %v1697 = vld [vmem:[%s1648 + $0x180] sm:$0xff]
        %v1698 = vld [vmem:[%s1648 + $0x188] sm:$0xff]
        %v1699 = vld [vmem:[%s1648 + $0x190] sm:$0xff]
        %v1700 = vld [vmem:[%s1648 + $0x198] sm:$0xff]
        %v1701 = vld [vmem:[%s1648 + $0x1a0] sm:$0xff]
        %v1702 = vld [vmem:[%s1648 + $0x1a8] sm:$0xff]
        %v1703 = vld [vmem:[%s1648 + $0x1b0] sm:$0xff]
        %v1704 = vld [vmem:[%s1648 + $0x1b8] sm:$0xff]
        %v1705 = vld [vmem:[%s1648 + $0x1c0] sm:$0xff]
        %v1706 = vld [vmem:[%s1648 + $0x1c8] sm:$0xff]
        %v1707 = vld [vmem:[%s1648 + $0x1d0] sm:$0xff]
        %v1708 = vld [vmem:[%s1648 + $0x1d8] sm:$0xff]
        %v1709 = vld [vmem:[%s1648 + $0x1e0] sm:$0xff]
        %v1710 = vld [vmem:[%s1648 + $0x1e8] sm:$0xff]
        %v1711 = vld [vmem:[%s1648 + $0x1f0] sm:$0xff]
        %v1712 = vld [vmem:[%s1648 + $0x1f8] sm:$0xff]
        %v1777 = vunpack.c.l.b16 %v1649
        %v1778 = vunpack.c.h.b16 %v1649
        %v1779 = vunpack.c.l.b16 %v1650
        %v1780 = vunpack.c.h.b16 %v1650
        %v1781 = vunpack.c.l.b16 %v1651
        %v1782 = vunpack.c.h.b16 %v1651
        %v1783 = vunpack.c.l.b16 %v1652
        %v1784 = vunpack.c.h.b16 %v1652
        %v1785 = vunpack.c.l.b16 %v1653
        %v1786 = vunpack.c.h.b16 %v1653
        %v1787 = vunpack.c.l.b16 %v1654
        %v1788 = vunpack.c.h.b16 %v1654
        %v1789 = vunpack.c.l.b16 %v1655
        %v1790 = vunpack.c.h.b16 %v1655
        %v1791 = vunpack.c.l.b16 %v1656
        %v1792 = vunpack.c.h.b16 %v1656
        %v1793 = vunpack.c.l.b16 %v1657
        %v1794 = vunpack.c.h.b16 %v1657
        %v1795 = vunpack.c.l.b16 %v1658
        %v1796 = vunpack.c.h.b16 %v1658
        %v1797 = vunpack.c.l.b16 %v1659
        %v1798 = vunpack.c.h.b16 %v1659
        %v1799 = vunpack.c.l.b16 %v1660
        %v1800 = vunpack.c.h.b16 %v1660
        %v1801 = vunpack.c.l.b16 %v1661
        %v1802 = vunpack.c.h.b16 %v1661
        %v1803 = vunpack.c.l.b16 %v1662
        %v1804 = vunpack.c.h.b16 %v1662
        %v1805 = vunpack.c.l.b16 %v1663
        %v1806 = vunpack.c.h.b16 %v1663
        %v1807 = vunpack.c.l.b16 %v1664
        %v1808 = vunpack.c.h.b16 %v1664
        %v1809 = vunpack.c.l.b16 %v1665
        %v1810 = vunpack.c.h.b16 %v1665
        %v1811 = vunpack.c.l.b16 %v1666
        %v1812 = vunpack.c.h.b16 %v1666
        %v1813 = vunpack.c.l.b16 %v1667
        %v1814 = vunpack.c.h.b16 %v1667
        %v1815 = vunpack.c.l.b16 %v1668
        %v1816 = vunpack.c.h.b16 %v1668
        %v1817 = vunpack.c.l.b16 %v1669
        %v1818 = vunpack.c.h.b16 %v1669
        %v1819 = vunpack.c.l.b16 %v1670
        %v1820 = vunpack.c.h.b16 %v1670
        %v1821 = vunpack.c.l.b16 %v1671
        %v1822 = vunpack.c.h.b16 %v1671
        %v1823 = vunpack.c.l.b16 %v1672
        %v1824 = vunpack.c.h.b16 %v1672
        %v1825 = vunpack.c.l.b16 %v1673
        %v1826 = vunpack.c.h.b16 %v1673
        %v1827 = vunpack.c.l.b16 %v1674
        %v1828 = vunpack.c.h.b16 %v1674
        %v1829 = vunpack.c.l.b16 %v1675
        %v1830 = vunpack.c.h.b16 %v1675
        %v1831 = vunpack.c.l.b16 %v1676
        %v1832 = vunpack.c.h.b16 %v1676
        %v1833 = vunpack.c.l.b16 %v1677
        %v1834 = vunpack.c.h.b16 %v1677
        %v1835 = vunpack.c.l.b16 %v1678
        %v1836 = vunpack.c.h.b16 %v1678
        %v1837 = vunpack.c.l.b16 %v1679
        %v1838 = vunpack.c.h.b16 %v1679
        %v1839 = vunpack.c.l.b16 %v1680
        %v1840 = vunpack.c.h.b16 %v1680
        %v1841 = vunpack.c.l.b16 %v1681
        %v1842 = vunpack.c.h.b16 %v1681
        %v1843 = vunpack.c.l.b16 %v1682
        %v1844 = vunpack.c.h.b16 %v1682
        %v1845 = vunpack.c.l.b16 %v1683
        %v1846 = vunpack.c.h.b16 %v1683
        %v1847 = vunpack.c.l.b16 %v1684
        %v1848 = vunpack.c.h.b16 %v1684
        %v1849 = vunpack.c.l.b16 %v1685
        %v1850 = vunpack.c.h.b16 %v1685
        %v1851 = vunpack.c.l.b16 %v1686
        %v1852 = vunpack.c.h.b16 %v1686
        %v1853 = vunpack.c.l.b16 %v1687
        %v1854 = vunpack.c.h.b16 %v1687
        %v1855 = vunpack.c.l.b16 %v1688
        %v1856 = vunpack.c.h.b16 %v1688
        %v1857 = vunpack.c.l.b16 %v1689
        %v1858 = vunpack.c.h.b16 %v1689
        %v1859 = vunpack.c.l.b16 %v1690
        %v1860 = vunpack.c.h.b16 %v1690
        %v1861 = vunpack.c.l.b16 %v1691
        %v1862 = vunpack.c.h.b16 %v1691
        %v1863 = vunpack.c.l.b16 %v1692
        %v1864 = vunpack.c.h.b16 %v1692
        %v1865 = vunpack.c.l.b16 %v1693
        %v1866 = vunpack.c.h.b16 %v1693
        %v1867 = vunpack.c.l.b16 %v1694
        %v1868 = vunpack.c.h.b16 %v1694
        %v1869 = vunpack.c.l.b16 %v1695
        %v1870 = vunpack.c.h.b16 %v1695
        %v1871 = vunpack.c.l.b16 %v1696
        %v1872 = vunpack.c.h.b16 %v1696
        %v1873 = vunpack.c.l.b16 %v1697
        %v1874 = vunpack.c.h.b16 %v1697
        %v1875 = vunpack.c.l.b16 %v1698
        %v1876 = vunpack.c.h.b16 %v1698
        %v1877 = vunpack.c.l.b16 %v1699
        %v1878 = vunpack.c.h.b16 %v1699
        %v1879 = vunpack.c.l.b16 %v1700
        %v1880 = vunpack.c.h.b16 %v1700
        %v1881 = vunpack.c.l.b16 %v1701
        %v1882 = vunpack.c.h.b16 %v1701
        %v1883 = vunpack.c.l.b16 %v1702
        %v1884 = vunpack.c.h.b16 %v1702
        %v1885 = vunpack.c.l.b16 %v1703
        %v1886 = vunpack.c.h.b16 %v1703
        %v1887 = vunpack.c.l.b16 %v1704
        %v1888 = vunpack.c.h.b16 %v1704
        %v1889 = vunpack.c.l.b16 %v1705
        %v1890 = vunpack.c.h.b16 %v1705
        %v1891 = vunpack.c.l.b16 %v1706
        %v1892 = vunpack.c.h.b16 %v1706
        %v1893 = vunpack.c.l.b16 %v1707
        %v1894 = vunpack.c.h.b16 %v1707
        %v1895 = vunpack.c.l.b16 %v1708
        %v1896 = vunpack.c.h.b16 %v1708
        %v1897 = vunpack.c.l.b16 %v1709
        %v1898 = vunpack.c.h.b16 %v1709
        %v1899 = vunpack.c.l.b16 %v1710
        %v1900 = vunpack.c.h.b16 %v1710
        %v1901 = vunpack.c.l.b16 %v1711
        %v1902 = vunpack.c.h.b16 %v1711
        %v1903 = vunpack.c.l.b16 %v1712
        %v1904 = vunpack.c.h.b16 %v1712
        %v1905 = vpack.c.b16 %v1781, %v1777
        %v1906 = vpack.c.b16 %v1782, %v1778
        %v1907 = vpack.c.b16 %v1783, %v1779
        %v1908 = vpack.c.b16 %v1784, %v1780
        %v1909 = vpack.c.b16 %v1789, %v1785
        %v1910 = vpack.c.b16 %v1790, %v1786
        %v1911 = vpack.c.b16 %v1791, %v1787
        %v1912 = vpack.c.b16 %v1792, %v1788
        %v1913 = vpack.c.b16 %v1797, %v1793
        %v1914 = vpack.c.b16 %v1798, %v1794
        %v1915 = vpack.c.b16 %v1799, %v1795
        %v1916 = vpack.c.b16 %v1800, %v1796
        %v1917 = vpack.c.b16 %v1805, %v1801
        %v1918 = vpack.c.b16 %v1806, %v1802
        %v1919 = vpack.c.b16 %v1807, %v1803
        %v1920 = vpack.c.b16 %v1808, %v1804
        %v1921 = vpack.c.b16 %v1813, %v1809
        %v1922 = vpack.c.b16 %v1814, %v1810
        %v1923 = vpack.c.b16 %v1815, %v1811
        %v1924 = vpack.c.b16 %v1816, %v1812
        %v1925 = vpack.c.b16 %v1821, %v1817
        %v1926 = vpack.c.b16 %v1822, %v1818
        %v1927 = vpack.c.b16 %v1823, %v1819
        %v1928 = vpack.c.b16 %v1824, %v1820
        %v1929 = vpack.c.b16 %v1829, %v1825
        %v1930 = vpack.c.b16 %v1830, %v1826
        %v1931 = vpack.c.b16 %v1831, %v1827
        %v1932 = vpack.c.b16 %v1832, %v1828
        %v1933 = vpack.c.b16 %v1837, %v1833
        %v1934 = vpack.c.b16 %v1838, %v1834
        %v1935 = vpack.c.b16 %v1839, %v1835
        %v1936 = vpack.c.b16 %v1840, %v1836
        %v1937 = vpack.c.b16 %v1845, %v1841
        %v1938 = vpack.c.b16 %v1846, %v1842
        %v1939 = vpack.c.b16 %v1847, %v1843
        %v1940 = vpack.c.b16 %v1848, %v1844
        %v1941 = vpack.c.b16 %v1853, %v1849
        %v1942 = vpack.c.b16 %v1854, %v1850
        %v1943 = vpack.c.b16 %v1855, %v1851
        %v1944 = vpack.c.b16 %v1856, %v1852
        %v1945 = vpack.c.b16 %v1861, %v1857
        %v1946 = vpack.c.b16 %v1862, %v1858
        %v1947 = vpack.c.b16 %v1863, %v1859
        %v1948 = vpack.c.b16 %v1864, %v1860
        %v1949 = vpack.c.b16 %v1869, %v1865
        %v1950 = vpack.c.b16 %v1870, %v1866
        %v1951 = vpack.c.b16 %v1871, %v1867
        %v1952 = vpack.c.b16 %v1872, %v1868
        %v1953 = vpack.c.b16 %v1877, %v1873
        %v1954 = vpack.c.b16 %v1878, %v1874
        %v1955 = vpack.c.b16 %v1879, %v1875
        %v1956 = vpack.c.b16 %v1880, %v1876
        %v1957 = vpack.c.b16 %v1885, %v1881
        %v1958 = vpack.c.b16 %v1886, %v1882
        %v1959 = vpack.c.b16 %v1887, %v1883
        %v1960 = vpack.c.b16 %v1888, %v1884
        %v1961 = vpack.c.b16 %v1893, %v1889
        %v1962 = vpack.c.b16 %v1894, %v1890
        %v1963 = vpack.c.b16 %v1895, %v1891
        %v1964 = vpack.c.b16 %v1896, %v1892
        %v1965 = vpack.c.b16 %v1901, %v1897
        %v1966 = vpack.c.b16 %v1902, %v1898
        %v1967 = vpack.c.b16 %v1903, %v1899
        %v1968 = vpack.c.b16 %v1904, %v1900
        %2033 = vmatprep.subr.bf16.mxu0 %v1906
        %2034 = vmatpush1.bf16.msra.mxu0 %v1905
        %2035 = vmatprep.subr.bf16.mxu0 %v1910
        %2036 = vmatpush1.bf16.msra.mxu0 %v1909
        %2037 = vmatprep.subr.bf16.mxu0 %v1914
        %2038 = vmatpush1.bf16.msra.mxu0 %v1913
        %2039 = vmatprep.subr.bf16.mxu0 %v1918
        %2040 = vmatpush1.bf16.msra.mxu0 %v1917
        %2041 = vmatprep.subr.bf16.mxu0 %v1922
        %2042 = vmatpush1.bf16.msra.mxu0 %v1921
        %2043 = vmatprep.subr.bf16.mxu0 %v1926
        %2044 = vmatpush1.bf16.msra.mxu0 %v1925
        %2045 = vmatprep.subr.bf16.mxu0 %v1930
        %2046 = vmatpush1.bf16.msra.mxu0 %v1929
        %2047 = vmatprep.subr.bf16.mxu0 %v1934
        %2048 = vmatpush1.bf16.msra.mxu0 %v1933
        %2049 = vmatprep.subr.bf16.mxu0 %v1938
        %2050 = vmatpush1.bf16.msra.mxu0 %v1937
        %2051 = vmatprep.subr.bf16.mxu0 %v1942
        %2052 = vmatpush1.bf16.msra.mxu0 %v1941
        %2053 = vmatprep.subr.bf16.mxu0 %v1946
        %2054 = vmatpush1.bf16.msra.mxu0 %v1945
        %2055 = vmatprep.subr.bf16.mxu0 %v1950
        %2056 = vmatpush1.bf16.msra.mxu0 %v1949
        %2057 = vmatprep.subr.bf16.mxu0 %v1954
        %2058 = vmatpush1.bf16.msra.mxu0 %v1953
        %2059 = vmatprep.subr.bf16.mxu0 %v1958
        %2060 = vmatpush1.bf16.msra.mxu0 %v1957
        %2061 = vmatprep.subr.bf16.mxu0 %v1962
        %2062 = vmatpush1.bf16.msra.mxu0 %v1961
        %2063 = vmatprep.subr.bf16.mxu0 %v1966
        %2064 = vmatpush1.bf16.msra.mxu0 %v1965
        %2065 = vmatprep.mubr.bf16.mxu0 %v772
        %2066 = vmatmul.mubr.bf16.gmra.mrb[0].mxu0 %v771
        %v2067 = vpop.f32.mrb[0].mxu0
        %v2068 = vadd.f32 0.0, %v2067
        %v2069 = vpop.f32.mrb[0].mxu0
        %v2070 = vadd.f32 0.0, %v2069
        %v2071 = vpop.f32.mrb[0].mxu0
        %v2072 = vpop.f32.mrb[0].mxu0
        %2073 = vdwg.mxu0
        %2074 = vmatprep.subr.bf16.mxu0 %v1908
        %2075 = vmatpush1.bf16.msra.mxu0 %v1907
        %2076 = vmatprep.subr.bf16.mxu0 %v1912
        %2077 = vmatpush1.bf16.msra.mxu0 %v1911
        %2078 = vmatprep.subr.bf16.mxu0 %v1916
        %2079 = vmatpush1.bf16.msra.mxu0 %v1915
        %2080 = vmatprep.subr.bf16.mxu0 %v1920
        %2081 = vmatpush1.bf16.msra.mxu0 %v1919
        %2082 = vmatprep.subr.bf16.mxu0 %v1924
        %2083 = vmatpush1.bf16.msra.mxu0 %v1923
        %2084 = vmatprep.subr.bf16.mxu0 %v1928
        %2085 = vmatpush1.bf16.msra.mxu0 %v1927
        %2086 = vmatprep.subr.bf16.mxu0 %v1932
        %2087 = vmatpush1.bf16.msra.mxu0 %v1931
        %2088 = vmatprep.subr.bf16.mxu0 %v1936
        %2089 = vmatpush1.bf16.msra.mxu0 %v1935
        %2090 = vmatprep.subr.bf16.mxu0 %v1940
        %2091 = vmatpush1.bf16.msra.mxu0 %v1939
        %2092 = vmatprep.subr.bf16.mxu0 %v1944
        %2093 = vmatpush1.bf16.msra.mxu0 %v1943
        %2094 = vmatprep.subr.bf16.mxu0 %v1948
        %2095 = vmatpush1.bf16.msra.mxu0 %v1947
        %2096 = vmatprep.subr.bf16.mxu0 %v1952
        %2097 = vmatpush1.bf16.msra.mxu0 %v1951
        %2098 = vmatprep.subr.bf16.mxu0 %v1956
        %2099 = vmatpush1.bf16.msra.mxu0 %v1955
        %2100 = vmatprep.subr.bf16.mxu0 %v1960
        %2101 = vmatpush1.bf16.msra.mxu0 %v1959
        %2102 = vmatprep.subr.bf16.mxu0 %v1964
        %2103 = vmatpush1.bf16.msra.mxu0 %v1963
        %2104 = vmatprep.subr.bf16.mxu0 %v1968
        %2105 = vmatpush1.bf16.msra.mxu0 %v1967
        %2106 = vmatprep.mubr.bf16.mxu0 %v772
        %2107 = vmatmul.mubr.bf16.gmra.mrb[0].mxu0 %v771
        %v2108 = vpop.f32.mrb[0].mxu0
        %v2109 = vadd.f32 0.0, %v2108
        %v2110 = vpop.f32.mrb[0].mxu0
        %v2111 = vadd.f32 0.0, %v2110
        %v2112 = vpop.f32.mrb[0].mxu0
        %v2113 = vpop.f32.mrb[0].mxu0
        %2114 = vdwg.mxu0
        %v2115 = vmax.f32 %v1644, %v2068
        %v2116 = vmax.f32 %v1645, %v2070
        %v2117 = vmax.f32 %v1646, %v2109
        %v2118 = vmax.f32 %v1647, %v2111
        %s2119 = scalar_lea.vmem %s675, 1536 [#allocation2]
        %v2120 = vld [vmem:[%s2119] sm:$0xff]
        %v2121 = vld [vmem:[%s2119 + $0x8] sm:$0xff]
        %v2122 = vld [vmem:[%s2119 + $0x10] sm:$0xff]
        %v2123 = vld [vmem:[%s2119 + $0x18] sm:$0xff]
        %v2124 = vld [vmem:[%s2119 + $0x20] sm:$0xff]
        %v2125 = vld [vmem:[%s2119 + $0x28] sm:$0xff]
        %v2126 = vld [vmem:[%s2119 + $0x30] sm:$0xff]
        %v2127 = vld [vmem:[%s2119 + $0x38] sm:$0xff]
        %v2128 = vld [vmem:[%s2119 + $0x40] sm:$0xff]
        %v2129 = vld [vmem:[%s2119 + $0x48] sm:$0xff]
        %v2130 = vld [vmem:[%s2119 + $0x50] sm:$0xff]
        %v2131 = vld [vmem:[%s2119 + $0x58] sm:$0xff]
        %v2132 = vld [vmem:[%s2119 + $0x60] sm:$0xff]
        %v2133 = vld [vmem:[%s2119 + $0x68] sm:$0xff]
        %v2134 = vld [vmem:[%s2119 + $0x70] sm:$0xff]
        %v2135 = vld [vmem:[%s2119 + $0x78] sm:$0xff]
        %v2136 = vld [vmem:[%s2119 + $0x80] sm:$0xff]
        %v2137 = vld [vmem:[%s2119 + $0x88] sm:$0xff]
        %v2138 = vld [vmem:[%s2119 + $0x90] sm:$0xff]
        %v2139 = vld [vmem:[%s2119 + $0x98] sm:$0xff]
        %v2140 = vld [vmem:[%s2119 + $0xa0] sm:$0xff]
        %v2141 = vld [vmem:[%s2119 + $0xa8] sm:$0xff]
        %v2142 = vld [vmem:[%s2119 + $0xb0] sm:$0xff]
        %v2143 = vld [vmem:[%s2119 + $0xb8] sm:$0xff]
        %v2144 = vld [vmem:[%s2119 + $0xc0] sm:$0xff]
        %v2145 = vld [vmem:[%s2119 + $0xc8] sm:$0xff]
        %v2146 = vld [vmem:[%s2119 + $0xd0] sm:$0xff]
        %v2147 = vld [vmem:[%s2119 + $0xd8] sm:$0xff]
        %v2148 = vld [vmem:[%s2119 + $0xe0] sm:$0xff]
        %v2149 = vld [vmem:[%s2119 + $0xe8] sm:$0xff]
        %v2150 = vld [vmem:[%s2119 + $0xf0] sm:$0xff]
        %v2151 = vld [vmem:[%s2119 + $0xf8] sm:$0xff]
        %v2152 = vld [vmem:[%s2119 + $0x100] sm:$0xff]
        %v2153 = vld [vmem:[%s2119 + $0x108] sm:$0xff]
        %v2154 = vld [vmem:[%s2119 + $0x110] sm:$0xff]
        %v2155 = vld [vmem:[%s2119 + $0x118] sm:$0xff]
        %v2156 = vld [vmem:[%s2119 + $0x120] sm:$0xff]
        %v2157 = vld [vmem:[%s2119 + $0x128] sm:$0xff]
        %v2158 = vld [vmem:[%s2119 + $0x130] sm:$0xff]
        %v2159 = vld [vmem:[%s2119 + $0x138] sm:$0xff]
        %v2160 = vld [vmem:[%s2119 + $0x140] sm:$0xff]
        %v2161 = vld [vmem:[%s2119 + $0x148] sm:$0xff]
        %v2162 = vld [vmem:[%s2119 + $0x150] sm:$0xff]
        %v2163 = vld [vmem:[%s2119 + $0x158] sm:$0xff]
        %v2164 = vld [vmem:[%s2119 + $0x160] sm:$0xff]
        %v2165 = vld [vmem:[%s2119 + $0x168] sm:$0xff]
        %v2166 = vld [vmem:[%s2119 + $0x170] sm:$0xff]
        %v2167 = vld [vmem:[%s2119 + $0x178] sm:$0xff]
        %v2168 = vld [vmem:[%s2119 + $0x180] sm:$0xff]
        %v2169 = vld [vmem:[%s2119 + $0x188] sm:$0xff]
        %v2170 = vld [vmem:[%s2119 + $0x190] sm:$0xff]
        %v2171 = vld [vmem:[%s2119 + $0x198] sm:$0xff]
        %v2172 = vld [vmem:[%s2119 + $0x1a0] sm:$0xff]
        %v2173 = vld [vmem:[%s2119 + $0x1a8] sm:$0xff]
        %v2174 = vld [vmem:[%s2119 + $0x1b0] sm:$0xff]
        %v2175 = vld [vmem:[%s2119 + $0x1b8] sm:$0xff]
        %v2176 = vld [vmem:[%s2119 + $0x1c0] sm:$0xff]
        %v2177 = vld [vmem:[%s2119 + $0x1c8] sm:$0xff]
        %v2178 = vld [vmem:[%s2119 + $0x1d0] sm:$0xff]
        %v2179 = vld [vmem:[%s2119 + $0x1d8] sm:$0xff]
        %v2180 = vld [vmem:[%s2119 + $0x1e0] sm:$0xff]
        %v2181 = vld [vmem:[%s2119 + $0x1e8] sm:$0xff]
        %v2182 = vld [vmem:[%s2119 + $0x1f0] sm:$0xff]
        %v2183 = vld [vmem:[%s2119 + $0x1f8] sm:$0xff]
        %v2248 = vunpack.c.l.b16 %v2120
        %v2249 = vunpack.c.h.b16 %v2120
        %v2250 = vunpack.c.l.b16 %v2121
        %v2251 = vunpack.c.h.b16 %v2121
        %v2252 = vunpack.c.l.b16 %v2122
        %v2253 = vunpack.c.h.b16 %v2122
        %v2254 = vunpack.c.l.b16 %v2123
        %v2255 = vunpack.c.h.b16 %v2123
        %v2256 = vunpack.c.l.b16 %v2124
        %v2257 = vunpack.c.h.b16 %v2124
        %v2258 = vunpack.c.l.b16 %v2125
        %v2259 = vunpack.c.h.b16 %v2125
        %v2260 = vunpack.c.l.b16 %v2126
        %v2261 = vunpack.c.h.b16 %v2126
        %v2262 = vunpack.c.l.b16 %v2127
        %v2263 = vunpack.c.h.b16 %v2127
        %v2264 = vunpack.c.l.b16 %v2128
        %v2265 = vunpack.c.h.b16 %v2128
        %v2266 = vunpack.c.l.b16 %v2129
        %v2267 = vunpack.c.h.b16 %v2129
        %v2268 = vunpack.c.l.b16 %v2130
        %v2269 = vunpack.c.h.b16 %v2130
        %v2270 = vunpack.c.l.b16 %v2131
        %v2271 = vunpack.c.h.b16 %v2131
        %v2272 = vunpack.c.l.b16 %v2132
        %v2273 = vunpack.c.h.b16 %v2132
        %v2274 = vunpack.c.l.b16 %v2133
        %v2275 = vunpack.c.h.b16 %v2133
        %v2276 = vunpack.c.l.b16 %v2134
        %v2277 = vunpack.c.h.b16 %v2134
        %v2278 = vunpack.c.l.b16 %v2135
        %v2279 = vunpack.c.h.b16 %v2135
        %v2280 = vunpack.c.l.b16 %v2136
        %v2281 = vunpack.c.h.b16 %v2136
        %v2282 = vunpack.c.l.b16 %v2137
        %v2283 = vunpack.c.h.b16 %v2137
        %v2284 = vunpack.c.l.b16 %v2138
        %v2285 = vunpack.c.h.b16 %v2138
        %v2286 = vunpack.c.l.b16 %v2139
        %v2287 = vunpack.c.h.b16 %v2139
        %v2288 = vunpack.c.l.b16 %v2140
        %v2289 = vunpack.c.h.b16 %v2140
        %v2290 = vunpack.c.l.b16 %v2141
        %v2291 = vunpack.c.h.b16 %v2141
        %v2292 = vunpack.c.l.b16 %v2142
        %v2293 = vunpack.c.h.b16 %v2142
        %v2294 = vunpack.c.l.b16 %v2143
        %v2295 = vunpack.c.h.b16 %v2143
        %v2296 = vunpack.c.l.b16 %v2144
        %v2297 = vunpack.c.h.b16 %v2144
        %v2298 = vunpack.c.l.b16 %v2145
        %v2299 = vunpack.c.h.b16 %v2145
        %v2300 = vunpack.c.l.b16 %v2146
        %v2301 = vunpack.c.h.b16 %v2146
        %v2302 = vunpack.c.l.b16 %v2147
        %v2303 = vunpack.c.h.b16 %v2147
        %v2304 = vunpack.c.l.b16 %v2148
        %v2305 = vunpack.c.h.b16 %v2148
        %v2306 = vunpack.c.l.b16 %v2149
        %v2307 = vunpack.c.h.b16 %v2149
        %v2308 = vunpack.c.l.b16 %v2150
        %v2309 = vunpack.c.h.b16 %v2150
        %v2310 = vunpack.c.l.b16 %v2151
        %v2311 = vunpack.c.h.b16 %v2151
        %v2312 = vunpack.c.l.b16 %v2152
        %v2313 = vunpack.c.h.b16 %v2152
        %v2314 = vunpack.c.l.b16 %v2153
        %v2315 = vunpack.c.h.b16 %v2153
        %v2316 = vunpack.c.l.b16 %v2154
        %v2317 = vunpack.c.h.b16 %v2154
        %v2318 = vunpack.c.l.b16 %v2155
        %v2319 = vunpack.c.h.b16 %v2155
        %v2320 = vunpack.c.l.b16 %v2156
        %v2321 = vunpack.c.h.b16 %v2156
        %v2322 = vunpack.c.l.b16 %v2157
        %v2323 = vunpack.c.h.b16 %v2157
        %v2324 = vunpack.c.l.b16 %v2158
        %v2325 = vunpack.c.h.b16 %v2158
        %v2326 = vunpack.c.l.b16 %v2159
        %v2327 = vunpack.c.h.b16 %v2159
        %v2328 = vunpack.c.l.b16 %v2160
        %v2329 = vunpack.c.h.b16 %v2160
        %v2330 = vunpack.c.l.b16 %v2161
        %v2331 = vunpack.c.h.b16 %v2161
        %v2332 = vunpack.c.l.b16 %v2162
        %v2333 = vunpack.c.h.b16 %v2162
        %v2334 = vunpack.c.l.b16 %v2163
        %v2335 = vunpack.c.h.b16 %v2163
        %v2336 = vunpack.c.l.b16 %v2164
        %v2337 = vunpack.c.h.b16 %v2164
        %v2338 = vunpack.c.l.b16 %v2165
        %v2339 = vunpack.c.h.b16 %v2165
        %v2340 = vunpack.c.l.b16 %v2166
        %v2341 = vunpack.c.h.b16 %v2166
        %v2342 = vunpack.c.l.b16 %v2167
        %v2343 = vunpack.c.h.b16 %v2167
        %v2344 = vunpack.c.l.b16 %v2168
        %v2345 = vunpack.c.h.b16 %v2168
        %v2346 = vunpack.c.l.b16 %v2169
        %v2347 = vunpack.c.h.b16 %v2169
        %v2348 = vunpack.c.l.b16 %v2170
        %v2349 = vunpack.c.h.b16 %v2170
        %v2350 = vunpack.c.l.b16 %v2171
        %v2351 = vunpack.c.h.b16 %v2171
        %v2352 = vunpack.c.l.b16 %v2172
        %v2353 = vunpack.c.h.b16 %v2172
        %v2354 = vunpack.c.l.b16 %v2173
        %v2355 = vunpack.c.h.b16 %v2173
        %v2356 = vunpack.c.l.b16 %v2174
        %v2357 = vunpack.c.h.b16 %v2174
        %v2358 = vunpack.c.l.b16 %v2175
        %v2359 = vunpack.c.h.b16 %v2175
        %v2360 = vunpack.c.l.b16 %v2176
        %v2361 = vunpack.c.h.b16 %v2176
        %v2362 = vunpack.c.l.b16 %v2177
        %v2363 = vunpack.c.h.b16 %v2177
        %v2364 = vunpack.c.l.b16 %v2178
        %v2365 = vunpack.c.h.b16 %v2178
        %v2366 = vunpack.c.l.b16 %v2179
        %v2367 = vunpack.c.h.b16 %v2179
        %v2368 = vunpack.c.l.b16 %v2180
        %v2369 = vunpack.c.h.b16 %v2180
        %v2370 = vunpack.c.l.b16 %v2181
        %v2371 = vunpack.c.h.b16 %v2181
        %v2372 = vunpack.c.l.b16 %v2182
        %v2373 = vunpack.c.h.b16 %v2182
        %v2374 = vunpack.c.l.b16 %v2183
        %v2375 = vunpack.c.h.b16 %v2183
        %v2376 = vpack.c.b16 %v2252, %v2248
        %v2377 = vpack.c.b16 %v2253, %v2249
        %v2378 = vpack.c.b16 %v2254, %v2250
        %v2379 = vpack.c.b16 %v2255, %v2251
        %v2380 = vpack.c.b16 %v2260, %v2256
        %v2381 = vpack.c.b16 %v2261, %v2257
        %v2382 = vpack.c.b16 %v2262, %v2258
        %v2383 = vpack.c.b16 %v2263, %v2259
        %v2384 = vpack.c.b16 %v2268, %v2264
        %v2385 = vpack.c.b16 %v2269, %v2265
        %v2386 = vpack.c.b16 %v2270, %v2266
        %v2387 = vpack.c.b16 %v2271, %v2267
        %v2388 = vpack.c.b16 %v2276, %v2272
        %v2389 = vpack.c.b16 %v2277, %v2273
        %v2390 = vpack.c.b16 %v2278, %v2274
        %v2391 = vpack.c.b16 %v2279, %v2275
        %v2392 = vpack.c.b16 %v2284, %v2280
        %v2393 = vpack.c.b16 %v2285, %v2281
        %v2394 = vpack.c.b16 %v2286, %v2282
        %v2395 = vpack.c.b16 %v2287, %v2283
        %v2396 = vpack.c.b16 %v2292, %v2288
        %v2397 = vpack.c.b16 %v2293, %v2289
        %v2398 = vpack.c.b16 %v2294, %v2290
        %v2399 = vpack.c.b16 %v2295, %v2291
        %v2400 = vpack.c.b16 %v2300, %v2296
        %v2401 = vpack.c.b16 %v2301, %v2297
        %v2402 = vpack.c.b16 %v2302, %v2298
        %v2403 = vpack.c.b16 %v2303, %v2299
        %v2404 = vpack.c.b16 %v2308, %v2304
        %v2405 = vpack.c.b16 %v2309, %v2305
        %v2406 = vpack.c.b16 %v2310, %v2306
        %v2407 = vpack.c.b16 %v2311, %v2307
        %v2408 = vpack.c.b16 %v2316, %v2312
        %v2409 = vpack.c.b16 %v2317, %v2313
        %v2410 = vpack.c.b16 %v2318, %v2314
        %v2411 = vpack.c.b16 %v2319, %v2315
        %v2412 = vpack.c.b16 %v2324, %v2320
        %v2413 = vpack.c.b16 %v2325, %v2321
        %v2414 = vpack.c.b16 %v2326, %v2322
        %v2415 = vpack.c.b16 %v2327, %v2323
        %v2416 = vpack.c.b16 %v2332, %v2328
        %v2417 = vpack.c.b16 %v2333, %v2329
        %v2418 = vpack.c.b16 %v2334, %v2330
        %v2419 = vpack.c.b16 %v2335, %v2331
        %v2420 = vpack.c.b16 %v2340, %v2336
        %v2421 = vpack.c.b16 %v2341, %v2337
        %v2422 = vpack.c.b16 %v2342, %v2338
        %v2423 = vpack.c.b16 %v2343, %v2339
        %v2424 = vpack.c.b16 %v2348, %v2344
        %v2425 = vpack.c.b16 %v2349, %v2345
        %v2426 = vpack.c.b16 %v2350, %v2346
        %v2427 = vpack.c.b16 %v2351, %v2347
        %v2428 = vpack.c.b16 %v2356, %v2352
        %v2429 = vpack.c.b16 %v2357, %v2353
        %v2430 = vpack.c.b16 %v2358, %v2354
        %v2431 = vpack.c.b16 %v2359, %v2355
        %v2432 = vpack.c.b16 %v2364, %v2360
        %v2433 = vpack.c.b16 %v2365, %v2361
        %v2434 = vpack.c.b16 %v2366, %v2362
        %v2435 = vpack.c.b16 %v2367, %v2363
        %v2436 = vpack.c.b16 %v2372, %v2368
        %v2437 = vpack.c.b16 %v2373, %v2369
        %v2438 = vpack.c.b16 %v2374, %v2370
        %v2439 = vpack.c.b16 %v2375, %v2371
        %2504 = vmatprep.subr.bf16.mxu0 %v2377
        %2505 = vmatpush1.bf16.msra.mxu0 %v2376
        %2506 = vmatprep.subr.bf16.mxu0 %v2381
        %2507 = vmatpush1.bf16.msra.mxu0 %v2380
        %2508 = vmatprep.subr.bf16.mxu0 %v2385
        %2509 = vmatpush1.bf16.msra.mxu0 %v2384
        %2510 = vmatprep.subr.bf16.mxu0 %v2389
        %2511 = vmatpush1.bf16.msra.mxu0 %v2388
        %2512 = vmatprep.subr.bf16.mxu0 %v2393
        %2513 = vmatpush1.bf16.msra.mxu0 %v2392
        %2514 = vmatprep.subr.bf16.mxu0 %v2397
        %2515 = vmatpush1.bf16.msra.mxu0 %v2396
        %2516 = vmatprep.subr.bf16.mxu0 %v2401
        %2517 = vmatpush1.bf16.msra.mxu0 %v2400
        %2518 = vmatprep.subr.bf16.mxu0 %v2405
        %2519 = vmatpush1.bf16.msra.mxu0 %v2404
        %2520 = vmatprep.subr.bf16.mxu0 %v2409
        %2521 = vmatpush1.bf16.msra.mxu0 %v2408
        %2522 = vmatprep.subr.bf16.mxu0 %v2413
        %2523 = vmatpush1.bf16.msra.mxu0 %v2412
        %2524 = vmatprep.subr.bf16.mxu0 %v2417
        %2525 = vmatpush1.bf16.msra.mxu0 %v2416
        %2526 = vmatprep.subr.bf16.mxu0 %v2421
        %2527 = vmatpush1.bf16.msra.mxu0 %v2420
        %2528 = vmatprep.subr.bf16.mxu0 %v2425
        %2529 = vmatpush1.bf16.msra.mxu0 %v2424
        %2530 = vmatprep.subr.bf16.mxu0 %v2429
        %2531 = vmatpush1.bf16.msra.mxu0 %v2428
        %2532 = vmatprep.subr.bf16.mxu0 %v2433
        %2533 = vmatpush1.bf16.msra.mxu0 %v2432
        %2534 = vmatprep.subr.bf16.mxu0 %v2437
        %2535 = vmatpush1.bf16.msra.mxu0 %v2436
        %2536 = vmatprep.mubr.bf16.mxu0 %v772
        %2537 = vmatmul.mubr.bf16.gmra.mrb[0].mxu0 %v771
        %v2538 = vpop.f32.mrb[0].mxu0
        %v2539 = vadd.f32 0.0, %v2538
        %v2540 = vpop.f32.mrb[0].mxu0
        %v2541 = vadd.f32 0.0, %v2540
        %v2542 = vpop.f32.mrb[0].mxu0
        %v2543 = vpop.f32.mrb[0].mxu0
        %2544 = vdwg.mxu0
        %2545 = vmatprep.subr.bf16.mxu0 %v2379
        %2546 = vmatpush1.bf16.msra.mxu0 %v2378
        %2547 = vmatprep.subr.bf16.mxu0 %v2383
        %2548 = vmatpush1.bf16.msra.mxu0 %v2382
        %2549 = vmatprep.subr.bf16.mxu0 %v2387
        %2550 = vmatpush1.bf16.msra.mxu0 %v2386
        %2551 = vmatprep.subr.bf16.mxu0 %v2391
        %2552 = vmatpush1.bf16.msra.mxu0 %v2390
        %2553 = vmatprep.subr.bf16.mxu0 %v2395
        %2554 = vmatpush1.bf16.msra.mxu0 %v2394
        %2555 = vmatprep.subr.bf16.mxu0 %v2399
        %2556 = vmatpush1.bf16.msra.mxu0 %v2398
        %2557 = vmatprep.subr.bf16.mxu0 %v2403
        %2558 = vmatpush1.bf16.msra.mxu0 %v2402
        %2559 = vmatprep.subr.bf16.mxu0 %v2407
        %2560 = vmatpush1.bf16.msra.mxu0 %v2406
        %2561 = vmatprep.subr.bf16.mxu0 %v2411
        %2562 = vmatpush1.bf16.msra.mxu0 %v2410
        %2563 = vmatprep.subr.bf16.mxu0 %v2415
        %2564 = vmatpush1.bf16.msra.mxu0 %v2414
        %2565 = vmatprep.subr.bf16.mxu0 %v2419
        %2566 = vmatpush1.bf16.msra.mxu0 %v2418
        %2567 = vmatprep.subr.bf16.mxu0 %v2423
        %2568 = vmatpush1.bf16.msra.mxu0 %v2422
        %2569 = vmatprep.subr.bf16.mxu0 %v2427
        %2570 = vmatpush1.bf16.msra.mxu0 %v2426
        %2571 = vmatprep.subr.bf16.mxu0 %v2431
        %2572 = vmatpush1.bf16.msra.mxu0 %v2430
        %2573 = vmatprep.subr.bf16.mxu0 %v2435
        %2574 = vmatpush1.bf16.msra.mxu0 %v2434
        %2575 = vmatprep.subr.bf16.mxu0 %v2439
        %2576 = vmatpush1.bf16.msra.mxu0 %v2438
        %2577 = vmatprep.mubr.bf16.mxu0 %v772
        %2578 = vmatmul.mubr.bf16.gmra.mrb[0].mxu0 %v771
        %v2579 = vpop.f32.mrb[0].mxu0
        %v2580 = vadd.f32 0.0, %v2579
        %v2581 = vpop.f32.mrb[0].mxu0
        %v2582 = vadd.f32 0.0, %v2581
        %v2583 = vpop.f32.mrb[0].mxu0
        %v2584 = vpop.f32.mrb[0].mxu0
        %2585 = vdwg.mxu0
        %v2586 = vmax.f32 %v2115, %v2539
        %v2587 = vmax.f32 %v2116, %v2541
        %v2588 = vmax.f32 %v2117, %v2580
        %v2589 = vmax.f32 %v2118, %v2582
        %v2590 = vld [vmem:[%s2] sm:$0xff]
        %2592 = vset.pattern.permute.xlu0 0
        %2593 = vperm.xlu0 %2592, %v2590
        %v2594 = vpop.permute.xlu0 %2593
        %v2596 = vadd.f32 %v2586, %v2594
        %v2597 = vadd.f32 %v2587, %v2594
        %v2598 = vadd.f32 %v2588, %v2594
        %v2599 = vadd.f32 %v2589, %v2594
        %v2600 = vmax.f32 %v2596, 0.0
        %v2601 = vmax.f32 %v2597, 0.0
        %v2602 = vmax.f32 %v2598, 0.0
        %v2603 = vmax.f32 %v2599, 0.0
        %v2604 = vpack.c.bf16 %v2600, %v2600
        %v2605 = vpack.c.bf16 %v2601, %v2601
        %v2606 = vpack.c.bf16 %v2602, %v2602
        %v2607 = vpack.c.bf16 %v2603, %v2603
        %v2612 = vunpack.c.l.b16 %v2604
        %v2613 = vunpack.c.l.b16 %v2605
        %v2614 = vunpack.c.l.b16 %v2606
        %v2615 = vunpack.c.l.b16 %v2607
        %v2616 = vpack.c.b16 %v2613, %v2612
        %v2617 = vpack.c.b16 %v2615, %v2614
        %2620 = vst [vmem:[%s701] sm:$0xff] %v2616
        %2621 = vst [vmem:[%s701 + $0x8] sm:$0xff] %v2617
        %s2622 = smul.u32 4, %s14
        %p2623 = scmp.lt.s32.totalorder %s2622, 7
        %s2624 = scalar_select %p2623, %s2622, 7
        %s2625 = smul.addr %s2624, 4
        %s2626 = scalar_lea.vmem %s3, %s2625
        // Predicated region
        $region56: #{lipnet_forward.4} parent=50 // pred_check
          %p2627 = pneg %p100
        $region57: #{lipnet_forward.4} parent=50 // pred_check_branch
          %2629 = sbr.rel (%p2627) target = $region59
        $region58: #{lipnet_forward.4} parent=50 // pred_region
          %s2630 = smul.u32 4, %s14
        $region59: #{lipnet_forward.4} parent=50 // pred_fallthru
          _
      $region51: #{lipnet_forward.4} parent=5 // pred_fallthru
        _
      %p2631 = scmp.le.s32.totalorder 2, %s9
      // Predicated region
      $region60: #{lipnet_forward.4} parent=5 // pred_check
        %p2632 = pneg %p2631
      $region61: #{lipnet_forward.4} parent=5 // pred_check_branch
        %2634 = sbr.rel (%p2632) target = $region63
      $region62: #{lipnet_forward.4} parent=5 // pred_region
        %s2635 = ssub.s32 %s9, 2
        // Predicated region
        $region64: #{lipnet_forward.4} parent=62 // pred_check
          %p2636 = pneg %p106
        $region65: #{lipnet_forward.4} parent=62 // pred_check_branch
          %2638 = sbr.rel (%p2636) target = $region67
        $region66: #{lipnet_forward.4} parent=62 // pred_region
          %s2639 = smul.u32 4, %s15
          %p2640 = scmp.lt.s32.totalorder %s2639, 7
          %s2641 = scalar_select %p2640, %s2639, 7
          %s2642 = smul.addr %s2641, 4
          %s2643 = scalar_lea.vmem %s3, %s2642
        $region67: #{lipnet_forward.4} parent=62 // pred_fallthru
          _
      $region63: #{lipnet_forward.4} parent=5 // pred_fallthru
        _
    $region6: #{lipnet_forward.4} parent=1 // loop_footer
      %s13 = sadd.s32 1, %s9
    $region7: #{lipnet_forward.4} parent=1 // loop_footer_branch
      %8 = sbr.rel target = $region3
    $region8: #{lipnet_forward.4} parent=1 // loop_exit
      _

// kernel: lipnet_forward.5
$region0: #{lipnet_forward.5}
  #allocation0 [shape = 'u32[]', space=smem, size = 0x4, offset = 0x4, fixed_abs, tag = 'smem constant byte address 0x4 - core index']
  #allocation1 [shape = 'u32[144,128]{1,0:T(1,128)}', space=vmem, size = 0x12000, scoped, tag = 'internal scratch']
  %s0 = inlined_call_operand.vmem [shape: bf16[4,640,256], index: 0, kind: input, shape index: {}]
  %s1 = inlined_call_operand.vmem [shape: bf16[16,640], index: 1, kind: input, shape index: {}]
  %s2 = inlined_call_operand.vmem [shape: f32[16,1], index: 2, kind: input, shape index: {}]
  %s3 = inlined_call_operand.vmem [shape: bf16[16,256], index: 3, kind: output, shape index: {}]
  %s4 = sld [smem:[#allocation0]]
  $region22: #{lipnet_forward.5} parent=0
    _
  %s6 = ssub.s32 1, %s4
  %s7 = scalar_select 0, %s6, %s4
  // Predicated region
  $region2: #{lipnet_forward.5} parent=0 // pred_check
    _
  $region3: #{lipnet_forward.5} parent=0 // pred_check_branch
    %9 = sbr.rel (0) target = $region5
  $region4: #{lipnet_forward.5} parent=0 // pred_region
    _
  $region5: #{lipnet_forward.5} parent=0 // pred_fallthru
    _
  // Predicated region
  $region6: #{lipnet_forward.5} parent=0 // pred_check
    _
  $region7: #{lipnet_forward.5} parent=0 // pred_check_branch
    %11 = sbr.rel (0) target = $region9
  $region8: #{lipnet_forward.5} parent=0 // pred_region
    _
  $region9: #{lipnet_forward.5} parent=0 // pred_fallthru
    _
  // Predicated region
  $region10: #{lipnet_forward.5} parent=0 // pred_check
    _
  $region11: #{lipnet_forward.5} parent=0 // pred_check_branch
    %13 = sbr.rel (0) target = $region13
  $region12: #{lipnet_forward.5} parent=0 // pred_region
    _
  $region13: #{lipnet_forward.5} parent=0 // pred_fallthru
    _
  %v15 = vld [vmem:[%s1] sm:$0xff]
  %v16 = vld [vmem:[%s1 + $0x8] sm:$0xff]
  %v17 = vld [vmem:[%s1 + $0x10] sm:$0xf]
  %v18 = vld [vmem:[%s1 + $0x14] sm:$0xff]
  %v19 = vld [vmem:[%s1 + $0x1c] sm:$0xff]
  %v20 = vld [vmem:[%s1 + $0x24] sm:$0xf]
  %v21 = vld [vmem:[%s0] sm:$0xff]
  %v22 = vld [vmem:[%s0 + $0x8] sm:$0xff]
  %v23 = vld [vmem:[%s0 + $0x10] sm:$0xff]
  %v24 = vld [vmem:[%s0 + $0x18] sm:$0xff]
  %v25 = vld [vmem:[%s0 + $0x20] sm:$0xff]
  %v26 = vld [vmem:[%s0 + $0x28] sm:$0xff]
  %v27 = vld [vmem:[%s0 + $0x30] sm:$0xff]
  %v28 = vld [vmem:[%s0 + $0x38] sm:$0xff]
  %v29 = vld [vmem:[%s0 + $0x40] sm:$0xff]
  %v30 = vld [vmem:[%s0 + $0x48] sm:$0xff]
  %v31 = vld [vmem:[%s0 + $0x50] sm:$0xff]
  %v32 = vld [vmem:[%s0 + $0x58] sm:$0xff]
  %v33 = vld [vmem:[%s0 + $0x60] sm:$0xff]
  %v34 = vld [vmem:[%s0 + $0x68] sm:$0xff]
  %v35 = vld [vmem:[%s0 + $0x70] sm:$0xff]
  %v36 = vld [vmem:[%s0 + $0x78] sm:$0xff]
  %v37 = vld [vmem:[%s0 + $0x80] sm:$0xff]
  %v38 = vld [vmem:[%s0 + $0x88] sm:$0xff]
  %v39 = vld [vmem:[%s0 + $0x90] sm:$0xff]
  %v40 = vld [vmem:[%s0 + $0x98] sm:$0xff]
  %v41 = vld [vmem:[%s0 + $0xa0] sm:$0xff]
  %v42 = vld [vmem:[%s0 + $0xa8] sm:$0xff]
  %v43 = vld [vmem:[%s0 + $0xb0] sm:$0xff]
  %v44 = vld [vmem:[%s0 + $0xb8] sm:$0xff]
  %v45 = vld [vmem:[%s0 + $0xc0] sm:$0xff]
  %v46 = vld [vmem:[%s0 + $0xc8] sm:$0xff]
  %v47 = vld [vmem:[%s0 + $0xd0] sm:$0xff]
  %v48 = vld [vmem:[%s0 + $0xd8] sm:$0xff]
  %v49 = vld [vmem:[%s0 + $0xe0] sm:$0xff]
  %v50 = vld [vmem:[%s0 + $0xe8] sm:$0xff]
  %v51 = vld [vmem:[%s0 + $0xf0] sm:$0xff]
  %v52 = vld [vmem:[%s0 + $0xf8] sm:$0xff]
  %v53 = vld [vmem:[%s0 + $0x100] sm:$0xff]
  %v54 = vld [vmem:[%s0 + $0x108] sm:$0xff]
  %v55 = vld [vmem:[%s0 + $0x110] sm:$0xff]
  %v56 = vld [vmem:[%s0 + $0x118] sm:$0xff]
  %v57 = vld [vmem:[%s0 + $0x120] sm:$0xff]
  %v58 = vld [vmem:[%s0 + $0x128] sm:$0xff]
  %v59 = vld [vmem:[%s0 + $0x130] sm:$0xff]
  %v60 = vld [vmem:[%s0 + $0x138] sm:$0xff]
  %v61 = vld [vmem:[%s0 + $0x140] sm:$0xff]
  %v62 = vld [vmem:[%s0 + $0x148] sm:$0xff]
  %v63 = vld [vmem:[%s0 + $0x150] sm:$0xff]
  %v64 = vld [vmem:[%s0 + $0x158] sm:$0xff]
  %v65 = vld [vmem:[%s0 + $0x160] sm:$0xff]
  %v66 = vld [vmem:[%s0 + $0x168] sm:$0xff]
  %v67 = vld [vmem:[%s0 + $0x170] sm:$0xff]
  %v68 = vld [vmem:[%s0 + $0x178] sm:$0xff]
  %v69 = vld [vmem:[%s0 + $0x180] sm:$0xff]
  %v70 = vld [vmem:[%s0 + $0x188] sm:$0xff]
  %v71 = vld [vmem:[%s0 + $0x190] sm:$0xff]
  %v72 = vld [vmem:[%s0 + $0x198] sm:$0xff]
  %v73 = vld [vmem:[%s0 + $0x1a0] sm:$0xff]
  %v74 = vld [vmem:[%s0 + $0x1a8] sm:$0xff]
  %v75 = vld [vmem:[%s0 + $0x1b0] sm:$0xff]
  %v76 = vld [vmem:[%s0 + $0x1b8] sm:$0xff]
  %v77 = vld [vmem:[%s0 + $0x1c0] sm:$0xff]
  %v78 = vld [vmem:[%s0 + $0x1c8] sm:$0xff]
  %v79 = vld [vmem:[%s0 + $0x1d0] sm:$0xff]
  %v80 = vld [vmem:[%s0 + $0x1d8] sm:$0xff]
  %v81 = vld [vmem:[%s0 + $0x1e0] sm:$0xff]
  %v82 = vld [vmem:[%s0 + $0x1e8] sm:$0xff]
  %v83 = vld [vmem:[%s0 + $0x1f0] sm:$0xff]
  %v84 = vld [vmem:[%s0 + $0x1f8] sm:$0xff]
  %v85 = vld [vmem:[%s0 + $0x200] sm:$0xff]
  %v86 = vld [vmem:[%s0 + $0x208] sm:$0xff]
  %v87 = vld [vmem:[%s0 + $0x210] sm:$0xff]
  %v88 = vld [vmem:[%s0 + $0x218] sm:$0xff]
  %v89 = vld [vmem:[%s0 + $0x220] sm:$0xff]
  %v90 = vld [vmem:[%s0 + $0x228] sm:$0xff]
  %v91 = vld [vmem:[%s0 + $0x230] sm:$0xff]
  %v92 = vld [vmem:[%s0 + $0x238] sm:$0xff]
  %v93 = vld [vmem:[%s0 + $0x240] sm:$0xff]
  %v94 = vld [vmem:[%s0 + $0x248] sm:$0xff]
  %v95 = vld [vmem:[%s0 + $0x250] sm:$0xff]
  %v96 = vld [vmem:[%s0 + $0x258] sm:$0xff]
  %v97 = vld [vmem:[%s0 + $0x260] sm:$0xff]
  %v98 = vld [vmem:[%s0 + $0x268] sm:$0xff]
  %v99 = vld [vmem:[%s0 + $0x270] sm:$0xff]
  %v100 = vld [vmem:[%s0 + $0x278] sm:$0xff]
  %v107 = vunpack.c.l.b16 %v15
  %v108 = vunpack.c.h.b16 %v15
  %v109 = vunpack.c.l.b16 %v16
  %v110 = vunpack.c.h.b16 %v16
  %v111 = vunpack.c.l.b16 %v17
  %v112 = vunpack.c.l.b16 %v18
  %v113 = vunpack.c.h.b16 %v18
  %v114 = vunpack.c.l.b16 %v19
  %v115 = vunpack.c.h.b16 %v19
  %v116 = vunpack.c.l.b16 %v20
  %v117 = vpack.c.b16 %v112, %v107
  %v118 = vpack.c.b16 %v113, %v108
  %v119 = vpack.c.b16 %v114, %v109
  %v120 = vpack.c.b16 %v115, %v110
  %v121 = vpack.c.b16 %v116, %v111
  %v207 = vunpack.c.l.b16 %v21
  %v208 = vunpack.c.h.b16 %v21
  %v209 = vunpack.c.l.b16 %v22
  %v210 = vunpack.c.h.b16 %v22
  %v211 = vunpack.c.l.b16 %v23
  %v212 = vunpack.c.h.b16 %v23
  %v213 = vunpack.c.l.b16 %v24
  %v214 = vunpack.c.h.b16 %v24
  %v215 = vunpack.c.l.b16 %v25
  %v216 = vunpack.c.h.b16 %v25
  %v217 = vunpack.c.l.b16 %v26
  %v218 = vunpack.c.h.b16 %v26
  %v219 = vunpack.c.l.b16 %v27
  %v220 = vunpack.c.h.b16 %v27
  %v221 = vunpack.c.l.b16 %v28
  %v222 = vunpack.c.h.b16 %v28
  %v223 = vunpack.c.l.b16 %v29
  %v224 = vunpack.c.h.b16 %v29
  %v225 = vunpack.c.l.b16 %v30
  %v226 = vunpack.c.h.b16 %v30
  %v227 = vunpack.c.l.b16 %v31
  %v228 = vunpack.c.h.b16 %v31
  %v229 = vunpack.c.l.b16 %v32
  %v230 = vunpack.c.h.b16 %v32
  %v231 = vunpack.c.l.b16 %v33
  %v232 = vunpack.c.h.b16 %v33
  %v233 = vunpack.c.l.b16 %v34
  %v234 = vunpack.c.h.b16 %v34
  %v235 = vunpack.c.l.b16 %v35
  %v236 = vunpack.c.h.b16 %v35
  %v237 = vunpack.c.l.b16 %v36
  %v238 = vunpack.c.h.b16 %v36
  %v239 = vunpack.c.l.b16 %v37
  %v240 = vunpack.c.h.b16 %v37
  %v241 = vunpack.c.l.b16 %v38
  %v242 = vunpack.c.h.b16 %v38
  %v243 = vunpack.c.l.b16 %v39
  %v244 = vunpack.c.h.b16 %v39
  %v245 = vunpack.c.l.b16 %v40
  %v246 = vunpack.c.h.b16 %v40
  %v247 = vunpack.c.l.b16 %v41
  %v248 = vunpack.c.h.b16 %v41
  %v249 = vunpack.c.l.b16 %v42
  %v250 = vunpack.c.h.b16 %v42
  %v251 = vunpack.c.l.b16 %v43
  %v252 = vunpack.c.h.b16 %v43
  %v253 = vunpack.c.l.b16 %v44
  %v254 = vunpack.c.h.b16 %v44
  %v255 = vunpack.c.l.b16 %v45
  %v256 = vunpack.c.h.b16 %v45
  %v257 = vunpack.c.l.b16 %v46
  %v258 = vunpack.c.h.b16 %v46
  %v259 = vunpack.c.l.b16 %v47
  %v260 = vunpack.c.h.b16 %v47
  %v261 = vunpack.c.l.b16 %v48
  %v262 = vunpack.c.h.b16 %v48
  %v263 = vunpack.c.l.b16 %v49
  %v264 = vunpack.c.h.b16 %v49
  %v265 = vunpack.c.l.b16 %v50
  %v266 = vunpack.c.h.b16 %v50
  %v267 = vunpack.c.l.b16 %v51
  %v268 = vunpack.c.h.b16 %v51
  %v269 = vunpack.c.l.b16 %v52
  %v270 = vunpack.c.h.b16 %v52
  %v271 = vunpack.c.l.b16 %v53
  %v272 = vunpack.c.h.b16 %v53
  %v273 = vunpack.c.l.b16 %v54
  %v274 = vunpack.c.h.b16 %v54
  %v275 = vunpack.c.l.b16 %v55
  %v276 = vunpack.c.h.b16 %v55
  %v277 = vunpack.c.l.b16 %v56
  %v278 = vunpack.c.h.b16 %v56
  %v279 = vunpack.c.l.b16 %v57
  %v280 = vunpack.c.h.b16 %v57
  %v281 = vunpack.c.l.b16 %v58
  %v282 = vunpack.c.h.b16 %v58
  %v283 = vunpack.c.l.b16 %v59
  %v284 = vunpack.c.h.b16 %v59
  %v285 = vunpack.c.l.b16 %v60
  %v286 = vunpack.c.h.b16 %v60
  %v287 = vunpack.c.l.b16 %v61
  %v288 = vunpack.c.h.b16 %v61
  %v289 = vunpack.c.l.b16 %v62
  %v290 = vunpack.c.h.b16 %v62
  %v291 = vunpack.c.l.b16 %v63
  %v292 = vunpack.c.h.b16 %v63
  %v293 = vunpack.c.l.b16 %v64
  %v294 = vunpack.c.h.b16 %v64
  %v295 = vunpack.c.l.b16 %v65
  %v296 = vunpack.c.h.b16 %v65
  %v297 = vunpack.c.l.b16 %v66
  %v298 = vunpack.c.h.b16 %v66
  %v299 = vunpack.c.l.b16 %v67
  %v300 = vunpack.c.h.b16 %v67
  %v301 = vunpack.c.l.b16 %v68
  %v302 = vunpack.c.h.b16 %v68
  %v303 = vunpack.c.l.b16 %v69
  %v304 = vunpack.c.h.b16 %v69
  %v305 = vunpack.c.l.b16 %v70
  %v306 = vunpack.c.h.b16 %v70
  %v307 = vunpack.c.l.b16 %v71
  %v308 = vunpack.c.h.b16 %v71
  %v309 = vunpack.c.l.b16 %v72
  %v310 = vunpack.c.h.b16 %v72
  %v311 = vunpack.c.l.b16 %v73
  %v312 = vunpack.c.h.b16 %v73
  %v313 = vunpack.c.l.b16 %v74
  %v314 = vunpack.c.h.b16 %v74
  %v315 = vunpack.c.l.b16 %v75
  %v316 = vunpack.c.h.b16 %v75
  %v317 = vunpack.c.l.b16 %v76
  %v318 = vunpack.c.h.b16 %v76
  %v319 = vunpack.c.l.b16 %v77
  %v320 = vunpack.c.h.b16 %v77
  %v321 = vunpack.c.l.b16 %v78
  %v322 = vunpack.c.h.b16 %v78
  %v323 = vunpack.c.l.b16 %v79
  %v324 = vunpack.c.h.b16 %v79
  %v325 = vunpack.c.l.b16 %v80
  %v326 = vunpack.c.h.b16 %v80
  %v327 = vunpack.c.l.b16 %v81
  %v328 = vunpack.c.h.b16 %v81
  %v329 = vunpack.c.l.b16 %v82
  %v330 = vunpack.c.h.b16 %v82
  %v331 = vunpack.c.l.b16 %v83
  %v332 = vunpack.c.h.b16 %v83
  %v333 = vunpack.c.l.b16 %v84
  %v334 = vunpack.c.h.b16 %v84
  %v335 = vunpack.c.l.b16 %v85
  %v336 = vunpack.c.h.b16 %v85
  %v337 = vunpack.c.l.b16 %v86
  %v338 = vunpack.c.h.b16 %v86
  %v339 = vunpack.c.l.b16 %v87
  %v340 = vunpack.c.h.b16 %v87
  %v341 = vunpack.c.l.b16 %v88
  %v342 = vunpack.c.h.b16 %v88
  %v343 = vunpack.c.l.b16 %v89
  %v344 = vunpack.c.h.b16 %v89
  %v345 = vunpack.c.l.b16 %v90
  %v346 = vunpack.c.h.b16 %v90
  %v347 = vunpack.c.l.b16 %v91
  %v348 = vunpack.c.h.b16 %v91
  %v349 = vunpack.c.l.b16 %v92
  %v350 = vunpack.c.h.b16 %v92
  %v351 = vunpack.c.l.b16 %v93
  %v352 = vunpack.c.h.b16 %v93
  %v353 = vunpack.c.l.b16 %v94
  %v354 = vunpack.c.h.b16 %v94
  %v355 = vunpack.c.l.b16 %v95
  %v356 = vunpack.c.h.b16 %v95
  %v357 = vunpack.c.l.b16 %v96
  %v358 = vunpack.c.h.b16 %v96
  %v359 = vunpack.c.l.b16 %v97
  %v360 = vunpack.c.h.b16 %v97
  %v361 = vunpack.c.l.b16 %v98
  %v362 = vunpack.c.h.b16 %v98
  %v363 = vunpack.c.l.b16 %v99
  %v364 = vunpack.c.h.b16 %v99
  %v365 = vunpack.c.l.b16 %v100
  %v366 = vunpack.c.h.b16 %v100
  %v367 = vpack.c.b16 %v209, %v207
  %v368 = vpack.c.b16 %v210, %v208
  %v369 = vpack.c.b16 %v213, %v211
  %v370 = vpack.c.b16 %v214, %v212
  %v371 = vpack.c.b16 %v217, %v215
  %v372 = vpack.c.b16 %v218, %v216
  %v373 = vpack.c.b16 %v221, %v219
  %v374 = vpack.c.b16 %v222, %v220
  %v375 = vpack.c.b16 %v225, %v223
  %v376 = vpack.c.b16 %v226, %v224
  %v377 = vpack.c.b16 %v229, %v227
  %v378 = vpack.c.b16 %v230, %v228
  %v379 = vpack.c.b16 %v233, %v231
  %v380 = vpack.c.b16 %v234, %v232
  %v381 = vpack.c.b16 %v237, %v235
  %v382 = vpack.c.b16 %v238, %v236
  %v383 = vpack.c.b16 %v241, %v239
  %v384 = vpack.c.b16 %v242, %v240
  %v385 = vpack.c.b16 %v245, %v243
  %v386 = vpack.c.b16 %v246, %v244
  %v387 = vpack.c.b16 %v249, %v247
  %v388 = vpack.c.b16 %v250, %v248
  %v389 = vpack.c.b16 %v253, %v251
  %v390 = vpack.c.b16 %v254, %v252
  %v391 = vpack.c.b16 %v257, %v255
  %v392 = vpack.c.b16 %v258, %v256
  %v393 = vpack.c.b16 %v261, %v259
  %v394 = vpack.c.b16 %v262, %v260
  %v395 = vpack.c.b16 %v265, %v263
  %v396 = vpack.c.b16 %v266, %v264
  %v397 = vpack.c.b16 %v269, %v267
  %v398 = vpack.c.b16 %v270, %v268
  %v399 = vpack.c.b16 %v273, %v271
  %v400 = vpack.c.b16 %v274, %v272
  %v401 = vpack.c.b16 %v277, %v275
  %v402 = vpack.c.b16 %v278, %v276
  %v403 = vpack.c.b16 %v281, %v279
  %v404 = vpack.c.b16 %v282, %v280
  %v405 = vpack.c.b16 %v285, %v283
  %v406 = vpack.c.b16 %v286, %v284
  %v407 = vpack.c.b16 %v289, %v287
  %v408 = vpack.c.b16 %v290, %v288
  %v409 = vpack.c.b16 %v293, %v291
  %v410 = vpack.c.b16 %v294, %v292
  %v411 = vpack.c.b16 %v297, %v295
  %v412 = vpack.c.b16 %v298, %v296
  %v413 = vpack.c.b16 %v301, %v299
  %v414 = vpack.c.b16 %v302, %v300
  %v415 = vpack.c.b16 %v305, %v303
  %v416 = vpack.c.b16 %v306, %v304
  %v417 = vpack.c.b16 %v309, %v307
  %v418 = vpack.c.b16 %v310, %v308
  %v419 = vpack.c.b16 %v313, %v311
  %v420 = vpack.c.b16 %v314, %v312
  %v421 = vpack.c.b16 %v317, %v315
  %v422 = vpack.c.b16 %v318, %v316
  %v423 = vpack.c.b16 %v321, %v319
  %v424 = vpack.c.b16 %v322, %v320
  %v425 = vpack.c.b16 %v325, %v323
  %v426 = vpack.c.b16 %v326, %v324
  %v427 = vpack.c.b16 %v329, %v327
  %v428 = vpack.c.b16 %v330, %v328
  %v429 = vpack.c.b16 %v333, %v331
  %v430 = vpack.c.b16 %v334, %v332
  %v431 = vpack.c.b16 %v337, %v335
  %v432 = vpack.c.b16 %v338, %v336
  %v433 = vpack.c.b16 %v341, %v339
  %v434 = vpack.c.b16 %v342, %v340
  %v435 = vpack.c.b16 %v345, %v343
  %v436 = vpack.c.b16 %v346, %v344
  %v437 = vpack.c.b16 %v349, %v347
  %v438 = vpack.c.b16 %v350, %v348
  %v439 = vpack.c.b16 %v353, %v351
  %v440 = vpack.c.b16 %v354, %v352
  %v441 = vpack.c.b16 %v357, %v355
  %v442 = vpack.c.b16 %v358, %v356
  %v443 = vpack.c.b16 %v361, %v359
  %v444 = vpack.c.b16 %v362, %v360
  %v445 = vpack.c.b16 %v365, %v363
  %v446 = vpack.c.b16 %v366, %v364
  %527 = vmatprep.subr.bf16.mxu0 %v368
  %528 = vmatpush1.bf16.msra.mxu0 %v367
  %529 = vmatprep.subr.bf16.mxu0 %v370
  %530 = vmatpush1.bf16.msra.mxu0 %v369
  %531 = vmatprep.subr.bf16.mxu0 %v372
  %532 = vmatpush1.bf16.msra.mxu0 %v371
  %533 = vmatprep.subr.bf16.mxu0 %v374
  %534 = vmatpush1.bf16.msra.mxu0 %v373
  %535 = vmatprep.subr.bf16.mxu0 %v376
  %536 = vmatpush1.bf16.msra.mxu0 %v375
  %537 = vmatprep.subr.bf16.mxu0 %v378
  %538 = vmatpush1.bf16.msra.mxu0 %v377
  %539 = vmatprep.subr.bf16.mxu0 %v380
  %540 = vmatpush1.bf16.msra.mxu0 %v379
  %541 = vmatprep.subr.bf16.mxu0 %v382
  %542 = vmatpush1.bf16.msra.mxu0 %v381
  %543 = vmatprep.subr.bf16.mxu0 %v384
  %544 = vmatpush1.bf16.msra.mxu0 %v383
  %545 = vmatprep.subr.bf16.mxu0 %v386
  %546 = vmatpush1.bf16.msra.mxu0 %v385
  %547 = vmatprep.subr.bf16.mxu0 %v388
  %548 = vmatpush1.bf16.msra.mxu0 %v387
  %549 = vmatprep.subr.bf16.mxu0 %v390
  %550 = vmatpush1.bf16.msra.mxu0 %v389
  %551 = vmatprep.subr.bf16.mxu0 %v392
  %552 = vmatpush1.bf16.msra.mxu0 %v391
  %553 = vmatprep.subr.bf16.mxu0 %v394
  %554 = vmatpush1.bf16.msra.mxu0 %v393
  %555 = vmatprep.subr.bf16.mxu0 %v396
  %556 = vmatpush1.bf16.msra.mxu0 %v395
  %557 = vmatprep.subr.bf16.mxu0 %v398
  %558 = vmatpush1.bf16.msra.mxu0 %v397
  %559 = vmatprep.mubr.bf16.mxu0 %v118
  %560 = vmatmul.mubr.bf16.gmra.mrb[0].mxu0 %v117
  %v561 = vpop.f32.mrb[0].mxu0
  %v562 = vadd.f32 0.0, %v561
  %v563 = vpop.f32.mrb[0].mxu0
  %v564 = vadd.f32 0.0, %v563
  %v565 = vpop.f32.mrb[0].mxu0
  %v566 = vadd.f32 0.0, %v565
  %v567 = vpop.f32.mrb[0].mxu0
  %v568 = vadd.f32 0.0, %v567
  %569 = vdwg.mxu0
  %570 = vmatprep.subr.bf16.mxu0 %v400
  %571 = vmatpush1.bf16.msra.mxu0 %v399
  %572 = vmatprep.subr.bf16.mxu0 %v402
  %573 = vmatpush1.bf16.msra.mxu0 %v401
  %574 = vmatprep.subr.bf16.mxu0 %v404
  %575 = vmatpush1.bf16.msra.mxu0 %v403
  %576 = vmatprep.subr.bf16.mxu0 %v406
  %577 = vmatpush1.bf16.msra.mxu0 %v405
  %578 = vmatprep.subr.bf16.mxu0 %v408
  %579 = vmatpush1.bf16.msra.mxu0 %v407
  %580 = vmatprep.subr.bf16.mxu0 %v410
  %581 = vmatpush1.bf16.msra.mxu0 %v409
  %582 = vmatprep.subr.bf16.mxu0 %v412
  %583 = vmatpush1.bf16.msra.mxu0 %v411
  %584 = vmatprep.subr.bf16.mxu0 %v414
  %585 = vmatpush1.bf16.msra.mxu0 %v413
  %586 = vmatprep.subr.bf16.mxu0 %v416
  %587 = vmatpush1.bf16.msra.mxu0 %v415
  %588 = vmatprep.subr.bf16.mxu0 %v418
  %589 = vmatpush1.bf16.msra.mxu0 %v417
  %590 = vmatprep.subr.bf16.mxu0 %v420
  %591 = vmatpush1.bf16.msra.mxu0 %v419
  %592 = vmatprep.subr.bf16.mxu0 %v422
  %593 = vmatpush1.bf16.msra.mxu0 %v421
  %594 = vmatprep.subr.bf16.mxu0 %v424
  %595 = vmatpush1.bf16.msra.mxu0 %v423
  %596 = vmatprep.subr.bf16.mxu0 %v426
  %597 = vmatpush1.bf16.msra.mxu0 %v425
  %598 = vmatprep.subr.bf16.mxu0 %v428
  %599 = vmatpush1.bf16.msra.mxu0 %v427
  %600 = vmatprep.subr.bf16.mxu0 %v430
  %601 = vmatpush1.bf16.msra.mxu0 %v429
  %602 = vmatprep.mubr.bf16.mxu0 %v120
  %603 = vmatmul.mubr.bf16.gmra.mrb[0].mxu0 %v119
  %v604 = vpop.f32.mrb[0].mxu0
  %v605 = vadd.f32 %v562, %v604
  %v606 = vpop.f32.mrb[0].mxu0
  %v607 = vadd.f32 %v564, %v606
  %v608 = vpop.f32.mrb[0].mxu0
  %v609 = vadd.f32 %v566, %v608
  %v610 = vpop.f32.mrb[0].mxu0
  %v611 = vadd.f32 %v568, %v610
  %612 = vdwg.mxu0
  %613 = vmatprep.subr.bf16.mxu0 %v432
  %614 = vmatpush1.bf16.msra.mxu0 %v431
  %615 = vmatprep.subr.bf16.mxu0 %v434
  %616 = vmatpush1.bf16.msra.mxu0 %v433
  %617 = vmatprep.subr.bf16.mxu0 %v436
  %618 = vmatpush1.bf16.msra.mxu0 %v435
  %619 = vmatprep.subr.bf16.mxu0 %v438
  %620 = vmatpush1.bf16.msra.mxu0 %v437
  %621 = vmatprep.subr.bf16.mxu0 %v440
  %622 = vmatpush1.bf16.msra.mxu0 %v439
  %623 = vmatprep.subr.bf16.mxu0 %v442
  %624 = vmatpush1.bf16.msra.mxu0 %v441
  %625 = vmatprep.subr.bf16.mxu0 %v444
  %626 = vmatpush1.bf16.msra.mxu0 %v443
  %627 = vmatprep.subr.bf16.mxu0 %v446
  %628 = vmatpush1.bf16.msra.mxu0 %v445
  %629 = vmatprep.subr.bf16.mxu0 0
  %630 = vmatpush1.bf16.msra.mxu0 0
  %631 = vmatprep.subr.bf16.mxu0 0
  %632 = vmatpush1.bf16.msra.mxu0 0
  %633 = vmatprep.subr.bf16.mxu0 0
  %634 = vmatpush1.bf16.msra.mxu0 0
  %635 = vmatprep.subr.bf16.mxu0 0
  %636 = vmatpush1.bf16.msra.mxu0 0
  %637 = vmatprep.subr.bf16.mxu0 0
  %638 = vmatpush1.bf16.msra.mxu0 0
  %639 = vmatprep.subr.bf16.mxu0 0
  %640 = vmatpush1.bf16.msra.mxu0 0
  %641 = vmatprep.subr.bf16.mxu0 0
  %642 = vmatpush1.bf16.msra.mxu0 0
  %643 = vmatprep.subr.bf16.mxu0 0
  %644 = vmatpush1.bf16.msra.mxu0 0
  %645 = vmatprep.mubr.bf16.mxu0 0
  %646 = vmatmul.mubr.bf16.gmra.mrb[0].mxu0 %v121
  %v647 = vpop.f32.mrb[0].mxu0
  %v648 = vadd.f32 %v605, %v647
  %v649 = vpop.f32.mrb[0].mxu0
  %v650 = vadd.f32 %v607, %v649
  %v651 = vpop.f32.mrb[0].mxu0
  %v652 = vadd.f32 %v609, %v651
  %v653 = vpop.f32.mrb[0].mxu0
  %v654 = vadd.f32 %v611, %v653
  %655 = vdwg.mxu0
  %s656 = scalar_lea.vmem %s0, 640
  %v657 = vld [vmem:[%s656] sm:$0xff]
  %v658 = vld [vmem:[%s656 + $0x8] sm:$0xff]
  %v659 = vld [vmem:[%s656 + $0x10] sm:$0xff]
  %v660 = vld [vmem:[%s656 + $0x18] sm:$0xff]
  %v661 = vld [vmem:[%s656 + $0x20] sm:$0xff]
  %v662 = vld [vmem:[%s656 + $0x28] sm:$0xff]
  %v663 = vld [vmem:[%s656 + $0x30] sm:$0xff]
  %v664 = vld [vmem:[%s656 + $0x38] sm:$0xff]
  %v665 = vld [vmem:[%s656 + $0x40] sm:$0xff]
  %v666 = vld [vmem:[%s656 + $0x48] sm:$0xff]
  %v667 = vld [vmem:[%s656 + $0x50] sm:$0xff]
  %v668 = vld [vmem:[%s656 + $0x58] sm:$0xff]
  %v669 = vld [vmem:[%s656 + $0x60] sm:$0xff]
  %v670 = vld [vmem:[%s656 + $0x68] sm:$0xff]
  %v671 = vld [vmem:[%s656 + $0x70] sm:$0xff]
  %v672 = vld [vmem:[%s656 + $0x78] sm:$0xff]
  %v673 = vld [vmem:[%s656 + $0x80] sm:$0xff]
  %v674 = vld [vmem:[%s656 + $0x88] sm:$0xff]
  %v675 = vld [vmem:[%s656 + $0x90] sm:$0xff]
  %v676 = vld [vmem:[%s656 + $0x98] sm:$0xff]
  %v677 = vld [vmem:[%s656 + $0xa0] sm:$0xff]
  %v678 = vld [vmem:[%s656 + $0xa8] sm:$0xff]
  %v679 = vld [vmem:[%s656 + $0xb0] sm:$0xff]
  %v680 = vld [vmem:[%s656 + $0xb8] sm:$0xff]
  %v681 = vld [vmem:[%s656 + $0xc0] sm:$0xff]
  %v682 = vld [vmem:[%s656 + $0xc8] sm:$0xff]
  %v683 = vld [vmem:[%s656 + $0xd0] sm:$0xff]
  %v684 = vld [vmem:[%s656 + $0xd8] sm:$0xff]
  %v685 = vld [vmem:[%s656 + $0xe0] sm:$0xff]
  %v686 = vld [vmem:[%s656 + $0xe8] sm:$0xff]
  %v687 = vld [vmem:[%s656 + $0xf0] sm:$0xff]
  %v688 = vld [vmem:[%s656 + $0xf8] sm:$0xff]
  %v689 = vld [vmem:[%s656 + $0x100] sm:$0xff]
  %v690 = vld [vmem:[%s656 + $0x108] sm:$0xff]
  %v691 = vld [vmem:[%s656 + $0x110] sm:$0xff]
  %v692 = vld [vmem:[%s656 + $0x118] sm:$0xff]
  %v693 = vld [vmem:[%s656 + $0x120] sm:$0xff]
  %v694 = vld [vmem:[%s656 + $0x128] sm:$0xff]
  %v695 = vld [vmem:[%s656 + $0x130] sm:$0xff]
  %v696 = vld [vmem:[%s656 + $0x138] sm:$0xff]
  %v697 = vld [vmem:[%s656 + $0x140] sm:$0xff]
  %v698 = vld [vmem:[%s656 + $0x148] sm:$0xff]
  %v699 = vld [vmem:[%s656 + $0x150] sm:$0xff]
  %v700 = vld [vmem:[%s656 + $0x158] sm:$0xff]
  %v701 = vld [vmem:[%s656 + $0x160] sm:$0xff]
  %v702 = vld [vmem:[%s656 + $0x168] sm:$0xff]
  %v703 = vld [vmem:[%s656 + $0x170] sm:$0xff]
  %v704 = vld [vmem:[%s656 + $0x178] sm:$0xff]
  %v705 = vld [vmem:[%s656 + $0x180] sm:$0xff]
  %v706 = vld [vmem:[%s656 + $0x188] sm:$0xff]
  %v707 = vld [vmem:[%s656 + $0x190] sm:$0xff]
  %v708 = vld [vmem:[%s656 + $0x198] sm:$0xff]
  %v709 = vld [vmem:[%s656 + $0x1a0] sm:$0xff]
  %v710 = vld [vmem:[%s656 + $0x1a8] sm:$0xff]
  %v711 = vld [vmem:[%s656 + $0x1b0] sm:$0xff]
  %v712 = vld [vmem:[%s656 + $0x1b8] sm:$0xff]
  %v713 = vld [vmem:[%s656 + $0x1c0] sm:$0xff]
  %v714 = vld [vmem:[%s656 + $0x1c8] sm:$0xff]
  %v715 = vld [vmem:[%s656 + $0x1d0] sm:$0xff]
  %v716 = vld [vmem:[%s656 + $0x1d8] sm:$0xff]
  %v717 = vld [vmem:[%s656 + $0x1e0] sm:$0xff]
  %v718 = vld [vmem:[%s656 + $0x1e8] sm:$0xff]
  %v719 = vld [vmem:[%s656 + $0x1f0] sm:$0xff]
  %v720 = vld [vmem:[%s656 + $0x1f8] sm:$0xff]
  %v721 = vld [vmem:[%s656 + $0x200] sm:$0xff]
  %v722 = vld [vmem:[%s656 + $0x208] sm:$0xff]
  %v723 = vld [vmem:[%s656 + $0x210] sm:$0xff]
  %v724 = vld [vmem:[%s656 + $0x218] sm:$0xff]
  %v725 = vld [vmem:[%s656 + $0x220] sm:$0xff]
  %v726 = vld [vmem:[%s656 + $0x228] sm:$0xff]
  %v727 = vld [vmem:[%s656 + $0x230] sm:$0xff]
  %v728 = vld [vmem:[%s656 + $0x238] sm:$0xff]
  %v729 = vld [vmem:[%s656 + $0x240] sm:$0xff]
  %v730 = vld [vmem:[%s656 + $0x248] sm:$0xff]
  %v731 = vld [vmem:[%s656 + $0x250] sm:$0xff]
  %v732 = vld [vmem:[%s656 + $0x258] sm:$0xff]
  %v733 = vld [vmem:[%s656 + $0x260] sm:$0xff]
  %v734 = vld [vmem:[%s656 + $0x268] sm:$0xff]
  %v735 = vld [vmem:[%s656 + $0x270] sm:$0xff]
  %v736 = vld [vmem:[%s656 + $0x278] sm:$0xff]
  %v817 = vunpack.c.l.b16 %v657
  %v818 = vunpack.c.h.b16 %v657
  %v819 = vunpack.c.l.b16 %v658
  %v820 = vunpack.c.h.b16 %v658
  %v821 = vunpack.c.l.b16 %v659
  %v822 = vunpack.c.h.b16 %v659
  %v823 = vunpack.c.l.b16 %v660
  %v824 = vunpack.c.h.b16 %v660
  %v825 = vunpack.c.l.b16 %v661
  %v826 = vunpack.c.h.b16 %v661
  %v827 = vunpack.c.l.b16 %v662
  %v828 = vunpack.c.h.b16 %v662
  %v829 = vunpack.c.l.b16 %v663
  %v830 = vunpack.c.h.b16 %v663
  %v831 = vunpack.c.l.b16 %v664
  %v832 = vunpack.c.h.b16 %v664
  %v833 = vunpack.c.l.b16 %v665
  %v834 = vunpack.c.h.b16 %v665
  %v835 = vunpack.c.l.b16 %v666
  %v836 = vunpack.c.h.b16 %v666
  %v837 = vunpack.c.l.b16 %v667
  %v838 = vunpack.c.h.b16 %v667
  %v839 = vunpack.c.l.b16 %v668
  %v840 = vunpack.c.h.b16 %v668
  %v841 = vunpack.c.l.b16 %v669
  %v842 = vunpack.c.h.b16 %v669
  %v843 = vunpack.c.l.b16 %v670
  %v844 = vunpack.c.h.b16 %v670
  %v845 = vunpack.c.l.b16 %v671
  %v846 = vunpack.c.h.b16 %v671
  %v847 = vunpack.c.l.b16 %v672
  %v848 = vunpack.c.h.b16 %v672
  %v849 = vunpack.c.l.b16 %v673
  %v850 = vunpack.c.h.b16 %v673
  %v851 = vunpack.c.l.b16 %v674
  %v852 = vunpack.c.h.b16 %v674
  %v853 = vunpack.c.l.b16 %v675
  %v854 = vunpack.c.h.b16 %v675
  %v855 = vunpack.c.l.b16 %v676
  %v856 = vunpack.c.h.b16 %v676
  %v857 = vunpack.c.l.b16 %v677
  %v858 = vunpack.c.h.b16 %v677
  %v859 = vunpack.c.l.b16 %v678
  %v860 = vunpack.c.h.b16 %v678
  %v861 = vunpack.c.l.b16 %v679
  %v862 = vunpack.c.h.b16 %v679
  %v863 = vunpack.c.l.b16 %v680
  %v864 = vunpack.c.h.b16 %v680
  %v865 = vunpack.c.l.b16 %v681
  %v866 = vunpack.c.h.b16 %v681
  %v867 = vunpack.c.l.b16 %v682
  %v868 = vunpack.c.h.b16 %v682
  %v869 = vunpack.c.l.b16 %v683
  %v870 = vunpack.c.h.b16 %v683
  %v871 = vunpack.c.l.b16 %v684
  %v872 = vunpack.c.h.b16 %v684
  %v873 = vunpack.c.l.b16 %v685
  %v874 = vunpack.c.h.b16 %v685
  %v875 = vunpack.c.l.b16 %v686
  %v876 = vunpack.c.h.b16 %v686
  %v877 = vunpack.c.l.b16 %v687
  %v878 = vunpack.c.h.b16 %v687
  %v879 = vunpack.c.l.b16 %v688
  %v880 = vunpack.c.h.b16 %v688
  %v881 = vunpack.c.l.b16 %v689
  %v882 = vunpack.c.h.b16 %v689
  %v883 = vunpack.c.l.b16 %v690
  %v884 = vunpack.c.h.b16 %v690
  %v885 = vunpack.c.l.b16 %v691
  %v886 = vunpack.c.h.b16 %v691
  %v887 = vunpack.c.l.b16 %v692
  %v888 = vunpack.c.h.b16 %v692
  %v889 = vunpack.c.l.b16 %v693
  %v890 = vunpack.c.h.b16 %v693
  %v891 = vunpack.c.l.b16 %v694
  %v892 = vunpack.c.h.b16 %v694
  %v893 = vunpack.c.l.b16 %v695
  %v894 = vunpack.c.h.b16 %v695
  %v895 = vunpack.c.l.b16 %v696
  %v896 = vunpack.c.h.b16 %v696
  %v897 = vunpack.c.l.b16 %v697
  %v898 = vunpack.c.h.b16 %v697
  %v899 = vunpack.c.l.b16 %v698
  %v900 = vunpack.c.h.b16 %v698
  %v901 = vunpack.c.l.b16 %v699
  %v902 = vunpack.c.h.b16 %v699
  %v903 = vunpack.c.l.b16 %v700
  %v904 = vunpack.c.h.b16 %v700
  %v905 = vunpack.c.l.b16 %v701
  %v906 = vunpack.c.h.b16 %v701
  %v907 = vunpack.c.l.b16 %v702
  %v908 = vunpack.c.h.b16 %v702
  %v909 = vunpack.c.l.b16 %v703
  %v910 = vunpack.c.h.b16 %v703
  %v911 = vunpack.c.l.b16 %v704
  %v912 = vunpack.c.h.b16 %v704
  %v913 = vunpack.c.l.b16 %v705
  %v914 = vunpack.c.h.b16 %v705
  %v915 = vunpack.c.l.b16 %v706
  %v916 = vunpack.c.h.b16 %v706
  %v917 = vunpack.c.l.b16 %v707
  %v918 = vunpack.c.h.b16 %v707
  %v919 = vunpack.c.l.b16 %v708
  %v920 = vunpack.c.h.b16 %v708
  %v921 = vunpack.c.l.b16 %v709
  %v922 = vunpack.c.h.b16 %v709
  %v923 = vunpack.c.l.b16 %v710
  %v924 = vunpack.c.h.b16 %v710
  %v925 = vunpack.c.l.b16 %v711
  %v926 = vunpack.c.h.b16 %v711
  %v927 = vunpack.c.l.b16 %v712
  %v928 = vunpack.c.h.b16 %v712
  %v929 = vunpack.c.l.b16 %v713
  %v930 = vunpack.c.h.b16 %v713
  %v931 = vunpack.c.l.b16 %v714
  %v932 = vunpack.c.h.b16 %v714
  %v933 = vunpack.c.l.b16 %v715
  %v934 = vunpack.c.h.b16 %v715
  %v935 = vunpack.c.l.b16 %v716
  %v936 = vunpack.c.h.b16 %v716
  %v937 = vunpack.c.l.b16 %v717
  %v938 = vunpack.c.h.b16 %v717
  %v939 = vunpack.c.l.b16 %v718
  %v940 = vunpack.c.h.b16 %v718
  %v941 = vunpack.c.l.b16 %v719
  %v942 = vunpack.c.h.b16 %v719
  %v943 = vunpack.c.l.b16 %v720
  %v944 = vunpack.c.h.b16 %v720
  %v945 = vunpack.c.l.b16 %v721
  %v946 = vunpack.c.h.b16 %v721
  %v947 = vunpack.c.l.b16 %v722
  %v948 = vunpack.c.h.b16 %v722
  %v949 = vunpack.c.l.b16 %v723
  %v950 = vunpack.c.h.b16 %v723
  %v951 = vunpack.c.l.b16 %v724
  %v952 = vunpack.c.h.b16 %v724
  %v953 = vunpack.c.l.b16 %v725
  %v954 = vunpack.c.h.b16 %v725
  %v955 = vunpack.c.l.b16 %v726
  %v956 = vunpack.c.h.b16 %v726
  %v957 = vunpack.c.l.b16 %v727
  %v958 = vunpack.c.h.b16 %v727
  %v959 = vunpack.c.l.b16 %v728
  %v960 = vunpack.c.h.b16 %v728
  %v961 = vunpack.c.l.b16 %v729
  %v962 = vunpack.c.h.b16 %v729
  %v963 = vunpack.c.l.b16 %v730
  %v964 = vunpack.c.h.b16 %v730
  %v965 = vunpack.c.l.b16 %v731
  %v966 = vunpack.c.h.b16 %v731
  %v967 = vunpack.c.l.b16 %v732
  %v968 = vunpack.c.h.b16 %v732
  %v969 = vunpack.c.l.b16 %v733
  %v970 = vunpack.c.h.b16 %v733
  %v971 = vunpack.c.l.b16 %v734
  %v972 = vunpack.c.h.b16 %v734
  %v973 = vunpack.c.l.b16 %v735
  %v974 = vunpack.c.h.b16 %v735
  %v975 = vunpack.c.l.b16 %v736
  %v976 = vunpack.c.h.b16 %v736
  %v977 = vpack.c.b16 %v819, %v817
  %v978 = vpack.c.b16 %v820, %v818
  %v979 = vpack.c.b16 %v823, %v821
  %v980 = vpack.c.b16 %v824, %v822
  %v981 = vpack.c.b16 %v827, %v825
  %v982 = vpack.c.b16 %v828, %v826
  %v983 = vpack.c.b16 %v831, %v829
  %v984 = vpack.c.b16 %v832, %v830
  %v985 = vpack.c.b16 %v835, %v833
  %v986 = vpack.c.b16 %v836, %v834
  %v987 = vpack.c.b16 %v839, %v837
  %v988 = vpack.c.b16 %v840, %v838
  %v989 = vpack.c.b16 %v843, %v841
  %v990 = vpack.c.b16 %v844, %v842
  %v991 = vpack.c.b16 %v847, %v845
  %v992 = vpack.c.b16 %v848, %v846
  %v993 = vpack.c.b16 %v851, %v849
  %v994 = vpack.c.b16 %v852, %v850
  %v995 = vpack.c.b16 %v855, %v853
  %v996 = vpack.c.b16 %v856, %v854
  %v997 = vpack.c.b16 %v859, %v857
  %v998 = vpack.c.b16 %v860, %v858
  %v999 = vpack.c.b16 %v863, %v861
  %v1000 = vpack.c.b16 %v864, %v862
  %v1001 = vpack.c.b16 %v867, %v865
  %v1002 = vpack.c.b16 %v868, %v866
  %v1003 = vpack.c.b16 %v871, %v869
  %v1004 = vpack.c.b16 %v872, %v870
  %v1005 = vpack.c.b16 %v875, %v873
  %v1006 = vpack.c.b16 %v876, %v874
  %v1007 = vpack.c.b16 %v879, %v877
  %v1008 = vpack.c.b16 %v880, %v878
  %v1009 = vpack.c.b16 %v883, %v881
  %v1010 = vpack.c.b16 %v884, %v882
  %v1011 = vpack.c.b16 %v887, %v885
  %v1012 = vpack.c.b16 %v888, %v886
  %v1013 = vpack.c.b16 %v891, %v889
  %v1014 = vpack.c.b16 %v892, %v890
  %v1015 = vpack.c.b16 %v895, %v893
  %v1016 = vpack.c.b16 %v896, %v894
  %v1017 = vpack.c.b16 %v899, %v897
  %v1018 = vpack.c.b16 %v900, %v898
  %v1019 = vpack.c.b16 %v903, %v901
  %v1020 = vpack.c.b16 %v904, %v902
  %v1021 = vpack.c.b16 %v907, %v905
  %v1022 = vpack.c.b16 %v908, %v906
  %v1023 = vpack.c.b16 %v911, %v909
  %v1024 = vpack.c.b16 %v912, %v910
  %v1025 = vpack.c.b16 %v915, %v913
  %v1026 = vpack.c.b16 %v916, %v914
  %v1027 = vpack.c.b16 %v919, %v917
  %v1028 = vpack.c.b16 %v920, %v918
  %v1029 = vpack.c.b16 %v923, %v921
  %v1030 = vpack.c.b16 %v924, %v922
  %v1031 = vpack.c.b16 %v927, %v925
  %v1032 = vpack.c.b16 %v928, %v926
  %v1033 = vpack.c.b16 %v931, %v929
  %v1034 = vpack.c.b16 %v932, %v930
  %v1035 = vpack.c.b16 %v935, %v933
  %v1036 = vpack.c.b16 %v936, %v934
  %v1037 = vpack.c.b16 %v939, %v937
  %v1038 = vpack.c.b16 %v940, %v938
  %v1039 = vpack.c.b16 %v943, %v941
  %v1040 = vpack.c.b16 %v944, %v942
  %v1041 = vpack.c.b16 %v947, %v945
  %v1042 = vpack.c.b16 %v948, %v946
  %v1043 = vpack.c.b16 %v951, %v949
  %v1044 = vpack.c.b16 %v952, %v950
  %v1045 = vpack.c.b16 %v955, %v953
  %v1046 = vpack.c.b16 %v956, %v954
  %v1047 = vpack.c.b16 %v959, %v957
  %v1048 = vpack.c.b16 %v960, %v958
  %v1049 = vpack.c.b16 %v963, %v961
  %v1050 = vpack.c.b16 %v964, %v962
  %v1051 = vpack.c.b16 %v967, %v965
  %v1052 = vpack.c.b16 %v968, %v966
  %v1053 = vpack.c.b16 %v971, %v969
  %v1054 = vpack.c.b16 %v972, %v970
  %v1055 = vpack.c.b16 %v975, %v973
  %v1056 = vpack.c.b16 %v976, %v974
  %1137 = vmatprep.subr.bf16.mxu0 %v978
  %1138 = vmatpush1.bf16.msra.mxu0 %v977
  %1139 = vmatprep.subr.bf16.mxu0 %v980
  %1140 = vmatpush1.bf16.msra.mxu0 %v979
  %1141 = vmatprep.subr.bf16.mxu0 %v982
  %1142 = vmatpush1.bf16.msra.mxu0 %v981
  %1143 = vmatprep.subr.bf16.mxu0 %v984
  %1144 = vmatpush1.bf16.msra.mxu0 %v983
  %1145 = vmatprep.subr.bf16.mxu0 %v986
  %1146 = vmatpush1.bf16.msra.mxu0 %v985
  %1147 = vmatprep.subr.bf16.mxu0 %v988
  %1148 = vmatpush1.bf16.msra.mxu0 %v987
  %1149 = vmatprep.subr.bf16.mxu0 %v990
  %1150 = vmatpush1.bf16.msra.mxu0 %v989
  %1151 = vmatprep.subr.bf16.mxu0 %v992
  %1152 = vmatpush1.bf16.msra.mxu0 %v991
  %1153 = vmatprep.subr.bf16.mxu0 %v994
  %1154 = vmatpush1.bf16.msra.mxu0 %v993
  %1155 = vmatprep.subr.bf16.mxu0 %v996
  %1156 = vmatpush1.bf16.msra.mxu0 %v995
  %1157 = vmatprep.subr.bf16.mxu0 %v998
  %1158 = vmatpush1.bf16.msra.mxu0 %v997
  %1159 = vmatprep.subr.bf16.mxu0 %v1000
  %1160 = vmatpush1.bf16.msra.mxu0 %v999
  %1161 = vmatprep.subr.bf16.mxu0 %v1002
  %1162 = vmatpush1.bf16.msra.mxu0 %v1001
  %1163 = vmatprep.subr.bf16.mxu0 %v1004
  %1164 = vmatpush1.bf16.msra.mxu0 %v1003
  %1165 = vmatprep.subr.bf16.mxu0 %v1006
  %1166 = vmatpush1.bf16.msra.mxu0 %v1005
  %1167 = vmatprep.subr.bf16.mxu0 %v1008
  %1168 = vmatpush1.bf16.msra.mxu0 %v1007
  %1169 = vmatprep.mubr.bf16.mxu0 %v118
  %1170 = vmatmul.mubr.bf16.gmra.mrb[0].mxu0 %v117
  %v1171 = vpop.f32.mrb[0].mxu0
  %v1172 = vadd.f32 0.0, %v1171
  %v1173 = vpop.f32.mrb[0].mxu0
  %v1174 = vadd.f32 0.0, %v1173
  %v1175 = vpop.f32.mrb[0].mxu0
  %v1176 = vadd.f32 0.0, %v1175
  %v1177 = vpop.f32.mrb[0].mxu0
  %v1178 = vadd.f32 0.0, %v1177
  %1179 = vdwg.mxu0
  %1180 = vmatprep.subr.bf16.mxu0 %v1010
  %1181 = vmatpush1.bf16.msra.mxu0 %v1009
  %1182 = vmatprep.subr.bf16.mxu0 %v1012
  %1183 = vmatpush1.bf16.msra.mxu0 %v1011
  %1184 = vmatprep.subr.bf16.mxu0 %v1014
  %1185 = vmatpush1.bf16.msra.mxu0 %v1013
  %1186 = vmatprep.subr.bf16.mxu0 %v1016
  %1187 = vmatpush1.bf16.msra.mxu0 %v1015
  %1188 = vmatprep.subr.bf16.mxu0 %v1018
  %1189 = vmatpush1.bf16.msra.mxu0 %v1017
  %1190 = vmatprep.subr.bf16.mxu0 %v1020
  %1191 = vmatpush1.bf16.msra.mxu0 %v1019
  %1192 = vmatprep.subr.bf16.mxu0 %v1022
  %1193 = vmatpush1.bf16.msra.mxu0 %v1021
  %1194 = vmatprep.subr.bf16.mxu0 %v1024
  %1195 = vmatpush1.bf16.msra.mxu0 %v1023
  %1196 = vmatprep.subr.bf16.mxu0 %v1026
  %1197 = vmatpush1.bf16.msra.mxu0 %v1025
  %1198 = vmatprep.subr.bf16.mxu0 %v1028
  %1199 = vmatpush1.bf16.msra.mxu0 %v1027
  %1200 = vmatprep.subr.bf16.mxu0 %v1030
  %1201 = vmatpush1.bf16.msra.mxu0 %v1029
  %1202 = vmatprep.subr.bf16.mxu0 %v1032
  %1203 = vmatpush1.bf16.msra.mxu0 %v1031
  %1204 = vmatprep.subr.bf16.mxu0 %v1034
  %1205 = vmatpush1.bf16.msra.mxu0 %v1033
  %1206 = vmatprep.subr.bf16.mxu0 %v1036
  %1207 = vmatpush1.bf16.msra.mxu0 %v1035
  %1208 = vmatprep.subr.bf16.mxu0 %v1038
  %1209 = vmatpush1.bf16.msra.mxu0 %v1037
  %1210 = vmatprep.subr.bf16.mxu0 %v1040
  %1211 = vmatpush1.bf16.msra.mxu0 %v1039
  %1212 = vmatprep.mubr.bf16.mxu0 %v120
  %1213 = vmatmul.mubr.bf16.gmra.mrb[0].mxu0 %v119
  %v1214 = vpop.f32.mrb[0].mxu0
  %v1215 = vadd.f32 %v1172, %v1214
  %v1216 = vpop.f32.mrb[0].mxu0
  %v1217 = vadd.f32 %v1174, %v1216
  %v1218 = vpop.f32.mrb[0].mxu0
  %v1219 = vadd.f32 %v1176, %v1218
  %v1220 = vpop.f32.mrb[0].mxu0
  %v1221 = vadd.f32 %v1178, %v1220
  %1222 = vdwg.mxu0
  %1223 = vmatprep.subr.bf16.mxu0 %v1042
  %1224 = vmatpush1.bf16.msra.mxu0 %v1041
  %1225 = vmatprep.subr.bf16.mxu0 %v1044
  %1226 = vmatpush1.bf16.msra.mxu0 %v1043
  %1227 = vmatprep.subr.bf16.mxu0 %v1046
  %1228 = vmatpush1.bf16.msra.mxu0 %v1045
  %1229 = vmatprep.subr.bf16.mxu0 %v1048
  %1230 = vmatpush1.bf16.msra.mxu0 %v1047
  %1231 = vmatprep.subr.bf16.mxu0 %v1050
  %1232 = vmatpush1.bf16.msra.mxu0 %v1049
  %1233 = vmatprep.subr.bf16.mxu0 %v1052
  %1234 = vmatpush1.bf16.msra.mxu0 %v1051
  %1235 = vmatprep.subr.bf16.mxu0 %v1054
  %1236 = vmatpush1.bf16.msra.mxu0 %v1053
  %1237 = vmatprep.subr.bf16.mxu0 %v1056
  %1238 = vmatpush1.bf16.msra.mxu0 %v1055
  %1239 = vmatprep.subr.bf16.mxu0 0
  %1240 = vmatpush1.bf16.msra.mxu0 0
  %1241 = vmatprep.subr.bf16.mxu0 0
  %1242 = vmatpush1.bf16.msra.mxu0 0
  %1243 = vmatprep.subr.bf16.mxu0 0
  %1244 = vmatpush1.bf16.msra.mxu0 0
  %1245 = vmatprep.subr.bf16.mxu0 0
  %1246 = vmatpush1.bf16.msra.mxu0 0
  %1247 = vmatprep.subr.bf16.mxu0 0
  %1248 = vmatpush1.bf16.msra.mxu0 0
  %1249 = vmatprep.subr.bf16.mxu0 0
  %1250 = vmatpush1.bf16.msra.mxu0 0
  %1251 = vmatprep.subr.bf16.mxu0 0
  %1252 = vmatpush1.bf16.msra.mxu0 0
  %1253 = vmatprep.subr.bf16.mxu0 0
  %1254 = vmatpush1.bf16.msra.mxu0 0
  %1255 = vmatprep.mubr.bf16.mxu0 0
  %1256 = vmatmul.mubr.bf16.gmra.mrb[0].mxu0 %v121
  %v1257 = vpop.f32.mrb[0].mxu0
  %v1258 = vadd.f32 %v1215, %v1257
  %v1259 = vpop.f32.mrb[0].mxu0
  %v1260 = vadd.f32 %v1217, %v1259
  %v1261 = vpop.f32.mrb[0].mxu0
  %v1262 = vadd.f32 %v1219, %v1261
  %v1263 = vpop.f32.mrb[0].mxu0
  %v1264 = vadd.f32 %v1221, %v1263
  %1265 = vdwg.mxu0
  %v1266 = vmax.f32 %v648, %v1258
  %v1267 = vmax.f32 %v650, %v1260
  %v1268 = vmax.f32 %v652, %v1262
  %v1269 = vmax.f32 %v654, %v1264
  %s1270 = scalar_lea.vmem %s0, 1280
  %v1271 = vld [vmem:[%s1270] sm:$0xff]
  %v1272 = vld [vmem:[%s1270 + $0x8] sm:$0xff]
  %v1273 = vld [vmem:[%s1270 + $0x10] sm:$0xff]
  %v1274 = vld [vmem:[%s1270 + $0x18] sm:$0xff]
  %v1275 = vld [vmem:[%s1270 + $0x20] sm:$0xff]
  %v1276 = vld [vmem:[%s1270 + $0x28] sm:$0xff]
  %v1277 = vld [vmem:[%s1270 + $0x30] sm:$0xff]
  %v1278 = vld [vmem:[%s1270 + $0x38] sm:$0xff]
  %v1279 = vld [vmem:[%s1270 + $0x40] sm:$0xff]
  %v1280 = vld [vmem:[%s1270 + $0x48] sm:$0xff]
  %v1281 = vld [vmem:[%s1270 + $0x50] sm:$0xff]
  %v1282 = vld [vmem:[%s1270 + $0x58] sm:$0xff]
  %v1283 = vld [vmem:[%s1270 + $0x60] sm:$0xff]
  %v1284 = vld [vmem:[%s1270 + $0x68] sm:$0xff]
  %v1285 = vld [vmem:[%s1270 + $0x70] sm:$0xff]
  %v1286 = vld [vmem:[%s1270 + $0x78] sm:$0xff]
  %v1287 = vld [vmem:[%s1270 + $0x80] sm:$0xff]
  %v1288 = vld [vmem:[%s1270 + $0x88] sm:$0xff]
  %v1289 = vld [vmem:[%s1270 + $0x90] sm:$0xff]
  %v1290 = vld [vmem:[%s1270 + $0x98] sm:$0xff]
  %v1291 = vld [vmem:[%s1270 + $0xa0] sm:$0xff]
  %v1292 = vld [vmem:[%s1270 + $0xa8] sm:$0xff]
  %v1293 = vld [vmem:[%s1270 + $0xb0] sm:$0xff]
  %v1294 = vld [vmem:[%s1270 + $0xb8] sm:$0xff]
  %v1295 = vld [vmem:[%s1270 + $0xc0] sm:$0xff]
  %v1296 = vld [vmem:[%s1270 + $0xc8] sm:$0xff]
  %v1297 = vld [vmem:[%s1270 + $0xd0] sm:$0xff]
  %v1298 = vld [vmem:[%s1270 + $0xd8] sm:$0xff]
  %v1299 = vld [vmem:[%s1270 + $0xe0] sm:$0xff]
  %v1300 = vld [vmem:[%s1270 + $0xe8] sm:$0xff]
  %v1301 = vld [vmem:[%s1270 + $0xf0] sm:$0xff]
  %v1302 = vld [vmem:[%s1270 + $0xf8] sm:$0xff]
  %v1303 = vld [vmem:[%s1270 + $0x100] sm:$0xff]
  %v1304 = vld [vmem:[%s1270 + $0x108] sm:$0xff]
  %v1305 = vld [vmem:[%s1270 + $0x110] sm:$0xff]
  %v1306 = vld [vmem:[%s1270 + $0x118] sm:$0xff]
  %v1307 = vld [vmem:[%s1270 + $0x120] sm:$0xff]
  %v1308 = vld [vmem:[%s1270 + $0x128] sm:$0xff]
  %v1309 = vld [vmem:[%s1270 + $0x130] sm:$0xff]
  %v1310 = vld [vmem:[%s1270 + $0x138] sm:$0xff]
  %v1311 = vld [vmem:[%s1270 + $0x140] sm:$0xff]
  %v1312 = vld [vmem:[%s1270 + $0x148] sm:$0xff]
  %v1313 = vld [vmem:[%s1270 + $0x150] sm:$0xff]
  %v1314 = vld [vmem:[%s1270 + $0x158] sm:$0xff]
  %v1315 = vld [vmem:[%s1270 + $0x160] sm:$0xff]
  %v1316 = vld [vmem:[%s1270 + $0x168] sm:$0xff]
  %v1317 = vld [vmem:[%s1270 + $0x170] sm:$0xff]
  %v1318 = vld [vmem:[%s1270 + $0x178] sm:$0xff]
  %v1319 = vld [vmem:[%s1270 + $0x180] sm:$0xff]
  %v1320 = vld [vmem:[%s1270 + $0x188] sm:$0xff]
  %v1321 = vld [vmem:[%s1270 + $0x190] sm:$0xff]
  %v1322 = vld [vmem:[%s1270 + $0x198] sm:$0xff]
  %v1323 = vld [vmem:[%s1270 + $0x1a0] sm:$0xff]
  %v1324 = vld [vmem:[%s1270 + $0x1a8] sm:$0xff]
  %v1325 = vld [vmem:[%s1270 + $0x1b0] sm:$0xff]
  %v1326 = vld [vmem:[%s1270 + $0x1b8] sm:$0xff]
  %v1327 = vld [vmem:[%s1270 + $0x1c0] sm:$0xff]
  %v1328 = vld [vmem:[%s1270 + $0x1c8] sm:$0xff]
  %v1329 = vld [vmem:[%s1270 + $0x1d0] sm:$0xff]
  %v1330 = vld [vmem:[%s1270 + $0x1d8] sm:$0xff]
  %v1331 = vld [vmem:[%s1270 + $0x1e0] sm:$0xff]
  %v1332 = vld [vmem:[%s1270 + $0x1e8] sm:$0xff]
  %v1333 = vld [vmem:[%s1270 + $0x1f0] sm:$0xff]
  %v1334 = vld [vmem:[%s1270 + $0x1f8] sm:$0xff]
  %v1335 = vld [vmem:[%s1270 + $0x200] sm:$0xff]
  %v1336 = vld [vmem:[%s1270 + $0x208] sm:$0xff]
  %v1337 = vld [vmem:[%s1270 + $0x210] sm:$0xff]
  %v1338 = vld [vmem:[%s1270 + $0x218] sm:$0xff]
  %v1339 = vld [vmem:[%s1270 + $0x220] sm:$0xff]
  %v1340 = vld [vmem:[%s1270 + $0x228] sm:$0xff]
  %v1341 = vld [vmem:[%s1270 + $0x230] sm:$0xff]
  %v1342 = vld [vmem:[%s1270 + $0x238] sm:$0xff]
  %v1343 = vld [vmem:[%s1270 + $0x240] sm:$0xff]
  %v1344 = vld [vmem:[%s1270 + $0x248] sm:$0xff]
  %v1345 = vld [vmem:[%s1270 + $0x250] sm:$0xff]
  %v1346 = vld [vmem:[%s1270 + $0x258] sm:$0xff]
  %v1347 = vld [vmem:[%s1270 + $0x260] sm:$0xff]
  %v1348 = vld [vmem:[%s1270 + $0x268] sm:$0xff]
  %v1349 = vld [vmem:[%s1270 + $0x270] sm:$0xff]
  %v1350 = vld [vmem:[%s1270 + $0x278] sm:$0xff]
  %v1431 = vunpack.c.l.b16 %v1271
  %v1432 = vunpack.c.h.b16 %v1271
  %v1433 = vunpack.c.l.b16 %v1272
  %v1434 = vunpack.c.h.b16 %v1272
  %v1435 = vunpack.c.l.b16 %v1273
  %v1436 = vunpack.c.h.b16 %v1273
  %v1437 = vunpack.c.l.b16 %v1274
  %v1438 = vunpack.c.h.b16 %v1274
  %v1439 = vunpack.c.l.b16 %v1275
  %v1440 = vunpack.c.h.b16 %v1275
  %v1441 = vunpack.c.l.b16 %v1276
  %v1442 = vunpack.c.h.b16 %v1276
  %v1443 = vunpack.c.l.b16 %v1277
  %v1444 = vunpack.c.h.b16 %v1277
  %v1445 = vunpack.c.l.b16 %v1278
  %v1446 = vunpack.c.h.b16 %v1278
  %v1447 = vunpack.c.l.b16 %v1279
  %v1448 = vunpack.c.h.b16 %v1279
  %v1449 = vunpack.c.l.b16 %v1280
  %v1450 = vunpack.c.h.b16 %v1280
  %v1451 = vunpack.c.l.b16 %v1281
  %v1452 = vunpack.c.h.b16 %v1281
  %v1453 = vunpack.c.l.b16 %v1282
  %v1454 = vunpack.c.h.b16 %v1282
  %v1455 = vunpack.c.l.b16 %v1283
  %v1456 = vunpack.c.h.b16 %v1283
  %v1457 = vunpack.c.l.b16 %v1284
  %v1458 = vunpack.c.h.b16 %v1284
  %v1459 = vunpack.c.l.b16 %v1285
  %v1460 = vunpack.c.h.b16 %v1285
  %v1461 = vunpack.c.l.b16 %v1286
  %v1462 = vunpack.c.h.b16 %v1286
  %v1463 = vunpack.c.l.b16 %v1287
  %v1464 = vunpack.c.h.b16 %v1287
  %v1465 = vunpack.c.l.b16 %v1288
  %v1466 = vunpack.c.h.b16 %v1288
  %v1467 = vunpack.c.l.b16 %v1289
  %v1468 = vunpack.c.h.b16 %v1289
  %v1469 = vunpack.c.l.b16 %v1290
  %v1470 = vunpack.c.h.b16 %v1290
  %v1471 = vunpack.c.l.b16 %v1291
  %v1472 = vunpack.c.h.b16 %v1291
  %v1473 = vunpack.c.l.b16 %v1292
  %v1474 = vunpack.c.h.b16 %v1292
  %v1475 = vunpack.c.l.b16 %v1293
  %v1476 = vunpack.c.h.b16 %v1293
  %v1477 = vunpack.c.l.b16 %v1294
  %v1478 = vunpack.c.h.b16 %v1294
  %v1479 = vunpack.c.l.b16 %v1295
  %v1480 = vunpack.c.h.b16 %v1295
  %v1481 = vunpack.c.l.b16 %v1296
  %v1482 = vunpack.c.h.b16 %v1296
  %v1483 = vunpack.c.l.b16 %v1297
  %v1484 = vunpack.c.h.b16 %v1297
  %v1485 = vunpack.c.l.b16 %v1298
  %v1486 = vunpack.c.h.b16 %v1298
  %v1487 = vunpack.c.l.b16 %v1299
  %v1488 = vunpack.c.h.b16 %v1299
  %v1489 = vunpack.c.l.b16 %v1300
  %v1490 = vunpack.c.h.b16 %v1300
  %v1491 = vunpack.c.l.b16 %v1301
  %v1492 = vunpack.c.h.b16 %v1301
  %v1493 = vunpack.c.l.b16 %v1302
  %v1494 = vunpack.c.h.b16 %v1302
  %v1495 = vunpack.c.l.b16 %v1303
  %v1496 = vunpack.c.h.b16 %v1303
  %v1497 = vunpack.c.l.b16 %v1304
  %v1498 = vunpack.c.h.b16 %v1304
  %v1499 = vunpack.c.l.b16 %v1305
  %v1500 = vunpack.c.h.b16 %v1305
  %v1501 = vunpack.c.l.b16 %v1306
  %v1502 = vunpack.c.h.b16 %v1306
  %v1503 = vunpack.c.l.b16 %v1307
  %v1504 = vunpack.c.h.b16 %v1307
  %v1505 = vunpack.c.l.b16 %v1308
  %v1506 = vunpack.c.h.b16 %v1308
  %v1507 = vunpack.c.l.b16 %v1309
  %v1508 = vunpack.c.h.b16 %v1309
  %v1509 = vunpack.c.l.b16 %v1310
  %v1510 = vunpack.c.h.b16 %v1310
  %v1511 = vunpack.c.l.b16 %v1311
  %v1512 = vunpack.c.h.b16 %v1311
  %v1513 = vunpack.c.l.b16 %v1312
  %v1514 = vunpack.c.h.b16 %v1312
  %v1515 = vunpack.c.l.b16 %v1313
  %v1516 = vunpack.c.h.b16 %v1313
  %v1517 = vunpack.c.l.b16 %v1314
  %v1518 = vunpack.c.h.b16 %v1314
  %v1519 = vunpack.c.l.b16 %v1315
  %v1520 = vunpack.c.h.b16 %v1315
  %v1521 = vunpack.c.l.b16 %v1316
  %v1522 = vunpack.c.h.b16 %v1316
  %v1523 = vunpack.c.l.b16 %v1317
  %v1524 = vunpack.c.h.b16 %v1317
  %v1525 = vunpack.c.l.b16 %v1318
  %v1526 = vunpack.c.h.b16 %v1318
  %v1527 = vunpack.c.l.b16 %v1319
  %v1528 = vunpack.c.h.b16 %v1319
  %v1529 = vunpack.c.l.b16 %v1320
  %v1530 = vunpack.c.h.b16 %v1320
  %v1531 = vunpack.c.l.b16 %v1321
  %v1532 = vunpack.c.h.b16 %v1321
  %v1533 = vunpack.c.l.b16 %v1322
  %v1534 = vunpack.c.h.b16 %v1322
  %v1535 = vunpack.c.l.b16 %v1323
  %v1536 = vunpack.c.h.b16 %v1323
  %v1537 = vunpack.c.l.b16 %v1324
  %v1538 = vunpack.c.h.b16 %v1324
  %v1539 = vunpack.c.l.b16 %v1325
  %v1540 = vunpack.c.h.b16 %v1325
  %v1541 = vunpack.c.l.b16 %v1326
  %v1542 = vunpack.c.h.b16 %v1326
  %v1543 = vunpack.c.l.b16 %v1327
  %v1544 = vunpack.c.h.b16 %v1327
  %v1545 = vunpack.c.l.b16 %v1328
  %v1546 = vunpack.c.h.b16 %v1328
  %v1547 = vunpack.c.l.b16 %v1329
  %v1548 = vunpack.c.h.b16 %v1329
  %v1549 = vunpack.c.l.b16 %v1330
  %v1550 = vunpack.c.h.b16 %v1330
  %v1551 = vunpack.c.l.b16 %v1331
  %v1552 = vunpack.c.h.b16 %v1331
  %v1553 = vunpack.c.l.b16 %v1332
  %v1554 = vunpack.c.h.b16 %v1332
  %v1555 = vunpack.c.l.b16 %v1333
  %v1556 = vunpack.c.h.b16 %v1333
  %v1557 = vunpack.c.l.b16 %v1334
  %v1558 = vunpack.c.h.b16 %v1334
  %v1559 = vunpack.c.l.b16 %v1335
  %v1560 = vunpack.c.h.b16 %v1335
  %v1561 = vunpack.c.l.b16 %v1336
  %v1562 = vunpack.c.h.b16 %v1336
  %v1563 = vunpack.c.l.b16 %v1337
  %v1564 = vunpack.c.h.b16 %v1337
  %v1565 = vunpack.c.l.b16 %v1338
  %v1566 = vunpack.c.h.b16 %v1338
  %v1567 = vunpack.c.l.b16 %v1339
  %v1568 = vunpack.c.h.b16 %v1339
  %v1569 = vunpack.c.l.b16 %v1340
  %v1570 = vunpack.c.h.b16 %v1340
  %v1571 = vunpack.c.l.b16 %v1341
  %v1572 = vunpack.c.h.b16 %v1341
  %v1573 = vunpack.c.l.b16 %v1342
  %v1574 = vunpack.c.h.b16 %v1342
  %v1575 = vunpack.c.l.b16 %v1343
  %v1576 = vunpack.c.h.b16 %v1343
  %v1577 = vunpack.c.l.b16 %v1344
  %v1578 = vunpack.c.h.b16 %v1344
  %v1579 = vunpack.c.l.b16 %v1345
  %v1580 = vunpack.c.h.b16 %v1345
  %v1581 = vunpack.c.l.b16 %v1346
  %v1582 = vunpack.c.h.b16 %v1346
  %v1583 = vunpack.c.l.b16 %v1347
  %v1584 = vunpack.c.h.b16 %v1347
  %v1585 = vunpack.c.l.b16 %v1348
  %v1586 = vunpack.c.h.b16 %v1348
  %v1587 = vunpack.c.l.b16 %v1349
  %v1588 = vunpack.c.h.b16 %v1349
  %v1589 = vunpack.c.l.b16 %v1350
  %v1590 = vunpack.c.h.b16 %v1350
  %v1591 = vpack.c.b16 %v1433, %v1431
  %v1592 = vpack.c.b16 %v1434, %v1432
  %v1593 = vpack.c.b16 %v1437, %v1435
  %v1594 = vpack.c.b16 %v1438, %v1436
  %v1595 = vpack.c.b16 %v1441, %v1439
  %v1596 = vpack.c.b16 %v1442, %v1440
  %v1597 = vpack.c.b16 %v1445, %v1443
  %v1598 = vpack.c.b16 %v1446, %v1444
  %v1599 = vpack.c.b16 %v1449, %v1447
  %v1600 = vpack.c.b16 %v1450, %v1448
  %v1601 = vpack.c.b16 %v1453, %v1451
  %v1602 = vpack.c.b16 %v1454, %v1452
  %v1603 = vpack.c.b16 %v1457, %v1455
  %v1604 = vpack.c.b16 %v1458, %v1456
  %v1605 = vpack.c.b16 %v1461, %v1459
  %v1606 = vpack.c.b16 %v1462, %v1460
  %v1607 = vpack.c.b16 %v1465, %v1463
  %v1608 = vpack.c.b16 %v1466, %v1464
  %v1609 = vpack.c.b16 %v1469, %v1467
  %v1610 = vpack.c.b16 %v1470, %v1468
  %v1611 = vpack.c.b16 %v1473, %v1471
  %v1612 = vpack.c.b16 %v1474, %v1472
  %v1613 = vpack.c.b16 %v1477, %v1475
  %v1614 = vpack.c.b16 %v1478, %v1476
  %v1615 = vpack.c.b16 %v1481, %v1479
  %v1616 = vpack.c.b16 %v1482, %v1480
  %v1617 = vpack.c.b16 %v1485, %v1483
  %v1618 = vpack.c.b16 %v1486, %v1484
  %v1619 = vpack.c.b16 %v1489, %v1487
  %v1620 = vpack.c.b16 %v1490, %v1488
  %v1621 = vpack.c.b16 %v1493, %v1491
  %v1622 = vpack.c.b16 %v1494, %v1492
  %v1623 = vpack.c.b16 %v1497, %v1495
  %v1624 = vpack.c.b16 %v1498, %v1496
  %v1625 = vpack.c.b16 %v1501, %v1499
  %v1626 = vpack.c.b16 %v1502, %v1500
  %v1627 = vpack.c.b16 %v1505, %v1503
  %v1628 = vpack.c.b16 %v1506, %v1504
  %v1629 = vpack.c.b16 %v1509, %v1507
  %v1630 = vpack.c.b16 %v1510, %v1508
  %v1631 = vpack.c.b16 %v1513, %v1511
  %v1632 = vpack.c.b16 %v1514, %v1512
  %v1633 = vpack.c.b16 %v1517, %v1515
  %v1634 = vpack.c.b16 %v1518, %v1516
  %v1635 = vpack.c.b16 %v1521, %v1519
  %v1636 = vpack.c.b16 %v1522, %v1520
  %v1637 = vpack.c.b16 %v1525, %v1523
  %v1638 = vpack.c.b16 %v1526, %v1524
  %v1639 = vpack.c.b16 %v1529, %v1527
  %v1640 = vpack.c.b16 %v1530, %v1528
  %v1641 = vpack.c.b16 %v1533, %v1531
  %v1642 = vpack.c.b16 %v1534, %v1532
  %v1643 = vpack.c.b16 %v1537, %v1535
  %v1644 = vpack.c.b16 %v1538, %v1536
  %v1645 = vpack.c.b16 %v1541, %v1539
  %v1646 = vpack.c.b16 %v1542, %v1540
  %v1647 = vpack.c.b16 %v1545, %v1543
  %v1648 = vpack.c.b16 %v1546, %v1544
  %v1649 = vpack.c.b16 %v1549, %v1547
  %v1650 = vpack.c.b16 %v1550, %v1548
  %v1651 = vpack.c.b16 %v1553, %v1551
  %v1652 = vpack.c.b16 %v1554, %v1552
  %v1653 = vpack.c.b16 %v1557, %v1555
  %v1654 = vpack.c.b16 %v1558, %v1556
  %v1655 = vpack.c.b16 %v1561, %v1559
  %v1656 = vpack.c.b16 %v1562, %v1560
  %v1657 = vpack.c.b16 %v1565, %v1563
  %v1658 = vpack.c.b16 %v1566, %v1564
  %v1659 = vpack.c.b16 %v1569, %v1567
  %v1660 = vpack.c.b16 %v1570, %v1568
  %v1661 = vpack.c.b16 %v1573, %v1571
  %v1662 = vpack.c.b16 %v1574, %v1572
  %v1663 = vpack.c.b16 %v1577, %v1575
  %v1664 = vpack.c.b16 %v1578, %v1576
  %v1665 = vpack.c.b16 %v1581, %v1579
  %v1666 = vpack.c.b16 %v1582, %v1580
  %v1667 = vpack.c.b16 %v1585, %v1583
  %v1668 = vpack.c.b16 %v1586, %v1584
  %v1669 = vpack.c.b16 %v1589, %v1587
  %v1670 = vpack.c.b16 %v1590, %v1588
  %1751 = vmatprep.subr.bf16.mxu0 %v1592
  %1752 = vmatpush1.bf16.msra.mxu0 %v1591
  %1753 = vmatprep.subr.bf16.mxu0 %v1594
  %1754 = vmatpush1.bf16.msra.mxu0 %v1593
  %1755 = vmatprep.subr.bf16.mxu0 %v1596
  %1756 = vmatpush1.bf16.msra.mxu0 %v1595
  %1757 = vmatprep.subr.bf16.mxu0 %v1598
  %1758 = vmatpush1.bf16.msra.mxu0 %v1597
  %1759 = vmatprep.subr.bf16.mxu0 %v1600
  %1760 = vmatpush1.bf16.msra.mxu0 %v1599
  %1761 = vmatprep.subr.bf16.mxu0 %v1602
  %1762 = vmatpush1.bf16.msra.mxu0 %v1601
  %1763 = vmatprep.subr.bf16.mxu0 %v1604
  %1764 = vmatpush1.bf16.msra.mxu0 %v1603
  %1765 = vmatprep.subr.bf16.mxu0 %v1606
  %1766 = vmatpush1.bf16.msra.mxu0 %v1605
  %1767 = vmatprep.subr.bf16.mxu0 %v1608
  %1768 = vmatpush1.bf16.msra.mxu0 %v1607
  %1769 = vmatprep.subr.bf16.mxu0 %v1610
  %1770 = vmatpush1.bf16.msra.mxu0 %v1609
  %1771 = vmatprep.subr.bf16.mxu0 %v1612
  %1772 = vmatpush1.bf16.msra.mxu0 %v1611
  %1773 = vmatprep.subr.bf16.mxu0 %v1614
  %1774 = vmatpush1.bf16.msra.mxu0 %v1613
  %1775 = vmatprep.subr.bf16.mxu0 %v1616
  %1776 = vmatpush1.bf16.msra.mxu0 %v1615
  %1777 = vmatprep.subr.bf16.mxu0 %v1618
  %1778 = vmatpush1.bf16.msra.mxu0 %v1617
  %1779 = vmatprep.subr.bf16.mxu0 %v1620
  %1780 = vmatpush1.bf16.msra.mxu0 %v1619
  %1781 = vmatprep.subr.bf16.mxu0 %v1622
  %1782 = vmatpush1.bf16.msra.mxu0 %v1621
  %1783 = vmatprep.mubr.bf16.mxu0 %v118
  %1784 = vmatmul.mubr.bf16.gmra.mrb[0].mxu0 %v117
  %v1785 = vpop.f32.mrb[0].mxu0
  %v1786 = vadd.f32 0.0, %v1785
  %v1787 = vpop.f32.mrb[0].mxu0
  %v1788 = vadd.f32 0.0, %v1787
  %v1789 = vpop.f32.mrb[0].mxu0
  %v1790 = vadd.f32 0.0, %v1789
  %v1791 = vpop.f32.mrb[0].mxu0
  %v1792 = vadd.f32 0.0, %v1791
  %1793 = vdwg.mxu0
  %1794 = vmatprep.subr.bf16.mxu0 %v1624
  %1795 = vmatpush1.bf16.msra.mxu0 %v1623
  %1796 = vmatprep.subr.bf16.mxu0 %v1626
  %1797 = vmatpush1.bf16.msra.mxu0 %v1625
  %1798 = vmatprep.subr.bf16.mxu0 %v1628
  %1799 = vmatpush1.bf16.msra.mxu0 %v1627
  %1800 = vmatprep.subr.bf16.mxu0 %v1630
  %1801 = vmatpush1.bf16.msra.mxu0 %v1629
  %1802 = vmatprep.subr.bf16.mxu0 %v1632
  %1803 = vmatpush1.bf16.msra.mxu0 %v1631
  %1804 = vmatprep.subr.bf16.mxu0 %v1634
  %1805 = vmatpush1.bf16.msra.mxu0 %v1633
  %1806 = vmatprep.subr.bf16.mxu0 %v1636
  %1807 = vmatpush1.bf16.msra.mxu0 %v1635
  %1808 = vmatprep.subr.bf16.mxu0 %v1638
  %1809 = vmatpush1.bf16.msra.mxu0 %v1637
  %1810 = vmatprep.subr.bf16.mxu0 %v1640
  %1811 = vmatpush1.bf16.msra.mxu0 %v1639
  %1812 = vmatprep.subr.bf16.mxu0 %v1642
  %1813 = vmatpush1.bf16.msra.mxu0 %v1641
  %1814 = vmatprep.subr.bf16.mxu0 %v1644
  %1815 = vmatpush1.bf16.msra.mxu0 %v1643
  %1816 = vmatprep.subr.bf16.mxu0 %v1646
  %1817 = vmatpush1.bf16.msra.mxu0 %v1645
  %1818 = vmatprep.subr.bf16.mxu0 %v1648
  %1819 = vmatpush1.bf16.msra.mxu0 %v1647
  %1820 = vmatprep.subr.bf16.mxu0 %v1650
  %1821 = vmatpush1.bf16.msra.mxu0 %v1649
  %1822 = vmatprep.subr.bf16.mxu0 %v1652
  %1823 = vmatpush1.bf16.msra.mxu0 %v1651
  %1824 = vmatprep.subr.bf16.mxu0 %v1654
  %1825 = vmatpush1.bf16.msra.mxu0 %v1653
  %1826 = vmatprep.mubr.bf16.mxu0 %v120
  %1827 = vmatmul.mubr.bf16.gmra.mrb[0].mxu0 %v119
  %v1828 = vpop.f32.mrb[0].mxu0
  %v1829 = vadd.f32 %v1786, %v1828
  %v1830 = vpop.f32.mrb[0].mxu0
  %v1831 = vadd.f32 %v1788, %v1830
  %v1832 = vpop.f32.mrb[0].mxu0
  %v1833 = vadd.f32 %v1790, %v1832
  %v1834 = vpop.f32.mrb[0].mxu0
  %v1835 = vadd.f32 %v1792, %v1834
  %1836 = vdwg.mxu0
  %1837 = vmatprep.subr.bf16.mxu0 %v1656
  %1838 = vmatpush1.bf16.msra.mxu0 %v1655
  %1839 = vmatprep.subr.bf16.mxu0 %v1658
  %1840 = vmatpush1.bf16.msra.mxu0 %v1657
  %1841 = vmatprep.subr.bf16.mxu0 %v1660
  %1842 = vmatpush1.bf16.msra.mxu0 %v1659
  %1843 = vmatprep.subr.bf16.mxu0 %v1662
  %1844 = vmatpush1.bf16.msra.mxu0 %v1661
  %1845 = vmatprep.subr.bf16.mxu0 %v1664
  %1846 = vmatpush1.bf16.msra.mxu0 %v1663
  %1847 = vmatprep.subr.bf16.mxu0 %v1666
  %1848 = vmatpush1.bf16.msra.mxu0 %v1665
  %1849 = vmatprep.subr.bf16.mxu0 %v1668
  %1850 = vmatpush1.bf16.msra.mxu0 %v1667
  %1851 = vmatprep.subr.bf16.mxu0 %v1670
  %1852 = vmatpush1.bf16.msra.mxu0 %v1669
  %1853 = vmatprep.subr.bf16.mxu0 0
  %1854 = vmatpush1.bf16.msra.mxu0 0
  %1855 = vmatprep.subr.bf16.mxu0 0
  %1856 = vmatpush1.bf16.msra.mxu0 0
  %1857 = vmatprep.subr.bf16.mxu0 0
  %1858 = vmatpush1.bf16.msra.mxu0 0
  %1859 = vmatprep.subr.bf16.mxu0 0
  %1860 = vmatpush1.bf16.msra.mxu0 0
  %1861 = vmatprep.subr.bf16.mxu0 0
  %1862 = vmatpush1.bf16.msra.mxu0 0
  %1863 = vmatprep.subr.bf16.mxu0 0
  %1864 = vmatpush1.bf16.msra.mxu0 0
  %1865 = vmatprep.subr.bf16.mxu0 0
  %1866 = vmatpush1.bf16.msra.mxu0 0
  %1867 = vmatprep.subr.bf16.mxu0 0
  %1868 = vmatpush1.bf16.msra.mxu0 0
  %1869 = vmatprep.mubr.bf16.mxu0 0
  %1870 = vmatmul.mubr.bf16.gmra.mrb[0].mxu0 %v121
  %v1871 = vpop.f32.mrb[0].mxu0
  %v1872 = vadd.f32 %v1829, %v1871
  %v1873 = vpop.f32.mrb[0].mxu0
  %v1874 = vadd.f32 %v1831, %v1873
  %v1875 = vpop.f32.mrb[0].mxu0
  %v1876 = vadd.f32 %v1833, %v1875
  %v1877 = vpop.f32.mrb[0].mxu0
  %v1878 = vadd.f32 %v1835, %v1877
  %1879 = vdwg.mxu0
  %v1880 = vmax.f32 %v1266, %v1872
  %v1881 = vmax.f32 %v1267, %v1874
  %v1882 = vmax.f32 %v1268, %v1876
  %v1883 = vmax.f32 %v1269, %v1878
  %s1884 = scalar_lea.vmem %s0, 1920
  %v1885 = vld [vmem:[%s1884] sm:$0xff]
  %v1886 = vld [vmem:[%s1884 + $0x8] sm:$0xff]
  %v1887 = vld [vmem:[%s1884 + $0x10] sm:$0xff]
  %v1888 = vld [vmem:[%s1884 + $0x18] sm:$0xff]
  %v1889 = vld [vmem:[%s1884 + $0x20] sm:$0xff]
  %v1890 = vld [vmem:[%s1884 + $0x28] sm:$0xff]
  %v1891 = vld [vmem:[%s1884 + $0x30] sm:$0xff]
  %v1892 = vld [vmem:[%s1884 + $0x38] sm:$0xff]
  %v1893 = vld [vmem:[%s1884 + $0x40] sm:$0xff]
  %v1894 = vld [vmem:[%s1884 + $0x48] sm:$0xff]
  %v1895 = vld [vmem:[%s1884 + $0x50] sm:$0xff]
  %v1896 = vld [vmem:[%s1884 + $0x58] sm:$0xff]
  %v1897 = vld [vmem:[%s1884 + $0x60] sm:$0xff]
  %v1898 = vld [vmem:[%s1884 + $0x68] sm:$0xff]
  %v1899 = vld [vmem:[%s1884 + $0x70] sm:$0xff]
  %v1900 = vld [vmem:[%s1884 + $0x78] sm:$0xff]
  %v1901 = vld [vmem:[%s1884 + $0x80] sm:$0xff]
  %v1902 = vld [vmem:[%s1884 + $0x88] sm:$0xff]
  %v1903 = vld [vmem:[%s1884 + $0x90] sm:$0xff]
  %v1904 = vld [vmem:[%s1884 + $0x98] sm:$0xff]
  %v1905 = vld [vmem:[%s1884 + $0xa0] sm:$0xff]
  %v1906 = vld [vmem:[%s1884 + $0xa8] sm:$0xff]
  %v1907 = vld [vmem:[%s1884 + $0xb0] sm:$0xff]
  %v1908 = vld [vmem:[%s1884 + $0xb8] sm:$0xff]
  %v1909 = vld [vmem:[%s1884 + $0xc0] sm:$0xff]
  %v1910 = vld [vmem:[%s1884 + $0xc8] sm:$0xff]
  %v1911 = vld [vmem:[%s1884 + $0xd0] sm:$0xff]
  %v1912 = vld [vmem:[%s1884 + $0xd8] sm:$0xff]
  %v1913 = vld [vmem:[%s1884 + $0xe0] sm:$0xff]
  %v1914 = vld [vmem:[%s1884 + $0xe8] sm:$0xff]
  %v1915 = vld [vmem:[%s1884 + $0xf0] sm:$0xff]
  %v1916 = vld [vmem:[%s1884 + $0xf8] sm:$0xff]
  %v1917 = vld [vmem:[%s1884 + $0x100] sm:$0xff]
  %v1918 = vld [vmem:[%s1884 + $0x108] sm:$0xff]
  %v1919 = vld [vmem:[%s1884 + $0x110] sm:$0xff]
  %v1920 = vld [vmem:[%s1884 + $0x118] sm:$0xff]
  %v1921 = vld [vmem:[%s1884 + $0x120] sm:$0xff]
  %v1922 = vld [vmem:[%s1884 + $0x128] sm:$0xff]
  %v1923 = vld [vmem:[%s1884 + $0x130] sm:$0xff]
  %v1924 = vld [vmem:[%s1884 + $0x138] sm:$0xff]
  %v1925 = vld [vmem:[%s1884 + $0x140] sm:$0xff]
  %v1926 = vld [vmem:[%s1884 + $0x148] sm:$0xff]
  %v1927 = vld [vmem:[%s1884 + $0x150] sm:$0xff]
  %v1928 = vld [vmem:[%s1884 + $0x158] sm:$0xff]
  %v1929 = vld [vmem:[%s1884 + $0x160] sm:$0xff]
  %v1930 = vld [vmem:[%s1884 + $0x168] sm:$0xff]
  %v1931 = vld [vmem:[%s1884 + $0x170] sm:$0xff]
  %v1932 = vld [vmem:[%s1884 + $0x178] sm:$0xff]
  %v1933 = vld [vmem:[%s1884 + $0x180] sm:$0xff]
  %v1934 = vld [vmem:[%s1884 + $0x188] sm:$0xff]
  %v1935 = vld [vmem:[%s1884 + $0x190] sm:$0xff]
  %v1936 = vld [vmem:[%s1884 + $0x198] sm:$0xff]
  %v1937 = vld [vmem:[%s1884 + $0x1a0] sm:$0xff]
  %v1938 = vld [vmem:[%s1884 + $0x1a8] sm:$0xff]
  %v1939 = vld [vmem:[%s1884 + $0x1b0] sm:$0xff]
  %v1940 = vld [vmem:[%s1884 + $0x1b8] sm:$0xff]
  %v1941 = vld [vmem:[%s1884 + $0x1c0] sm:$0xff]
  %v1942 = vld [vmem:[%s1884 + $0x1c8] sm:$0xff]
  %v1943 = vld [vmem:[%s1884 + $0x1d0] sm:$0xff]
  %v1944 = vld [vmem:[%s1884 + $0x1d8] sm:$0xff]
  %v1945 = vld [vmem:[%s1884 + $0x1e0] sm:$0xff]
  %v1946 = vld [vmem:[%s1884 + $0x1e8] sm:$0xff]
  %v1947 = vld [vmem:[%s1884 + $0x1f0] sm:$0xff]
  %v1948 = vld [vmem:[%s1884 + $0x1f8] sm:$0xff]
  %v1949 = vld [vmem:[%s1884 + $0x200] sm:$0xff]
  %v1950 = vld [vmem:[%s1884 + $0x208] sm:$0xff]
  %v1951 = vld [vmem:[%s1884 + $0x210] sm:$0xff]
  %v1952 = vld [vmem:[%s1884 + $0x218] sm:$0xff]
  %v1953 = vld [vmem:[%s1884 + $0x220] sm:$0xff]
  %v1954 = vld [vmem:[%s1884 + $0x228] sm:$0xff]
  %v1955 = vld [vmem:[%s1884 + $0x230] sm:$0xff]
  %v1956 = vld [vmem:[%s1884 + $0x238] sm:$0xff]
  %v1957 = vld [vmem:[%s1884 + $0x240] sm:$0xff]
  %v1958 = vld [vmem:[%s1884 + $0x248] sm:$0xff]
  %v1959 = vld [vmem:[%s1884 + $0x250] sm:$0xff]
  %v1960 = vld [vmem:[%s1884 + $0x258] sm:$0xff]
  %v1961 = vld [vmem:[%s1884 + $0x260] sm:$0xff]
  %v1962 = vld [vmem:[%s1884 + $0x268] sm:$0xff]
  %v1963 = vld [vmem:[%s1884 + $0x270] sm:$0xff]
  %v1964 = vld [vmem:[%s1884 + $0x278] sm:$0xff]
  %v2045 = vunpack.c.l.b16 %v1885
  %v2046 = vunpack.c.h.b16 %v1885
  %v2047 = vunpack.c.l.b16 %v1886
  %v2048 = vunpack.c.h.b16 %v1886
  %v2049 = vunpack.c.l.b16 %v1887
  %v2050 = vunpack.c.h.b16 %v1887
  %v2051 = vunpack.c.l.b16 %v1888
  %v2052 = vunpack.c.h.b16 %v1888
  %v2053 = vunpack.c.l.b16 %v1889
  %v2054 = vunpack.c.h.b16 %v1889
  %v2055 = vunpack.c.l.b16 %v1890
  %v2056 = vunpack.c.h.b16 %v1890
  %v2057 = vunpack.c.l.b16 %v1891
  %v2058 = vunpack.c.h.b16 %v1891
  %v2059 = vunpack.c.l.b16 %v1892
  %v2060 = vunpack.c.h.b16 %v1892
  %v2061 = vunpack.c.l.b16 %v1893
  %v2062 = vunpack.c.h.b16 %v1893
  %v2063 = vunpack.c.l.b16 %v1894
  %v2064 = vunpack.c.h.b16 %v1894
  %v2065 = vunpack.c.l.b16 %v1895
  %v2066 = vunpack.c.h.b16 %v1895
  %v2067 = vunpack.c.l.b16 %v1896
  %v2068 = vunpack.c.h.b16 %v1896
  %v2069 = vunpack.c.l.b16 %v1897
  %v2070 = vunpack.c.h.b16 %v1897
  %v2071 = vunpack.c.l.b16 %v1898
  %v2072 = vunpack.c.h.b16 %v1898
  %v2073 = vunpack.c.l.b16 %v1899
  %v2074 = vunpack.c.h.b16 %v1899
  %v2075 = vunpack.c.l.b16 %v1900
  %v2076 = vunpack.c.h.b16 %v1900
  %v2077 = vunpack.c.l.b16 %v1901
  %v2078 = vunpack.c.h.b16 %v1901
  %v2079 = vunpack.c.l.b16 %v1902
  %v2080 = vunpack.c.h.b16 %v1902
  %v2081 = vunpack.c.l.b16 %v1903
  %v2082 = vunpack.c.h.b16 %v1903
  %v2083 = vunpack.c.l.b16 %v1904
  %v2084 = vunpack.c.h.b16 %v1904
  %v2085 = vunpack.c.l.b16 %v1905
  %v2086 = vunpack.c.h.b16 %v1905
  %v2087 = vunpack.c.l.b16 %v1906
  %v2088 = vunpack.c.h.b16 %v1906
  %v2089 = vunpack.c.l.b16 %v1907
  %v2090 = vunpack.c.h.b16 %v1907
  %v2091 = vunpack.c.l.b16 %v1908
  %v2092 = vunpack.c.h.b16 %v1908
  %v2093 = vunpack.c.l.b16 %v1909
  %v2094 = vunpack.c.h.b16 %v1909
  %v2095 = vunpack.c.l.b16 %v1910
  %v2096 = vunpack.c.h.b16 %v1910
  %v2097 = vunpack.c.l.b16 %v1911
  %v2098 = vunpack.c.h.b16 %v1911
  %v2099 = vunpack.c.l.b16 %v1912
  %v2100 = vunpack.c.h.b16 %v1912
  %v2101 = vunpack.c.l.b16 %v1913
  %v2102 = vunpack.c.h.b16 %v1913
  %v2103 = vunpack.c.l.b16 %v1914
  %v2104 = vunpack.c.h.b16 %v1914
  %v2105 = vunpack.c.l.b16 %v1915
  %v2106 = vunpack.c.h.b16 %v1915
  %v2107 = vunpack.c.l.b16 %v1916
  %v2108 = vunpack.c.h.b16 %v1916
  %v2109 = vunpack.c.l.b16 %v1917
  %v2110 = vunpack.c.h.b16 %v1917
  %v2111 = vunpack.c.l.b16 %v1918
  %v2112 = vunpack.c.h.b16 %v1918
  %v2113 = vunpack.c.l.b16 %v1919
  %v2114 = vunpack.c.h.b16 %v1919
  %v2115 = vunpack.c.l.b16 %v1920
  %v2116 = vunpack.c.h.b16 %v1920
  %v2117 = vunpack.c.l.b16 %v1921
  %v2118 = vunpack.c.h.b16 %v1921
  %v2119 = vunpack.c.l.b16 %v1922
  %v2120 = vunpack.c.h.b16 %v1922
  %v2121 = vunpack.c.l.b16 %v1923
  %v2122 = vunpack.c.h.b16 %v1923
  %v2123 = vunpack.c.l.b16 %v1924
  %v2124 = vunpack.c.h.b16 %v1924
  %v2125 = vunpack.c.l.b16 %v1925
  %v2126 = vunpack.c.h.b16 %v1925
  %v2127 = vunpack.c.l.b16 %v1926
  %v2128 = vunpack.c.h.b16 %v1926
  %v2129 = vunpack.c.l.b16 %v1927
  %v2130 = vunpack.c.h.b16 %v1927
  %v2131 = vunpack.c.l.b16 %v1928
  %v2132 = vunpack.c.h.b16 %v1928
  %v2133 = vunpack.c.l.b16 %v1929
  %v2134 = vunpack.c.h.b16 %v1929
  %v2135 = vunpack.c.l.b16 %v1930
  %v2136 = vunpack.c.h.b16 %v1930
  %v2137 = vunpack.c.l.b16 %v1931
  %v2138 = vunpack.c.h.b16 %v1931
  %v2139 = vunpack.c.l.b16 %v1932
  %v2140 = vunpack.c.h.b16 %v1932
  %v2141 = vunpack.c.l.b16 %v1933
  %v2142 = vunpack.c.h.b16 %v1933
  %v2143 = vunpack.c.l.b16 %v1934
  %v2144 = vunpack.c.h.b16 %v1934
  %v2145 = vunpack.c.l.b16 %v1935
  %v2146 = vunpack.c.h.b16 %v1935
  %v2147 = vunpack.c.l.b16 %v1936
  %v2148 = vunpack.c.h.b16 %v1936
  %v2149 = vunpack.c.l.b16 %v1937
  %v2150 = vunpack.c.h.b16 %v1937
  %v2151 = vunpack.c.l.b16 %v1938
  %v2152 = vunpack.c.h.b16 %v1938
  %v2153 = vunpack.c.l.b16 %v1939
  %v2154 = vunpack.c.h.b16 %v1939
  %v2155 = vunpack.c.l.b16 %v1940
  %v2156 = vunpack.c.h.b16 %v1940
  %v2157 = vunpack.c.l.b16 %v1941
  %v2158 = vunpack.c.h.b16 %v1941
  %v2159 = vunpack.c.l.b16 %v1942
  %v2160 = vunpack.c.h.b16 %v1942
  %v2161 = vunpack.c.l.b16 %v1943
  %v2162 = vunpack.c.h.b16 %v1943
  %v2163 = vunpack.c.l.b16 %v1944
  %v2164 = vunpack.c.h.b16 %v1944
  %v2165 = vunpack.c.l.b16 %v1945
  %v2166 = vunpack.c.h.b16 %v1945
  %v2167 = vunpack.c.l.b16 %v1946
  %v2168 = vunpack.c.h.b16 %v1946
  %v2169 = vunpack.c.l.b16 %v1947
  %v2170 = vunpack.c.h.b16 %v1947
  %v2171 = vunpack.c.l.b16 %v1948
  %v2172 = vunpack.c.h.b16 %v1948
  %v2173 = vunpack.c.l.b16 %v1949
  %v2174 = vunpack.c.h.b16 %v1949
  %v2175 = vunpack.c.l.b16 %v1950
  %v2176 = vunpack.c.h.b16 %v1950
  %v2177 = vunpack.c.l.b16 %v1951
  %v2178 = vunpack.c.h.b16 %v1951
  %v2179 = vunpack.c.l.b16 %v1952
  %v2180 = vunpack.c.h.b16 %v1952
  %v2181 = vunpack.c.l.b16 %v1953
  %v2182 = vunpack.c.h.b16 %v1953
  %v2183 = vunpack.c.l.b16 %v1954
  %v2184 = vunpack.c.h.b16 %v1954
  %v2185 = vunpack.c.l.b16 %v1955
  %v2186 = vunpack.c.h.b16 %v1955
  %v2187 = vunpack.c.l.b16 %v1956
  %v2188 = vunpack.c.h.b16 %v1956
  %v2189 = vunpack.c.l.b16 %v1957
  %v2190 = vunpack.c.h.b16 %v1957
  %v2191 = vunpack.c.l.b16 %v1958
  %v2192 = vunpack.c.h.b16 %v1958
  %v2193 = vunpack.c.l.b16 %v1959
  %v2194 = vunpack.c.h.b16 %v1959
  %v2195 = vunpack.c.l.b16 %v1960
  %v2196 = vunpack.c.h.b16 %v1960
  %v2197 = vunpack.c.l.b16 %v1961
  %v2198 = vunpack.c.h.b16 %v1961
  %v2199 = vunpack.c.l.b16 %v1962
  %v2200 = vunpack.c.h.b16 %v1962
  %v2201 = vunpack.c.l.b16 %v1963
  %v2202 = vunpack.c.h.b16 %v1963
  %v2203 = vunpack.c.l.b16 %v1964
  %v2204 = vunpack.c.h.b16 %v1964
  %v2205 = vpack.c.b16 %v2047, %v2045
  %v2206 = vpack.c.b16 %v2048, %v2046
  %v2207 = vpack.c.b16 %v2051, %v2049
  %v2208 = vpack.c.b16 %v2052, %v2050
  %v2209 = vpack.c.b16 %v2055, %v2053
  %v2210 = vpack.c.b16 %v2056, %v2054
  %v2211 = vpack.c.b16 %v2059, %v2057
  %v2212 = vpack.c.b16 %v2060, %v2058
  %v2213 = vpack.c.b16 %v2063, %v2061
  %v2214 = vpack.c.b16 %v2064, %v2062
  %v2215 = vpack.c.b16 %v2067, %v2065
  %v2216 = vpack.c.b16 %v2068, %v2066
  %v2217 = vpack.c.b16 %v2071, %v2069
  %v2218 = vpack.c.b16 %v2072, %v2070
  %v2219 = vpack.c.b16 %v2075, %v2073
  %v2220 = vpack.c.b16 %v2076, %v2074
  %v2221 = vpack.c.b16 %v2079, %v2077
  %v2222 = vpack.c.b16 %v2080, %v2078
  %v2223 = vpack.c.b16 %v2083, %v2081
  %v2224 = vpack.c.b16 %v2084, %v2082
  %v2225 = vpack.c.b16 %v2087, %v2085
  %v2226 = vpack.c.b16 %v2088, %v2086
  %v2227 = vpack.c.b16 %v2091, %v2089
  %v2228 = vpack.c.b16 %v2092, %v2090
  %v2229 = vpack.c.b16 %v2095, %v2093
  %v2230 = vpack.c.b16 %v2096, %v2094
  %v2231 = vpack.c.b16 %v2099, %v2097
  %v2232 = vpack.c.b16 %v2100, %v2098
  %v2233 = vpack.c.b16 %v2103, %v2101
  %v2234 = vpack.c.b16 %v2104, %v2102
  %v2235 = vpack.c.b16 %v2107, %v2105
  %v2236 = vpack.c.b16 %v2108, %v2106
  %v2237 = vpack.c.b16 %v2111, %v2109
  %v2238 = vpack.c.b16 %v2112, %v2110
  %v2239 = vpack.c.b16 %v2115, %v2113
  %v2240 = vpack.c.b16 %v2116, %v2114
  %v2241 = vpack.c.b16 %v2119, %v2117
  %v2242 = vpack.c.b16 %v2120, %v2118
  %v2243 = vpack.c.b16 %v2123, %v2121
  %v2244 = vpack.c.b16 %v2124, %v2122
  %v2245 = vpack.c.b16 %v2127, %v2125
  %v2246 = vpack.c.b16 %v2128, %v2126
  %v2247 = vpack.c.b16 %v2131, %v2129
  %v2248 = vpack.c.b16 %v2132, %v2130
  %v2249 = vpack.c.b16 %v2135, %v2133
  %v2250 = vpack.c.b16 %v2136, %v2134
  %v2251 = vpack.c.b16 %v2139, %v2137
  %v2252 = vpack.c.b16 %v2140, %v2138
  %v2253 = vpack.c.b16 %v2143, %v2141
  %v2254 = vpack.c.b16 %v2144, %v2142
  %v2255 = vpack.c.b16 %v2147, %v2145
  %v2256 = vpack.c.b16 %v2148, %v2146
  %v2257 = vpack.c.b16 %v2151, %v2149
  %v2258 = vpack.c.b16 %v2152, %v2150
  %v2259 = vpack.c.b16 %v2155, %v2153
  %v2260 = vpack.c.b16 %v2156, %v2154
  %v2261 = vpack.c.b16 %v2159, %v2157
  %v2262 = vpack.c.b16 %v2160, %v2158
  %v2263 = vpack.c.b16 %v2163, %v2161
  %v2264 = vpack.c.b16 %v2164, %v2162
  %v2265 = vpack.c.b16 %v2167, %v2165
  %v2266 = vpack.c.b16 %v2168, %v2166
  %v2267 = vpack.c.b16 %v2171, %v2169
  %v2268 = vpack.c.b16 %v2172, %v2170
  %v2269 = vpack.c.b16 %v2175, %v2173
  %v2270 = vpack.c.b16 %v2176, %v2174
  %v2271 = vpack.c.b16 %v2179, %v2177
  %v2272 = vpack.c.b16 %v2180, %v2178
  %v2273 = vpack.c.b16 %v2183, %v2181
  %v2274 = vpack.c.b16 %v2184, %v2182
  %v2275 = vpack.c.b16 %v2187, %v2185
  %v2276 = vpack.c.b16 %v2188, %v2186
  %v2277 = vpack.c.b16 %v2191, %v2189
  %v2278 = vpack.c.b16 %v2192, %v2190
  %v2279 = vpack.c.b16 %v2195, %v2193
  %v2280 = vpack.c.b16 %v2196, %v2194
  %v2281 = vpack.c.b16 %v2199, %v2197
  %v2282 = vpack.c.b16 %v2200, %v2198
  %v2283 = vpack.c.b16 %v2203, %v2201
  %v2284 = vpack.c.b16 %v2204, %v2202
  %2365 = vmatprep.subr.bf16.mxu0 %v2206
  %2366 = vmatpush1.bf16.msra.mxu0 %v2205
  %2367 = vmatprep.subr.bf16.mxu0 %v2208
  %2368 = vmatpush1.bf16.msra.mxu0 %v2207
  %2369 = vmatprep.subr.bf16.mxu0 %v2210
  %2370 = vmatpush1.bf16.msra.mxu0 %v2209
  %2371 = vmatprep.subr.bf16.mxu0 %v2212
  %2372 = vmatpush1.bf16.msra.mxu0 %v2211
  %2373 = vmatprep.subr.bf16.mxu0 %v2214
  %2374 = vmatpush1.bf16.msra.mxu0 %v2213
  %2375 = vmatprep.subr.bf16.mxu0 %v2216
  %2376 = vmatpush1.bf16.msra.mxu0 %v2215
  %2377 = vmatprep.subr.bf16.mxu0 %v2218
  %2378 = vmatpush1.bf16.msra.mxu0 %v2217
  %2379 = vmatprep.subr.bf16.mxu0 %v2220
  %2380 = vmatpush1.bf16.msra.mxu0 %v2219
  %2381 = vmatprep.subr.bf16.mxu0 %v2222
  %2382 = vmatpush1.bf16.msra.mxu0 %v2221
  %2383 = vmatprep.subr.bf16.mxu0 %v2224
  %2384 = vmatpush1.bf16.msra.mxu0 %v2223
  %2385 = vmatprep.subr.bf16.mxu0 %v2226
  %2386 = vmatpush1.bf16.msra.mxu0 %v2225
  %2387 = vmatprep.subr.bf16.mxu0 %v2228
  %2388 = vmatpush1.bf16.msra.mxu0 %v2227
  %2389 = vmatprep.subr.bf16.mxu0 %v2230
  %2390 = vmatpush1.bf16.msra.mxu0 %v2229
  %2391 = vmatprep.subr.bf16.mxu0 %v2232
  %2392 = vmatpush1.bf16.msra.mxu0 %v2231
  %2393 = vmatprep.subr.bf16.mxu0 %v2234
  %2394 = vmatpush1.bf16.msra.mxu0 %v2233
  %2395 = vmatprep.subr.bf16.mxu0 %v2236
  %2396 = vmatpush1.bf16.msra.mxu0 %v2235
  %2397 = vmatprep.mubr.bf16.mxu0 %v118
  %2398 = vmatmul.mubr.bf16.gmra.mrb[0].mxu0 %v117
  %v2399 = vpop.f32.mrb[0].mxu0
  %v2400 = vadd.f32 0.0, %v2399
  %v2401 = vpop.f32.mrb[0].mxu0
  %v2402 = vadd.f32 0.0, %v2401
  %v2403 = vpop.f32.mrb[0].mxu0
  %v2404 = vadd.f32 0.0, %v2403
  %v2405 = vpop.f32.mrb[0].mxu0
  %v2406 = vadd.f32 0.0, %v2405
  %2407 = vdwg.mxu0
  %2408 = vmatprep.subr.bf16.mxu0 %v2238
  %2409 = vmatpush1.bf16.msra.mxu0 %v2237
  %2410 = vmatprep.subr.bf16.mxu0 %v2240
  %2411 = vmatpush1.bf16.msra.mxu0 %v2239
  %2412 = vmatprep.subr.bf16.mxu0 %v2242
  %2413 = vmatpush1.bf16.msra.mxu0 %v2241
  %2414 = vmatprep.subr.bf16.mxu0 %v2244
  %2415 = vmatpush1.bf16.msra.mxu0 %v2243
  %2416 = vmatprep.subr.bf16.mxu0 %v2246
  %2417 = vmatpush1.bf16.msra.mxu0 %v2245
  %2418 = vmatprep.subr.bf16.mxu0 %v2248
  %2419 = vmatpush1.bf16.msra.mxu0 %v2247
  %2420 = vmatprep.subr.bf16.mxu0 %v2250
  %2421 = vmatpush1.bf16.msra.mxu0 %v2249
  %2422 = vmatprep.subr.bf16.mxu0 %v2252
  %2423 = vmatpush1.bf16.msra.mxu0 %v2251
  %2424 = vmatprep.subr.bf16.mxu0 %v2254
  %2425 = vmatpush1.bf16.msra.mxu0 %v2253
  %2426 = vmatprep.subr.bf16.mxu0 %v2256
  %2427 = vmatpush1.bf16.msra.mxu0 %v2255
  %2428 = vmatprep.subr.bf16.mxu0 %v2258
  %2429 = vmatpush1.bf16.msra.mxu0 %v2257
  %2430 = vmatprep.subr.bf16.mxu0 %v2260
  %2431 = vmatpush1.bf16.msra.mxu0 %v2259
  %2432 = vmatprep.subr.bf16.mxu0 %v2262
  %2433 = vmatpush1.bf16.msra.mxu0 %v2261
  %2434 = vmatprep.subr.bf16.mxu0 %v2264
  %2435 = vmatpush1.bf16.msra.mxu0 %v2263
  %2436 = vmatprep.subr.bf16.mxu0 %v2266
  %2437 = vmatpush1.bf16.msra.mxu0 %v2265
  %2438 = vmatprep.subr.bf16.mxu0 %v2268
  %2439 = vmatpush1.bf16.msra.mxu0 %v2267
  %2440 = vmatprep.mubr.bf16.mxu0 %v120
  %2441 = vmatmul.mubr.bf16.gmra.mrb[0].mxu0 %v119
  %v2442 = vpop.f32.mrb[0].mxu0
  %v2443 = vadd.f32 %v2400, %v2442
  %v2444 = vpop.f32.mrb[0].mxu0
  %v2445 = vadd.f32 %v2402, %v2444
  %v2446 = vpop.f32.mrb[0].mxu0
  %v2447 = vadd.f32 %v2404, %v2446
  %v2448 = vpop.f32.mrb[0].mxu0
  %v2449 = vadd.f32 %v2406, %v2448
  %2450 = vdwg.mxu0
  %2451 = vmatprep.subr.bf16.mxu0 %v2270
  %2452 = vmatpush1.bf16.msra.mxu0 %v2269
  %2453 = vmatprep.subr.bf16.mxu0 %v2272
  %2454 = vmatpush1.bf16.msra.mxu0 %v2271
  %2455 = vmatprep.subr.bf16.mxu0 %v2274
  %2456 = vmatpush1.bf16.msra.mxu0 %v2273
  %2457 = vmatprep.subr.bf16.mxu0 %v2276
  %2458 = vmatpush1.bf16.msra.mxu0 %v2275
  %2459 = vmatprep.subr.bf16.mxu0 %v2278
  %2460 = vmatpush1.bf16.msra.mxu0 %v2277
  %2461 = vmatprep.subr.bf16.mxu0 %v2280
  %2462 = vmatpush1.bf16.msra.mxu0 %v2279
  %2463 = vmatprep.subr.bf16.mxu0 %v2282
  %2464 = vmatpush1.bf16.msra.mxu0 %v2281
  %2465 = vmatprep.subr.bf16.mxu0 %v2284
  %2466 = vmatpush1.bf16.msra.mxu0 %v2283
  %2467 = vmatprep.subr.bf16.mxu0 0
  %2468 = vmatpush1.bf16.msra.mxu0 0
  %2469 = vmatprep.subr.bf16.mxu0 0
  %2470 = vmatpush1.bf16.msra.mxu0 0
  %2471 = vmatprep.subr.bf16.mxu0 0
  %2472 = vmatpush1.bf16.msra.mxu0 0
  %2473 = vmatprep.subr.bf16.mxu0 0
  %2474 = vmatpush1.bf16.msra.mxu0 0
  %2475 = vmatprep.subr.bf16.mxu0 0
  %2476 = vmatpush1.bf16.msra.mxu0 0
  %2477 = vmatprep.subr.bf16.mxu0 0
  %2478 = vmatpush1.bf16.msra.mxu0 0
  %2479 = vmatprep.subr.bf16.mxu0 0
  %2480 = vmatpush1.bf16.msra.mxu0 0
  %2481 = vmatprep.subr.bf16.mxu0 0
  %2482 = vmatpush1.bf16.msra.mxu0 0
  %2483 = vmatprep.mubr.bf16.mxu0 0
  %2484 = vmatmul.mubr.bf16.gmra.mrb[0].mxu0 %v121
  %v2485 = vpop.f32.mrb[0].mxu0
  %v2486 = vadd.f32 %v2443, %v2485
  %v2487 = vpop.f32.mrb[0].mxu0
  %v2488 = vadd.f32 %v2445, %v2487
  %v2489 = vpop.f32.mrb[0].mxu0
  %v2490 = vadd.f32 %v2447, %v2489
  %v2491 = vpop.f32.mrb[0].mxu0
  %v2492 = vadd.f32 %v2449, %v2491
  %2493 = vdwg.mxu0
  %v2494 = vmax.f32 %v1880, %v2486
  %v2495 = vmax.f32 %v1881, %v2488
  %v2496 = vmax.f32 %v1882, %v2490
  %v2497 = vmax.f32 %v1883, %v2492
  %v2498 = vld [vmem:[%s2] sm:$0xff]
  %v2499 = vld [vmem:[%s2 + $0x8] sm:$0xff]
  %2501 = vset.pattern.permute.xlu0 0
  %2502 = vperm.xlu0 %2501, %v2498
  %v2503 = vpop.permute.xlu0 %2502
  %2506 = vset.pattern.permute.xlu0 0
  %2507 = vperm.xlu0 %2506, %v2499
  %v2508 = vpop.permute.xlu0 %2507
  %v2510 = vadd.f32 %v2494, %v2503
  %v2511 = vadd.f32 %v2495, %v2503
  %v2512 = vadd.f32 %v2496, %v2508
  %v2513 = vadd.f32 %v2497, %v2508
  %v2514 = vmax.f32 %v2510, 0.0
  %v2515 = vmax.f32 %v2511, 0.0
  %v2516 = vmax.f32 %v2512, 0.0
  %v2517 = vmax.f32 %v2513, 0.0
  %v2518 = vpack.c.bf16 %v2516, %v2514
  %v2519 = vpack.c.bf16 %v2517, %v2515
  %v2522 = vunpack.c.l.b16 %v2518
  %v2523 = vunpack.c.l.b16 %v2519
  %v2524 = vunpack.c.h.b16 %v2518
  %v2525 = vunpack.c.h.b16 %v2519
  %v2526 = vpack.c.b16 %v2523, %v2522
  %v2527 = vpack.c.b16 %v2525, %v2524
  %2530 = vst [vmem:[%s3] sm:$0xff] %v2526
  %2531 = vst [vmem:[%s3 + $0x8] sm:$0xff] %v2527
  // Predicated region
  $region14: #{lipnet_forward.5} parent=0 // pred_check
    _
  $region15: #{lipnet_forward.5} parent=0 // pred_check_branch
    %2533 = sbr.rel (0) target = $region17
  $region16: #{lipnet_forward.5} parent=0 // pred_region
    _
  $region17: #{lipnet_forward.5} parent=0 // pred_fallthru
    _
  // Predicated region
  $region18: #{lipnet_forward.5} parent=0 // pred_check
    _
  $region19: #{lipnet_forward.5} parent=0 // pred_check_branch
    %2535 = sbr.rel (0) target = $region21
  $region20: #{lipnet_forward.5} parent=0 // pred_region
    _
  $region21: #{lipnet_forward.5} parent=0 // pred_fallthru
    _

// kernel: lipnet_forward.6
$region0: #{lipnet_forward.6}
  #allocation0 [shape = 'u32[]', space=smem, size = 0x4, offset = 0x4, fixed_abs, tag = 'smem constant byte address 0x4 - core index']
  #allocation1 [shape = 'u32[144,128]{1,0:T(1,128)}', space=vmem, size = 0x12000, scoped, tag = 'internal scratch']
  %s0 = inlined_call_operand.vmem [shape: bf16[4,512,128], index: 0, kind: input, shape index: {}]
  %s1 = inlined_call_operand.vmem [shape: bf16[24,512], index: 1, kind: input, shape index: {}]
  %s2 = inlined_call_operand.vmem [shape: f32[24,1], index: 2, kind: input, shape index: {}]
  %s3 = inlined_call_operand.vmem [shape: bf16[24,128], index: 3, kind: output, shape index: {}]
  %s4 = sld [smem:[#allocation0]]
  $region22: #{lipnet_forward.6} parent=0
    _
  %s6 = ssub.s32 1, %s4
  %s7 = scalar_select 0, %s6, %s4
  // Predicated region
  $region2: #{lipnet_forward.6} parent=0 // pred_check
    _
  $region3: #{lipnet_forward.6} parent=0 // pred_check_branch
    %9 = sbr.rel (0) target = $region5
  $region4: #{lipnet_forward.6} parent=0 // pred_region
    _
  $region5: #{lipnet_forward.6} parent=0 // pred_fallthru
    _
  // Predicated region
  $region6: #{lipnet_forward.6} parent=0 // pred_check
    _
  $region7: #{lipnet_forward.6} parent=0 // pred_check_branch
    %11 = sbr.rel (0) target = $region9
  $region8: #{lipnet_forward.6} parent=0 // pred_region
    _
  $region9: #{lipnet_forward.6} parent=0 // pred_fallthru
    _
  // Predicated region
  $region10: #{lipnet_forward.6} parent=0 // pred_check
    _
  $region11: #{lipnet_forward.6} parent=0 // pred_check_branch
    %13 = sbr.rel (0) target = $region13
  $region12: #{lipnet_forward.6} parent=0 // pred_region
    _
  $region13: #{lipnet_forward.6} parent=0 // pred_fallthru
    _
  %v15 = vld [vmem:[%s1] sm:$0xff]
  %v16 = vld [vmem:[%s1 + $0x8] sm:$0xff]
  %v17 = vld [vmem:[%s1 + $0x10] sm:$0xff]
  %v18 = vld [vmem:[%s1 + $0x18] sm:$0xff]
  %v19 = vld [vmem:[%s1 + $0x20] sm:$0xff]
  %v20 = vld [vmem:[%s1 + $0x28] sm:$0xff]
  %v21 = vld [vmem:[%s0] sm:$0xf]
  %v22 = vld [vmem:[%s0 + $0x4] sm:$0xf]
  %v23 = vld [vmem:[%s0 + $0x8] sm:$0xf]
  %v24 = vld [vmem:[%s0 + $0xc] sm:$0xf]
  %v25 = vld [vmem:[%s0 + $0x10] sm:$0xf]
  %v26 = vld [vmem:[%s0 + $0x14] sm:$0xf]
  %v27 = vld [vmem:[%s0 + $0x18] sm:$0xf]
  %v28 = vld [vmem:[%s0 + $0x1c] sm:$0xf]
  %v29 = vld [vmem:[%s0 + $0x20] sm:$0xf]
  %v30 = vld [vmem:[%s0 + $0x24] sm:$0xf]
  %v31 = vld [vmem:[%s0 + $0x28] sm:$0xf]
  %v32 = vld [vmem:[%s0 + $0x2c] sm:$0xf]
  %v33 = vld [vmem:[%s0 + $0x30] sm:$0xf]
  %v34 = vld [vmem:[%s0 + $0x34] sm:$0xf]
  %v35 = vld [vmem:[%s0 + $0x38] sm:$0xf]
  %v36 = vld [vmem:[%s0 + $0x3c] sm:$0xf]
  %v37 = vld [vmem:[%s0 + $0x40] sm:$0xf]
  %v38 = vld [vmem:[%s0 + $0x44] sm:$0xf]
  %v39 = vld [vmem:[%s0 + $0x48] sm:$0xf]
  %v40 = vld [vmem:[%s0 + $0x4c] sm:$0xf]
  %v41 = vld [vmem:[%s0 + $0x50] sm:$0xf]
  %v42 = vld [vmem:[%s0 + $0x54] sm:$0xf]
  %v43 = vld [vmem:[%s0 + $0x58] sm:$0xf]
  %v44 = vld [vmem:[%s0 + $0x5c] sm:$0xf]
  %v45 = vld [vmem:[%s0 + $0x60] sm:$0xf]
  %v46 = vld [vmem:[%s0 + $0x64] sm:$0xf]
  %v47 = vld [vmem:[%s0 + $0x68] sm:$0xf]
  %v48 = vld [vmem:[%s0 + $0x6c] sm:$0xf]
  %v49 = vld [vmem:[%s0 + $0x70] sm:$0xf]
  %v50 = vld [vmem:[%s0 + $0x74] sm:$0xf]
  %v51 = vld [vmem:[%s0 + $0x78] sm:$0xf]
  %v52 = vld [vmem:[%s0 + $0x7c] sm:$0xf]
  %v53 = vld [vmem:[%s0 + $0x80] sm:$0xf]
  %v54 = vld [vmem:[%s0 + $0x84] sm:$0xf]
  %v55 = vld [vmem:[%s0 + $0x88] sm:$0xf]
  %v56 = vld [vmem:[%s0 + $0x8c] sm:$0xf]
  %v57 = vld [vmem:[%s0 + $0x90] sm:$0xf]
  %v58 = vld [vmem:[%s0 + $0x94] sm:$0xf]
  %v59 = vld [vmem:[%s0 + $0x98] sm:$0xf]
  %v60 = vld [vmem:[%s0 + $0x9c] sm:$0xf]
  %v61 = vld [vmem:[%s0 + $0xa0] sm:$0xf]
  %v62 = vld [vmem:[%s0 + $0xa4] sm:$0xf]
  %v63 = vld [vmem:[%s0 + $0xa8] sm:$0xf]
  %v64 = vld [vmem:[%s0 + $0xac] sm:$0xf]
  %v65 = vld [vmem:[%s0 + $0xb0] sm:$0xf]
  %v66 = vld [vmem:[%s0 + $0xb4] sm:$0xf]
  %v67 = vld [vmem:[%s0 + $0xb8] sm:$0xf]
  %v68 = vld [vmem:[%s0 + $0xbc] sm:$0xf]
  %v69 = vld [vmem:[%s0 + $0xc0] sm:$0xf]
  %v70 = vld [vmem:[%s0 + $0xc4] sm:$0xf]
  %v71 = vld [vmem:[%s0 + $0xc8] sm:$0xf]
  %v72 = vld [vmem:[%s0 + $0xcc] sm:$0xf]
  %v73 = vld [vmem:[%s0 + $0xd0] sm:$0xf]
  %v74 = vld [vmem:[%s0 + $0xd4] sm:$0xf]
  %v75 = vld [vmem:[%s0 + $0xd8] sm:$0xf]
  %v76 = vld [vmem:[%s0 + $0xdc] sm:$0xf]
  %v77 = vld [vmem:[%s0 + $0xe0] sm:$0xf]
  %v78 = vld [vmem:[%s0 + $0xe4] sm:$0xf]
  %v79 = vld [vmem:[%s0 + $0xe8] sm:$0xf]
  %v80 = vld [vmem:[%s0 + $0xec] sm:$0xf]
  %v81 = vld [vmem:[%s0 + $0xf0] sm:$0xf]
  %v82 = vld [vmem:[%s0 + $0xf4] sm:$0xf]
  %v83 = vld [vmem:[%s0 + $0xf8] sm:$0xf]
  %v84 = vld [vmem:[%s0 + $0xfc] sm:$0xf]
  %v91 = vunpack.c.l.b16 %v15
  %v92 = vunpack.c.h.b16 %v15
  %v93 = vunpack.c.l.b16 %v16
  %v94 = vunpack.c.h.b16 %v16
  %v95 = vunpack.c.l.b16 %v17
  %v96 = vunpack.c.h.b16 %v17
  %v97 = vunpack.c.l.b16 %v18
  %v98 = vunpack.c.h.b16 %v18
  %v99 = vunpack.c.l.b16 %v19
  %v100 = vunpack.c.h.b16 %v19
  %v101 = vunpack.c.l.b16 %v20
  %v102 = vunpack.c.h.b16 %v20
  %v103 = vpack.c.b16 %v95, %v91
  %v104 = vpack.c.b16 %v96, %v92
  %v105 = vpack.c.b16 %v97, %v93
  %v106 = vpack.c.b16 %v98, %v94
  %v107 = vpack.c.b16 %v99, %v99
  %v108 = vpack.c.b16 %v100, %v100
  %v109 = vpack.c.b16 %v101, %v101
  %v110 = vpack.c.b16 %v102, %v102
  %v183 = vunpack.c.l.b16 %v21
  %v184 = vunpack.c.l.b16 %v22
  %v185 = vunpack.c.l.b16 %v23
  %v186 = vunpack.c.l.b16 %v24
  %v187 = vunpack.c.l.b16 %v25
  %v188 = vunpack.c.l.b16 %v26
  %v189 = vunpack.c.l.b16 %v27
  %v190 = vunpack.c.l.b16 %v28
  %v191 = vunpack.c.l.b16 %v29
  %v192 = vunpack.c.l.b16 %v30
  %v193 = vunpack.c.l.b16 %v31
  %v194 = vunpack.c.l.b16 %v32
  %v195 = vunpack.c.l.b16 %v33
  %v196 = vunpack.c.l.b16 %v34
  %v197 = vunpack.c.l.b16 %v35
  %v198 = vunpack.c.l.b16 %v36
  %v199 = vunpack.c.l.b16 %v37
  %v200 = vunpack.c.l.b16 %v38
  %v201 = vunpack.c.l.b16 %v39
  %v202 = vunpack.c.l.b16 %v40
  %v203 = vunpack.c.l.b16 %v41
  %v204 = vunpack.c.l.b16 %v42
  %v205 = vunpack.c.l.b16 %v43
  %v206 = vunpack.c.l.b16 %v44
  %v207 = vunpack.c.l.b16 %v45
  %v208 = vunpack.c.l.b16 %v46
  %v209 = vunpack.c.l.b16 %v47
  %v210 = vunpack.c.l.b16 %v48
  %v211 = vunpack.c.l.b16 %v49
  %v212 = vunpack.c.l.b16 %v50
  %v213 = vunpack.c.l.b16 %v51
  %v214 = vunpack.c.l.b16 %v52
  %v215 = vunpack.c.l.b16 %v53
  %v216 = vunpack.c.l.b16 %v54
  %v217 = vunpack.c.l.b16 %v55
  %v218 = vunpack.c.l.b16 %v56
  %v219 = vunpack.c.l.b16 %v57
  %v220 = vunpack.c.l.b16 %v58
  %v221 = vunpack.c.l.b16 %v59
  %v222 = vunpack.c.l.b16 %v60
  %v223 = vunpack.c.l.b16 %v61
  %v224 = vunpack.c.l.b16 %v62
  %v225 = vunpack.c.l.b16 %v63
  %v226 = vunpack.c.l.b16 %v64
  %v227 = vunpack.c.l.b16 %v65
  %v228 = vunpack.c.l.b16 %v66
  %v229 = vunpack.c.l.b16 %v67
  %v230 = vunpack.c.l.b16 %v68
  %v231 = vunpack.c.l.b16 %v69
  %v232 = vunpack.c.l.b16 %v70
  %v233 = vunpack.c.l.b16 %v71
  %v234 = vunpack.c.l.b16 %v72
  %v235 = vunpack.c.l.b16 %v73
  %v236 = vunpack.c.l.b16 %v74
  %v237 = vunpack.c.l.b16 %v75
  %v238 = vunpack.c.l.b16 %v76
  %v239 = vunpack.c.l.b16 %v77
  %v240 = vunpack.c.l.b16 %v78
  %v241 = vunpack.c.l.b16 %v79
  %v242 = vunpack.c.l.b16 %v80
  %v243 = vunpack.c.l.b16 %v81
  %v244 = vunpack.c.l.b16 %v82
  %v245 = vunpack.c.l.b16 %v83
  %v246 = vunpack.c.l.b16 %v84
  %v247 = vpack.c.b16 %v184, %v183
  %v248 = vpack.c.b16 %v186, %v185
  %v249 = vpack.c.b16 %v188, %v187
  %v250 = vpack.c.b16 %v190, %v189
  %v251 = vpack.c.b16 %v192, %v191
  %v252 = vpack.c.b16 %v194, %v193
  %v253 = vpack.c.b16 %v196, %v195
  %v254 = vpack.c.b16 %v198, %v197
  %v255 = vpack.c.b16 %v200, %v199
  %v256 = vpack.c.b16 %v202, %v201
  %v257 = vpack.c.b16 %v204, %v203
  %v258 = vpack.c.b16 %v206, %v205
  %v259 = vpack.c.b16 %v208, %v207
  %v260 = vpack.c.b16 %v210, %v209
  %v261 = vpack.c.b16 %v212, %v211
  %v262 = vpack.c.b16 %v214, %v213
  %v263 = vpack.c.b16 %v216, %v215
  %v264 = vpack.c.b16 %v218, %v217
  %v265 = vpack.c.b16 %v220, %v219
  %v266 = vpack.c.b16 %v222, %v221
  %v267 = vpack.c.b16 %v224, %v223
  %v268 = vpack.c.b16 %v226, %v225
  %v269 = vpack.c.b16 %v228, %v227
  %v270 = vpack.c.b16 %v230, %v229
  %v271 = vpack.c.b16 %v232, %v231
  %v272 = vpack.c.b16 %v234, %v233
  %v273 = vpack.c.b16 %v236, %v235
  %v274 = vpack.c.b16 %v238, %v237
  %v275 = vpack.c.b16 %v240, %v239
  %v276 = vpack.c.b16 %v242, %v241
  %v277 = vpack.c.b16 %v244, %v243
  %v278 = vpack.c.b16 %v246, %v245
  %311 = vmatprep.subr.bf16.mxu0 0
  %312 = vmatpush1.bf16.msra.mxu0 %v247
  %313 = vmatprep.subr.bf16.mxu0 0
  %314 = vmatpush1.bf16.msra.mxu0 %v248
  %315 = vmatprep.subr.bf16.mxu0 0
  %316 = vmatpush1.bf16.msra.mxu0 %v249
  %317 = vmatprep.subr.bf16.mxu0 0
  %318 = vmatpush1.bf16.msra.mxu0 %v250
  %319 = vmatprep.subr.bf16.mxu0 0
  %320 = vmatpush1.bf16.msra.mxu0 %v251
  %321 = vmatprep.subr.bf16.mxu0 0
  %322 = vmatpush1.bf16.msra.mxu0 %v252
  %323 = vmatprep.subr.bf16.mxu0 0
  %324 = vmatpush1.bf16.msra.mxu0 %v253
  %325 = vmatprep.subr.bf16.mxu0 0
  %326 = vmatpush1.bf16.msra.mxu0 %v254
  %327 = vmatprep.subr.bf16.mxu0 0
  %328 = vmatpush1.bf16.msra.mxu0 %v255
  %329 = vmatprep.subr.bf16.mxu0 0
  %330 = vmatpush1.bf16.msra.mxu0 %v256
  %331 = vmatprep.subr.bf16.mxu0 0
  %332 = vmatpush1.bf16.msra.mxu0 %v257
  %333 = vmatprep.subr.bf16.mxu0 0
  %334 = vmatpush1.bf16.msra.mxu0 %v258
  %335 = vmatprep.subr.bf16.mxu0 0
  %336 = vmatpush1.bf16.msra.mxu0 %v259
  %337 = vmatprep.subr.bf16.mxu0 0
  %338 = vmatpush1.bf16.msra.mxu0 %v260
  %339 = vmatprep.subr.bf16.mxu0 0
  %340 = vmatpush1.bf16.msra.mxu0 %v261
  %341 = vmatprep.subr.bf16.mxu0 0
  %342 = vmatpush1.bf16.msra.mxu0 %v262
  %343 = vmatprep.mubr.bf16.mxu0 %v104
  %344 = vmatmul.mubr.bf16.gmra.mrb[0].mxu0 %v103
  %v345 = vpop.f32.mrb[0].mxu0
  %v346 = vadd.f32 0.0, %v345
  %v347 = vpop.f32.mrb[0].mxu0
  %v348 = vpop.f32.mrb[0].mxu0
  %v349 = vadd.f32 0.0, %v348
  %v350 = vpop.f32.mrb[0].mxu0
  %351 = vmatprep.mubr.bf16.mxu0 %v108
  %352 = vmatmul.mubr.bf16.gmra.mrb[0].mxu0 %v107
  %v353 = vpop.f32.mrb[0].mxu0
  %v354 = vadd.f32 0.0, %v353
  %v355 = vpop.f32.mrb[0].mxu0
  %v356 = vpop.f32.mrb[0].mxu0
  %v357 = vpop.f32.mrb[0].mxu0
  %358 = vdwg.mxu0
  %359 = vmatprep.subr.bf16.mxu0 0
  %360 = vmatpush1.bf16.msra.mxu0 %v263
  %361 = vmatprep.subr.bf16.mxu0 0
  %362 = vmatpush1.bf16.msra.mxu0 %v264
  %363 = vmatprep.subr.bf16.mxu0 0
  %364 = vmatpush1.bf16.msra.mxu0 %v265
  %365 = vmatprep.subr.bf16.mxu0 0
  %366 = vmatpush1.bf16.msra.mxu0 %v266
  %367 = vmatprep.subr.bf16.mxu0 0
  %368 = vmatpush1.bf16.msra.mxu0 %v267
  %369 = vmatprep.subr.bf16.mxu0 0
  %370 = vmatpush1.bf16.msra.mxu0 %v268
  %371 = vmatprep.subr.bf16.mxu0 0
  %372 = vmatpush1.bf16.msra.mxu0 %v269
  %373 = vmatprep.subr.bf16.mxu0 0
  %374 = vmatpush1.bf16.msra.mxu0 %v270
  %375 = vmatprep.subr.bf16.mxu0 0
  %376 = vmatpush1.bf16.msra.mxu0 %v271
  %377 = vmatprep.subr.bf16.mxu0 0
  %378 = vmatpush1.bf16.msra.mxu0 %v272
  %379 = vmatprep.subr.bf16.mxu0 0
  %380 = vmatpush1.bf16.msra.mxu0 %v273
  %381 = vmatprep.subr.bf16.mxu0 0
  %382 = vmatpush1.bf16.msra.mxu0 %v274
  %383 = vmatprep.subr.bf16.mxu0 0
  %384 = vmatpush1.bf16.msra.mxu0 %v275
  %385 = vmatprep.subr.bf16.mxu0 0
  %386 = vmatpush1.bf16.msra.mxu0 %v276
  %387 = vmatprep.subr.bf16.mxu0 0
  %388 = vmatpush1.bf16.msra.mxu0 %v277
  %389 = vmatprep.subr.bf16.mxu0 0
  %390 = vmatpush1.bf16.msra.mxu0 %v278
  %391 = vmatprep.mubr.bf16.mxu0 %v106
  %392 = vmatmul.mubr.bf16.gmra.mrb[0].mxu0 %v105
  %v393 = vpop.f32.mrb[0].mxu0
  %v394 = vadd.f32 %v346, %v393
  %v395 = vpop.f32.mrb[0].mxu0
  %v396 = vpop.f32.mrb[0].mxu0
  %v397 = vadd.f32 %v349, %v396
  %v398 = vpop.f32.mrb[0].mxu0
  %399 = vmatprep.mubr.bf16.mxu0 %v110
  %400 = vmatmul.mubr.bf16.gmra.mrb[0].mxu0 %v109
  %v401 = vpop.f32.mrb[0].mxu0
  %v402 = vadd.f32 %v354, %v401
  %v403 = vpop.f32.mrb[0].mxu0
  %v404 = vpop.f32.mrb[0].mxu0
  %v405 = vpop.f32.mrb[0].mxu0
  %406 = vdwg.mxu0
  %s407 = scalar_lea.vmem %s0, 256
  %v408 = vld [vmem:[%s407] sm:$0xf]
  %v409 = vld [vmem:[%s407 + $0x4] sm:$0xf]
  %v410 = vld [vmem:[%s407 + $0x8] sm:$0xf]
  %v411 = vld [vmem:[%s407 + $0xc] sm:$0xf]
  %v412 = vld [vmem:[%s407 + $0x10] sm:$0xf]
  %v413 = vld [vmem:[%s407 + $0x14] sm:$0xf]
  %v414 = vld [vmem:[%s407 + $0x18] sm:$0xf]
  %v415 = vld [vmem:[%s407 + $0x1c] sm:$0xf]
  %v416 = vld [vmem:[%s407 + $0x20] sm:$0xf]
  %v417 = vld [vmem:[%s407 + $0x24] sm:$0xf]
  %v418 = vld [vmem:[%s407 + $0x28] sm:$0xf]
  %v419 = vld [vmem:[%s407 + $0x2c] sm:$0xf]
  %v420 = vld [vmem:[%s407 + $0x30] sm:$0xf]
  %v421 = vld [vmem:[%s407 + $0x34] sm:$0xf]
  %v422 = vld [vmem:[%s407 + $0x38] sm:$0xf]
  %v423 = vld [vmem:[%s407 + $0x3c] sm:$0xf]
  %v424 = vld [vmem:[%s407 + $0x40] sm:$0xf]
  %v425 = vld [vmem:[%s407 + $0x44] sm:$0xf]
  %v426 = vld [vmem:[%s407 + $0x48] sm:$0xf]
  %v427 = vld [vmem:[%s407 + $0x4c] sm:$0xf]
  %v428 = vld [vmem:[%s407 + $0x50] sm:$0xf]
  %v429 = vld [vmem:[%s407 + $0x54] sm:$0xf]
  %v430 = vld [vmem:[%s407 + $0x58] sm:$0xf]
  %v431 = vld [vmem:[%s407 + $0x5c] sm:$0xf]
  %v432 = vld [vmem:[%s407 + $0x60] sm:$0xf]
  %v433 = vld [vmem:[%s407 + $0x64] sm:$0xf]
  %v434 = vld [vmem:[%s407 + $0x68] sm:$0xf]
  %v435 = vld [vmem:[%s407 + $0x6c] sm:$0xf]
  %v436 = vld [vmem:[%s407 + $0x70] sm:$0xf]
  %v437 = vld [vmem:[%s407 + $0x74] sm:$0xf]
  %v438 = vld [vmem:[%s407 + $0x78] sm:$0xf]
  %v439 = vld [vmem:[%s407 + $0x7c] sm:$0xf]
  %v440 = vld [vmem:[%s407 + $0x80] sm:$0xf]
  %v441 = vld [vmem:[%s407 + $0x84] sm:$0xf]
  %v442 = vld [vmem:[%s407 + $0x88] sm:$0xf]
  %v443 = vld [vmem:[%s407 + $0x8c] sm:$0xf]
  %v444 = vld [vmem:[%s407 + $0x90] sm:$0xf]
  %v445 = vld [vmem:[%s407 + $0x94] sm:$0xf]
  %v446 = vld [vmem:[%s407 + $0x98] sm:$0xf]
  %v447 = vld [vmem:[%s407 + $0x9c] sm:$0xf]
  %v448 = vld [vmem:[%s407 + $0xa0] sm:$0xf]
  %v449 = vld [vmem:[%s407 + $0xa4] sm:$0xf]
  %v450 = vld [vmem:[%s407 + $0xa8] sm:$0xf]
  %v451 = vld [vmem:[%s407 + $0xac] sm:$0xf]
  %v452 = vld [vmem:[%s407 + $0xb0] sm:$0xf]
  %v453 = vld [vmem:[%s407 + $0xb4] sm:$0xf]
  %v454 = vld [vmem:[%s407 + $0xb8] sm:$0xf]
  %v455 = vld [vmem:[%s407 + $0xbc] sm:$0xf]
  %v456 = vld [vmem:[%s407 + $0xc0] sm:$0xf]
  %v457 = vld [vmem:[%s407 + $0xc4] sm:$0xf]
  %v458 = vld [vmem:[%s407 + $0xc8] sm:$0xf]
  %v459 = vld [vmem:[%s407 + $0xcc] sm:$0xf]
  %v460 = vld [vmem:[%s407 + $0xd0] sm:$0xf]
  %v461 = vld [vmem:[%s407 + $0xd4] sm:$0xf]
  %v462 = vld [vmem:[%s407 + $0xd8] sm:$0xf]
  %v463 = vld [vmem:[%s407 + $0xdc] sm:$0xf]
  %v464 = vld [vmem:[%s407 + $0xe0] sm:$0xf]
  %v465 = vld [vmem:[%s407 + $0xe4] sm:$0xf]
  %v466 = vld [vmem:[%s407 + $0xe8] sm:$0xf]
  %v467 = vld [vmem:[%s407 + $0xec] sm:$0xf]
  %v468 = vld [vmem:[%s407 + $0xf0] sm:$0xf]
  %v469 = vld [vmem:[%s407 + $0xf4] sm:$0xf]
  %v470 = vld [vmem:[%s407 + $0xf8] sm:$0xf]
  %v471 = vld [vmem:[%s407 + $0xfc] sm:$0xf]
  %v536 = vunpack.c.l.b16 %v408
  %v537 = vunpack.c.l.b16 %v409
  %v538 = vunpack.c.l.b16 %v410
  %v539 = vunpack.c.l.b16 %v411
  %v540 = vunpack.c.l.b16 %v412
  %v541 = vunpack.c.l.b16 %v413
  %v542 = vunpack.c.l.b16 %v414
  %v543 = vunpack.c.l.b16 %v415
  %v544 = vunpack.c.l.b16 %v416
  %v545 = vunpack.c.l.b16 %v417
  %v546 = vunpack.c.l.b16 %v418
  %v547 = vunpack.c.l.b16 %v419
  %v548 = vunpack.c.l.b16 %v420
  %v549 = vunpack.c.l.b16 %v421
  %v550 = vunpack.c.l.b16 %v422
  %v551 = vunpack.c.l.b16 %v423
  %v552 = vunpack.c.l.b16 %v424
  %v553 = vunpack.c.l.b16 %v425
  %v554 = vunpack.c.l.b16 %v426
  %v555 = vunpack.c.l.b16 %v427
  %v556 = vunpack.c.l.b16 %v428
  %v557 = vunpack.c.l.b16 %v429
  %v558 = vunpack.c.l.b16 %v430
  %v559 = vunpack.c.l.b16 %v431
  %v560 = vunpack.c.l.b16 %v432
  %v561 = vunpack.c.l.b16 %v433
  %v562 = vunpack.c.l.b16 %v434
  %v563 = vunpack.c.l.b16 %v435
  %v564 = vunpack.c.l.b16 %v436
  %v565 = vunpack.c.l.b16 %v437
  %v566 = vunpack.c.l.b16 %v438
  %v567 = vunpack.c.l.b16 %v439
  %v568 = vunpack.c.l.b16 %v440
  %v569 = vunpack.c.l.b16 %v441
  %v570 = vunpack.c.l.b16 %v442
  %v571 = vunpack.c.l.b16 %v443
  %v572 = vunpack.c.l.b16 %v444
  %v573 = vunpack.c.l.b16 %v445
  %v574 = vunpack.c.l.b16 %v446
  %v575 = vunpack.c.l.b16 %v447
  %v576 = vunpack.c.l.b16 %v448
  %v577 = vunpack.c.l.b16 %v449
  %v578 = vunpack.c.l.b16 %v450
  %v579 = vunpack.c.l.b16 %v451
  %v580 = vunpack.c.l.b16 %v452
  %v581 = vunpack.c.l.b16 %v453
  %v582 = vunpack.c.l.b16 %v454
  %v583 = vunpack.c.l.b16 %v455
  %v584 = vunpack.c.l.b16 %v456
  %v585 = vunpack.c.l.b16 %v457
  %v586 = vunpack.c.l.b16 %v458
  %v587 = vunpack.c.l.b16 %v459
  %v588 = vunpack.c.l.b16 %v460
  %v589 = vunpack.c.l.b16 %v461
  %v590 = vunpack.c.l.b16 %v462
  %v591 = vunpack.c.l.b16 %v463
  %v592 = vunpack.c.l.b16 %v464
  %v593 = vunpack.c.l.b16 %v465
  %v594 = vunpack.c.l.b16 %v466
  %v595 = vunpack.c.l.b16 %v467
  %v596 = vunpack.c.l.b16 %v468
  %v597 = vunpack.c.l.b16 %v469
  %v598 = vunpack.c.l.b16 %v470
  %v599 = vunpack.c.l.b16 %v471
  %v600 = vpack.c.b16 %v537, %v536
  %v601 = vpack.c.b16 %v539, %v538
  %v602 = vpack.c.b16 %v541, %v540
  %v603 = vpack.c.b16 %v543, %v542
  %v604 = vpack.c.b16 %v545, %v544
  %v605 = vpack.c.b16 %v547, %v546
  %v606 = vpack.c.b16 %v549, %v548
  %v607 = vpack.c.b16 %v551, %v550
  %v608 = vpack.c.b16 %v553, %v552
  %v609 = vpack.c.b16 %v555, %v554
  %v610 = vpack.c.b16 %v557, %v556
  %v611 = vpack.c.b16 %v559, %v558
  %v612 = vpack.c.b16 %v561, %v560
  %v613 = vpack.c.b16 %v563, %v562
  %v614 = vpack.c.b16 %v565, %v564
  %v615 = vpack.c.b16 %v567, %v566
  %v616 = vpack.c.b16 %v569, %v568
  %v617 = vpack.c.b16 %v571, %v570
  %v618 = vpack.c.b16 %v573, %v572
  %v619 = vpack.c.b16 %v575, %v574
  %v620 = vpack.c.b16 %v577, %v576
  %v621 = vpack.c.b16 %v579, %v578
  %v622 = vpack.c.b16 %v581, %v580
  %v623 = vpack.c.b16 %v583, %v582
  %v624 = vpack.c.b16 %v585, %v584
  %v625 = vpack.c.b16 %v587, %v586
  %v626 = vpack.c.b16 %v589, %v588
  %v627 = vpack.c.b16 %v591, %v590
  %v628 = vpack.c.b16 %v593, %v592
  %v629 = vpack.c.b16 %v595, %v594
  %v630 = vpack.c.b16 %v597, %v596
  %v631 = vpack.c.b16 %v599, %v598
  %664 = vmatprep.subr.bf16.mxu0 0
  %665 = vmatpush1.bf16.msra.mxu0 %v600
  %666 = vmatprep.subr.bf16.mxu0 0
  %667 = vmatpush1.bf16.msra.mxu0 %v601
  %668 = vmatprep.subr.bf16.mxu0 0
  %669 = vmatpush1.bf16.msra.mxu0 %v602
  %670 = vmatprep.subr.bf16.mxu0 0
  %671 = vmatpush1.bf16.msra.mxu0 %v603
  %672 = vmatprep.subr.bf16.mxu0 0
  %673 = vmatpush1.bf16.msra.mxu0 %v604
  %674 = vmatprep.subr.bf16.mxu0 0
  %675 = vmatpush1.bf16.msra.mxu0 %v605
  %676 = vmatprep.subr.bf16.mxu0 0
  %677 = vmatpush1.bf16.msra.mxu0 %v606
  %678 = vmatprep.subr.bf16.mxu0 0
  %679 = vmatpush1.bf16.msra.mxu0 %v607
  %680 = vmatprep.subr.bf16.mxu0 0
  %681 = vmatpush1.bf16.msra.mxu0 %v608
  %682 = vmatprep.subr.bf16.mxu0 0
  %683 = vmatpush1.bf16.msra.mxu0 %v609
  %684 = vmatprep.subr.bf16.mxu0 0
  %685 = vmatpush1.bf16.msra.mxu0 %v610
  %686 = vmatprep.subr.bf16.mxu0 0
  %687 = vmatpush1.bf16.msra.mxu0 %v611
  %688 = vmatprep.subr.bf16.mxu0 0
  %689 = vmatpush1.bf16.msra.mxu0 %v612
  %690 = vmatprep.subr.bf16.mxu0 0
  %691 = vmatpush1.bf16.msra.mxu0 %v613
  %692 = vmatprep.subr.bf16.mxu0 0
  %693 = vmatpush1.bf16.msra.mxu0 %v614
  %694 = vmatprep.subr.bf16.mxu0 0
  %695 = vmatpush1.bf16.msra.mxu0 %v615
  %696 = vmatprep.mubr.bf16.mxu0 %v104
  %697 = vmatmul.mubr.bf16.gmra.mrb[0].mxu0 %v103
  %v698 = vpop.f32.mrb[0].mxu0
  %v699 = vadd.f32 0.0, %v698
  %v700 = vpop.f32.mrb[0].mxu0
  %v701 = vpop.f32.mrb[0].mxu0
  %v702 = vadd.f32 0.0, %v701
  %v703 = vpop.f32.mrb[0].mxu0
  %704 = vmatprep.mubr.bf16.mxu0 %v108
  %705 = vmatmul.mubr.bf16.gmra.mrb[0].mxu0 %v107
  %v706 = vpop.f32.mrb[0].mxu0
  %v707 = vadd.f32 0.0, %v706
  %v708 = vpop.f32.mrb[0].mxu0
  %v709 = vpop.f32.mrb[0].mxu0
  %v710 = vpop.f32.mrb[0].mxu0
  %711 = vdwg.mxu0
  %712 = vmatprep.subr.bf16.mxu0 0
  %713 = vmatpush1.bf16.msra.mxu0 %v616
  %714 = vmatprep.subr.bf16.mxu0 0
  %715 = vmatpush1.bf16.msra.mxu0 %v617
  %716 = vmatprep.subr.bf16.mxu0 0
  %717 = vmatpush1.bf16.msra.mxu0 %v618
  %718 = vmatprep.subr.bf16.mxu0 0
  %719 = vmatpush1.bf16.msra.mxu0 %v619
  %720 = vmatprep.subr.bf16.mxu0 0
  %721 = vmatpush1.bf16.msra.mxu0 %v620
  %722 = vmatprep.subr.bf16.mxu0 0
  %723 = vmatpush1.bf16.msra.mxu0 %v621
  %724 = vmatprep.subr.bf16.mxu0 0
  %725 = vmatpush1.bf16.msra.mxu0 %v622
  %726 = vmatprep.subr.bf16.mxu0 0
  %727 = vmatpush1.bf16.msra.mxu0 %v623
  %728 = vmatprep.subr.bf16.mxu0 0
  %729 = vmatpush1.bf16.msra.mxu0 %v624
  %730 = vmatprep.subr.bf16.mxu0 0
  %731 = vmatpush1.bf16.msra.mxu0 %v625
  %732 = vmatprep.subr.bf16.mxu0 0
  %733 = vmatpush1.bf16.msra.mxu0 %v626
  %734 = vmatprep.subr.bf16.mxu0 0
  %735 = vmatpush1.bf16.msra.mxu0 %v627
  %736 = vmatprep.subr.bf16.mxu0 0
  %737 = vmatpush1.bf16.msra.mxu0 %v628
  %738 = vmatprep.subr.bf16.mxu0 0
  %739 = vmatpush1.bf16.msra.mxu0 %v629
  %740 = vmatprep.subr.bf16.mxu0 0
  %741 = vmatpush1.bf16.msra.mxu0 %v630
  %742 = vmatprep.subr.bf16.mxu0 0
  %743 = vmatpush1.bf16.msra.mxu0 %v631
  %744 = vmatprep.mubr.bf16.mxu0 %v106
  %745 = vmatmul.mubr.bf16.gmra.mrb[0].mxu0 %v105
  %v746 = vpop.f32.mrb[0].mxu0
  %v747 = vadd.f32 %v699, %v746
  %v748 = vpop.f32.mrb[0].mxu0
  %v749 = vpop.f32.mrb[0].mxu0
  %v750 = vadd.f32 %v702, %v749
  %v751 = vpop.f32.mrb[0].mxu0
  %752 = vmatprep.mubr.bf16.mxu0 %v110
  %753 = vmatmul.mubr.bf16.gmra.mrb[0].mxu0 %v109
  %v754 = vpop.f32.mrb[0].mxu0
  %v755 = vadd.f32 %v707, %v754
  %v756 = vpop.f32.mrb[0].mxu0
  %v757 = vpop.f32.mrb[0].mxu0
  %v758 = vpop.f32.mrb[0].mxu0
  %759 = vdwg.mxu0
  %v760 = vmax.f32 %v394, %v747
  %v761 = vmax.f32 %v397, %v750
  %v762 = vmax.f32 %v402, %v755
  %s763 = scalar_lea.vmem %s0, 512
  %v764 = vld [vmem:[%s763] sm:$0xf]
  %v765 = vld [vmem:[%s763 + $0x4] sm:$0xf]
  %v766 = vld [vmem:[%s763 + $0x8] sm:$0xf]
  %v767 = vld [vmem:[%s763 + $0xc] sm:$0xf]
  %v768 = vld [vmem:[%s763 + $0x10] sm:$0xf]
  %v769 = vld [vmem:[%s763 + $0x14] sm:$0xf]
  %v770 = vld [vmem:[%s763 + $0x18] sm:$0xf]
  %v771 = vld [vmem:[%s763 + $0x1c] sm:$0xf]
  %v772 = vld [vmem:[%s763 + $0x20] sm:$0xf]
  %v773 = vld [vmem:[%s763 + $0x24] sm:$0xf]
  %v774 = vld [vmem:[%s763 + $0x28] sm:$0xf]
  %v775 = vld [vmem:[%s763 + $0x2c] sm:$0xf]
  %v776 = vld [vmem:[%s763 + $0x30] sm:$0xf]
  %v777 = vld [vmem:[%s763 + $0x34] sm:$0xf]
  %v778 = vld [vmem:[%s763 + $0x38] sm:$0xf]
  %v779 = vld [vmem:[%s763 + $0x3c] sm:$0xf]
  %v780 = vld [vmem:[%s763 + $0x40] sm:$0xf]
  %v781 = vld [vmem:[%s763 + $0x44] sm:$0xf]
  %v782 = vld [vmem:[%s763 + $0x48] sm:$0xf]
  %v783 = vld [vmem:[%s763 + $0x4c] sm:$0xf]
  %v784 = vld [vmem:[%s763 + $0x50] sm:$0xf]
  %v785 = vld [vmem:[%s763 + $0x54] sm:$0xf]
  %v786 = vld [vmem:[%s763 + $0x58] sm:$0xf]
  %v787 = vld [vmem:[%s763 + $0x5c] sm:$0xf]
  %v788 = vld [vmem:[%s763 + $0x60] sm:$0xf]
  %v789 = vld [vmem:[%s763 + $0x64] sm:$0xf]
  %v790 = vld [vmem:[%s763 + $0x68] sm:$0xf]
  %v791 = vld [vmem:[%s763 + $0x6c] sm:$0xf]
  %v792 = vld [vmem:[%s763 + $0x70] sm:$0xf]
  %v793 = vld [vmem:[%s763 + $0x74] sm:$0xf]
  %v794 = vld [vmem:[%s763 + $0x78] sm:$0xf]
  %v795 = vld [vmem:[%s763 + $0x7c] sm:$0xf]
  %v796 = vld [vmem:[%s763 + $0x80] sm:$0xf]
  %v797 = vld [vmem:[%s763 + $0x84] sm:$0xf]
  %v798 = vld [vmem:[%s763 + $0x88] sm:$0xf]
  %v799 = vld [vmem:[%s763 + $0x8c] sm:$0xf]
  %v800 = vld [vmem:[%s763 + $0x90] sm:$0xf]
  %v801 = vld [vmem:[%s763 + $0x94] sm:$0xf]
  %v802 = vld [vmem:[%s763 + $0x98] sm:$0xf]
  %v803 = vld [vmem:[%s763 + $0x9c] sm:$0xf]
  %v804 = vld [vmem:[%s763 + $0xa0] sm:$0xf]
  %v805 = vld [vmem:[%s763 + $0xa4] sm:$0xf]
  %v806 = vld [vmem:[%s763 + $0xa8] sm:$0xf]
  %v807 = vld [vmem:[%s763 + $0xac] sm:$0xf]
  %v808 = vld [vmem:[%s763 + $0xb0] sm:$0xf]
  %v809 = vld [vmem:[%s763 + $0xb4] sm:$0xf]
  %v810 = vld [vmem:[%s763 + $0xb8] sm:$0xf]
  %v811 = vld [vmem:[%s763 + $0xbc] sm:$0xf]
  %v812 = vld [vmem:[%s763 + $0xc0] sm:$0xf]
  %v813 = vld [vmem:[%s763 + $0xc4] sm:$0xf]
  %v814 = vld [vmem:[%s763 + $0xc8] sm:$0xf]
  %v815 = vld [vmem:[%s763 + $0xcc] sm:$0xf]
  %v816 = vld [vmem:[%s763 + $0xd0] sm:$0xf]
  %v817 = vld [vmem:[%s763 + $0xd4] sm:$0xf]
  %v818 = vld [vmem:[%s763 + $0xd8] sm:$0xf]
  %v819 = vld [vmem:[%s763 + $0xdc] sm:$0xf]
  %v820 = vld [vmem:[%s763 + $0xe0] sm:$0xf]
  %v821 = vld [vmem:[%s763 + $0xe4] sm:$0xf]
  %v822 = vld [vmem:[%s763 + $0xe8] sm:$0xf]
  %v823 = vld [vmem:[%s763 + $0xec] sm:$0xf]
  %v824 = vld [vmem:[%s763 + $0xf0] sm:$0xf]
  %v825 = vld [vmem:[%s763 + $0xf4] sm:$0xf]
  %v826 = vld [vmem:[%s763 + $0xf8] sm:$0xf]
  %v827 = vld [vmem:[%s763 + $0xfc] sm:$0xf]
  %v892 = vunpack.c.l.b16 %v764
  %v893 = vunpack.c.l.b16 %v765
  %v894 = vunpack.c.l.b16 %v766
  %v895 = vunpack.c.l.b16 %v767
  %v896 = vunpack.c.l.b16 %v768
  %v897 = vunpack.c.l.b16 %v769
  %v898 = vunpack.c.l.b16 %v770
  %v899 = vunpack.c.l.b16 %v771
  %v900 = vunpack.c.l.b16 %v772
  %v901 = vunpack.c.l.b16 %v773
  %v902 = vunpack.c.l.b16 %v774
  %v903 = vunpack.c.l.b16 %v775
  %v904 = vunpack.c.l.b16 %v776
  %v905 = vunpack.c.l.b16 %v777
  %v906 = vunpack.c.l.b16 %v778
  %v907 = vunpack.c.l.b16 %v779
  %v908 = vunpack.c.l.b16 %v780
  %v909 = vunpack.c.l.b16 %v781
  %v910 = vunpack.c.l.b16 %v782
  %v911 = vunpack.c.l.b16 %v783
  %v912 = vunpack.c.l.b16 %v784
  %v913 = vunpack.c.l.b16 %v785
  %v914 = vunpack.c.l.b16 %v786
  %v915 = vunpack.c.l.b16 %v787
  %v916 = vunpack.c.l.b16 %v788
  %v917 = vunpack.c.l.b16 %v789
  %v918 = vunpack.c.l.b16 %v790
  %v919 = vunpack.c.l.b16 %v791
  %v920 = vunpack.c.l.b16 %v792
  %v921 = vunpack.c.l.b16 %v793
  %v922 = vunpack.c.l.b16 %v794
  %v923 = vunpack.c.l.b16 %v795
  %v924 = vunpack.c.l.b16 %v796
  %v925 = vunpack.c.l.b16 %v797
  %v926 = vunpack.c.l.b16 %v798
  %v927 = vunpack.c.l.b16 %v799
  %v928 = vunpack.c.l.b16 %v800
  %v929 = vunpack.c.l.b16 %v801
  %v930 = vunpack.c.l.b16 %v802
  %v931 = vunpack.c.l.b16 %v803
  %v932 = vunpack.c.l.b16 %v804
  %v933 = vunpack.c.l.b16 %v805
  %v934 = vunpack.c.l.b16 %v806
  %v935 = vunpack.c.l.b16 %v807
  %v936 = vunpack.c.l.b16 %v808
  %v937 = vunpack.c.l.b16 %v809
  %v938 = vunpack.c.l.b16 %v810
  %v939 = vunpack.c.l.b16 %v811
  %v940 = vunpack.c.l.b16 %v812
  %v941 = vunpack.c.l.b16 %v813
  %v942 = vunpack.c.l.b16 %v814
  %v943 = vunpack.c.l.b16 %v815
  %v944 = vunpack.c.l.b16 %v816
  %v945 = vunpack.c.l.b16 %v817
  %v946 = vunpack.c.l.b16 %v818
  %v947 = vunpack.c.l.b16 %v819
  %v948 = vunpack.c.l.b16 %v820
  %v949 = vunpack.c.l.b16 %v821
  %v950 = vunpack.c.l.b16 %v822
  %v951 = vunpack.c.l.b16 %v823
  %v952 = vunpack.c.l.b16 %v824
  %v953 = vunpack.c.l.b16 %v825
  %v954 = vunpack.c.l.b16 %v826
  %v955 = vunpack.c.l.b16 %v827
  %v956 = vpack.c.b16 %v893, %v892
  %v957 = vpack.c.b16 %v895, %v894
  %v958 = vpack.c.b16 %v897, %v896
  %v959 = vpack.c.b16 %v899, %v898
  %v960 = vpack.c.b16 %v901, %v900
  %v961 = vpack.c.b16 %v903, %v902
  %v962 = vpack.c.b16 %v905, %v904
  %v963 = vpack.c.b16 %v907, %v906
  %v964 = vpack.c.b16 %v909, %v908
  %v965 = vpack.c.b16 %v911, %v910
  %v966 = vpack.c.b16 %v913, %v912
  %v967 = vpack.c.b16 %v915, %v914
  %v968 = vpack.c.b16 %v917, %v916
  %v969 = vpack.c.b16 %v919, %v918
  %v970 = vpack.c.b16 %v921, %v920
  %v971 = vpack.c.b16 %v923, %v922
  %v972 = vpack.c.b16 %v925, %v924
  %v973 = vpack.c.b16 %v927, %v926
  %v974 = vpack.c.b16 %v929, %v928
  %v975 = vpack.c.b16 %v931, %v930
  %v976 = vpack.c.b16 %v933, %v932
  %v977 = vpack.c.b16 %v935, %v934
  %v978 = vpack.c.b16 %v937, %v936
  %v979 = vpack.c.b16 %v939, %v938
  %v980 = vpack.c.b16 %v941, %v940
  %v981 = vpack.c.b16 %v943, %v942
  %v982 = vpack.c.b16 %v945, %v944
  %v983 = vpack.c.b16 %v947, %v946
  %v984 = vpack.c.b16 %v949, %v948
  %v985 = vpack.c.b16 %v951, %v950
  %v986 = vpack.c.b16 %v953, %v952
  %v987 = vpack.c.b16 %v955, %v954
  %1020 = vmatprep.subr.bf16.mxu0 0
  %1021 = vmatpush1.bf16.msra.mxu0 %v956
  %1022 = vmatprep.subr.bf16.mxu0 0
  %1023 = vmatpush1.bf16.msra.mxu0 %v957
  %1024 = vmatprep.subr.bf16.mxu0 0
  %1025 = vmatpush1.bf16.msra.mxu0 %v958
  %1026 = vmatprep.subr.bf16.mxu0 0
  %1027 = vmatpush1.bf16.msra.mxu0 %v959
  %1028 = vmatprep.subr.bf16.mxu0 0
  %1029 = vmatpush1.bf16.msra.mxu0 %v960
  %1030 = vmatprep.subr.bf16.mxu0 0
  %1031 = vmatpush1.bf16.msra.mxu0 %v961
  %1032 = vmatprep.subr.bf16.mxu0 0
  %1033 = vmatpush1.bf16.msra.mxu0 %v962
  %1034 = vmatprep.subr.bf16.mxu0 0
  %1035 = vmatpush1.bf16.msra.mxu0 %v963
  %1036 = vmatprep.subr.bf16.mxu0 0
  %1037 = vmatpush1.bf16.msra.mxu0 %v964
  %1038 = vmatprep.subr.bf16.mxu0 0
  %1039 = vmatpush1.bf16.msra.mxu0 %v965
  %1040 = vmatprep.subr.bf16.mxu0 0
  %1041 = vmatpush1.bf16.msra.mxu0 %v966
  %1042 = vmatprep.subr.bf16.mxu0 0
  %1043 = vmatpush1.bf16.msra.mxu0 %v967
  %1044 = vmatprep.subr.bf16.mxu0 0
  %1045 = vmatpush1.bf16.msra.mxu0 %v968
  %1046 = vmatprep.subr.bf16.mxu0 0
  %1047 = vmatpush1.bf16.msra.mxu0 %v969
  %1048 = vmatprep.subr.bf16.mxu0 0
  %1049 = vmatpush1.bf16.msra.mxu0 %v970
  %1050 = vmatprep.subr.bf16.mxu0 0
  %1051 = vmatpush1.bf16.msra.mxu0 %v971
  %1052 = vmatprep.mubr.bf16.mxu0 %v104
  %1053 = vmatmul.mubr.bf16.gmra.mrb[0].mxu0 %v103
  %v1054 = vpop.f32.mrb[0].mxu0
  %v1055 = vadd.f32 0.0, %v1054
  %v1056 = vpop.f32.mrb[0].mxu0
  %v1057 = vpop.f32.mrb[0].mxu0
  %v1058 = vadd.f32 0.0, %v1057
  %v1059 = vpop.f32.mrb[0].mxu0
  %1060 = vmatprep.mubr.bf16.mxu0 %v108
  %1061 = vmatmul.mubr.bf16.gmra.mrb[0].mxu0 %v107
  %v1062 = vpop.f32.mrb[0].mxu0
  %v1063 = vadd.f32 0.0, %v1062
  %v1064 = vpop.f32.mrb[0].mxu0
  %v1065 = vpop.f32.mrb[0].mxu0
  %v1066 = vpop.f32.mrb[0].mxu0
  %1067 = vdwg.mxu0
  %1068 = vmatprep.subr.bf16.mxu0 0
  %1069 = vmatpush1.bf16.msra.mxu0 %v972
  %1070 = vmatprep.subr.bf16.mxu0 0
  %1071 = vmatpush1.bf16.msra.mxu0 %v973
  %1072 = vmatprep.subr.bf16.mxu0 0
  %1073 = vmatpush1.bf16.msra.mxu0 %v974
  %1074 = vmatprep.subr.bf16.mxu0 0
  %1075 = vmatpush1.bf16.msra.mxu0 %v975
  %1076 = vmatprep.subr.bf16.mxu0 0
  %1077 = vmatpush1.bf16.msra.mxu0 %v976
  %1078 = vmatprep.subr.bf16.mxu0 0
  %1079 = vmatpush1.bf16.msra.mxu0 %v977
  %1080 = vmatprep.subr.bf16.mxu0 0
  %1081 = vmatpush1.bf16.msra.mxu0 %v978
  %1082 = vmatprep.subr.bf16.mxu0 0
  %1083 = vmatpush1.bf16.msra.mxu0 %v979
  %1084 = vmatprep.subr.bf16.mxu0 0
  %1085 = vmatpush1.bf16.msra.mxu0 %v980
  %1086 = vmatprep.subr.bf16.mxu0 0
  %1087 = vmatpush1.bf16.msra.mxu0 %v981
  %1088 = vmatprep.subr.bf16.mxu0 0
  %1089 = vmatpush1.bf16.msra.mxu0 %v982
  %1090 = vmatprep.subr.bf16.mxu0 0
  %1091 = vmatpush1.bf16.msra.mxu0 %v983
  %1092 = vmatprep.subr.bf16.mxu0 0
  %1093 = vmatpush1.bf16.msra.mxu0 %v984
  %1094 = vmatprep.subr.bf16.mxu0 0
  %1095 = vmatpush1.bf16.msra.mxu0 %v985
  %1096 = vmatprep.subr.bf16.mxu0 0
  %1097 = vmatpush1.bf16.msra.mxu0 %v986
  %1098 = vmatprep.subr.bf16.mxu0 0
  %1099 = vmatpush1.bf16.msra.mxu0 %v987
  %1100 = vmatprep.mubr.bf16.mxu0 %v106
  %1101 = vmatmul.mubr.bf16.gmra.mrb[0].mxu0 %v105
  %v1102 = vpop.f32.mrb[0].mxu0
  %v1103 = vadd.f32 %v1055, %v1102
  %v1104 = vpop.f32.mrb[0].mxu0
  %v1105 = vpop.f32.mrb[0].mxu0
  %v1106 = vadd.f32 %v1058, %v1105
  %v1107 = vpop.f32.mrb[0].mxu0
  %1108 = vmatprep.mubr.bf16.mxu0 %v110
  %1109 = vmatmul.mubr.bf16.gmra.mrb[0].mxu0 %v109
  %v1110 = vpop.f32.mrb[0].mxu0
  %v1111 = vadd.f32 %v1063, %v1110
  %v1112 = vpop.f32.mrb[0].mxu0
  %v1113 = vpop.f32.mrb[0].mxu0
  %v1114 = vpop.f32.mrb[0].mxu0
  %1115 = vdwg.mxu0
  %v1116 = vmax.f32 %v760, %v1103
  %v1117 = vmax.f32 %v761, %v1106
  %v1118 = vmax.f32 %v762, %v1111
  %s1119 = scalar_lea.vmem %s0, 768
  %v1120 = vld [vmem:[%s1119] sm:$0xf]
  %v1121 = vld [vmem:[%s1119 + $0x4] sm:$0xf]
  %v1122 = vld [vmem:[%s1119 + $0x8] sm:$0xf]
  %v1123 = vld [vmem:[%s1119 + $0xc] sm:$0xf]
  %v1124 = vld [vmem:[%s1119 + $0x10] sm:$0xf]
  %v1125 = vld [vmem:[%s1119 + $0x14] sm:$0xf]
  %v1126 = vld [vmem:[%s1119 + $0x18] sm:$0xf]
  %v1127 = vld [vmem:[%s1119 + $0x1c] sm:$0xf]
  %v1128 = vld [vmem:[%s1119 + $0x20] sm:$0xf]
  %v1129 = vld [vmem:[%s1119 + $0x24] sm:$0xf]
  %v1130 = vld [vmem:[%s1119 + $0x28] sm:$0xf]
  %v1131 = vld [vmem:[%s1119 + $0x2c] sm:$0xf]
  %v1132 = vld [vmem:[%s1119 + $0x30] sm:$0xf]
  %v1133 = vld [vmem:[%s1119 + $0x34] sm:$0xf]
  %v1134 = vld [vmem:[%s1119 + $0x38] sm:$0xf]
  %v1135 = vld [vmem:[%s1119 + $0x3c] sm:$0xf]
  %v1136 = vld [vmem:[%s1119 + $0x40] sm:$0xf]
  %v1137 = vld [vmem:[%s1119 + $0x44] sm:$0xf]
  %v1138 = vld [vmem:[%s1119 + $0x48] sm:$0xf]
  %v1139 = vld [vmem:[%s1119 + $0x4c] sm:$0xf]
  %v1140 = vld [vmem:[%s1119 + $0x50] sm:$0xf]
  %v1141 = vld [vmem:[%s1119 + $0x54] sm:$0xf]
  %v1142 = vld [vmem:[%s1119 + $0x58] sm:$0xf]
  %v1143 = vld [vmem:[%s1119 + $0x5c] sm:$0xf]
  %v1144 = vld [vmem:[%s1119 + $0x60] sm:$0xf]
  %v1145 = vld [vmem:[%s1119 + $0x64] sm:$0xf]
  %v1146 = vld [vmem:[%s1119 + $0x68] sm:$0xf]
  %v1147 = vld [vmem:[%s1119 + $0x6c] sm:$0xf]
  %v1148 = vld [vmem:[%s1119 + $0x70] sm:$0xf]
  %v1149 = vld [vmem:[%s1119 + $0x74] sm:$0xf]
  %v1150 = vld [vmem:[%s1119 + $0x78] sm:$0xf]
  %v1151 = vld [vmem:[%s1119 + $0x7c] sm:$0xf]
  %v1152 = vld [vmem:[%s1119 + $0x80] sm:$0xf]
  %v1153 = vld [vmem:[%s1119 + $0x84] sm:$0xf]
  %v1154 = vld [vmem:[%s1119 + $0x88] sm:$0xf]
  %v1155 = vld [vmem:[%s1119 + $0x8c] sm:$0xf]
  %v1156 = vld [vmem:[%s1119 + $0x90] sm:$0xf]
  %v1157 = vld [vmem:[%s1119 + $0x94] sm:$0xf]
  %v1158 = vld [vmem:[%s1119 + $0x98] sm:$0xf]
  %v1159 = vld [vmem:[%s1119 + $0x9c] sm:$0xf]
  %v1160 = vld [vmem:[%s1119 + $0xa0] sm:$0xf]
  %v1161 = vld [vmem:[%s1119 + $0xa4] sm:$0xf]
  %v1162 = vld [vmem:[%s1119 + $0xa8] sm:$0xf]
  %v1163 = vld [vmem:[%s1119 + $0xac] sm:$0xf]
  %v1164 = vld [vmem:[%s1119 + $0xb0] sm:$0xf]
  %v1165 = vld [vmem:[%s1119 + $0xb4] sm:$0xf]
  %v1166 = vld [vmem:[%s1119 + $0xb8] sm:$0xf]
  %v1167 = vld [vmem:[%s1119 + $0xbc] sm:$0xf]
  %v1168 = vld [vmem:[%s1119 + $0xc0] sm:$0xf]
  %v1169 = vld [vmem:[%s1119 + $0xc4] sm:$0xf]
  %v1170 = vld [vmem:[%s1119 + $0xc8] sm:$0xf]
  %v1171 = vld [vmem:[%s1119 + $0xcc] sm:$0xf]
  %v1172 = vld [vmem:[%s1119 + $0xd0] sm:$0xf]
  %v1173 = vld [vmem:[%s1119 + $0xd4] sm:$0xf]
  %v1174 = vld [vmem:[%s1119 + $0xd8] sm:$0xf]
  %v1175 = vld [vmem:[%s1119 + $0xdc] sm:$0xf]
  %v1176 = vld [vmem:[%s1119 + $0xe0] sm:$0xf]
  %v1177 = vld [vmem:[%s1119 + $0xe4] sm:$0xf]
  %v1178 = vld [vmem:[%s1119 + $0xe8] sm:$0xf]
  %v1179 = vld [vmem:[%s1119 + $0xec] sm:$0xf]
  %v1180 = vld [vmem:[%s1119 + $0xf0] sm:$0xf]
  %v1181 = vld [vmem:[%s1119 + $0xf4] sm:$0xf]
  %v1182 = vld [vmem:[%s1119 + $0xf8] sm:$0xf]
  %v1183 = vld [vmem:[%s1119 + $0xfc] sm:$0xf]
  %v1248 = vunpack.c.l.b16 %v1120
  %v1249 = vunpack.c.l.b16 %v1121
  %v1250 = vunpack.c.l.b16 %v1122
  %v1251 = vunpack.c.l.b16 %v1123
  %v1252 = vunpack.c.l.b16 %v1124
  %v1253 = vunpack.c.l.b16 %v1125
  %v1254 = vunpack.c.l.b16 %v1126
  %v1255 = vunpack.c.l.b16 %v1127
  %v1256 = vunpack.c.l.b16 %v1128
  %v1257 = vunpack.c.l.b16 %v1129
  %v1258 = vunpack.c.l.b16 %v1130
  %v1259 = vunpack.c.l.b16 %v1131
  %v1260 = vunpack.c.l.b16 %v1132
  %v1261 = vunpack.c.l.b16 %v1133
  %v1262 = vunpack.c.l.b16 %v1134
  %v1263 = vunpack.c.l.b16 %v1135
  %v1264 = vunpack.c.l.b16 %v1136
  %v1265 = vunpack.c.l.b16 %v1137
  %v1266 = vunpack.c.l.b16 %v1138
  %v1267 = vunpack.c.l.b16 %v1139
  %v1268 = vunpack.c.l.b16 %v1140
  %v1269 = vunpack.c.l.b16 %v1141
  %v1270 = vunpack.c.l.b16 %v1142
  %v1271 = vunpack.c.l.b16 %v1143
  %v1272 = vunpack.c.l.b16 %v1144
  %v1273 = vunpack.c.l.b16 %v1145
  %v1274 = vunpack.c.l.b16 %v1146
  %v1275 = vunpack.c.l.b16 %v1147
  %v1276 = vunpack.c.l.b16 %v1148
  %v1277 = vunpack.c.l.b16 %v1149
  %v1278 = vunpack.c.l.b16 %v1150
  %v1279 = vunpack.c.l.b16 %v1151
  %v1280 = vunpack.c.l.b16 %v1152
  %v1281 = vunpack.c.l.b16 %v1153
  %v1282 = vunpack.c.l.b16 %v1154
  %v1283 = vunpack.c.l.b16 %v1155
  %v1284 = vunpack.c.l.b16 %v1156
  %v1285 = vunpack.c.l.b16 %v1157
  %v1286 = vunpack.c.l.b16 %v1158
  %v1287 = vunpack.c.l.b16 %v1159
  %v1288 = vunpack.c.l.b16 %v1160
  %v1289 = vunpack.c.l.b16 %v1161
  %v1290 = vunpack.c.l.b16 %v1162
  %v1291 = vunpack.c.l.b16 %v1163
  %v1292 = vunpack.c.l.b16 %v1164
  %v1293 = vunpack.c.l.b16 %v1165
  %v1294 = vunpack.c.l.b16 %v1166
  %v1295 = vunpack.c.l.b16 %v1167
  %v1296 = vunpack.c.l.b16 %v1168
  %v1297 = vunpack.c.l.b16 %v1169
  %v1298 = vunpack.c.l.b16 %v1170
  %v1299 = vunpack.c.l.b16 %v1171
  %v1300 = vunpack.c.l.b16 %v1172
  %v1301 = vunpack.c.l.b16 %v1173
  %v1302 = vunpack.c.l.b16 %v1174
  %v1303 = vunpack.c.l.b16 %v1175
  %v1304 = vunpack.c.l.b16 %v1176
  %v1305 = vunpack.c.l.b16 %v1177
  %v1306 = vunpack.c.l.b16 %v1178
  %v1307 = vunpack.c.l.b16 %v1179
  %v1308 = vunpack.c.l.b16 %v1180
  %v1309 = vunpack.c.l.b16 %v1181
  %v1310 = vunpack.c.l.b16 %v1182
  %v1311 = vunpack.c.l.b16 %v1183
  %v1312 = vpack.c.b16 %v1249, %v1248
  %v1313 = vpack.c.b16 %v1251, %v1250
  %v1314 = vpack.c.b16 %v1253, %v1252
  %v1315 = vpack.c.b16 %v1255, %v1254
  %v1316 = vpack.c.b16 %v1257, %v1256
  %v1317 = vpack.c.b16 %v1259, %v1258
  %v1318 = vpack.c.b16 %v1261, %v1260
  %v1319 = vpack.c.b16 %v1263, %v1262
  %v1320 = vpack.c.b16 %v1265, %v1264
  %v1321 = vpack.c.b16 %v1267, %v1266
  %v1322 = vpack.c.b16 %v1269, %v1268
  %v1323 = vpack.c.b16 %v1271, %v1270
  %v1324 = vpack.c.b16 %v1273, %v1272
  %v1325 = vpack.c.b16 %v1275, %v1274
  %v1326 = vpack.c.b16 %v1277, %v1276
  %v1327 = vpack.c.b16 %v1279, %v1278
  %v1328 = vpack.c.b16 %v1281, %v1280
  %v1329 = vpack.c.b16 %v1283, %v1282
  %v1330 = vpack.c.b16 %v1285, %v1284
  %v1331 = vpack.c.b16 %v1287, %v1286
  %v1332 = vpack.c.b16 %v1289, %v1288
  %v1333 = vpack.c.b16 %v1291, %v1290
  %v1334 = vpack.c.b16 %v1293, %v1292
  %v1335 = vpack.c.b16 %v1295, %v1294
  %v1336 = vpack.c.b16 %v1297, %v1296
  %v1337 = vpack.c.b16 %v1299, %v1298
  %v1338 = vpack.c.b16 %v1301, %v1300
  %v1339 = vpack.c.b16 %v1303, %v1302
  %v1340 = vpack.c.b16 %v1305, %v1304
  %v1341 = vpack.c.b16 %v1307, %v1306
  %v1342 = vpack.c.b16 %v1309, %v1308
  %v1343 = vpack.c.b16 %v1311, %v1310
  %1376 = vmatprep.subr.bf16.mxu0 0
  %1377 = vmatpush1.bf16.msra.mxu0 %v1312
  %1378 = vmatprep.subr.bf16.mxu0 0
  %1379 = vmatpush1.bf16.msra.mxu0 %v1313
  %1380 = vmatprep.subr.bf16.mxu0 0
  %1381 = vmatpush1.bf16.msra.mxu0 %v1314
  %1382 = vmatprep.subr.bf16.mxu0 0
  %1383 = vmatpush1.bf16.msra.mxu0 %v1315
  %1384 = vmatprep.subr.bf16.mxu0 0
  %1385 = vmatpush1.bf16.msra.mxu0 %v1316
  %1386 = vmatprep.subr.bf16.mxu0 0
  %1387 = vmatpush1.bf16.msra.mxu0 %v1317
  %1388 = vmatprep.subr.bf16.mxu0 0
  %1389 = vmatpush1.bf16.msra.mxu0 %v1318
  %1390 = vmatprep.subr.bf16.mxu0 0
  %1391 = vmatpush1.bf16.msra.mxu0 %v1319
  %1392 = vmatprep.subr.bf16.mxu0 0
  %1393 = vmatpush1.bf16.msra.mxu0 %v1320
  %1394 = vmatprep.subr.bf16.mxu0 0
  %1395 = vmatpush1.bf16.msra.mxu0 %v1321
  %1396 = vmatprep.subr.bf16.mxu0 0
  %1397 = vmatpush1.bf16.msra.mxu0 %v1322
  %1398 = vmatprep.subr.bf16.mxu0 0
  %1399 = vmatpush1.bf16.msra.mxu0 %v1323
  %1400 = vmatprep.subr.bf16.mxu0 0
  %1401 = vmatpush1.bf16.msra.mxu0 %v1324
  %1402 = vmatprep.subr.bf16.mxu0 0
  %1403 = vmatpush1.bf16.msra.mxu0 %v1325
  %1404 = vmatprep.subr.bf16.mxu0 0
  %1405 = vmatpush1.bf16.msra.mxu0 %v1326
  %1406 = vmatprep.subr.bf16.mxu0 0
  %1407 = vmatpush1.bf16.msra.mxu0 %v1327
  %1408 = vmatprep.mubr.bf16.mxu0 %v104
  %1409 = vmatmul.mubr.bf16.gmra.mrb[0].mxu0 %v103
  %v1410 = vpop.f32.mrb[0].mxu0
  %v1411 = vadd.f32 0.0, %v1410
  %v1412 = vpop.f32.mrb[0].mxu0
  %v1413 = vpop.f32.mrb[0].mxu0
  %v1414 = vadd.f32 0.0, %v1413
  %v1415 = vpop.f32.mrb[0].mxu0
  %1416 = vmatprep.mubr.bf16.mxu0 %v108
  %1417 = vmatmul.mubr.bf16.gmra.mrb[0].mxu0 %v107
  %v1418 = vpop.f32.mrb[0].mxu0
  %v1419 = vadd.f32 0.0, %v1418
  %v1420 = vpop.f32.mrb[0].mxu0
  %v1421 = vpop.f32.mrb[0].mxu0
  %v1422 = vpop.f32.mrb[0].mxu0
  %1423 = vdwg.mxu0
  %1424 = vmatprep.subr.bf16.mxu0 0
  %1425 = vmatpush1.bf16.msra.mxu0 %v1328
  %1426 = vmatprep.subr.bf16.mxu0 0
  %1427 = vmatpush1.bf16.msra.mxu0 %v1329
  %1428 = vmatprep.subr.bf16.mxu0 0
  %1429 = vmatpush1.bf16.msra.mxu0 %v1330
  %1430 = vmatprep.subr.bf16.mxu0 0
  %1431 = vmatpush1.bf16.msra.mxu0 %v1331
  %1432 = vmatprep.subr.bf16.mxu0 0
  %1433 = vmatpush1.bf16.msra.mxu0 %v1332
  %1434 = vmatprep.subr.bf16.mxu0 0
  %1435 = vmatpush1.bf16.msra.mxu0 %v1333
  %1436 = vmatprep.subr.bf16.mxu0 0
  %1437 = vmatpush1.bf16.msra.mxu0 %v1334
  %1438 = vmatprep.subr.bf16.mxu0 0
  %1439 = vmatpush1.bf16.msra.mxu0 %v1335
  %1440 = vmatprep.subr.bf16.mxu0 0
  %1441 = vmatpush1.bf16.msra.mxu0 %v1336
  %1442 = vmatprep.subr.bf16.mxu0 0
  %1443 = vmatpush1.bf16.msra.mxu0 %v1337
  %1444 = vmatprep.subr.bf16.mxu0 0
  %1445 = vmatpush1.bf16.msra.mxu0 %v1338
  %1446 = vmatprep.subr.bf16.mxu0 0
  %1447 = vmatpush1.bf16.msra.mxu0 %v1339
  %1448 = vmatprep.subr.bf16.mxu0 0
  %1449 = vmatpush1.bf16.msra.mxu0 %v1340
  %1450 = vmatprep.subr.bf16.mxu0 0
  %1451 = vmatpush1.bf16.msra.mxu0 %v1341
  %1452 = vmatprep.subr.bf16.mxu0 0
  %1453 = vmatpush1.bf16.msra.mxu0 %v1342
  %1454 = vmatprep.subr.bf16.mxu0 0
  %1455 = vmatpush1.bf16.msra.mxu0 %v1343
  %1456 = vmatprep.mubr.bf16.mxu0 %v106
  %1457 = vmatmul.mubr.bf16.gmra.mrb[0].mxu0 %v105
  %v1458 = vpop.f32.mrb[0].mxu0
  %v1459 = vadd.f32 %v1411, %v1458
  %v1460 = vpop.f32.mrb[0].mxu0
  %v1461 = vpop.f32.mrb[0].mxu0
  %v1462 = vadd.f32 %v1414, %v1461
  %v1463 = vpop.f32.mrb[0].mxu0
  %1464 = vmatprep.mubr.bf16.mxu0 %v110
  %1465 = vmatmul.mubr.bf16.gmra.mrb[0].mxu0 %v109
  %v1466 = vpop.f32.mrb[0].mxu0
  %v1467 = vadd.f32 %v1419, %v1466
  %v1468 = vpop.f32.mrb[0].mxu0
  %v1469 = vpop.f32.mrb[0].mxu0
  %v1470 = vpop.f32.mrb[0].mxu0
  %1471 = vdwg.mxu0
  %v1472 = vmax.f32 %v1116, %v1459
  %v1473 = vmax.f32 %v1117, %v1462
  %v1474 = vmax.f32 %v1118, %v1467
  %v1475 = vld [vmem:[%s2] sm:$0xff]
  %v1476 = vld [vmem:[%s2 + $0x8] sm:$0xff]
  %v1477 = vld [vmem:[%s2 + $0x10] sm:$0xff]
  %1479 = vset.pattern.permute.xlu0 0
  %1480 = vperm.xlu0 %1479, %v1475
  %v1481 = vpop.permute.xlu0 %1480
  %1484 = vset.pattern.permute.xlu0 0
  %1485 = vperm.xlu0 %1484, %v1476
  %v1486 = vpop.permute.xlu0 %1485
  %1489 = vset.pattern.permute.xlu0 0
  %1490 = vperm.xlu0 %1489, %v1477
  %v1491 = vpop.permute.xlu0 %1490
  %v1493 = vadd.f32 %v1472, %v1481
  %v1494 = vadd.f32 %v1473, %v1486
  %v1495 = vadd.f32 %v1474, %v1491
  %v1496 = vmax.f32 %v1493, 0.0
  %v1497 = vmax.f32 %v1494, 0.0
  %v1498 = vmax.f32 %v1495, 0.0
  %v1499 = vpack.c.bf16 %v1497, %v1496
  %v1500 = vpack.c.bf16 %v1498, %v1498
  %v1503 = vunpack.c.l.b16 %v1499
  %v1504 = vunpack.c.h.b16 %v1499
  %v1505 = vunpack.c.l.b16 %v1500
  %v1506 = vpack.c.b16 %v1503, %v1503
  %v1507 = vpack.c.b16 %v1504, %v1504
  %v1508 = vpack.c.b16 %v1505, %v1505
  %1512 = vst [vmem:[%s3] sm:$0xf] %v1506
  %1513 = vst [vmem:[%s3 + $0x4] sm:$0xf] %v1507
  %1514 = vst [vmem:[%s3 + $0x8] sm:$0xf] %v1508
  // Predicated region
  $region14: #{lipnet_forward.6} parent=0 // pred_check
    _
  $region15: #{lipnet_forward.6} parent=0 // pred_check_branch
    %1516 = sbr.rel (0) target = $region17
  $region16: #{lipnet_forward.6} parent=0 // pred_region
    _
  $region17: #{lipnet_forward.6} parent=0 // pred_fallthru
    _
  // Predicated region
  $region18: #{lipnet_forward.6} parent=0 // pred_check
    _
  $region19: #{lipnet_forward.6} parent=0 // pred_check_branch
    %1518 = sbr.rel (0) target = $region21
  $region20: #{lipnet_forward.6} parent=0 // pred_region
    _
  $region21: #{lipnet_forward.6} parent=0 // pred_fallthru
    _

// kernel: lipnet_forward.7
$region0: #{lipnet_forward.7}
  #allocation0 [shape = 'u32[]', space=smem, size = 0x4, offset = 0x4, fixed_abs, tag = 'smem constant byte address 0x4 - core index']
  #allocation1 [shape = 'u32[144,128]{1,0:T(1,128)}', space=vmem, size = 0x12000, scoped, tag = 'internal scratch']
  #allocation2 [shape = 'f32[4,2,32]{2,1,0:T(2,128)}', space=vmem, size = 0x1000, scoped, tag = 'scratch operand']
  #allocation3 [shape = 'f32[4,2,32]{2,1,0:T(2,128)}', space=vmem, size = 0x1000, scoped, tag = 'scratch operand']
  #allocation4 [shape = 'f32[4,2,32]{2,1,0:T(2,128)}', space=vmem, size = 0x1000, scoped, tag = 'scratch operand']
  #allocation5 [shape = 'f32[4,2,32]{2,1,0:T(2,128)}', space=vmem, size = 0x1000, scoped, tag = 'scratch operand']
  %s0 = inlined_call_operand.vmem [shape: bf16[4,2,192], index: 0, kind: input, shape index: {}]
  %s1 = inlined_call_operand.vmem [shape: bf16[192,192], index: 1, kind: input, shape index: {}]
  %s2 = inlined_call_operand.vmem [shape: f32[1,192], index: 2, kind: input, shape index: {}]
  %s3 = inlined_call_operand.vmem [shape: f32[64,192], index: 3, kind: input, shape index: {}]
  %s4 = inlined_call_operand.vmem [shape: f32[1,192], index: 4, kind: input, shape index: {}]
  %s5 = inlined_call_operand.vmem [shape: bf16[64,192], index: 5, kind: input, shape index: {}]
  %s6 = inlined_call_operand.vmem [shape: f32[1,192], index: 6, kind: input, shape index: {}]
  %s7 = inlined_call_operand.vmem [shape: f32[64,192], index: 7, kind: input, shape index: {}]
  %s8 = inlined_call_operand.vmem [shape: f32[1,192], index: 8, kind: input, shape index: {}]
  %s9 = inlined_call_operand.vmem [shape: bf16[64,128], index: 9, kind: input, shape index: {}]
  %s10 = inlined_call_operand.vmem [shape: f32[1,128], index: 10, kind: input, shape index: {}]
  %s11 = inlined_call_operand.vmem [shape: f32[8,128], index: 11, kind: output, shape index: {}]
  %s12 = sld [smem:[#allocation0]]
  $region54: #{lipnet_forward.7} parent=0
    _
  %s14 = ssub.s32 1, %s12
  %s15 = scalar_select 0, %s14, %s12
  // Predicated region
  $region2: #{lipnet_forward.7} parent=0 // pred_check
    _
  $region3: #{lipnet_forward.7} parent=0 // pred_check_branch
    %17 = sbr.rel (0) target = $region5
  $region4: #{lipnet_forward.7} parent=0 // pred_region
    _
  $region5: #{lipnet_forward.7} parent=0 // pred_fallthru
    _
  // Predicated region
  $region6: #{lipnet_forward.7} parent=0 // pred_check
    _
  $region7: #{lipnet_forward.7} parent=0 // pred_check_branch
    %19 = sbr.rel (0) target = $region9
  $region8: #{lipnet_forward.7} parent=0 // pred_region
    _
  $region9: #{lipnet_forward.7} parent=0 // pred_fallthru
    _
  // Predicated region
  $region10: #{lipnet_forward.7} parent=0 // pred_check
    _
  $region11: #{lipnet_forward.7} parent=0 // pred_check_branch
    %21 = sbr.rel (0) target = $region13
  $region12: #{lipnet_forward.7} parent=0 // pred_region
    _
  $region13: #{lipnet_forward.7} parent=0 // pred_fallthru
    _
  // Predicated region
  $region14: #{lipnet_forward.7} parent=0 // pred_check
    _
  $region15: #{lipnet_forward.7} parent=0 // pred_check_branch
    %23 = sbr.rel (0) target = $region17
  $region16: #{lipnet_forward.7} parent=0 // pred_region
    _
  $region17: #{lipnet_forward.7} parent=0 // pred_fallthru
    _
  // Predicated region
  $region18: #{lipnet_forward.7} parent=0 // pred_check
    _
  $region19: #{lipnet_forward.7} parent=0 // pred_check_branch
    %25 = sbr.rel (0) target = $region21
  $region20: #{lipnet_forward.7} parent=0 // pred_region
    _
  $region21: #{lipnet_forward.7} parent=0 // pred_fallthru
    _
  // Predicated region
  $region22: #{lipnet_forward.7} parent=0 // pred_check
    _
  $region23: #{lipnet_forward.7} parent=0 // pred_check_branch
    %27 = sbr.rel (0) target = $region25
  $region24: #{lipnet_forward.7} parent=0 // pred_region
    _
  $region25: #{lipnet_forward.7} parent=0 // pred_fallthru
    _
  // Predicated region
  $region26: #{lipnet_forward.7} parent=0 // pred_check
    _
  $region27: #{lipnet_forward.7} parent=0 // pred_check_branch
    %29 = sbr.rel (0) target = $region29
  $region28: #{lipnet_forward.7} parent=0 // pred_region
    _
  $region29: #{lipnet_forward.7} parent=0 // pred_fallthru
    _
  // Predicated region
  $region30: #{lipnet_forward.7} parent=0 // pred_check
    _
  $region31: #{lipnet_forward.7} parent=0 // pred_check_branch
    %31 = sbr.rel (0) target = $region33
  $region32: #{lipnet_forward.7} parent=0 // pred_region
    _
  $region33: #{lipnet_forward.7} parent=0 // pred_fallthru
    _
  // Predicated region
  $region34: #{lipnet_forward.7} parent=0 // pred_check
    _
  $region35: #{lipnet_forward.7} parent=0 // pred_check_branch
    %33 = sbr.rel (0) target = $region37
  $region36: #{lipnet_forward.7} parent=0 // pred_region
    _
  $region37: #{lipnet_forward.7} parent=0 // pred_fallthru
    _
  // Predicated region
  $region38: #{lipnet_forward.7} parent=0 // pred_check
    _
  $region39: #{lipnet_forward.7} parent=0 // pred_check_branch
    %35 = sbr.rel (0) target = $region41
  $region40: #{lipnet_forward.7} parent=0 // pred_region
    _
  $region41: #{lipnet_forward.7} parent=0 // pred_fallthru
    _
  // Predicated region
  $region42: #{lipnet_forward.7} parent=0 // pred_check
    _
  $region43: #{lipnet_forward.7} parent=0 // pred_check_branch
    %37 = sbr.rel (0) target = $region45
  $region44: #{lipnet_forward.7} parent=0 // pred_region
    _
  $region45: #{lipnet_forward.7} parent=0 // pred_fallthru
    _
  %v39 = vld [vmem:[%s0] sm:$0x3]
  %v40 = vld [vmem:[%s0 + $0x2] sm:$0x3]
  %v41 = vld [vmem:[%s0 + $0x4] sm:$0x3]
  %v42 = vld [vmem:[%s0 + $0x6] sm:$0x3]
  %v43 = vld [vmem:[%s1] sm:$0xff]
  %v44 = vld [vmem:[%s1 + $0x8] sm:$0xff]
  %v45 = vld [vmem:[%s1 + $0x10] sm:$0xff]
  %v46 = vld [vmem:[%s1 + $0x18] sm:$0xff]
  %v47 = vld [vmem:[%s1 + $0x20] sm:$0xff]
  %v48 = vld [vmem:[%s1 + $0x28] sm:$0xff]
  %v49 = vld [vmem:[%s1 + $0x30] sm:$0xff]
  %v50 = vld [vmem:[%s1 + $0x38] sm:$0xff]
  %v51 = vld [vmem:[%s1 + $0x40] sm:$0xff]
  %v52 = vld [vmem:[%s1 + $0x48] sm:$0xff]
  %v53 = vld [vmem:[%s1 + $0x50] sm:$0xff]
  %v54 = vld [vmem:[%s1 + $0x58] sm:$0xff]
  %v55 = vld [vmem:[%s1 + $0x60] sm:$0xff]
  %v56 = vld [vmem:[%s1 + $0x68] sm:$0xff]
  %v57 = vld [vmem:[%s1 + $0x70] sm:$0xff]
  %v58 = vld [vmem:[%s1 + $0x78] sm:$0xff]
  %v59 = vld [vmem:[%s1 + $0x80] sm:$0xff]
  %v60 = vld [vmem:[%s1 + $0x88] sm:$0xff]
  %v61 = vld [vmem:[%s1 + $0x90] sm:$0xff]
  %v62 = vld [vmem:[%s1 + $0x98] sm:$0xff]
  %v63 = vld [vmem:[%s1 + $0xa0] sm:$0xff]
  %v64 = vld [vmem:[%s1 + $0xa8] sm:$0xff]
  %v65 = vld [vmem:[%s1 + $0xb0] sm:$0xff]
  %v66 = vld [vmem:[%s1 + $0xb8] sm:$0xff]
  %v67 = vld [vmem:[%s2] sm:$0x3]
  %v69 = vlaneseq
  %v70 = vshrl.u32 %v69, 7
  %v71 = vsub.s32 0, %v70
  %v72 = vrot.slane %v67, %v71
  %v73 = vlaneseq
  %v74 = vshrl.u32 %v73, 7
  %v75 = vsub.s32 1, %v74
  %v76 = vrot.slane %v67, %v75
  %v83 = vcombine.low %v39, %v40
  %v84 = vcombine.low %v41, %v42
  %v86 = vunpack.c.l.s4 1966171168
  %v87 = vunpack.c.0.s8 %v86
  %v88 = vlaneseq
  %v89 = vshrl.u32 %v88, 7
  %v90 = vsub.s32 %v87, %v89
  %v91 = vrot.slane %v83, %v90
  %v93 = vunpack.c.l.s4 1966171168
  %v94 = vunpack.c.0.s8 %v93
  %v95 = vlaneseq
  %v96 = vshrl.u32 %v95, 7
  %v97 = vsub.s32 %v94, %v96
  %v98 = vrot.slane %v84, %v97
  %v99 = vcombine.low %v91, %v98
  %v100 = vcombine.high %v91, %v98
  %v102 = vunpack.c.l.s4 1966171168
  %v103 = vunpack.c.0.s8 %v102
  %v104 = vlaneseq
  %v105 = vshrl.u32 %v104, 7
  %v106 = vsub.s32 %v103, %v105
  %v107 = vrot.slane %v99, %v106
  %v109 = vunpack.c.l.s4 1966171168
  %v110 = vunpack.c.0.s8 %v109
  %v111 = vlaneseq
  %v112 = vshrl.u32 %v111, 7
  %v113 = vsub.s32 %v110, %v112
  %v114 = vrot.slane %v100, %v113
  %v140 = vunpack.c.l.b16 %v43
  %v141 = vunpack.c.h.b16 %v43
  %v142 = vunpack.c.l.b16 %v44
  %v143 = vunpack.c.h.b16 %v44
  %v144 = vunpack.c.l.b16 %v45
  %v145 = vunpack.c.h.b16 %v45
  %v146 = vunpack.c.l.b16 %v46
  %v147 = vunpack.c.h.b16 %v46
  %v148 = vunpack.c.l.b16 %v47
  %v149 = vunpack.c.h.b16 %v47
  %v150 = vunpack.c.l.b16 %v48
  %v151 = vunpack.c.h.b16 %v48
  %v152 = vunpack.c.l.b16 %v49
  %v153 = vunpack.c.h.b16 %v49
  %v154 = vunpack.c.l.b16 %v50
  %v155 = vunpack.c.h.b16 %v50
  %v156 = vunpack.c.l.b16 %v51
  %v157 = vunpack.c.h.b16 %v51
  %v158 = vunpack.c.l.b16 %v52
  %v159 = vunpack.c.h.b16 %v52
  %v160 = vunpack.c.l.b16 %v53
  %v161 = vunpack.c.h.b16 %v53
  %v162 = vunpack.c.l.b16 %v54
  %v163 = vunpack.c.h.b16 %v54
  %v164 = vunpack.c.l.b16 %v55
  %v165 = vunpack.c.h.b16 %v55
  %v166 = vunpack.c.l.b16 %v56
  %v167 = vunpack.c.h.b16 %v56
  %v168 = vunpack.c.l.b16 %v57
  %v169 = vunpack.c.h.b16 %v57
  %v170 = vunpack.c.l.b16 %v58
  %v171 = vunpack.c.h.b16 %v58
  %v172 = vunpack.c.l.b16 %v59
  %v173 = vunpack.c.h.b16 %v59
  %v174 = vunpack.c.l.b16 %v60
  %v175 = vunpack.c.h.b16 %v60
  %v176 = vunpack.c.l.b16 %v61
  %v177 = vunpack.c.h.b16 %v61
  %v178 = vunpack.c.l.b16 %v62
  %v179 = vunpack.c.h.b16 %v62
  %v180 = vunpack.c.l.b16 %v63
  %v181 = vunpack.c.h.b16 %v63
  %v182 = vunpack.c.l.b16 %v64
  %v183 = vunpack.c.h.b16 %v64
  %v184 = vunpack.c.l.b16 %v65
  %v185 = vunpack.c.h.b16 %v65
  %v186 = vunpack.c.l.b16 %v66
  %v187 = vunpack.c.h.b16 %v66
  %v188 = vpack.c.b16 %v142, %v140
  %v189 = vpack.c.b16 %v143, %v141
  %v190 = vpack.c.b16 %v146, %v144
  %v191 = vpack.c.b16 %v147, %v145
  %v192 = vpack.c.b16 %v150, %v148
  %v193 = vpack.c.b16 %v151, %v149
  %v194 = vpack.c.b16 %v154, %v152
  %v195 = vpack.c.b16 %v155, %v153
  %v196 = vpack.c.b16 %v158, %v156
  %v197 = vpack.c.b16 %v159, %v157
  %v198 = vpack.c.b16 %v162, %v160
  %v199 = vpack.c.b16 %v163, %v161
  %v200 = vpack.c.b16 %v166, %v164
  %v201 = vpack.c.b16 %v167, %v165
  %v202 = vpack.c.b16 %v170, %v168
  %v203 = vpack.c.b16 %v171, %v169
  %v204 = vpack.c.b16 %v174, %v172
  %v205 = vpack.c.b16 %v175, %v173
  %v206 = vpack.c.b16 %v178, %v176
  %v207 = vpack.c.b16 %v179, %v177
  %v208 = vpack.c.b16 %v182, %v180
  %v209 = vpack.c.b16 %v183, %v181
  %v210 = vpack.c.b16 %v186, %v184
  %v211 = vpack.c.b16 %v187, %v185
  %vm236 = vcmask 523264
  %v238 = vsel %vm236, %v114, 0
  %240 = vmatprep.subr.bf16.mxu0 %v189
  %241 = vmatpush1.bf16.msra.mxu0 %v188
  %242 = vmatprep.subr.bf16.mxu0 %v191
  %243 = vmatpush1.bf16.msra.mxu0 %v190
  %244 = vmatprep.subr.bf16.mxu0 %v193
  %245 = vmatpush1.bf16.msra.mxu0 %v192
  %246 = vmatprep.subr.bf16.mxu0 %v195
  %247 = vmatpush1.bf16.msra.mxu0 %v194
  %248 = vmatprep.subr.bf16.mxu0 %v197
  %249 = vmatpush1.bf16.msra.mxu0 %v196
  %250 = vmatprep.subr.bf16.mxu0 %v199
  %251 = vmatpush1.bf16.msra.mxu0 %v198
  %252 = vmatprep.subr.bf16.mxu0 %v201
  %253 = vmatpush1.bf16.msra.mxu0 %v200
  %254 = vmatprep.subr.bf16.mxu0 %v203
  %255 = vmatpush1.bf16.msra.mxu0 %v202
  %256 = vmatprep.subr.bf16.mxu0 %v205
  %257 = vmatpush1.bf16.msra.mxu0 %v204
  %258 = vmatprep.subr.bf16.mxu0 %v207
  %259 = vmatpush1.bf16.msra.mxu0 %v206
  %260 = vmatprep.subr.bf16.mxu0 %v209
  %261 = vmatpush1.bf16.msra.mxu0 %v208
  %262 = vmatprep.subr.bf16.mxu0 %v211
  %263 = vmatpush1.bf16.msra.mxu0 %v210
  %264 = vmatprep.subr.bf16.mxu0 0
  %265 = vmatpush1.bf16.msra.mxu0 0
  %266 = vmatprep.subr.bf16.mxu0 0
  %267 = vmatpush1.bf16.msra.mxu0 0
  %268 = vmatprep.subr.bf16.mxu0 0
  %269 = vmatpush1.bf16.msra.mxu0 0
  %270 = vmatprep.subr.bf16.mxu0 0
  %271 = vmatpush1.bf16.msra.mxu0 0
  %272 = vmatprep.mubr.bf16.mxu0 %v238
  %273 = vmatmul.mubr.bf16.gmra.mrb[0].mxu0 %v107
  %v274 = vpop.f32.mrb[0].mxu0
  %v275 = vadd.f32 %v72, %v274
  %v276 = vpop.f32.mrb[0].mxu0
  %v277 = vadd.f32 %v76, %v276
  %v278 = vpop.f32.mrb[0].mxu0
  %v279 = vpop.f32.mrb[0].mxu0
  %280 = vdwg.mxu0
  %v283 = vcombine.low %v275, %v277
  %v284 = vcombine.high %v275, %v277
  %v286 = vunpack.c.l.s4 1983009808
  %v287 = vunpack.c.0.s8 %v286
  %v288 = vlaneseq
  %v289 = vshrl.u32 %v288, 7
  %v290 = vsub.s32 %v287, %v289
  %v291 = vrot.slane %v283, %v290
  %v293 = vunpack.c.l.s4 1983009808
  %v294 = vunpack.c.0.s8 %v293
  %v295 = vlaneseq
  %v296 = vshrl.u32 %v295, 7
  %v297 = vsub.s32 %v294, %v296
  %v298 = vrot.slane %v284, %v297
  %v299 = vcombine.high %v291, %v291
  %v300 = vcombine.high %v298, %v298
  %v305 = vld [vmem:[%s3] sm:$0xff]
  %v306 = vld [vmem:[%s3 + $0x8] sm:$0xff]
  %v307 = vld [vmem:[%s3 + $0x10] sm:$0xff]
  %v308 = vld [vmem:[%s3 + $0x18] sm:$0xff]
  %v309 = vld [vmem:[%s3 + $0x20] sm:$0xff]
  %v310 = vld [vmem:[%s3 + $0x28] sm:$0xff]
  %v311 = vld [vmem:[%s3 + $0x30] sm:$0xff]
  %v312 = vld [vmem:[%s3 + $0x38] sm:$0xff]
  %v313 = vld [vmem:[%s3 + $0x40] sm:$0xff]
  %v314 = vld [vmem:[%s3 + $0x48] sm:$0xff]
  %v315 = vld [vmem:[%s3 + $0x50] sm:$0xff]
  %v316 = vld [vmem:[%s3 + $0x58] sm:$0xff]
  %v317 = vld [vmem:[%s3 + $0x60] sm:$0xff]
  %v318 = vld [vmem:[%s3 + $0x68] sm:$0xff]
  %v319 = vld [vmem:[%s3 + $0x70] sm:$0xff]
  %v320 = vld [vmem:[%s3 + $0x78] sm:$0xff]
  %v321 = vld [vmem:[%s4] sm:$0x3]
  %v323 = vlaneseq
  %v324 = vshrl.u32 %v323, 7
  %v325 = vsub.s32 0, %v324
  %v326 = vrot.slane %v321, %v325
  %v327 = vlaneseq
  %v328 = vshrl.u32 %v327, 7
  %v329 = vsub.s32 1, %v328
  %v330 = vrot.slane %v321, %v329
  %v334 = vsel %vm236, 0.0, 0
  %336 = vmatprep.subr.mxu0 %v306
  %337 = vmatpush1.msra.mxu0 %v305
  %338 = vmatprep.subr.mxu0 %v308
  %339 = vmatpush1.msra.mxu0 %v307
  %340 = vmatprep.subr.mxu0 %v310
  %341 = vmatpush1.msra.mxu0 %v309
  %342 = vmatprep.subr.mxu0 %v312
  %343 = vmatpush1.msra.mxu0 %v311
  %344 = vmatprep.subr.mxu0 %v314
  %345 = vmatpush1.msra.mxu0 %v313
  %346 = vmatprep.subr.mxu0 %v316
  %347 = vmatpush1.msra.mxu0 %v315
  %348 = vmatprep.subr.mxu0 %v318
  %349 = vmatpush1.msra.mxu0 %v317
  %350 = vmatprep.subr.mxu0 %v320
  %351 = vmatpush1.msra.mxu0 %v319
  %352 = vmatprep.subr.mxu0 0.0
  %353 = vmatpush1.msra.mxu0 0.0
  %354 = vmatprep.subr.mxu0 0.0
  %355 = vmatpush1.msra.mxu0 0.0
  %356 = vmatprep.subr.mxu0 0.0
  %357 = vmatpush1.msra.mxu0 0.0
  %358 = vmatprep.subr.mxu0 0.0
  %359 = vmatpush1.msra.mxu0 0.0
  %360 = vmatprep.subr.mxu0 0.0
  %361 = vmatpush1.msra.mxu0 0.0
  %362 = vmatprep.subr.mxu0 0.0
  %363 = vmatpush1.msra.mxu0 0.0
  %364 = vmatprep.subr.mxu0 0.0
  %365 = vmatpush1.msra.mxu0 0.0
  %366 = vmatprep.subr.mxu0 0.0
  %367 = vmatpush1.msra.mxu0 0.0
  %368 = vmatprep.subr.mxu0 0.0
  %369 = vmatpush1.msra.mxu0 0.0
  %370 = vmatprep.subr.mxu0 0.0
  %371 = vmatpush1.msra.mxu0 0.0
  %372 = vmatprep.subr.mxu0 0.0
  %373 = vmatpush1.msra.mxu0 0.0
  %374 = vmatprep.subr.mxu0 0.0
  %375 = vmatpush1.msra.mxu0 0.0
  %376 = vmatprep.subr.mxu0 0.0
  %377 = vmatpush1.msra.mxu0 0.0
  %378 = vmatprep.subr.mxu0 0.0
  %379 = vmatpush1.msra.mxu0 0.0
  %380 = vmatprep.subr.mxu0 0.0
  %381 = vmatpush1.msra.mxu0 0.0
  %382 = vmatprep.subr.mxu0 0.0
  %383 = vmatpush1.msra.mxu0 0.0
  %384 = vmatprep.subr.mxu0 0.0
  %385 = vmatpush1.msra.mxu0 0.0
  %386 = vmatprep.subr.mxu0 0.0
  %387 = vmatpush1.msra.mxu0 0.0
  %388 = vmatprep.subr.mxu0 0.0
  %389 = vmatpush1.msra.mxu0 0.0
  %390 = vmatprep.subr.mxu0 0.0
  %391 = vmatpush1.msra.mxu0 0.0
  %392 = vmatprep.subr.mxu0 0.0
  %393 = vmatpush1.msra.mxu0 0.0
  %394 = vmatprep.subr.mxu0 0.0
  %395 = vmatpush1.msra.mxu0 0.0
  %396 = vmatprep.subr.mxu0 0.0
  %397 = vmatpush1.msra.mxu0 0.0
  %398 = vmatprep.subr.mxu0 0.0
  %399 = vmatpush1.msra.mxu0 0.0
  %400 = vmatprep.mubr.f32.mxu0 0.0
  %401 = vmatmul.mubr.f32.gmra.mrb[0].mxu0 %v334
  %v402 = vpop.f32.mrb[0].mxu0
  %v403 = vadd.f32 %v326, %v402
  %v404 = vpop.f32.mrb[0].mxu0
  %v405 = vadd.f32 %v330, %v404
  %406 = vdwg.mxu0
  %v407 = vadd.f32 %v291, %v403
  %v408 = vxor.u32 %v407, 2147483648
  %v409 = vmul.f32 %v408, 1.442695
  %v410 = vpow.pop %v409
  %v411 = vadd.f32 %v410, 1.0
  %v412 = vrcp.pop %v411
  %v413 = vmul.f32 1.0, %v412
  %v416 = vunpack.c.l.s4 1983009808
  %v417 = vunpack.c.0.s8 %v416
  %v418 = vlaneseq
  %v419 = vshrl.u32 %v418, 7
  %v420 = vsub.s32 %v417, %v419
  %v421 = vrot.slane %v403, %v420
  %422 = vrot.lane.b32.xlu0 %v421, 64
  %v423 = vpop.permute.xlu0 %422
  %v425 = vmul.f32 %v413, %v423
  %427 = vrot.lane.b32.xlu0 %v425, 64
  %v428 = vpop.permute.xlu0 %427
  %v430 = vadd.f32 %v291, %v428
  %v431 = vtanh.pop %v430
  %v432 = vsub.f32 1.0, %v413
  %434 = vrot.lane.b32.xlu0 %v431, 96
  %v435 = vpop.permute.xlu0 %434
  %v437 = vmul.f32 %v432, %v435
  %v438 = vmul.f32 %v413, 0.0
  %v439 = vadd.f32 %v437, %v438
  %v441 = vcombine.low %v403, %v405
  %v443 = vunpack.c.l.s4 1983009808
  %v444 = vunpack.c.0.s8 %v443
  %v445 = vlaneseq
  %v446 = vshrl.u32 %v445, 7
  %v447 = vsub.s32 %v444, %v446
  %v448 = vrot.slane %v441, %v447
  %v450 = vadd.f32 %v300, %v448
  %v451 = vxor.u32 %v450, 2147483648
  %v452 = vmul.f32 %v451, 1.442695
  %v453 = vpow.pop %v452
  %v454 = vadd.f32 %v453, 1.0
  %v455 = vrcp.pop %v454
  %v456 = vmul.f32 1.0, %v455
  %v458 = vunpack.c.l.s4 1983009808
  %v459 = vunpack.c.0.s8 %v458
  %v460 = vlaneseq
  %v461 = vshrl.u32 %v460, 7
  %v462 = vsub.s32 %v459, %v461
  %v463 = vrot.slane %v405, %v462
  %464 = vrot.lane.b32.xlu0 %v463, 64
  %v465 = vpop.permute.xlu0 %464
  %v467 = vmul.f32 %v456, %v465
  %468 = vrot.lane.b32.xlu0 %v300, 96
  %v469 = vpop.permute.xlu0 %468
  %v470 = vrot.slane %v469, 2
  %473 = vrot.lane.b32.xlu0 %v467, 32
  %v474 = vpop.permute.xlu0 %473
  %v476 = vadd.f32 %v470, %v474
  %v477 = vtanh.pop %v476
  %v479 = vrot.slane %v456, 2
  %v481 = vsub.f32 1.0, %v479
  %v482 = vmul.f32 %v481, %v477
  %v483 = vmul.f32 %v479, 0.0
  %v484 = vadd.f32 %v482, %v483
  %v487 = vunpack.c.l.s4 1983009808
  %v488 = vunpack.c.0.s8 %v487
  %v489 = vlaneseq
  %v490 = vshrl.u32 %v489, 7
  %v491 = vsub.s32 %v488, %v490
  %v492 = vrot.slane %v439, %v491
  %493 = vrot.lane.b32.xlu0 %v492, 96
  %v494 = vpop.permute.xlu0 %493
  %v498 = vunpack.c.l.s4 1983009808
  %v499 = vunpack.c.0.s8 %v498
  %v500 = vlaneseq
  %v501 = vshrl.u32 %v500, 7
  %v502 = vsub.s32 %v499, %v501
  %v503 = vrot.slane %v484, %v502
  %504 = vrot.lane.b32.xlu0 %v503, 32
  %v505 = vpop.permute.xlu0 %504
  %vm507 = vcmask 261120
  %v508 = vsel %vm507, %v494, %v505
  %vm509 = vcmask 254976
  %510 = vst.msk [vmem:[#allocation2] sm:$0x3] %vm509, %v494
  %s511 = scalar_lea.vmem [#allocation3], 6
  %512 = vst.msk [vmem:[%s511] sm:$0x3] %vm509, %v484
  %v514 = vsel %vm236, %v508, 0
  %516 = vmatprep.subr.mxu0 %v306
  %517 = vmatpush1.msra.mxu0 %v305
  %518 = vmatprep.subr.mxu0 %v308
  %519 = vmatpush1.msra.mxu0 %v307
  %520 = vmatprep.subr.mxu0 %v310
  %521 = vmatpush1.msra.mxu0 %v309
  %522 = vmatprep.subr.mxu0 %v312
  %523 = vmatpush1.msra.mxu0 %v311
  %524 = vmatprep.subr.mxu0 %v314
  %525 = vmatpush1.msra.mxu0 %v313
  %526 = vmatprep.subr.mxu0 %v316
  %527 = vmatpush1.msra.mxu0 %v315
  %528 = vmatprep.subr.mxu0 %v318
  %529 = vmatpush1.msra.mxu0 %v317
  %530 = vmatprep.subr.mxu0 %v320
  %531 = vmatpush1.msra.mxu0 %v319
  %532 = vmatprep.subr.mxu0 0.0
  %533 = vmatpush1.msra.mxu0 0.0
  %534 = vmatprep.subr.mxu0 0.0
  %535 = vmatpush1.msra.mxu0 0.0
  %536 = vmatprep.subr.mxu0 0.0
  %537 = vmatpush1.msra.mxu0 0.0
  %538 = vmatprep.subr.mxu0 0.0
  %539 = vmatpush1.msra.mxu0 0.0
  %540 = vmatprep.subr.mxu0 0.0
  %541 = vmatpush1.msra.mxu0 0.0
  %542 = vmatprep.subr.mxu0 0.0
  %543 = vmatpush1.msra.mxu0 0.0
  %544 = vmatprep.subr.mxu0 0.0
  %545 = vmatpush1.msra.mxu0 0.0
  %546 = vmatprep.subr.mxu0 0.0
  %547 = vmatpush1.msra.mxu0 0.0
  %548 = vmatprep.subr.mxu0 0.0
  %549 = vmatpush1.msra.mxu0 0.0
  %550 = vmatprep.subr.mxu0 0.0
  %551 = vmatpush1.msra.mxu0 0.0
  %552 = vmatprep.subr.mxu0 0.0
  %553 = vmatpush1.msra.mxu0 0.0
  %554 = vmatprep.subr.mxu0 0.0
  %555 = vmatpush1.msra.mxu0 0.0
  %556 = vmatprep.subr.mxu0 0.0
  %557 = vmatpush1.msra.mxu0 0.0
  %558 = vmatprep.subr.mxu0 0.0
  %559 = vmatpush1.msra.mxu0 0.0
  %560 = vmatprep.subr.mxu0 0.0
  %561 = vmatpush1.msra.mxu0 0.0
  %562 = vmatprep.subr.mxu0 0.0
  %563 = vmatpush1.msra.mxu0 0.0
  %564 = vmatprep.subr.mxu0 0.0
  %565 = vmatpush1.msra.mxu0 0.0
  %566 = vmatprep.subr.mxu0 0.0
  %567 = vmatpush1.msra.mxu0 0.0
  %568 = vmatprep.subr.mxu0 0.0
  %569 = vmatpush1.msra.mxu0 0.0
  %570 = vmatprep.subr.mxu0 0.0
  %571 = vmatpush1.msra.mxu0 0.0
  %572 = vmatprep.subr.mxu0 0.0
  %573 = vmatpush1.msra.mxu0 0.0
  %574 = vmatprep.subr.mxu0 0.0
  %575 = vmatpush1.msra.mxu0 0.0
  %576 = vmatprep.subr.mxu0 0.0
  %577 = vmatpush1.msra.mxu0 0.0
  %578 = vmatprep.subr.mxu0 0.0
  %579 = vmatpush1.msra.mxu0 0.0
  %580 = vmatprep.mubr.f32.mxu0 0.0
  %581 = vmatmul.mubr.f32.gmra.mrb[0].mxu0 %v514
  %v582 = vpop.f32.mrb[0].mxu0
  %v583 = vadd.f32 %v326, %v582
  %v584 = vpop.f32.mrb[0].mxu0
  %v585 = vadd.f32 %v330, %v584
  %586 = vdwg.mxu0
  %v587 = vadd.f32 %v299, %v583
  %v588 = vxor.u32 %v587, 2147483648
  %v589 = vmul.f32 %v588, 1.442695
  %v590 = vpow.pop %v589
  %v591 = vadd.f32 %v590, 1.0
  %v592 = vrcp.pop %v591
  %v593 = vmul.f32 1.0, %v592
  %v596 = vunpack.c.l.s4 1983009808
  %v597 = vunpack.c.0.s8 %v596
  %v598 = vlaneseq
  %v599 = vshrl.u32 %v598, 7
  %v600 = vsub.s32 %v597, %v599
  %v601 = vrot.slane %v583, %v600
  %602 = vrot.lane.b32.xlu0 %v601, 64
  %v603 = vpop.permute.xlu0 %602
  %v605 = vmul.f32 %v593, %v603
  %607 = vrot.lane.b32.xlu0 %v605, 64
  %v608 = vpop.permute.xlu0 %607
  %v610 = vadd.f32 %v299, %v608
  %v611 = vtanh.pop %v610
  %v612 = vsub.f32 1.0, %v593
  %614 = vrot.lane.b32.xlu0 %v611, 96
  %v615 = vpop.permute.xlu0 %614
  %v617 = vmul.f32 %v612, %v615
  %v619 = vunpack.c.l.s4 1983009808
  %v620 = vunpack.c.0.s8 %v619
  %v621 = vlaneseq
  %v622 = vshrl.u32 %v621, 7
  %v623 = vsub.s32 %v620, %v622
  %v624 = vrot.slane %v508, %v623
  %625 = vrot.lane.b32.xlu0 %v624, 32
  %v626 = vpop.permute.xlu0 %625
  %v628 = vmul.f32 %v593, %v626
  %v629 = vadd.f32 %v617, %v628
  %v631 = vcombine.low %v583, %v585
  %v633 = vunpack.c.l.s4 1983009808
  %v634 = vunpack.c.0.s8 %v633
  %v635 = vlaneseq
  %v636 = vshrl.u32 %v635, 7
  %v637 = vsub.s32 %v634, %v636
  %v638 = vrot.slane %v631, %v637
  %v640 = vadd.f32 %v298, %v638
  %v641 = vxor.u32 %v640, 2147483648
  %v642 = vmul.f32 %v641, 1.442695
  %v643 = vpow.pop %v642
  %v644 = vadd.f32 %v643, 1.0
  %v645 = vrcp.pop %v644
  %v646 = vmul.f32 1.0, %v645
  %v648 = vunpack.c.l.s4 1983009808
  %v649 = vunpack.c.0.s8 %v648
  %v650 = vlaneseq
  %v651 = vshrl.u32 %v650, 7
  %v652 = vsub.s32 %v649, %v651
  %v653 = vrot.slane %v585, %v652
  %654 = vrot.lane.b32.xlu0 %v653, 64
  %v655 = vpop.permute.xlu0 %654
  %v657 = vmul.f32 %v646, %v655
  %658 = vrot.lane.b32.xlu0 %v298, 96
  %v659 = vpop.permute.xlu0 %658
  %v660 = vrot.slane %v659, 2
  %663 = vrot.lane.b32.xlu0 %v657, 32
  %v664 = vpop.permute.xlu0 %663
  %v666 = vadd.f32 %v660, %v664
  %v667 = vtanh.pop %v666
  %v669 = vrot.slane %v646, 2
  %v671 = vsub.f32 1.0, %v669
  %v672 = vmul.f32 %v671, %v667
  %673 = vrot.lane.b32.xlu0 %v624, 96
  %v674 = vpop.permute.xlu0 %673
  %v676 = vmul.f32 %v669, %v674
  %v677 = vadd.f32 %v672, %v676
  %v680 = vunpack.c.l.s4 1983009808
  %v681 = vunpack.c.0.s8 %v680
  %v682 = vlaneseq
  %v683 = vshrl.u32 %v682, 7
  %v684 = vsub.s32 %v681, %v683
  %v685 = vrot.slane %v629, %v684
  %686 = vrot.lane.b32.xlu0 %v685, 96
  %v687 = vpop.permute.xlu0 %686
  %v691 = vunpack.c.l.s4 1983009808
  %v692 = vunpack.c.0.s8 %v691
  %v693 = vlaneseq
  %v694 = vshrl.u32 %v693, 7
  %v695 = vsub.s32 %v692, %v694
  %v696 = vrot.slane %v677, %v695
  %697 = vrot.lane.b32.xlu0 %v696, 32
  %v698 = vpop.permute.xlu0 %697
  %v700 = vsel %vm507, %v687, %v698
  %s701 = scalar_lea.vmem [#allocation2], 2
  %702 = vst.msk [vmem:[%s701] sm:$0x3] %vm509, %v687
  %s703 = scalar_lea.vmem [#allocation3], 4
  %704 = vst.msk [vmem:[%s703] sm:$0x3] %vm509, %v677
  %v706 = vsel %vm236, %v700, 0
  %708 = vmatprep.subr.mxu0 %v306
  %709 = vmatpush1.msra.mxu0 %v305
  %710 = vmatprep.subr.mxu0 %v308
  %711 = vmatpush1.msra.mxu0 %v307
  %712 = vmatprep.subr.mxu0 %v310
  %713 = vmatpush1.msra.mxu0 %v309
  %714 = vmatprep.subr.mxu0 %v312
  %715 = vmatpush1.msra.mxu0 %v311
  %716 = vmatprep.subr.mxu0 %v314
  %717 = vmatpush1.msra.mxu0 %v313
  %718 = vmatprep.subr.mxu0 %v316
  %719 = vmatpush1.msra.mxu0 %v315
  %720 = vmatprep.subr.mxu0 %v318
  %721 = vmatpush1.msra.mxu0 %v317
  %722 = vmatprep.subr.mxu0 %v320
  %723 = vmatpush1.msra.mxu0 %v319
  %724 = vmatprep.subr.mxu0 0.0
  %725 = vmatpush1.msra.mxu0 0.0
  %726 = vmatprep.subr.mxu0 0.0
  %727 = vmatpush1.msra.mxu0 0.0
  %728 = vmatprep.subr.mxu0 0.0
  %729 = vmatpush1.msra.mxu0 0.0
  %730 = vmatprep.subr.mxu0 0.0
  %731 = vmatpush1.msra.mxu0 0.0
  %732 = vmatprep.subr.mxu0 0.0
  %733 = vmatpush1.msra.mxu0 0.0
  %734 = vmatprep.subr.mxu0 0.0
  %735 = vmatpush1.msra.mxu0 0.0
  %736 = vmatprep.subr.mxu0 0.0
  %737 = vmatpush1.msra.mxu0 0.0
  %738 = vmatprep.subr.mxu0 0.0
  %739 = vmatpush1.msra.mxu0 0.0
  %740 = vmatprep.subr.mxu0 0.0
  %741 = vmatpush1.msra.mxu0 0.0
  %742 = vmatprep.subr.mxu0 0.0
  %743 = vmatpush1.msra.mxu0 0.0
  %744 = vmatprep.subr.mxu0 0.0
  %745 = vmatpush1.msra.mxu0 0.0
  %746 = vmatprep.subr.mxu0 0.0
  %747 = vmatpush1.msra.mxu0 0.0
  %748 = vmatprep.subr.mxu0 0.0
  %749 = vmatpush1.msra.mxu0 0.0
  %750 = vmatprep.subr.mxu0 0.0
  %751 = vmatpush1.msra.mxu0 0.0
  %752 = vmatprep.subr.mxu0 0.0
  %753 = vmatpush1.msra.mxu0 0.0
  %754 = vmatprep.subr.mxu0 0.0
  %755 = vmatpush1.msra.mxu0 0.0
  %756 = vmatprep.subr.mxu0 0.0
  %757 = vmatpush1.msra.mxu0 0.0
  %758 = vmatprep.subr.mxu0 0.0
  %759 = vmatpush1.msra.mxu0 0.0
  %760 = vmatprep.subr.mxu0 0.0
  %761 = vmatpush1.msra.mxu0 0.0
  %762 = vmatprep.subr.mxu0 0.0
  %763 = vmatpush1.msra.mxu0 0.0
  %764 = vmatprep.subr.mxu0 0.0
  %765 = vmatpush1.msra.mxu0 0.0
  %766 = vmatprep.subr.mxu0 0.0
  %767 = vmatpush1.msra.mxu0 0.0
  %768 = vmatprep.subr.mxu0 0.0
  %769 = vmatpush1.msra.mxu0 0.0
  %770 = vmatprep.subr.mxu0 0.0
  %771 = vmatpush1.msra.mxu0 0.0
  %772 = vmatprep.mubr.f32.mxu0 0.0
  %773 = vmatmul.mubr.f32.gmra.mrb[0].mxu0 %v706
  %v774 = vpop.f32.mrb[0].mxu0
  %v775 = vadd.f32 %v326, %v774
  %v776 = vpop.f32.mrb[0].mxu0
  %v777 = vadd.f32 %v330, %v776
  %778 = vdwg.mxu0
  %v779 = vadd.f32 %v298, %v775
  %v780 = vxor.u32 %v779, 2147483648
  %v781 = vmul.f32 %v780, 1.442695
  %v782 = vpow.pop %v781
  %v783 = vadd.f32 %v782, 1.0
  %v784 = vrcp.pop %v783
  %v785 = vmul.f32 1.0, %v784
  %v788 = vunpack.c.l.s4 1983009808
  %v789 = vunpack.c.0.s8 %v788
  %v790 = vlaneseq
  %v791 = vshrl.u32 %v790, 7
  %v792 = vsub.s32 %v789, %v791
  %v793 = vrot.slane %v775, %v792
  %794 = vrot.lane.b32.xlu0 %v793, 64
  %v795 = vpop.permute.xlu0 %794
  %v797 = vmul.f32 %v785, %v795
  %799 = vrot.lane.b32.xlu0 %v797, 64
  %v800 = vpop.permute.xlu0 %799
  %v802 = vadd.f32 %v298, %v800
  %v803 = vtanh.pop %v802
  %v804 = vsub.f32 1.0, %v785
  %806 = vrot.lane.b32.xlu0 %v803, 96
  %v807 = vpop.permute.xlu0 %806
  %v809 = vmul.f32 %v804, %v807
  %v811 = vunpack.c.l.s4 1983009808
  %v812 = vunpack.c.0.s8 %v811
  %v813 = vlaneseq
  %v814 = vshrl.u32 %v813, 7
  %v815 = vsub.s32 %v812, %v814
  %v816 = vrot.slane %v700, %v815
  %817 = vrot.lane.b32.xlu0 %v816, 32
  %v818 = vpop.permute.xlu0 %817
  %v820 = vmul.f32 %v785, %v818
  %v821 = vadd.f32 %v809, %v820
  %v823 = vcombine.low %v775, %v777
  %v825 = vunpack.c.l.s4 1983009808
  %v826 = vunpack.c.0.s8 %v825
  %v827 = vlaneseq
  %v828 = vshrl.u32 %v827, 7
  %v829 = vsub.s32 %v826, %v828
  %v830 = vrot.slane %v823, %v829
  %v832 = vadd.f32 %v299, %v830
  %v833 = vxor.u32 %v832, 2147483648
  %v834 = vmul.f32 %v833, 1.442695
  %v835 = vpow.pop %v834
  %v836 = vadd.f32 %v835, 1.0
  %v837 = vrcp.pop %v836
  %v838 = vmul.f32 1.0, %v837
  %v840 = vunpack.c.l.s4 1983009808
  %v841 = vunpack.c.0.s8 %v840
  %v842 = vlaneseq
  %v843 = vshrl.u32 %v842, 7
  %v844 = vsub.s32 %v841, %v843
  %v845 = vrot.slane %v777, %v844
  %846 = vrot.lane.b32.xlu0 %v845, 64
  %v847 = vpop.permute.xlu0 %846
  %v849 = vmul.f32 %v838, %v847
  %850 = vrot.lane.b32.xlu0 %v299, 96
  %v851 = vpop.permute.xlu0 %850
  %v852 = vrot.slane %v851, 2
  %855 = vrot.lane.b32.xlu0 %v849, 32
  %v856 = vpop.permute.xlu0 %855
  %v858 = vadd.f32 %v852, %v856
  %v859 = vtanh.pop %v858
  %v861 = vrot.slane %v838, 2
  %v863 = vsub.f32 1.0, %v861
  %v864 = vmul.f32 %v863, %v859
  %865 = vrot.lane.b32.xlu0 %v816, 96
  %v866 = vpop.permute.xlu0 %865
  %v868 = vmul.f32 %v861, %v866
  %v869 = vadd.f32 %v864, %v868
  %v872 = vunpack.c.l.s4 1983009808
  %v873 = vunpack.c.0.s8 %v872
  %v874 = vlaneseq
  %v875 = vshrl.u32 %v874, 7
  %v876 = vsub.s32 %v873, %v875
  %v877 = vrot.slane %v821, %v876
  %878 = vrot.lane.b32.xlu0 %v877, 96
  %v879 = vpop.permute.xlu0 %878
  %v883 = vunpack.c.l.s4 1983009808
  %v884 = vunpack.c.0.s8 %v883
  %v885 = vlaneseq
  %v886 = vshrl.u32 %v885, 7
  %v887 = vsub.s32 %v884, %v886
  %v888 = vrot.slane %v869, %v887
  %889 = vrot.lane.b32.xlu0 %v888, 32
  %v890 = vpop.permute.xlu0 %889
  %v892 = vsel %vm507, %v879, %v890
  %s893 = scalar_lea.vmem [#allocation2], 4
  %894 = vst.msk [vmem:[%s893] sm:$0x3] %vm509, %v879
  %s895 = scalar_lea.vmem [#allocation3], 2
  %896 = vst.msk [vmem:[%s895] sm:$0x3] %vm509, %v869
  %v898 = vsel %vm236, %v892, 0
  %900 = vmatprep.subr.mxu0 %v306
  %901 = vmatpush1.msra.mxu0 %v305
  %902 = vmatprep.subr.mxu0 %v308
  %903 = vmatpush1.msra.mxu0 %v307
  %904 = vmatprep.subr.mxu0 %v310
  %905 = vmatpush1.msra.mxu0 %v309
  %906 = vmatprep.subr.mxu0 %v312
  %907 = vmatpush1.msra.mxu0 %v311
  %908 = vmatprep.subr.mxu0 %v314
  %909 = vmatpush1.msra.mxu0 %v313
  %910 = vmatprep.subr.mxu0 %v316
  %911 = vmatpush1.msra.mxu0 %v315
  %912 = vmatprep.subr.mxu0 %v318
  %913 = vmatpush1.msra.mxu0 %v317
  %914 = vmatprep.subr.mxu0 %v320
  %915 = vmatpush1.msra.mxu0 %v319
  %916 = vmatprep.subr.mxu0 0.0
  %917 = vmatpush1.msra.mxu0 0.0
  %918 = vmatprep.subr.mxu0 0.0
  %919 = vmatpush1.msra.mxu0 0.0
  %920 = vmatprep.subr.mxu0 0.0
  %921 = vmatpush1.msra.mxu0 0.0
  %922 = vmatprep.subr.mxu0 0.0
  %923 = vmatpush1.msra.mxu0 0.0
  %924 = vmatprep.subr.mxu0 0.0
  %925 = vmatpush1.msra.mxu0 0.0
  %926 = vmatprep.subr.mxu0 0.0
  %927 = vmatpush1.msra.mxu0 0.0
  %928 = vmatprep.subr.mxu0 0.0
  %929 = vmatpush1.msra.mxu0 0.0
  %930 = vmatprep.subr.mxu0 0.0
  %931 = vmatpush1.msra.mxu0 0.0
  %932 = vmatprep.subr.mxu0 0.0
  %933 = vmatpush1.msra.mxu0 0.0
  %934 = vmatprep.subr.mxu0 0.0
  %935 = vmatpush1.msra.mxu0 0.0
  %936 = vmatprep.subr.mxu0 0.0
  %937 = vmatpush1.msra.mxu0 0.0
  %938 = vmatprep.subr.mxu0 0.0
  %939 = vmatpush1.msra.mxu0 0.0
  %940 = vmatprep.subr.mxu0 0.0
  %941 = vmatpush1.msra.mxu0 0.0
  %942 = vmatprep.subr.mxu0 0.0
  %943 = vmatpush1.msra.mxu0 0.0
  %944 = vmatprep.subr.mxu0 0.0
  %945 = vmatpush1.msra.mxu0 0.0
  %946 = vmatprep.subr.mxu0 0.0
  %947 = vmatpush1.msra.mxu0 0.0
  %948 = vmatprep.subr.mxu0 0.0
  %949 = vmatpush1.msra.mxu0 0.0
  %950 = vmatprep.subr.mxu0 0.0
  %951 = vmatpush1.msra.mxu0 0.0
  %952 = vmatprep.subr.mxu0 0.0
  %953 = vmatpush1.msra.mxu0 0.0
  %954 = vmatprep.subr.mxu0 0.0
  %955 = vmatpush1.msra.mxu0 0.0
  %956 = vmatprep.subr.mxu0 0.0
  %957 = vmatpush1.msra.mxu0 0.0
  %958 = vmatprep.subr.mxu0 0.0
  %959 = vmatpush1.msra.mxu0 0.0
  %960 = vmatprep.subr.mxu0 0.0
  %961 = vmatpush1.msra.mxu0 0.0
  %962 = vmatprep.subr.mxu0 0.0
  %963 = vmatpush1.msra.mxu0 0.0
  %964 = vmatprep.mubr.f32.mxu0 0.0
  %965 = vmatmul.mubr.f32.gmra.mrb[0].mxu0 %v898
  %v966 = vpop.f32.mrb[0].mxu0
  %v967 = vadd.f32 %v326, %v966
  %v968 = vpop.f32.mrb[0].mxu0
  %v969 = vadd.f32 %v330, %v968
  %970 = vdwg.mxu0
  %v971 = vadd.f32 %v300, %v967
  %v972 = vxor.u32 %v971, 2147483648
  %v973 = vmul.f32 %v972, 1.442695
  %v974 = vpow.pop %v973
  %v975 = vadd.f32 %v974, 1.0
  %v976 = vrcp.pop %v975
  %v977 = vmul.f32 1.0, %v976
  %v980 = vunpack.c.l.s4 1983009808
  %v981 = vunpack.c.0.s8 %v980
  %v982 = vlaneseq
  %v983 = vshrl.u32 %v982, 7
  %v984 = vsub.s32 %v981, %v983
  %v985 = vrot.slane %v967, %v984
  %986 = vrot.lane.b32.xlu0 %v985, 64
  %v987 = vpop.permute.xlu0 %986
  %v989 = vmul.f32 %v977, %v987
  %991 = vrot.lane.b32.xlu0 %v989, 64
  %v992 = vpop.permute.xlu0 %991
  %v994 = vadd.f32 %v300, %v992
  %v995 = vtanh.pop %v994
  %v996 = vsub.f32 1.0, %v977
  %998 = vrot.lane.b32.xlu0 %v995, 96
  %v999 = vpop.permute.xlu0 %998
  %v1001 = vmul.f32 %v996, %v999
  %v1003 = vunpack.c.l.s4 1983009808
  %v1004 = vunpack.c.0.s8 %v1003
  %v1005 = vlaneseq
  %v1006 = vshrl.u32 %v1005, 7
  %v1007 = vsub.s32 %v1004, %v1006
  %v1008 = vrot.slane %v892, %v1007
  %1009 = vrot.lane.b32.xlu0 %v1008, 32
  %v1010 = vpop.permute.xlu0 %1009
  %v1012 = vmul.f32 %v977, %v1010
  %v1013 = vadd.f32 %v1001, %v1012
  %v1015 = vcombine.low %v967, %v969
  %v1017 = vunpack.c.l.s4 1983009808
  %v1018 = vunpack.c.0.s8 %v1017
  %v1019 = vlaneseq
  %v1020 = vshrl.u32 %v1019, 7
  %v1021 = vsub.s32 %v1018, %v1020
  %v1022 = vrot.slane %v1015, %v1021
  %v1024 = vadd.f32 %v291, %v1022
  %v1025 = vxor.u32 %v1024, 2147483648
  %v1026 = vmul.f32 %v1025, 1.442695
  %v1027 = vpow.pop %v1026
  %v1028 = vadd.f32 %v1027, 1.0
  %v1029 = vrcp.pop %v1028
  %v1030 = vmul.f32 1.0, %v1029
  %v1032 = vunpack.c.l.s4 1983009808
  %v1033 = vunpack.c.0.s8 %v1032
  %v1034 = vlaneseq
  %v1035 = vshrl.u32 %v1034, 7
  %v1036 = vsub.s32 %v1033, %v1035
  %v1037 = vrot.slane %v969, %v1036
  %1038 = vrot.lane.b32.xlu0 %v1037, 64
  %v1039 = vpop.permute.xlu0 %1038
  %v1041 = vmul.f32 %v1030, %v1039
  %1042 = vrot.lane.b32.xlu0 %v291, 96
  %v1043 = vpop.permute.xlu0 %1042
  %v1044 = vrot.slane %v1043, 2
  %1047 = vrot.lane.b32.xlu0 %v1041, 32
  %v1048 = vpop.permute.xlu0 %1047
  %v1050 = vadd.f32 %v1044, %v1048
  %v1051 = vtanh.pop %v1050
  %v1053 = vrot.slane %v1030, 2
  %v1055 = vsub.f32 1.0, %v1053
  %v1056 = vmul.f32 %v1055, %v1051
  %1057 = vrot.lane.b32.xlu0 %v1008, 96
  %v1058 = vpop.permute.xlu0 %1057
  %v1060 = vmul.f32 %v1053, %v1058
  %v1061 = vadd.f32 %v1056, %v1060
  %v1064 = vunpack.c.l.s4 1983009808
  %v1065 = vunpack.c.0.s8 %v1064
  %v1066 = vlaneseq
  %v1067 = vshrl.u32 %v1066, 7
  %v1068 = vsub.s32 %v1065, %v1067
  %v1069 = vrot.slane %v1013, %v1068
  %1070 = vrot.lane.b32.xlu0 %v1069, 96
  %v1071 = vpop.permute.xlu0 %1070
  %s1073 = scalar_lea.vmem [#allocation2], 6
  %1074 = vst.msk [vmem:[%s1073] sm:$0x3] %vm509, %v1071
  %1075 = vst.msk [vmem:[#allocation3] sm:$0x3] %vm509, %v1061
  %v1076 = vld [vmem:[#allocation2] sm:$0x3]
  %v1077 = vld [vmem:[#allocation2 + $0x2] sm:$0x3]
  %v1078 = vld [vmem:[#allocation2 + $0x4] sm:$0x3]
  %v1079 = vld [vmem:[#allocation2 + $0x6] sm:$0x3]
  %v1080 = vld [vmem:[#allocation3] sm:$0x3]
  %v1081 = vld [vmem:[#allocation3 + $0x2] sm:$0x3]
  %v1082 = vld [vmem:[#allocation3 + $0x4] sm:$0x3]
  %v1083 = vld [vmem:[#allocation3 + $0x6] sm:$0x3]
  %1088 = vrot.lane.b32.xlu0 %v1080, 32
  %v1089 = vpop.permute.xlu0 %1088
  %1090 = vrot.lane.b32.xlu0 %v1081, 32
  %v1091 = vpop.permute.xlu0 %1090
  %1092 = vrot.lane.b32.xlu0 %v1082, 32
  %v1093 = vpop.permute.xlu0 %1092
  %1094 = vrot.lane.b32.xlu0 %v1083, 32
  %v1095 = vpop.permute.xlu0 %1094
  %v1100 = vsel %vm507, %v1076, %v1089
  %v1101 = vsel %vm507, %v1077, %v1091
  %v1102 = vsel %vm507, %v1078, %v1093
  %v1103 = vsel %vm507, %v1079, %v1095
  %v1108 = vcombine.low %v1100, %v1101
  %v1109 = vcombine.low %v1102, %v1103
  %v1111 = vunpack.c.l.s4 1983009808
  %v1112 = vunpack.c.0.s8 %v1111
  %v1113 = vlaneseq
  %v1114 = vshrl.u32 %v1113, 7
  %v1115 = vsub.s32 %v1112, %v1114
  %v1116 = vrot.slane %v1108, %v1115
  %v1118 = vunpack.c.l.s4 1983009808
  %v1119 = vunpack.c.0.s8 %v1118
  %v1120 = vlaneseq
  %v1121 = vshrl.u32 %v1120, 7
  %v1122 = vsub.s32 %v1119, %v1121
  %v1123 = vrot.slane %v1109, %v1122
  %v1124 = vcombine.low %v1116, %v1123
  %v1126 = vpack.c.bf16 %v1124, %v1124
  %v1127 = vld [vmem:[%s5] sm:$0xff]
  %v1128 = vld [vmem:[%s5 + $0x8] sm:$0xff]
  %v1129 = vld [vmem:[%s5 + $0x10] sm:$0xff]
  %v1130 = vld [vmem:[%s5 + $0x18] sm:$0xff]
  %v1131 = vld [vmem:[%s5 + $0x20] sm:$0xff]
  %v1132 = vld [vmem:[%s5 + $0x28] sm:$0xff]
  %v1133 = vld [vmem:[%s5 + $0x30] sm:$0xff]
  %v1134 = vld [vmem:[%s5 + $0x38] sm:$0xff]
  %v1135 = vld [vmem:[%s6] sm:$0x3]
  %v1137 = vlaneseq
  %v1138 = vshrl.u32 %v1137, 7
  %v1139 = vsub.s32 0, %v1138
  %v1140 = vrot.slane %v1135, %v1139
  %v1141 = vlaneseq
  %v1142 = vshrl.u32 %v1141, 7
  %v1143 = vsub.s32 1, %v1142
  %v1144 = vrot.slane %v1135, %v1143
  %v1155 = vunpack.c.l.b16 %v1127
  %v1156 = vunpack.c.h.b16 %v1127
  %v1157 = vunpack.c.l.b16 %v1128
  %v1158 = vunpack.c.h.b16 %v1128
  %v1159 = vunpack.c.l.b16 %v1129
  %v1160 = vunpack.c.h.b16 %v1129
  %v1161 = vunpack.c.l.b16 %v1130
  %v1162 = vunpack.c.h.b16 %v1130
  %v1163 = vunpack.c.l.b16 %v1131
  %v1164 = vunpack.c.h.b16 %v1131
  %v1165 = vunpack.c.l.b16 %v1132
  %v1166 = vunpack.c.h.b16 %v1132
  %v1167 = vunpack.c.l.b16 %v1133
  %v1168 = vunpack.c.h.b16 %v1133
  %v1169 = vunpack.c.l.b16 %v1134
  %v1170 = vunpack.c.h.b16 %v1134
  %v1171 = vpack.c.b16 %v1157, %v1155
  %v1172 = vpack.c.b16 %v1158, %v1156
  %v1173 = vpack.c.b16 %v1161, %v1159
  %v1174 = vpack.c.b16 %v1162, %v1160
  %v1175 = vpack.c.b16 %v1165, %v1163
  %v1176 = vpack.c.b16 %v1166, %v1164
  %v1177 = vpack.c.b16 %v1169, %v1167
  %v1178 = vpack.c.b16 %v1170, %v1168
  %v1188 = vsel %vm236, %v1126, 0
  %1190 = vmatprep.subr.bf16.mxu0 %v1172
  %1191 = vmatpush1.bf16.msra.mxu0 %v1171
  %1192 = vmatprep.subr.bf16.mxu0 %v1174
  %1193 = vmatpush1.bf16.msra.mxu0 %v1173
  %1194 = vmatprep.subr.bf16.mxu0 %v1176
  %1195 = vmatpush1.bf16.msra.mxu0 %v1175
  %1196 = vmatprep.subr.bf16.mxu0 %v1178
  %1197 = vmatpush1.bf16.msra.mxu0 %v1177
  %1198 = vmatprep.subr.bf16.mxu0 0
  %1199 = vmatpush1.bf16.msra.mxu0 0
  %1200 = vmatprep.subr.bf16.mxu0 0
  %1201 = vmatpush1.bf16.msra.mxu0 0
  %1202 = vmatprep.subr.bf16.mxu0 0
  %1203 = vmatpush1.bf16.msra.mxu0 0
  %1204 = vmatprep.subr.bf16.mxu0 0
  %1205 = vmatpush1.bf16.msra.mxu0 0
  %1206 = vmatprep.subr.bf16.mxu0 0
  %1207 = vmatpush1.bf16.msra.mxu0 0
  %1208 = vmatprep.subr.bf16.mxu0 0
  %1209 = vmatpush1.bf16.msra.mxu0 0
  %1210 = vmatprep.subr.bf16.mxu0 0
  %1211 = vmatpush1.bf16.msra.mxu0 0
  %1212 = vmatprep.subr.bf16.mxu0 0
  %1213 = vmatpush1.bf16.msra.mxu0 0
  %1214 = vmatprep.subr.bf16.mxu0 0
  %1215 = vmatpush1.bf16.msra.mxu0 0
  %1216 = vmatprep.subr.bf16.mxu0 0
  %1217 = vmatpush1.bf16.msra.mxu0 0
  %1218 = vmatprep.subr.bf16.mxu0 0
  %1219 = vmatpush1.bf16.msra.mxu0 0
  %1220 = vmatprep.subr.bf16.mxu0 0
  %1221 = vmatpush1.bf16.msra.mxu0 0
  %1222 = vmatprep.mubr.bf16.mxu0 0
  %1223 = vmatmul.mubr.bf16.gmra.mrb[0].mxu0 %v1188
  %v1224 = vpop.f32.mrb[0].mxu0
  %v1225 = vadd.f32 %v1140, %v1224
  %v1226 = vpop.f32.mrb[0].mxu0
  %v1227 = vadd.f32 %v1144, %v1226
  %v1228 = vpop.f32.mrb[0].mxu0
  %v1229 = vpop.f32.mrb[0].mxu0
  %1230 = vdwg.mxu0
  %v1233 = vcombine.low %v1225, %v1227
  %v1234 = vcombine.high %v1225, %v1227
  %v1236 = vunpack.c.l.s4 1983009808
  %v1237 = vunpack.c.0.s8 %v1236
  %v1238 = vlaneseq
  %v1239 = vshrl.u32 %v1238, 7
  %v1240 = vsub.s32 %v1237, %v1239
  %v1241 = vrot.slane %v1233, %v1240
  %v1243 = vunpack.c.l.s4 1983009808
  %v1244 = vunpack.c.0.s8 %v1243
  %v1245 = vlaneseq
  %v1246 = vshrl.u32 %v1245, 7
  %v1247 = vsub.s32 %v1244, %v1246
  %v1248 = vrot.slane %v1234, %v1247
  %v1249 = vcombine.high %v1241, %v1241
  %v1250 = vcombine.high %v1248, %v1248
  %v1255 = vld [vmem:[%s7] sm:$0xff]
  %v1256 = vld [vmem:[%s7 + $0x8] sm:$0xff]
  %v1257 = vld [vmem:[%s7 + $0x10] sm:$0xff]
  %v1258 = vld [vmem:[%s7 + $0x18] sm:$0xff]
  %v1259 = vld [vmem:[%s7 + $0x20] sm:$0xff]
  %v1260 = vld [vmem:[%s7 + $0x28] sm:$0xff]
  %v1261 = vld [vmem:[%s7 + $0x30] sm:$0xff]
  %v1262 = vld [vmem:[%s7 + $0x38] sm:$0xff]
  %v1263 = vld [vmem:[%s7 + $0x40] sm:$0xff]
  %v1264 = vld [vmem:[%s7 + $0x48] sm:$0xff]
  %v1265 = vld [vmem:[%s7 + $0x50] sm:$0xff]
  %v1266 = vld [vmem:[%s7 + $0x58] sm:$0xff]
  %v1267 = vld [vmem:[%s7 + $0x60] sm:$0xff]
  %v1268 = vld [vmem:[%s7 + $0x68] sm:$0xff]
  %v1269 = vld [vmem:[%s7 + $0x70] sm:$0xff]
  %v1270 = vld [vmem:[%s7 + $0x78] sm:$0xff]
  %v1271 = vld [vmem:[%s8] sm:$0x3]
  %v1273 = vlaneseq
  %v1274 = vshrl.u32 %v1273, 7
  %v1275 = vsub.s32 0, %v1274
  %v1276 = vrot.slane %v1271, %v1275
  %v1277 = vlaneseq
  %v1278 = vshrl.u32 %v1277, 7
  %v1279 = vsub.s32 1, %v1278
  %v1280 = vrot.slane %v1271, %v1279
  %1283 = vmatprep.subr.mxu0 %v1256
  %1284 = vmatpush1.msra.mxu0 %v1255
  %1285 = vmatprep.subr.mxu0 %v1258
  %1286 = vmatpush1.msra.mxu0 %v1257
  %1287 = vmatprep.subr.mxu0 %v1260
  %1288 = vmatpush1.msra.mxu0 %v1259
  %1289 = vmatprep.subr.mxu0 %v1262
  %1290 = vmatpush1.msra.mxu0 %v1261
  %1291 = vmatprep.subr.mxu0 %v1264
  %1292 = vmatpush1.msra.mxu0 %v1263
  %1293 = vmatprep.subr.mxu0 %v1266
  %1294 = vmatpush1.msra.mxu0 %v1265
  %1295 = vmatprep.subr.mxu0 %v1268
  %1296 = vmatpush1.msra.mxu0 %v1267
  %1297 = vmatprep.subr.mxu0 %v1270
  %1298 = vmatpush1.msra.mxu0 %v1269
  %1299 = vmatprep.subr.mxu0 0.0
  %1300 = vmatpush1.msra.mxu0 0.0
  %1301 = vmatprep.subr.mxu0 0.0
  %1302 = vmatpush1.msra.mxu0 0.0
  %1303 = vmatprep.subr.mxu0 0.0
  %1304 = vmatpush1.msra.mxu0 0.0
  %1305 = vmatprep.subr.mxu0 0.0
  %1306 = vmatpush1.msra.mxu0 0.0
  %1307 = vmatprep.subr.mxu0 0.0
  %1308 = vmatpush1.msra.mxu0 0.0
  %1309 = vmatprep.subr.mxu0 0.0
  %1310 = vmatpush1.msra.mxu0 0.0
  %1311 = vmatprep.subr.mxu0 0.0
  %1312 = vmatpush1.msra.mxu0 0.0
  %1313 = vmatprep.subr.mxu0 0.0
  %1314 = vmatpush1.msra.mxu0 0.0
  %1315 = vmatprep.subr.mxu0 0.0
  %1316 = vmatpush1.msra.mxu0 0.0
  %1317 = vmatprep.subr.mxu0 0.0
  %1318 = vmatpush1.msra.mxu0 0.0
  %1319 = vmatprep.subr.mxu0 0.0
  %1320 = vmatpush1.msra.mxu0 0.0
  %1321 = vmatprep.subr.mxu0 0.0
  %1322 = vmatpush1.msra.mxu0 0.0
  %1323 = vmatprep.subr.mxu0 0.0
  %1324 = vmatpush1.msra.mxu0 0.0
  %1325 = vmatprep.subr.mxu0 0.0
  %1326 = vmatpush1.msra.mxu0 0.0
  %1327 = vmatprep.subr.mxu0 0.0
  %1328 = vmatpush1.msra.mxu0 0.0
  %1329 = vmatprep.subr.mxu0 0.0
  %1330 = vmatpush1.msra.mxu0 0.0
  %1331 = vmatprep.subr.mxu0 0.0
  %1332 = vmatpush1.msra.mxu0 0.0
  %1333 = vmatprep.subr.mxu0 0.0
  %1334 = vmatpush1.msra.mxu0 0.0
  %1335 = vmatprep.subr.mxu0 0.0
  %1336 = vmatpush1.msra.mxu0 0.0
  %1337 = vmatprep.subr.mxu0 0.0
  %1338 = vmatpush1.msra.mxu0 0.0
  %1339 = vmatprep.subr.mxu0 0.0
  %1340 = vmatpush1.msra.mxu0 0.0
  %1341 = vmatprep.subr.mxu0 0.0
  %1342 = vmatpush1.msra.mxu0 0.0
  %1343 = vmatprep.subr.mxu0 0.0
  %1344 = vmatpush1.msra.mxu0 0.0
  %1345 = vmatprep.subr.mxu0 0.0
  %1346 = vmatpush1.msra.mxu0 0.0
  %1347 = vmatprep.mubr.f32.mxu0 0.0
  %1348 = vmatmul.mubr.f32.gmra.mrb[0].mxu0 %v334
  %v1349 = vpop.f32.mrb[0].mxu0
  %v1350 = vadd.f32 %v1276, %v1349
  %v1351 = vpop.f32.mrb[0].mxu0
  %v1352 = vadd.f32 %v1280, %v1351
  %1353 = vdwg.mxu0
  %v1354 = vadd.f32 %v1241, %v1350
  %v1355 = vxor.u32 %v1354, 2147483648
  %v1356 = vmul.f32 %v1355, 1.442695
  %v1357 = vpow.pop %v1356
  %v1358 = vadd.f32 %v1357, 1.0
  %v1359 = vrcp.pop %v1358
  %v1360 = vmul.f32 1.0, %v1359
  %v1363 = vunpack.c.l.s4 1983009808
  %v1364 = vunpack.c.0.s8 %v1363
  %v1365 = vlaneseq
  %v1366 = vshrl.u32 %v1365, 7
  %v1367 = vsub.s32 %v1364, %v1366
  %v1368 = vrot.slane %v1350, %v1367
  %1369 = vrot.lane.b32.xlu0 %v1368, 64
  %v1370 = vpop.permute.xlu0 %1369
  %v1372 = vmul.f32 %v1360, %v1370
  %1374 = vrot.lane.b32.xlu0 %v1372, 64
  %v1375 = vpop.permute.xlu0 %1374
  %v1377 = vadd.f32 %v1241, %v1375
  %v1378 = vtanh.pop %v1377
  %v1379 = vsub.f32 1.0, %v1360
  %1381 = vrot.lane.b32.xlu0 %v1378, 96
  %v1382 = vpop.permute.xlu0 %1381
  %v1384 = vmul.f32 %v1379, %v1382
  %v1385 = vmul.f32 %v1360, 0.0
  %v1386 = vadd.f32 %v1384, %v1385
  %v1388 = vcombine.low %v1350, %v1352
  %v1390 = vunpack.c.l.s4 1983009808
  %v1391 = vunpack.c.0.s8 %v1390
  %v1392 = vlaneseq
  %v1393 = vshrl.u32 %v1392, 7
  %v1394 = vsub.s32 %v1391, %v1393
  %v1395 = vrot.slane %v1388, %v1394
  %v1397 = vadd.f32 %v1250, %v1395
  %v1398 = vxor.u32 %v1397, 2147483648
  %v1399 = vmul.f32 %v1398, 1.442695
  %v1400 = vpow.pop %v1399
  %v1401 = vadd.f32 %v1400, 1.0
  %v1402 = vrcp.pop %v1401
  %v1403 = vmul.f32 1.0, %v1402
  %v1405 = vunpack.c.l.s4 1983009808
  %v1406 = vunpack.c.0.s8 %v1405
  %v1407 = vlaneseq
  %v1408 = vshrl.u32 %v1407, 7
  %v1409 = vsub.s32 %v1406, %v1408
  %v1410 = vrot.slane %v1352, %v1409
  %1411 = vrot.lane.b32.xlu0 %v1410, 64
  %v1412 = vpop.permute.xlu0 %1411
  %v1414 = vmul.f32 %v1403, %v1412
  %1415 = vrot.lane.b32.xlu0 %v1250, 96
  %v1416 = vpop.permute.xlu0 %1415
  %v1417 = vrot.slane %v1416, 2
  %1420 = vrot.lane.b32.xlu0 %v1414, 32
  %v1421 = vpop.permute.xlu0 %1420
  %v1423 = vadd.f32 %v1417, %v1421
  %v1424 = vtanh.pop %v1423
  %v1426 = vrot.slane %v1403, 2
  %v1428 = vsub.f32 1.0, %v1426
  %v1429 = vmul.f32 %v1428, %v1424
  %v1430 = vmul.f32 %v1426, 0.0
  %v1431 = vadd.f32 %v1429, %v1430
  %v1434 = vunpack.c.l.s4 1983009808
  %v1435 = vunpack.c.0.s8 %v1434
  %v1436 = vlaneseq
  %v1437 = vshrl.u32 %v1436, 7
  %v1438 = vsub.s32 %v1435, %v1437
  %v1439 = vrot.slane %v1386, %v1438
  %1440 = vrot.lane.b32.xlu0 %v1439, 96
  %v1441 = vpop.permute.xlu0 %1440
  %v1445 = vunpack.c.l.s4 1983009808
  %v1446 = vunpack.c.0.s8 %v1445
  %v1447 = vlaneseq
  %v1448 = vshrl.u32 %v1447, 7
  %v1449 = vsub.s32 %v1446, %v1448
  %v1450 = vrot.slane %v1431, %v1449
  %1451 = vrot.lane.b32.xlu0 %v1450, 32
  %v1452 = vpop.permute.xlu0 %1451
  %v1454 = vsel %vm507, %v1441, %v1452
  %1455 = vst.msk [vmem:[#allocation4] sm:$0x3] %vm509, %v1441
  %s1456 = scalar_lea.vmem [#allocation5], 6
  %1457 = vst.msk [vmem:[%s1456] sm:$0x3] %vm509, %v1431
  %v1459 = vsel %vm236, %v1454, 0
  %1461 = vmatprep.subr.mxu0 %v1256
  %1462 = vmatpush1.msra.mxu0 %v1255
  %1463 = vmatprep.subr.mxu0 %v1258
  %1464 = vmatpush1.msra.mxu0 %v1257
  %1465 = vmatprep.subr.mxu0 %v1260
  %1466 = vmatpush1.msra.mxu0 %v1259
  %1467 = vmatprep.subr.mxu0 %v1262
  %1468 = vmatpush1.msra.mxu0 %v1261
  %1469 = vmatprep.subr.mxu0 %v1264
  %1470 = vmatpush1.msra.mxu0 %v1263
  %1471 = vmatprep.subr.mxu0 %v1266
  %1472 = vmatpush1.msra.mxu0 %v1265
  %1473 = vmatprep.subr.mxu0 %v1268
  %1474 = vmatpush1.msra.mxu0 %v1267
  %1475 = vmatprep.subr.mxu0 %v1270
  %1476 = vmatpush1.msra.mxu0 %v1269
  %1477 = vmatprep.subr.mxu0 0.0
  %1478 = vmatpush1.msra.mxu0 0.0
  %1479 = vmatprep.subr.mxu0 0.0
  %1480 = vmatpush1.msra.mxu0 0.0
  %1481 = vmatprep.subr.mxu0 0.0
  %1482 = vmatpush1.msra.mxu0 0.0
  %1483 = vmatprep.subr.mxu0 0.0
  %1484 = vmatpush1.msra.mxu0 0.0
  %1485 = vmatprep.subr.mxu0 0.0
  %1486 = vmatpush1.msra.mxu0 0.0
  %1487 = vmatprep.subr.mxu0 0.0
  %1488 = vmatpush1.msra.mxu0 0.0
  %1489 = vmatprep.subr.mxu0 0.0
  %1490 = vmatpush1.msra.mxu0 0.0
  %1491 = vmatprep.subr.mxu0 0.0
  %1492 = vmatpush1.msra.mxu0 0.0
  %1493 = vmatprep.subr.mxu0 0.0
  %1494 = vmatpush1.msra.mxu0 0.0
  %1495 = vmatprep.subr.mxu0 0.0
  %1496 = vmatpush1.msra.mxu0 0.0
  %1497 = vmatprep.subr.mxu0 0.0
  %1498 = vmatpush1.msra.mxu0 0.0
  %1499 = vmatprep.subr.mxu0 0.0
  %1500 = vmatpush1.msra.mxu0 0.0
  %1501 = vmatprep.subr.mxu0 0.0
  %1502 = vmatpush1.msra.mxu0 0.0
  %1503 = vmatprep.subr.mxu0 0.0
  %1504 = vmatpush1.msra.mxu0 0.0
  %1505 = vmatprep.subr.mxu0 0.0
  %1506 = vmatpush1.msra.mxu0 0.0
  %1507 = vmatprep.subr.mxu0 0.0
  %1508 = vmatpush1.msra.mxu0 0.0
  %1509 = vmatprep.subr.mxu0 0.0
  %1510 = vmatpush1.msra.mxu0 0.0
  %1511 = vmatprep.subr.mxu0 0.0
  %1512 = vmatpush1.msra.mxu0 0.0
  %1513 = vmatprep.subr.mxu0 0.0
  %1514 = vmatpush1.msra.mxu0 0.0
  %1515 = vmatprep.subr.mxu0 0.0
  %1516 = vmatpush1.msra.mxu0 0.0
  %1517 = vmatprep.subr.mxu0 0.0
  %1518 = vmatpush1.msra.mxu0 0.0
  %1519 = vmatprep.subr.mxu0 0.0
  %1520 = vmatpush1.msra.mxu0 0.0
  %1521 = vmatprep.subr.mxu0 0.0
  %1522 = vmatpush1.msra.mxu0 0.0
  %1523 = vmatprep.subr.mxu0 0.0
  %1524 = vmatpush1.msra.mxu0 0.0
  %1525 = vmatprep.mubr.f32.mxu0 0.0
  %1526 = vmatmul.mubr.f32.gmra.mrb[0].mxu0 %v1459
  %v1527 = vpop.f32.mrb[0].mxu0
  %v1528 = vadd.f32 %v1276, %v1527
  %v1529 = vpop.f32.mrb[0].mxu0
  %v1530 = vadd.f32 %v1280, %v1529
  %1531 = vdwg.mxu0
  %v1532 = vadd.f32 %v1249, %v1528
  %v1533 = vxor.u32 %v1532, 2147483648
  %v1534 = vmul.f32 %v1533, 1.442695
  %v1535 = vpow.pop %v1534
  %v1536 = vadd.f32 %v1535, 1.0
  %v1537 = vrcp.pop %v1536
  %v1538 = vmul.f32 1.0, %v1537
  %v1541 = vunpack.c.l.s4 1983009808
  %v1542 = vunpack.c.0.s8 %v1541
  %v1543 = vlaneseq
  %v1544 = vshrl.u32 %v1543, 7
  %v1545 = vsub.s32 %v1542, %v1544
  %v1546 = vrot.slane %v1528, %v1545
  %1547 = vrot.lane.b32.xlu0 %v1546, 64
  %v1548 = vpop.permute.xlu0 %1547
  %v1550 = vmul.f32 %v1538, %v1548
  %1552 = vrot.lane.b32.xlu0 %v1550, 64
  %v1553 = vpop.permute.xlu0 %1552
  %v1555 = vadd.f32 %v1249, %v1553
  %v1556 = vtanh.pop %v1555
  %v1557 = vsub.f32 1.0, %v1538
  %1559 = vrot.lane.b32.xlu0 %v1556, 96
  %v1560 = vpop.permute.xlu0 %1559
  %v1562 = vmul.f32 %v1557, %v1560
  %v1564 = vunpack.c.l.s4 1983009808
  %v1565 = vunpack.c.0.s8 %v1564
  %v1566 = vlaneseq
  %v1567 = vshrl.u32 %v1566, 7
  %v1568 = vsub.s32 %v1565, %v1567
  %v1569 = vrot.slane %v1454, %v1568
  %1570 = vrot.lane.b32.xlu0 %v1569, 32
  %v1571 = vpop.permute.xlu0 %1570
  %v1573 = vmul.f32 %v1538, %v1571
  %v1574 = vadd.f32 %v1562, %v1573
  %v1576 = vcombine.low %v1528, %v1530
  %v1578 = vunpack.c.l.s4 1983009808
  %v1579 = vunpack.c.0.s8 %v1578
  %v1580 = vlaneseq
  %v1581 = vshrl.u32 %v1580, 7
  %v1582 = vsub.s32 %v1579, %v1581
  %v1583 = vrot.slane %v1576, %v1582
  %v1585 = vadd.f32 %v1248, %v1583
  %v1586 = vxor.u32 %v1585, 2147483648
  %v1587 = vmul.f32 %v1586, 1.442695
  %v1588 = vpow.pop %v1587
  %v1589 = vadd.f32 %v1588, 1.0
  %v1590 = vrcp.pop %v1589
  %v1591 = vmul.f32 1.0, %v1590
  %v1593 = vunpack.c.l.s4 1983009808
  %v1594 = vunpack.c.0.s8 %v1593
  %v1595 = vlaneseq
  %v1596 = vshrl.u32 %v1595, 7
  %v1597 = vsub.s32 %v1594, %v1596
  %v1598 = vrot.slane %v1530, %v1597
  %1599 = vrot.lane.b32.xlu0 %v1598, 64
  %v1600 = vpop.permute.xlu0 %1599
  %v1602 = vmul.f32 %v1591, %v1600
  %1603 = vrot.lane.b32.xlu0 %v1248, 96
  %v1604 = vpop.permute.xlu0 %1603
  %v1605 = vrot.slane %v1604, 2
  %1608 = vrot.lane.b32.xlu0 %v1602, 32
  %v1609 = vpop.permute.xlu0 %1608
  %v1611 = vadd.f32 %v1605, %v1609
  %v1612 = vtanh.pop %v1611
  %v1614 = vrot.slane %v1591, 2
  %v1616 = vsub.f32 1.0, %v1614
  %v1617 = vmul.f32 %v1616, %v1612
  %1618 = vrot.lane.b32.xlu0 %v1569, 96
  %v1619 = vpop.permute.xlu0 %1618
  %v1621 = vmul.f32 %v1614, %v1619
  %v1622 = vadd.f32 %v1617, %v1621
  %v1625 = vunpack.c.l.s4 1983009808
  %v1626 = vunpack.c.0.s8 %v1625
  %v1627 = vlaneseq
  %v1628 = vshrl.u32 %v1627, 7
  %v1629 = vsub.s32 %v1626, %v1628
  %v1630 = vrot.slane %v1574, %v1629
  %1631 = vrot.lane.b32.xlu0 %v1630, 96
  %v1632 = vpop.permute.xlu0 %1631
  %v1636 = vunpack.c.l.s4 1983009808
  %v1637 = vunpack.c.0.s8 %v1636
  %v1638 = vlaneseq
  %v1639 = vshrl.u32 %v1638, 7
  %v1640 = vsub.s32 %v1637, %v1639
  %v1641 = vrot.slane %v1622, %v1640
  %1642 = vrot.lane.b32.xlu0 %v1641, 32
  %v1643 = vpop.permute.xlu0 %1642
  %v1645 = vsel %vm507, %v1632, %v1643
  %s1646 = scalar_lea.vmem [#allocation4], 2
  %1647 = vst.msk [vmem:[%s1646] sm:$0x3] %vm509, %v1632
  %s1648 = scalar_lea.vmem [#allocation5], 4
  %1649 = vst.msk [vmem:[%s1648] sm:$0x3] %vm509, %v1622
  %v1651 = vsel %vm236, %v1645, 0
  %1653 = vmatprep.subr.mxu0 %v1256
  %1654 = vmatpush1.msra.mxu0 %v1255
  %1655 = vmatprep.subr.mxu0 %v1258
  %1656 = vmatpush1.msra.mxu0 %v1257
  %1657 = vmatprep.subr.mxu0 %v1260
  %1658 = vmatpush1.msra.mxu0 %v1259
  %1659 = vmatprep.subr.mxu0 %v1262
  %1660 = vmatpush1.msra.mxu0 %v1261
  %1661 = vmatprep.subr.mxu0 %v1264
  %1662 = vmatpush1.msra.mxu0 %v1263
  %1663 = vmatprep.subr.mxu0 %v1266
  %1664 = vmatpush1.msra.mxu0 %v1265
  %1665 = vmatprep.subr.mxu0 %v1268
  %1666 = vmatpush1.msra.mxu0 %v1267
  %1667 = vmatprep.subr.mxu0 %v1270
  %1668 = vmatpush1.msra.mxu0 %v1269
  %1669 = vmatprep.subr.mxu0 0.0
  %1670 = vmatpush1.msra.mxu0 0.0
  %1671 = vmatprep.subr.mxu0 0.0
  %1672 = vmatpush1.msra.mxu0 0.0
  %1673 = vmatprep.subr.mxu0 0.0
  %1674 = vmatpush1.msra.mxu0 0.0
  %1675 = vmatprep.subr.mxu0 0.0
  %1676 = vmatpush1.msra.mxu0 0.0
  %1677 = vmatprep.subr.mxu0 0.0
  %1678 = vmatpush1.msra.mxu0 0.0
  %1679 = vmatprep.subr.mxu0 0.0
  %1680 = vmatpush1.msra.mxu0 0.0
  %1681 = vmatprep.subr.mxu0 0.0
  %1682 = vmatpush1.msra.mxu0 0.0
  %1683 = vmatprep.subr.mxu0 0.0
  %1684 = vmatpush1.msra.mxu0 0.0
  %1685 = vmatprep.subr.mxu0 0.0
  %1686 = vmatpush1.msra.mxu0 0.0
  %1687 = vmatprep.subr.mxu0 0.0
  %1688 = vmatpush1.msra.mxu0 0.0
  %1689 = vmatprep.subr.mxu0 0.0
  %1690 = vmatpush1.msra.mxu0 0.0
  %1691 = vmatprep.subr.mxu0 0.0
  %1692 = vmatpush1.msra.mxu0 0.0
  %1693 = vmatprep.subr.mxu0 0.0
  %1694 = vmatpush1.msra.mxu0 0.0
  %1695 = vmatprep.subr.mxu0 0.0
  %1696 = vmatpush1.msra.mxu0 0.0
  %1697 = vmatprep.subr.mxu0 0.0
  %1698 = vmatpush1.msra.mxu0 0.0
  %1699 = vmatprep.subr.mxu0 0.0
  %1700 = vmatpush1.msra.mxu0 0.0
  %1701 = vmatprep.subr.mxu0 0.0
  %1702 = vmatpush1.msra.mxu0 0.0
  %1703 = vmatprep.subr.mxu0 0.0
  %1704 = vmatpush1.msra.mxu0 0.0
  %1705 = vmatprep.subr.mxu0 0.0
  %1706 = vmatpush1.msra.mxu0 0.0
  %1707 = vmatprep.subr.mxu0 0.0
  %1708 = vmatpush1.msra.mxu0 0.0
  %1709 = vmatprep.subr.mxu0 0.0
  %1710 = vmatpush1.msra.mxu0 0.0
  %1711 = vmatprep.subr.mxu0 0.0
  %1712 = vmatpush1.msra.mxu0 0.0
  %1713 = vmatprep.subr.mxu0 0.0
  %1714 = vmatpush1.msra.mxu0 0.0
  %1715 = vmatprep.subr.mxu0 0.0
  %1716 = vmatpush1.msra.mxu0 0.0
  %1717 = vmatprep.mubr.f32.mxu0 0.0
  %1718 = vmatmul.mubr.f32.gmra.mrb[0].mxu0 %v1651
  %v1719 = vpop.f32.mrb[0].mxu0
  %v1720 = vadd.f32 %v1276, %v1719
  %v1721 = vpop.f32.mrb[0].mxu0
  %v1722 = vadd.f32 %v1280, %v1721
  %1723 = vdwg.mxu0
  %v1724 = vadd.f32 %v1248, %v1720
  %v1725 = vxor.u32 %v1724, 2147483648
  %v1726 = vmul.f32 %v1725, 1.442695
  %v1727 = vpow.pop %v1726
  %v1728 = vadd.f32 %v1727, 1.0
  %v1729 = vrcp.pop %v1728
  %v1730 = vmul.f32 1.0, %v1729
  %v1733 = vunpack.c.l.s4 1983009808
  %v1734 = vunpack.c.0.s8 %v1733
  %v1735 = vlaneseq
  %v1736 = vshrl.u32 %v1735, 7
  %v1737 = vsub.s32 %v1734, %v1736
  %v1738 = vrot.slane %v1720, %v1737
  %1739 = vrot.lane.b32.xlu0 %v1738, 64
  %v1740 = vpop.permute.xlu0 %1739
  %v1742 = vmul.f32 %v1730, %v1740
  %1744 = vrot.lane.b32.xlu0 %v1742, 64
  %v1745 = vpop.permute.xlu0 %1744
  %v1747 = vadd.f32 %v1248, %v1745
  %v1748 = vtanh.pop %v1747
  %v1749 = vsub.f32 1.0, %v1730
  %1751 = vrot.lane.b32.xlu0 %v1748, 96
  %v1752 = vpop.permute.xlu0 %1751
  %v1754 = vmul.f32 %v1749, %v1752
  %v1756 = vunpack.c.l.s4 1983009808
  %v1757 = vunpack.c.0.s8 %v1756
  %v1758 = vlaneseq
  %v1759 = vshrl.u32 %v1758, 7
  %v1760 = vsub.s32 %v1757, %v1759
  %v1761 = vrot.slane %v1645, %v1760
  %1762 = vrot.lane.b32.xlu0 %v1761, 32
  %v1763 = vpop.permute.xlu0 %1762
  %v1765 = vmul.f32 %v1730, %v1763
  %v1766 = vadd.f32 %v1754, %v1765
  %v1768 = vcombine.low %v1720, %v1722
  %v1770 = vunpack.c.l.s4 1983009808
  %v1771 = vunpack.c.0.s8 %v1770
  %v1772 = vlaneseq
  %v1773 = vshrl.u32 %v1772, 7
  %v1774 = vsub.s32 %v1771, %v1773
  %v1775 = vrot.slane %v1768, %v1774
  %v1777 = vadd.f32 %v1249, %v1775
  %v1778 = vxor.u32 %v1777, 2147483648
  %v1779 = vmul.f32 %v1778, 1.442695
  %v1780 = vpow.pop %v1779
  %v1781 = vadd.f32 %v1780, 1.0
  %v1782 = vrcp.pop %v1781
  %v1783 = vmul.f32 1.0, %v1782
  %v1785 = vunpack.c.l.s4 1983009808
  %v1786 = vunpack.c.0.s8 %v1785
  %v1787 = vlaneseq
  %v1788 = vshrl.u32 %v1787, 7
  %v1789 = vsub.s32 %v1786, %v1788
  %v1790 = vrot.slane %v1722, %v1789
  %1791 = vrot.lane.b32.xlu0 %v1790, 64
  %v1792 = vpop.permute.xlu0 %1791
  %v1794 = vmul.f32 %v1783, %v1792
  %1795 = vrot.lane.b32.xlu0 %v1249, 96
  %v1796 = vpop.permute.xlu0 %1795
  %v1797 = vrot.slane %v1796, 2
  %1800 = vrot.lane.b32.xlu0 %v1794, 32
  %v1801 = vpop.permute.xlu0 %1800
  %v1803 = vadd.f32 %v1797, %v1801
  %v1804 = vtanh.pop %v1803
  %v1806 = vrot.slane %v1783, 2
  %v1808 = vsub.f32 1.0, %v1806
  %v1809 = vmul.f32 %v1808, %v1804
  %1810 = vrot.lane.b32.xlu0 %v1761, 96
  %v1811 = vpop.permute.xlu0 %1810
  %v1813 = vmul.f32 %v1806, %v1811
  %v1814 = vadd.f32 %v1809, %v1813
  %v1817 = vunpack.c.l.s4 1983009808
  %v1818 = vunpack.c.0.s8 %v1817
  %v1819 = vlaneseq
  %v1820 = vshrl.u32 %v1819, 7
  %v1821 = vsub.s32 %v1818, %v1820
  %v1822 = vrot.slane %v1766, %v1821
  %1823 = vrot.lane.b32.xlu0 %v1822, 96
  %v1824 = vpop.permute.xlu0 %1823
  %v1828 = vunpack.c.l.s4 1983009808
  %v1829 = vunpack.c.0.s8 %v1828
  %v1830 = vlaneseq
  %v1831 = vshrl.u32 %v1830, 7
  %v1832 = vsub.s32 %v1829, %v1831
  %v1833 = vrot.slane %v1814, %v1832
  %1834 = vrot.lane.b32.xlu0 %v1833, 32
  %v1835 = vpop.permute.xlu0 %1834
  %v1837 = vsel %vm507, %v1824, %v1835
  %s1838 = scalar_lea.vmem [#allocation4], 4
  %1839 = vst.msk [vmem:[%s1838] sm:$0x3] %vm509, %v1824
  %s1840 = scalar_lea.vmem [#allocation5], 2
  %1841 = vst.msk [vmem:[%s1840] sm:$0x3] %vm509, %v1814
  %v1843 = vsel %vm236, %v1837, 0
  %1845 = vmatprep.subr.mxu0 %v1256
  %1846 = vmatpush1.msra.mxu0 %v1255
  %1847 = vmatprep.subr.mxu0 %v1258
  %1848 = vmatpush1.msra.mxu0 %v1257
  %1849 = vmatprep.subr.mxu0 %v1260
  %1850 = vmatpush1.msra.mxu0 %v1259
  %1851 = vmatprep.subr.mxu0 %v1262
  %1852 = vmatpush1.msra.mxu0 %v1261
  %1853 = vmatprep.subr.mxu0 %v1264
  %1854 = vmatpush1.msra.mxu0 %v1263
  %1855 = vmatprep.subr.mxu0 %v1266
  %1856 = vmatpush1.msra.mxu0 %v1265
  %1857 = vmatprep.subr.mxu0 %v1268
  %1858 = vmatpush1.msra.mxu0 %v1267
  %1859 = vmatprep.subr.mxu0 %v1270
  %1860 = vmatpush1.msra.mxu0 %v1269
  %1861 = vmatprep.subr.mxu0 0.0
  %1862 = vmatpush1.msra.mxu0 0.0
  %1863 = vmatprep.subr.mxu0 0.0
  %1864 = vmatpush1.msra.mxu0 0.0
  %1865 = vmatprep.subr.mxu0 0.0
  %1866 = vmatpush1.msra.mxu0 0.0
  %1867 = vmatprep.subr.mxu0 0.0
  %1868 = vmatpush1.msra.mxu0 0.0
  %1869 = vmatprep.subr.mxu0 0.0
  %1870 = vmatpush1.msra.mxu0 0.0
  %1871 = vmatprep.subr.mxu0 0.0
  %1872 = vmatpush1.msra.mxu0 0.0
  %1873 = vmatprep.subr.mxu0 0.0
  %1874 = vmatpush1.msra.mxu0 0.0
  %1875 = vmatprep.subr.mxu0 0.0
  %1876 = vmatpush1.msra.mxu0 0.0
  %1877 = vmatprep.subr.mxu0 0.0
  %1878 = vmatpush1.msra.mxu0 0.0
  %1879 = vmatprep.subr.mxu0 0.0
  %1880 = vmatpush1.msra.mxu0 0.0
  %1881 = vmatprep.subr.mxu0 0.0
  %1882 = vmatpush1.msra.mxu0 0.0
  %1883 = vmatprep.subr.mxu0 0.0
  %1884 = vmatpush1.msra.mxu0 0.0
  %1885 = vmatprep.subr.mxu0 0.0
  %1886 = vmatpush1.msra.mxu0 0.0
  %1887 = vmatprep.subr.mxu0 0.0
  %1888 = vmatpush1.msra.mxu0 0.0
  %1889 = vmatprep.subr.mxu0 0.0
  %1890 = vmatpush1.msra.mxu0 0.0
  %1891 = vmatprep.subr.mxu0 0.0
  %1892 = vmatpush1.msra.mxu0 0.0
  %1893 = vmatprep.subr.mxu0 0.0
  %1894 = vmatpush1.msra.mxu0 0.0
  %1895 = vmatprep.subr.mxu0 0.0
  %1896 = vmatpush1.msra.mxu0 0.0
  %1897 = vmatprep.subr.mxu0 0.0
  %1898 = vmatpush1.msra.mxu0 0.0
  %1899 = vmatprep.subr.mxu0 0.0
  %1900 = vmatpush1.msra.mxu0 0.0
  %1901 = vmatprep.subr.mxu0 0.0
  %1902 = vmatpush1.msra.mxu0 0.0
  %1903 = vmatprep.subr.mxu0 0.0
  %1904 = vmatpush1.msra.mxu0 0.0
  %1905 = vmatprep.subr.mxu0 0.0
  %1906 = vmatpush1.msra.mxu0 0.0
  %1907 = vmatprep.subr.mxu0 0.0
  %1908 = vmatpush1.msra.mxu0 0.0
  %1909 = vmatprep.mubr.f32.mxu0 0.0
  %1910 = vmatmul.mubr.f32.gmra.mrb[0].mxu0 %v1843
  %v1911 = vpop.f32.mrb[0].mxu0
  %v1912 = vadd.f32 %v1276, %v1911
  %v1913 = vpop.f32.mrb[0].mxu0
  %v1914 = vadd.f32 %v1280, %v1913
  %1915 = vdwg.mxu0
  %v1916 = vadd.f32 %v1250, %v1912
  %v1917 = vxor.u32 %v1916, 2147483648
  %v1918 = vmul.f32 %v1917, 1.442695
  %v1919 = vpow.pop %v1918
  %v1920 = vadd.f32 %v1919, 1.0
  %v1921 = vrcp.pop %v1920
  %v1922 = vmul.f32 1.0, %v1921
  %v1925 = vunpack.c.l.s4 1983009808
  %v1926 = vunpack.c.0.s8 %v1925
  %v1927 = vlaneseq
  %v1928 = vshrl.u32 %v1927, 7
  %v1929 = vsub.s32 %v1926, %v1928
  %v1930 = vrot.slane %v1912, %v1929
  %1931 = vrot.lane.b32.xlu0 %v1930, 64
  %v1932 = vpop.permute.xlu0 %1931
  %v1934 = vmul.f32 %v1922, %v1932
  %1936 = vrot.lane.b32.xlu0 %v1934, 64
  %v1937 = vpop.permute.xlu0 %1936
  %v1939 = vadd.f32 %v1250, %v1937
  %v1940 = vtanh.pop %v1939
  %v1941 = vsub.f32 1.0, %v1922
  %1943 = vrot.lane.b32.xlu0 %v1940, 96
  %v1944 = vpop.permute.xlu0 %1943
  %v1946 = vmul.f32 %v1941, %v1944
  %v1948 = vunpack.c.l.s4 1983009808
  %v1949 = vunpack.c.0.s8 %v1948
  %v1950 = vlaneseq
  %v1951 = vshrl.u32 %v1950, 7
  %v1952 = vsub.s32 %v1949, %v1951
  %v1953 = vrot.slane %v1837, %v1952
  %1954 = vrot.lane.b32.xlu0 %v1953, 32
  %v1955 = vpop.permute.xlu0 %1954
  %v1957 = vmul.f32 %v1922, %v1955
  %v1958 = vadd.f32 %v1946, %v1957
  %v1960 = vcombine.low %v1912, %v1914
  %v1962 = vunpack.c.l.s4 1983009808
  %v1963 = vunpack.c.0.s8 %v1962
  %v1964 = vlaneseq
  %v1965 = vshrl.u32 %v1964, 7
  %v1966 = vsub.s32 %v1963, %v1965
  %v1967 = vrot.slane %v1960, %v1966
  %v1969 = vadd.f32 %v1241, %v1967
  %v1970 = vxor.u32 %v1969, 2147483648
  %v1971 = vmul.f32 %v1970, 1.442695
  %v1972 = vpow.pop %v1971
  %v1973 = vadd.f32 %v1972, 1.0
  %v1974 = vrcp.pop %v1973
  %v1975 = vmul.f32 1.0, %v1974
  %v1977 = vunpack.c.l.s4 1983009808
  %v1978 = vunpack.c.0.s8 %v1977
  %v1979 = vlaneseq
  %v1980 = vshrl.u32 %v1979, 7
  %v1981 = vsub.s32 %v1978, %v1980
  %v1982 = vrot.slane %v1914, %v1981
  %1983 = vrot.lane.b32.xlu0 %v1982, 64
  %v1984 = vpop.permute.xlu0 %1983
  %v1986 = vmul.f32 %v1975, %v1984
  %1987 = vrot.lane.b32.xlu0 %v1241, 96
  %v1988 = vpop.permute.xlu0 %1987
  %v1989 = vrot.slane %v1988, 2
  %1992 = vrot.lane.b32.xlu0 %v1986, 32
  %v1993 = vpop.permute.xlu0 %1992
  %v1995 = vadd.f32 %v1989, %v1993
  %v1996 = vtanh.pop %v1995
  %v1998 = vrot.slane %v1975, 2
  %v2000 = vsub.f32 1.0, %v1998
  %v2001 = vmul.f32 %v2000, %v1996
  %2002 = vrot.lane.b32.xlu0 %v1953, 96
  %v2003 = vpop.permute.xlu0 %2002
  %v2005 = vmul.f32 %v1998, %v2003
  %v2006 = vadd.f32 %v2001, %v2005
  %v2009 = vunpack.c.l.s4 1983009808
  %v2010 = vunpack.c.0.s8 %v2009
  %v2011 = vlaneseq
  %v2012 = vshrl.u32 %v2011, 7
  %v2013 = vsub.s32 %v2010, %v2012
  %v2014 = vrot.slane %v1958, %v2013
  %2015 = vrot.lane.b32.xlu0 %v2014, 96
  %v2016 = vpop.permute.xlu0 %2015
  %s2018 = scalar_lea.vmem [#allocation4], 6
  %2019 = vst.msk [vmem:[%s2018] sm:$0x3] %vm509, %v2016
  %2020 = vst.msk [vmem:[#allocation5] sm:$0x3] %vm509, %v2006
  %v2021 = vld [vmem:[#allocation4] sm:$0x3]
  %v2022 = vld [vmem:[#allocation4 + $0x2] sm:$0x3]
  %v2023 = vld [vmem:[#allocation4 + $0x4] sm:$0x3]
  %v2024 = vld [vmem:[#allocation4 + $0x6] sm:$0x3]
  %v2025 = vld [vmem:[#allocation5] sm:$0x3]
  %v2026 = vld [vmem:[#allocation5 + $0x2] sm:$0x3]
  %v2027 = vld [vmem:[#allocation5 + $0x4] sm:$0x3]
  %v2028 = vld [vmem:[#allocation5 + $0x6] sm:$0x3]
  %2033 = vrot.lane.b32.xlu0 %v2025, 32
  %v2034 = vpop.permute.xlu0 %2033
  %2035 = vrot.lane.b32.xlu0 %v2026, 32
  %v2036 = vpop.permute.xlu0 %2035
  %2037 = vrot.lane.b32.xlu0 %v2027, 32
  %v2038 = vpop.permute.xlu0 %2037
  %2039 = vrot.lane.b32.xlu0 %v2028, 32
  %v2040 = vpop.permute.xlu0 %2039
  %v2045 = vsel %vm507, %v2021, %v2034
  %v2046 = vsel %vm507, %v2022, %v2036
  %v2047 = vsel %vm507, %v2023, %v2038
  %v2048 = vsel %vm507, %v2024, %v2040
  %v2053 = vcombine.low %v2045, %v2046
  %v2054 = vcombine.low %v2047, %v2048
  %v2056 = vunpack.c.l.s4 1983009808
  %v2057 = vunpack.c.0.s8 %v2056
  %v2058 = vlaneseq
  %v2059 = vshrl.u32 %v2058, 7
  %v2060 = vsub.s32 %v2057, %v2059
  %v2061 = vrot.slane %v2053, %v2060
  %v2063 = vunpack.c.l.s4 1983009808
  %v2064 = vunpack.c.0.s8 %v2063
  %v2065 = vlaneseq
  %v2066 = vshrl.u32 %v2065, 7
  %v2067 = vsub.s32 %v2064, %v2066
  %v2068 = vrot.slane %v2054, %v2067
  %v2069 = vcombine.low %v2061, %v2068
  %v2071 = vpack.c.bf16 %v2069, %v2069
  %v2072 = vld [vmem:[%s9] sm:$0xf]
  %v2073 = vld [vmem:[%s9 + $0x4] sm:$0xf]
  %v2074 = vld [vmem:[%s9 + $0x8] sm:$0xf]
  %v2075 = vld [vmem:[%s9 + $0xc] sm:$0xf]
  %v2076 = vld [vmem:[%s9 + $0x10] sm:$0xf]
  %v2077 = vld [vmem:[%s9 + $0x14] sm:$0xf]
  %v2078 = vld [vmem:[%s9 + $0x18] sm:$0xf]
  %v2079 = vld [vmem:[%s9 + $0x1c] sm:$0xf]
  %v2080 = vld [vmem:[%s10] sm:$0x1]
  %v2082 = vlaneseq
  %v2083 = vshrl.u32 %v2082, 7
  %v2084 = vsub.s32 0, %v2083
  %v2085 = vrot.slane %v2080, %v2084
  %v2095 = vunpack.c.l.b16 %v2072
  %v2096 = vunpack.c.l.b16 %v2073
  %v2097 = vunpack.c.l.b16 %v2074
  %v2098 = vunpack.c.l.b16 %v2075
  %v2099 = vunpack.c.l.b16 %v2076
  %v2100 = vunpack.c.l.b16 %v2077
  %v2101 = vunpack.c.l.b16 %v2078
  %v2102 = vunpack.c.l.b16 %v2079
  %v2103 = vpack.c.b16 %v2096, %v2095
  %v2104 = vpack.c.b16 %v2098, %v2097
  %v2105 = vpack.c.b16 %v2100, %v2099
  %v2106 = vpack.c.b16 %v2102, %v2101
  %v2112 = vsel %vm236, %v2071, 0
  %2114 = vmatprep.subr.bf16.mxu0 0
  %2115 = vmatpush1.bf16.msra.mxu0 %v2103
  %2116 = vmatprep.subr.bf16.mxu0 0
  %2117 = vmatpush1.bf16.msra.mxu0 %v2104
  %2118 = vmatprep.subr.bf16.mxu0 0
  %2119 = vmatpush1.bf16.msra.mxu0 %v2105
  %2120 = vmatprep.subr.bf16.mxu0 0
  %2121 = vmatpush1.bf16.msra.mxu0 %v2106
  %2122 = vmatprep.subr.bf16.mxu0 0
  %2123 = vmatpush1.bf16.msra.mxu0 0
  %2124 = vmatprep.subr.bf16.mxu0 0
  %2125 = vmatpush1.bf16.msra.mxu0 0
  %2126 = vmatprep.subr.bf16.mxu0 0
  %2127 = vmatpush1.bf16.msra.mxu0 0
  %2128 = vmatprep.subr.bf16.mxu0 0
  %2129 = vmatpush1.bf16.msra.mxu0 0
  %2130 = vmatprep.subr.bf16.mxu0 0
  %2131 = vmatpush1.bf16.msra.mxu0 0
  %2132 = vmatprep.subr.bf16.mxu0 0
  %2133 = vmatpush1.bf16.msra.mxu0 0
  %2134 = vmatprep.subr.bf16.mxu0 0
  %2135 = vmatpush1.bf16.msra.mxu0 0
  %2136 = vmatprep.subr.bf16.mxu0 0
  %2137 = vmatpush1.bf16.msra.mxu0 0
  %2138 = vmatprep.subr.bf16.mxu0 0
  %2139 = vmatpush1.bf16.msra.mxu0 0
  %2140 = vmatprep.subr.bf16.mxu0 0
  %2141 = vmatpush1.bf16.msra.mxu0 0
  %2142 = vmatprep.subr.bf16.mxu0 0
  %2143 = vmatpush1.bf16.msra.mxu0 0
  %2144 = vmatprep.subr.bf16.mxu0 0
  %2145 = vmatpush1.bf16.msra.mxu0 0
  %2146 = vmatprep.mubr.bf16.mxu0 0
  %2147 = vmatmul.mubr.bf16.gmra.mrb[0].mxu0 %v2112
  %v2148 = vpop.f32.mrb[0].mxu0
  %v2149 = vadd.f32 %v2085, %v2148
  %v2150 = vpop.f32.mrb[0].mxu0
  %v2151 = vpop.f32.mrb[0].mxu0
  %v2152 = vpop.f32.mrb[0].mxu0
  %2153 = vdwg.mxu0
  %2154 = vst [vmem:[%s11] sm:$0xff] %v2149
  // Predicated region
  $region46: #{lipnet_forward.7} parent=0 // pred_check
    _
  $region47: #{lipnet_forward.7} parent=0 // pred_check_branch
    %2156 = sbr.rel (0) target = $region49
  $region48: #{lipnet_forward.7} parent=0 // pred_region
    _
  $region49: #{lipnet_forward.7} parent=0 // pred_fallthru
    _
  // Predicated region
  $region50: #{lipnet_forward.7} parent=0 // pred_check
    _
  $region51: #{lipnet_forward.7} parent=0 // pred_check_branch
    %2158 = sbr.rel (0) target = $region53
  $region52: #{lipnet_forward.7} parent=0 // pred_region
    _
  $region53: #{lipnet_forward.7} parent=0 // pred_fallthru
    _

</llo_original>
